<compile_context>
chip_gen: v6e
topology: v6e:2x2x1
jax: 0.10.0
libtpu: 0.0.40
codegen_flags: <defaults>
</compile_context>

<pallas_src>
import numpy as np
import jax
import jax.numpy as jnp
from jax.experimental import pallas as pl
from jax.experimental.pallas import tpu as pltpu

C1 = 32      # conv1 out-channels padded 20 -> 32
C2 = 64      # conv2 out-channels padded 50 -> 64
N1 = 512     # fc1 width padded 500 -> 512
N2 = 128     # fc2 / output width padded 10 -> 128
NEG = -1e30  # bias for padded logit lanes (exp -> 0 in the softmax)


# ------------------------------- fused kernel -------------------------------

def _lenet_kernel(x_ref, s1_ref, b1_ref, s2_ref, b2_ref,
                  fw1_ref, fb1_ref, fw2_ref, fb2_ref, o_ref):
    bB = x_ref.shape[0]
    f32, bf16 = jnp.float32, jnp.bfloat16

    # ---- conv1: 4 banded matmuls, one per output-row group (oh % 4 == r) ----
    # x_ref[b, r, t, i*28 + w'] == image[b, 4t + r + i, w'] (built by wrapper).
    # S1 folds the 5 W-taps and the (even-ow | odd-ow) column split.
    s1 = s1_ref[...]                                          # (140, 24*C1) bf16

    def conv1_rows(r):
        xr = x_ref[:, r:r + 1, :, :].reshape(bB * 6, 140)     # rows (b, t)
        return jnp.dot(xr, s1, preferred_element_type=f32)    # (bB*6, 768)

    def relu_pool1(a, b):
        m = jnp.maximum(a, b)                                 # H-pool (row pair)
        m = jnp.maximum(m[:, 0:12 * C1], m[:, 12 * C1:24 * C1])  # W-pool (halves)
        m = jnp.maximum(m + b1_ref[...], 0.0)                 # bias + ReLU
        return m.astype(bf16).reshape(bB, 6, 12 * C1)         # rows (b, t)

    q1e = relu_pool1(conv1_rows(0), conv1_rows(1))            # pooled rows 2t
    q1o = relu_pool1(conv1_rows(2), conv1_rows(3))            # pooled rows 2t+1

    # ---- conv2: 5 H-taps x {even, odd} output rows, f32 accumulation -------
    acc_e = jnp.zeros((bB * 4, 2 * 4 * C2), f32)
    acc_o = jnp.zeros((bB * 4, 2 * 4 * C2), f32)
    for i in range(5):
        m = i // 2
        w = s2_ref[i]                                         # (384, 512) bf16
        if i % 2 == 0:
            xe, xo = q1e[:, m:m + 4, :], q1o[:, m:m + 4, :]
        else:
            xe, xo = q1o[:, m:m + 4, :], q1e[:, m + 1:m + 5, :]
        acc_e = acc_e + jnp.dot(xe.reshape(bB * 4, 12 * C1), w,
                                preferred_element_type=f32)
        acc_o = acc_o + jnp.dot(xo.reshape(bB * 4, 12 * C1), w,
                                preferred_element_type=f32)

    # ---- 2x2 maxpool + bias + ReLU (flatten-free) ---------------------------
    hp = jnp.maximum(acc_e, acc_o)                            # H-pool
    p2 = jnp.maximum(hp[:, 0:4 * C2], hp[:, 4 * C2:8 * C2])   # W-pool
    p2 = jnp.maximum(p2 + b2_ref[...], 0.0)                   # (bB*4, 256)
    p2 = p2.reshape(bB, 4, 4 * C2).astype(bf16)

    # ---- fc1 + ReLU: 4 per-pooled-row partial dots (== torch NCHW flatten) --
    z = jnp.zeros((bB, N1), f32)
    for k2 in range(4):
        pk = p2[:, k2:k2 + 1, :].reshape(bB, 4 * C2)
        z = z + jnp.dot(pk, fw1_ref[k2], preferred_element_type=f32)
    z = jnp.maximum(z + fb1_ref[...], 0.0).astype(bf16)

    # ---- fc2 + log_softmax (padded logit lanes are biased to -1e30) ---------
    logits = jnp.dot(z, fw2_ref[...], preferred_element_type=f32) + fb2_ref[...]
    mx = jnp.max(logits, axis=-1, keepdims=True)
    s = logits - mx
    lse = jnp.log(jnp.sum(jnp.exp(s), axis=-1, keepdims=True))
    o_ref[...] = s - lse                                      # (bB, 128)


# ------------------------------ pallas wrapper -------------------------------

def _lenet_pallas(x5, params, block_b):
    s1, b1, s2, b2, fw1, fb1, fw2, fb2 = params
    Bp = x5.shape[0]
    grid = (Bp // block_b,)

    def _const(shape):
        zeros = (0,) * len(shape)
        return pl.BlockSpec(shape, lambda i, _z=zeros: _z)

    return pl.pallas_call(
        _lenet_kernel,
        out_shape=jax.ShapeDtypeStruct((Bp, N2), jnp.float32),
        grid_spec=pltpu.PrefetchScalarGridSpec(
            num_scalar_prefetch=0,
            grid=grid,
            in_specs=[
                pl.BlockSpec((block_b, 4, 6, 140), lambda i: (i, 0, 0, 0)),
                _const(s1.shape), _const(b1.shape),
                _const(s2.shape), _const(b2.shape),
                _const(fw1.shape), _const(fb1.shape),
                _const(fw2.shape), _const(fb2.shape),
            ],
            out_specs=pl.BlockSpec((block_b, N2), lambda i: (i, 0)),
        ),
        compiler_params=pltpu.CompilerParams(
            dimension_semantics=("parallel",),
            vmem_limit_bytes=48 * 1024 * 1024,
        ),
    )(x5, s1, b1, s2, b2, fw1, fb1, fw2, fb2)


def lenet_forward(x_nchw, params):
    B = x_nchw.shape[0]
    x = x_nchw.reshape(B, 28, 28).astype(jnp.float32)

    block_b = min(B, 128)                      # big batch tile (MXU M >= 128)
    Bp = ((B + block_b - 1) // block_b) * block_b
    if Bp != B:
        x = jnp.pad(x, ((0, Bp - B), (0, 0), (0, 0)))

    # Tiny host(XLA)-side gather: pack the 5 conv1 H-taps into K=140 and group
    # the 24 output rows by (oh % 4) so every in-kernel pool is a contiguous
    # row-block / lane-half max.  x5[b, r, t, i*28+w'] = x[b, 4t+r+i, w'].
    cols = []
    for i in range(5):
        xi = x[:, i:i + 24, :]                                   # (Bp,24,28)
        xi = xi.reshape(Bp, 6, 4, 28).transpose(0, 2, 1, 3)      # (Bp,4,6,28)
        cols.append(xi)
    x5 = jnp.concatenate(cols, axis=-1).astype(jnp.bfloat16)     # (Bp,4,6,140)

    out = _lenet_pallas(x5, params, block_b)
    return out[:B, :10]


# --------------------------- weight packing / init ---------------------------

def pack_params(c1w, c1b, c2w, c2b, f1w, f1b, f2w, f2b):
    """Pack torch-layout LeNet params into the kernel's banded/padded layout."""
    # S1: (5*28, 2*12*C1).  Row = i*28 + w'.  Col = owp*12*C1 + k1*C1 + c
    # with ow = 2*k1 + owp.  S1[row, col] = conv1_w[c, 0, i, w' - ow].
    S1 = np.zeros((5 * 28, 2 * 12 * C1), np.float32)
    for i in range(5):
        for ow in range(24):
            owp, k1 = ow % 2, ow // 2
            col0 = owp * 12 * C1 + k1 * C1
            for j in range(5):
                S1[i * 28 + ow + j, col0:col0 + 20] = c1w[:, 0, i, j]
    b1t = np.zeros((1, 12 * C1), np.float32)
    for k1 in range(12):
        b1t[0, k1 * C1:k1 * C1 + 20] = c1b

    # S2: (5, 12*C1, 2*4*C2).  In-col = k1*C1 + c ; out-col = ow2p*4*C2 + k2w*C2 + d
    # with ow2 = 2*k2w + ow2p.  S2[i, in, out] = conv2_w[d, c, i, k1 - ow2].
    S2 = np.zeros((5, 12 * C1, 2 * 4 * C2), np.float32)
    for i in range(5):
        for ow2 in range(8):
            ow2p, k2w = ow2 % 2, ow2 // 2
            col0 = ow2p * 4 * C2 + k2w * C2
            for j in range(5):
                k1 = ow2 + j
                S2[i, k1 * C1:k1 * C1 + 20, col0:col0 + 50] = c2w[:, :, i, j].T
    b2t = np.zeros((1, 4 * C2), np.float32)
    for k2w in range(4):
        b2t[0, k2w * C2:k2w * C2 + 50] = c2b

    # fc1: (4, 4*C2, N1); row (k2w*C2 + d) of slab k2 maps to torch flat index
    # d*16 + k2*4 + k2w (NCHW flatten of the pooled (50,4,4) map).
    FW1 = np.zeros((4, 4 * C2, N1), np.float32)
    for k2 in range(4):
        for k2w in range(4):
            idx = np.arange(50) * 16 + k2 * 4 + k2w
            FW1[k2, k2w * C2:k2w * C2 + 50, :500] = f1w[:, idx].T
    FB1 = np.zeros((1, N1), np.float32)
    FB1[0, :500] = f1b

    FW2 = np.zeros((N1, N2), np.float32)
    FW2[:500, :10] = f2w.T
    FB2 = np.full((1, N2), NEG, np.float32)
    FB2[0, :10] = f2b

    return (jnp.asarray(S1, jnp.bfloat16), jnp.asarray(b1t),
            jnp.asarray(S2, jnp.bfloat16), jnp.asarray(b2t),
            jnp.asarray(FW1, jnp.bfloat16), jnp.asarray(FB1),
            jnp.asarray(FW2, jnp.bfloat16), jnp.asarray(FB2))


def init_params(key):
    """Synthetic init mimicking PyTorch's default uniform fan-in init."""
    ks = jax.random.split(key, 8)

    def u(k, shape, fan_in):
        bound = 1.0 / np.sqrt(fan_in)
        return np.asarray(jax.random.uniform(k, shape, jnp.float32, -bound, bound))

    c1w = u(ks[0], (20, 1, 5, 5), 25);     c1b = u(ks[1], (20,), 25)
    c2w = u(ks[2], (50, 20, 5, 5), 500);   c2b = u(ks[3], (50,), 500)
    f1w = u(ks[4], (500, 800), 800);       f1b = u(ks[5], (500,), 800)
    f2w = u(ks[6], (10, 500), 500);        f2b = u(ks[7], (10,), 500)
    raw = (c1w, c1b, c2w, c2b, f1w, f1b, f2w, f2b)
    return pack_params(*raw), raw


# ------------------------------ pure-JAX reference ---------------------------

def lenet_reference(x, raw):
    c1w, c1b, c2w, c2b, f1w, f1b, f2w, f2b = [jnp.asarray(a) for a in raw]

    def pool(v):
        B, C, H, W = v.shape
        return v.reshape(B, C, H // 2, 2, W // 2, 2).max(axis=(3, 5))

    v = jax.nn.relu(jax.lax.conv(x, c1w, (1, 1), 'VALID') + c1b[None, :, None, None])
    v = pool(v)
    v = jax.nn.relu(jax.lax.conv(v, c2w, (1, 1), 'VALID') + c2b[None, :, None, None])
    v = pool(v)
    v = v.reshape(v.shape[0], -1)
    v = jax.nn.relu(v @ f1w.T + f1b)
    v = v @ f2w.T + f2b
    return jax.nn.log_softmax(v, axis=1)


# ----------------------------------- main ------------------------------------

if __name__ == "__main__":
    key = jax.random.PRNGKey(0)
    pkey, xkey = jax.random.split(key)
    packed, raw = init_params(pkey)

    # MNIST-shaped input implied by the module (view(-1, 4*4*50) => 28x28).
    x = jax.random.normal(xkey, (2, 1, 28, 28), jnp.float32)

    fwd = jax.jit(lenet_forward)
    out = jax.block_until_ready(fwd(x, packed))

    assert out.shape == (2, 10)
    # log_softmax rows must exponentiate-sum to 1.
    assert bool(jnp.allclose(jnp.exp(out).sum(axis=-1), 1.0, atol=1e-3))
    # Match the f32 reference (bf16 matmul inputs -> loose tolerance).
    ref = lenet_reference(x, raw)
    assert bool(jnp.allclose(out, ref, atol=0.1)), (out, ref)
    print("KERNEL_OK")
</pallas_src>

<mosaic_0001>
module attributes {stable_mosaic.version = 11 : i64} {
  func.func @_lenet_kernel(%arg0: i32, %arg1: memref<2x4x6x140xbf16, #tpu.memory_space<vmem>>, %arg2: memref<140x768xbf16, #tpu.memory_space<vmem>>, %arg3: memref<1x384xf32, #tpu.memory_space<vmem>>, %arg4: memref<5x384x512xbf16, #tpu.memory_space<vmem>>, %arg5: memref<1x256xf32, #tpu.memory_space<vmem>>, %arg6: memref<4x256x512xbf16, #tpu.memory_space<vmem>>, %arg7: memref<1x512xf32, #tpu.memory_space<vmem>>, %arg8: memref<512x128xbf16, #tpu.memory_space<vmem>>, %arg9: memref<1x128xf32, #tpu.memory_space<vmem>>, %arg10: memref<2x128xf32, #tpu.memory_space<vmem>>) attributes {dimension_semantics = [#tpu.dimension_semantics<parallel>], iteration_bounds = array<i64: 1>, scalar_prefetch = 0 : i64, scratch_operands = 0 : i64, tpu.core_type = #tpu.core_type<tc>, window_params = [{transform_indices = @transform_0, window_bounds = array<i64: 2, 4, 6, 140>}, {pipeline_mode = #tpu.pipeline_mode<synchronous>, transform_indices = @transform_1, window_bounds = array<i64: 140, 768>}, {pipeline_mode = #tpu.pipeline_mode<synchronous>, transform_indices = @transform_2, window_bounds = array<i64: 1, 384>}, {pipeline_mode = #tpu.pipeline_mode<synchronous>, transform_indices = @transform_3, window_bounds = array<i64: 5, 384, 512>}, {pipeline_mode = #tpu.pipeline_mode<synchronous>, transform_indices = @transform_4, window_bounds = array<i64: 1, 256>}, {pipeline_mode = #tpu.pipeline_mode<synchronous>, transform_indices = @transform_5, window_bounds = array<i64: 4, 256, 512>}, {pipeline_mode = #tpu.pipeline_mode<synchronous>, transform_indices = @transform_6, window_bounds = array<i64: 1, 512>}, {pipeline_mode = #tpu.pipeline_mode<synchronous>, transform_indices = @transform_7, window_bounds = array<i64: 512, 128>}, {pipeline_mode = #tpu.pipeline_mode<synchronous>, transform_indices = @transform_8, window_bounds = array<i64: 1, 128>}, {transform_indices = @transform_9, window_bounds = array<i64: 2, 128>}]} {
    %c0 = arith.constant 0 : index
    %c0_0 = arith.constant 0 : index
    %0 = vector.load %arg2[%c0, %c0_0] : memref<140x768xbf16, #tpu.memory_space<vmem>>, vector<140x768xbf16>
    %c0_1 = arith.constant 0 : index
    %c0_2 = arith.constant 0 : index
    %c0_3 = arith.constant 0 : index
    %c0_4 = arith.constant 0 : index
    %1 = vector.load %arg1[%c0_1, %c0_2, %c0_3, %c0_4] : memref<2x4x6x140xbf16, #tpu.memory_space<vmem>>, vector<2x1x6x140xbf16>
    %2 = vector.shape_cast %1 : vector<2x1x6x140xbf16> to vector<12x140xbf16>
    %cst = arith.constant dense<0.000000e+00> : vector<12x768xf32>
    %3 = tpu.matmul %2, %0, %cst {dimension_numbers = #tpu.dot_dimension_numbers<[1], [0], [0], [1], [0, 0, 1, 1], [], []>} : vector<12x140xbf16>, vector<140x768xbf16>, vector<12x768xf32> -> vector<12x768xf32>
    %c0_5 = arith.constant 0 : index
    %c1 = arith.constant 1 : index
    %c0_6 = arith.constant 0 : index
    %c0_7 = arith.constant 0 : index
    %4 = vector.load %arg1[%c0_5, %c1, %c0_6, %c0_7] : memref<2x4x6x140xbf16, #tpu.memory_space<vmem>>, vector<2x1x6x140xbf16>
    %5 = vector.shape_cast %4 : vector<2x1x6x140xbf16> to vector<12x140xbf16>
    %cst_8 = arith.constant dense<0.000000e+00> : vector<12x768xf32>
    %6 = tpu.matmul %5, %0, %cst_8 {dimension_numbers = #tpu.dot_dimension_numbers<[1], [0], [0], [1], [0, 0, 1, 1], [], []>} : vector<12x140xbf16>, vector<140x768xbf16>, vector<12x768xf32> -> vector<12x768xf32>
    %7 = arith.maximumf %3, %6 : vector<12x768xf32>
    %8 = vector.extract_strided_slice %7 {offsets = [0, 0], sizes = [12, 384], strides = [1, 1]} : vector<12x768xf32> to vector<12x384xf32>
    %9 = vector.extract_strided_slice %7 {offsets = [0, 384], sizes = [12, 384], strides = [1, 1]} : vector<12x768xf32> to vector<12x384xf32>
    %10 = arith.maximumf %8, %9 : vector<12x384xf32>
    %c0_9 = arith.constant 0 : index
    %c0_10 = arith.constant 0 : index
    %11 = vector.load %arg3[%c0_9, %c0_10] : memref<1x384xf32, #tpu.memory_space<vmem>>, vector<1x384xf32>
    %12 = vector.broadcast %11 : vector<1x384xf32> to vector<12x384xf32>
    %13 = arith.addf %10, %12 : vector<12x384xf32>
    %cst_11 = arith.constant 0.000000e+00 : f32
    %14 = vector.broadcast %cst_11 : f32 to vector<12x384xf32>
    %15 = arith.maximumf %13, %14 : vector<12x384xf32>
    %16 = arith.truncf %15 : vector<12x384xf32> to vector<12x384xbf16>
    %17 = vector.shape_cast %16 : vector<12x384xbf16> to vector<2x6x384xbf16>
    %c0_12 = arith.constant 0 : index
    %c2 = arith.constant 2 : index
    %c0_13 = arith.constant 0 : index
    %c0_14 = arith.constant 0 : index
    %18 = vector.load %arg1[%c0_12, %c2, %c0_13, %c0_14] : memref<2x4x6x140xbf16, #tpu.memory_space<vmem>>, vector<2x1x6x140xbf16>
    %19 = vector.shape_cast %18 : vector<2x1x6x140xbf16> to vector<12x140xbf16>
    %cst_15 = arith.constant dense<0.000000e+00> : vector<12x768xf32>
    %20 = tpu.matmul %19, %0, %cst_15 {dimension_numbers = #tpu.dot_dimension_numbers<[1], [0], [0], [1], [0, 0, 1, 1], [], []>} : vector<12x140xbf16>, vector<140x768xbf16>, vector<12x768xf32> -> vector<12x768xf32>
    %c0_16 = arith.constant 0 : index
    %c3 = arith.constant 3 : index
    %c0_17 = arith.constant 0 : index
    %c0_18 = arith.constant 0 : index
    %21 = vector.load %arg1[%c0_16, %c3, %c0_17, %c0_18] : memref<2x4x6x140xbf16, #tpu.memory_space<vmem>>, vector<2x1x6x140xbf16>
    %22 = vector.shape_cast %21 : vector<2x1x6x140xbf16> to vector<12x140xbf16>
    %cst_19 = arith.constant dense<0.000000e+00> : vector<12x768xf32>
    %23 = tpu.matmul %22, %0, %cst_19 {dimension_numbers = #tpu.dot_dimension_numbers<[1], [0], [0], [1], [0, 0, 1, 1], [], []>} : vector<12x140xbf16>, vector<140x768xbf16>, vector<12x768xf32> -> vector<12x768xf32>
    %24 = arith.maximumf %20, %23 : vector<12x768xf32>
    %25 = vector.extract_strided_slice %24 {offsets = [0, 0], sizes = [12, 384], strides = [1, 1]} : vector<12x768xf32> to vector<12x384xf32>
    %26 = vector.extract_strided_slice %24 {offsets = [0, 384], sizes = [12, 384], strides = [1, 1]} : vector<12x768xf32> to vector<12x384xf32>
    %27 = arith.maximumf %25, %26 : vector<12x384xf32>
    %c0_20 = arith.constant 0 : index
    %c0_21 = arith.constant 0 : index
    %28 = vector.load %arg3[%c0_20, %c0_21] : memref<1x384xf32, #tpu.memory_space<vmem>>, vector<1x384xf32>
    %29 = vector.broadcast %28 : vector<1x384xf32> to vector<12x384xf32>
    %30 = arith.addf %27, %29 : vector<12x384xf32>
    %cst_22 = arith.constant 0.000000e+00 : f32
    %31 = vector.broadcast %cst_22 : f32 to vector<12x384xf32>
    %32 = arith.maximumf %30, %31 : vector<12x384xf32>
    %33 = arith.truncf %32 : vector<12x384xf32> to vector<12x384xbf16>
    %34 = vector.shape_cast %33 : vector<12x384xbf16> to vector<2x6x384xbf16>
    %cst_23 = arith.constant 0.000000e+00 : f32
    %35 = vector.broadcast %cst_23 : f32 to vector<8x512xf32>
    %cst_24 = arith.constant 0.000000e+00 : f32
    %36 = vector.broadcast %cst_24 : f32 to vector<8x512xf32>
    %c0_25 = arith.constant 0 : index
    %c0_26 = arith.constant 0 : index
    %c0_27 = arith.constant 0 : index
    %37 = vector.load %arg4[%c0_25, %c0_26, %c0_27] : memref<5x384x512xbf16, #tpu.memory_space<vmem>>, vector<1x384x512xbf16>
    %38 = vector.shape_cast %37 : vector<1x384x512xbf16> to vector<384x512xbf16>
    %39 = vector.extract_strided_slice %17 {offsets = [0, 0, 0], sizes = [2, 4, 384], strides = [1, 1, 1]} : vector<2x6x384xbf16> to vector<2x4x384xbf16>
    %40 = vector.extract_strided_slice %34 {offsets = [0, 0, 0], sizes = [2, 4, 384], strides = [1, 1, 1]} : vector<2x6x384xbf16> to vector<2x4x384xbf16>
    %41 = vector.shape_cast %39 : vector<2x4x384xbf16> to vector<8x384xbf16>
    %cst_28 = arith.constant dense<0.000000e+00> : vector<8x512xf32>
    %42 = tpu.matmul %41, %38, %cst_28 {dimension_numbers = #tpu.dot_dimension_numbers<[1], [0], [0], [1], [0, 0, 1, 1], [], []>} : vector<8x384xbf16>, vector<384x512xbf16>, vector<8x512xf32> -> vector<8x512xf32>
    %43 = arith.addf %35, %42 : vector<8x512xf32>
    %44 = vector.shape_cast %40 : vector<2x4x384xbf16> to vector<8x384xbf16>
    %cst_29 = arith.constant dense<0.000000e+00> : vector<8x512xf32>
    %45 = tpu.matmul %44, %38, %cst_29 {dimension_numbers = #tpu.dot_dimension_numbers<[1], [0], [0], [1], [0, 0, 1, 1], [], []>} : vector<8x384xbf16>, vector<384x512xbf16>, vector<8x512xf32> -> vector<8x512xf32>
    %46 = arith.addf %36, %45 : vector<8x512xf32>
    %c1_30 = arith.constant 1 : index
    %c0_31 = arith.constant 0 : index
    %c0_32 = arith.constant 0 : index
    %47 = vector.load %arg4[%c1_30, %c0_31, %c0_32] : memref<5x384x512xbf16, #tpu.memory_space<vmem>>, vector<1x384x512xbf16>
    %48 = vector.shape_cast %47 : vector<1x384x512xbf16> to vector<384x512xbf16>
    %49 = vector.extract_strided_slice %34 {offsets = [0, 0, 0], sizes = [2, 4, 384], strides = [1, 1, 1]} : vector<2x6x384xbf16> to vector<2x4x384xbf16>
    %50 = vector.extract_strided_slice %17 {offsets = [0, 1, 0], sizes = [2, 4, 384], strides = [1, 1, 1]} : vector<2x6x384xbf16> to vector<2x4x384xbf16>
    %51 = vector.shape_cast %49 : vector<2x4x384xbf16> to vector<8x384xbf16>
    %cst_33 = arith.constant dense<0.000000e+00> : vector<8x512xf32>
    %52 = tpu.matmul %51, %48, %cst_33 {dimension_numbers = #tpu.dot_dimension_numbers<[1], [0], [0], [1], [0, 0, 1, 1], [], []>} : vector<8x384xbf16>, vector<384x512xbf16>, vector<8x512xf32> -> vector<8x512xf32>
    %53 = arith.addf %43, %52 : vector<8x512xf32>
    %54 = vector.shape_cast %50 : vector<2x4x384xbf16> to vector<8x384xbf16>
    %cst_34 = arith.constant dense<0.000000e+00> : vector<8x512xf32>
    %55 = tpu.matmul %54, %48, %cst_34 {dimension_numbers = #tpu.dot_dimension_numbers<[1], [0], [0], [1], [0, 0, 1, 1], [], []>} : vector<8x384xbf16>, vector<384x512xbf16>, vector<8x512xf32> -> vector<8x512xf32>
    %56 = arith.addf %46, %55 : vector<8x512xf32>
    %c2_35 = arith.constant 2 : index
    %c0_36 = arith.constant 0 : index
    %c0_37 = arith.constant 0 : index
    %57 = vector.load %arg4[%c2_35, %c0_36, %c0_37] : memref<5x384x512xbf16, #tpu.memory_space<vmem>>, vector<1x384x512xbf16>
    %58 = vector.shape_cast %57 : vector<1x384x512xbf16> to vector<384x512xbf16>
    %59 = vector.extract_strided_slice %17 {offsets = [0, 1, 0], sizes = [2, 4, 384], strides = [1, 1, 1]} : vector<2x6x384xbf16> to vector<2x4x384xbf16>
    %60 = vector.extract_strided_slice %34 {offsets = [0, 1, 0], sizes = [2, 4, 384], strides = [1, 1, 1]} : vector<2x6x384xbf16> to vector<2x4x384xbf16>
    %61 = vector.shape_cast %59 : vector<2x4x384xbf16> to vector<8x384xbf16>
    %cst_38 = arith.constant dense<0.000000e+00> : vector<8x512xf32>
    %62 = tpu.matmul %61, %58, %cst_38 {dimension_numbers = #tpu.dot_dimension_numbers<[1], [0], [0], [1], [0, 0, 1, 1], [], []>} : vector<8x384xbf16>, vector<384x512xbf16>, vector<8x512xf32> -> vector<8x512xf32>
    %63 = arith.addf %53, %62 : vector<8x512xf32>
    %64 = vector.shape_cast %60 : vector<2x4x384xbf16> to vector<8x384xbf16>
    %cst_39 = arith.constant dense<0.000000e+00> : vector<8x512xf32>
    %65 = tpu.matmul %64, %58, %cst_39 {dimension_numbers = #tpu.dot_dimension_numbers<[1], [0], [0], [1], [0, 0, 1, 1], [], []>} : vector<8x384xbf16>, vector<384x512xbf16>, vector<8x512xf32> -> vector<8x512xf32>
    %66 = arith.addf %56, %65 : vector<8x512xf32>
    %c3_40 = arith.constant 3 : index
    %c0_41 = arith.constant 0 : index
    %c0_42 = arith.constant 0 : index
    %67 = vector.load %arg4[%c3_40, %c0_41, %c0_42] : memref<5x384x512xbf16, #tpu.memory_space<vmem>>, vector<1x384x512xbf16>
    %68 = vector.shape_cast %67 : vector<1x384x512xbf16> to vector<384x512xbf16>
    %69 = vector.extract_strided_slice %34 {offsets = [0, 1, 0], sizes = [2, 4, 384], strides = [1, 1, 1]} : vector<2x6x384xbf16> to vector<2x4x384xbf16>
    %70 = vector.extract_strided_slice %17 {offsets = [0, 2, 0], sizes = [2, 4, 384], strides = [1, 1, 1]} : vector<2x6x384xbf16> to vector<2x4x384xbf16>
    %71 = vector.shape_cast %69 : vector<2x4x384xbf16> to vector<8x384xbf16>
    %cst_43 = arith.constant dense<0.000000e+00> : vector<8x512xf32>
    %72 = tpu.matmul %71, %68, %cst_43 {dimension_numbers = #tpu.dot_dimension_numbers<[1], [0], [0], [1], [0, 0, 1, 1], [], []>} : vector<8x384xbf16>, vector<384x512xbf16>, vector<8x512xf32> -> vector<8x512xf32>
    %73 = arith.addf %63, %72 : vector<8x512xf32>
    %74 = vector.shape_cast %70 : vector<2x4x384xbf16> to vector<8x384xbf16>
    %cst_44 = arith.constant dense<0.000000e+00> : vector<8x512xf32>
    %75 = tpu.matmul %74, %68, %cst_44 {dimension_numbers = #tpu.dot_dimension_numbers<[1], [0], [0], [1], [0, 0, 1, 1], [], []>} : vector<8x384xbf16>, vector<384x512xbf16>, vector<8x512xf32> -> vector<8x512xf32>
    %76 = arith.addf %66, %75 : vector<8x512xf32>
    %c4 = arith.constant 4 : index
    %c0_45 = arith.constant 0 : index
    %c0_46 = arith.constant 0 : index
    %77 = vector.load %arg4[%c4, %c0_45, %c0_46] : memref<5x384x512xbf16, #tpu.memory_space<vmem>>, vector<1x384x512xbf16>
    %78 = vector.shape_cast %77 : vector<1x384x512xbf16> to vector<384x512xbf16>
    %79 = vector.extract_strided_slice %17 {offsets = [0, 2, 0], sizes = [2, 4, 384], strides = [1, 1, 1]} : vector<2x6x384xbf16> to vector<2x4x384xbf16>
    %80 = vector.extract_strided_slice %34 {offsets = [0, 2, 0], sizes = [2, 4, 384], strides = [1, 1, 1]} : vector<2x6x384xbf16> to vector<2x4x384xbf16>
    %81 = vector.shape_cast %79 : vector<2x4x384xbf16> to vector<8x384xbf16>
    %cst_47 = arith.constant dense<0.000000e+00> : vector<8x512xf32>
    %82 = tpu.matmul %81, %78, %cst_47 {dimension_numbers = #tpu.dot_dimension_numbers<[1], [0], [0], [1], [0, 0, 1, 1], [], []>} : vector<8x384xbf16>, vector<384x512xbf16>, vector<8x512xf32> -> vector<8x512xf32>
    %83 = arith.addf %73, %82 : vector<8x512xf32>
    %84 = vector.shape_cast %80 : vector<2x4x384xbf16> to vector<8x384xbf16>
    %cst_48 = arith.constant dense<0.000000e+00> : vector<8x512xf32>
    %85 = tpu.matmul %84, %78, %cst_48 {dimension_numbers = #tpu.dot_dimension_numbers<[1], [0], [0], [1], [0, 0, 1, 1], [], []>} : vector<8x384xbf16>, vector<384x512xbf16>, vector<8x512xf32> -> vector<8x512xf32>
    %86 = arith.addf %76, %85 : vector<8x512xf32>
    %87 = arith.maximumf %83, %86 : vector<8x512xf32>
    %88 = vector.extract_strided_slice %87 {offsets = [0, 0], sizes = [8, 256], strides = [1, 1]} : vector<8x512xf32> to vector<8x256xf32>
    %89 = vector.extract_strided_slice %87 {offsets = [0, 256], sizes = [8, 256], strides = [1, 1]} : vector<8x512xf32> to vector<8x256xf32>
    %90 = arith.maximumf %88, %89 : vector<8x256xf32>
    %c0_49 = arith.constant 0 : index
    %c0_50 = arith.constant 0 : index
    %91 = vector.load %arg5[%c0_49, %c0_50] : memref<1x256xf32, #tpu.memory_space<vmem>>, vector<1x256xf32>
    %92 = vector.broadcast %91 : vector<1x256xf32> to vector<8x256xf32>
    %93 = arith.addf %90, %92 : vector<8x256xf32>
    %cst_51 = arith.constant 0.000000e+00 : f32
    %94 = vector.broadcast %cst_51 : f32 to vector<8x256xf32>
    %95 = arith.maximumf %93, %94 : vector<8x256xf32>
    %96 = vector.shape_cast %95 : vector<8x256xf32> to vector<2x4x256xf32>
    %97 = arith.truncf %96 : vector<2x4x256xf32> to vector<2x4x256xbf16>
    %cst_52 = arith.constant 0.000000e+00 : f32
    %98 = vector.broadcast %cst_52 : f32 to vector<2x512xf32>
    %99 = vector.extract_strided_slice %97 {offsets = [0, 0, 0], sizes = [2, 1, 256], strides = [1, 1, 1]} : vector<2x4x256xbf16> to vector<2x1x256xbf16>
    %100 = vector.shape_cast %99 : vector<2x1x256xbf16> to vector<2x256xbf16>
    %c0_53 = arith.constant 0 : index
    %c0_54 = arith.constant 0 : index
    %c0_55 = arith.constant 0 : index
    %101 = vector.load %arg6[%c0_53, %c0_54, %c0_55] : memref<4x256x512xbf16, #tpu.memory_space<vmem>>, vector<1x256x512xbf16>
    %102 = vector.shape_cast %101 : vector<1x256x512xbf16> to vector<256x512xbf16>
    %cst_56 = arith.constant dense<0.000000e+00> : vector<2x512xf32>
    %103 = tpu.matmul %100, %102, %cst_56 {dimension_numbers = #tpu.dot_dimension_numbers<[1], [0], [0], [1], [0, 0, 1, 1], [], []>} : vector<2x256xbf16>, vector<256x512xbf16>, vector<2x512xf32> -> vector<2x512xf32>
    %104 = arith.addf %98, %103 : vector<2x512xf32>
    %105 = vector.extract_strided_slice %97 {offsets = [0, 1, 0], sizes = [2, 1, 256], strides = [1, 1, 1]} : vector<2x4x256xbf16> to vector<2x1x256xbf16>
    %106 = vector.shape_cast %105 : vector<2x1x256xbf16> to vector<2x256xbf16>
    %c1_57 = arith.constant 1 : index
    %c0_58 = arith.constant 0 : index
    %c0_59 = arith.constant 0 : index
    %107 = vector.load %arg6[%c1_57, %c0_58, %c0_59] : memref<4x256x512xbf16, #tpu.memory_space<vmem>>, vector<1x256x512xbf16>
    %108 = vector.shape_cast %107 : vector<1x256x512xbf16> to vector<256x512xbf16>
    %cst_60 = arith.constant dense<0.000000e+00> : vector<2x512xf32>
    %109 = tpu.matmul %106, %108, %cst_60 {dimension_numbers = #tpu.dot_dimension_numbers<[1], [0], [0], [1], [0, 0, 1, 1], [], []>} : vector<2x256xbf16>, vector<256x512xbf16>, vector<2x512xf32> -> vector<2x512xf32>
    %110 = arith.addf %104, %109 : vector<2x512xf32>
    %111 = vector.extract_strided_slice %97 {offsets = [0, 2, 0], sizes = [2, 1, 256], strides = [1, 1, 1]} : vector<2x4x256xbf16> to vector<2x1x256xbf16>
    %112 = vector.shape_cast %111 : vector<2x1x256xbf16> to vector<2x256xbf16>
    %c2_61 = arith.constant 2 : index
    %c0_62 = arith.constant 0 : index
    %c0_63 = arith.constant 0 : index
    %113 = vector.load %arg6[%c2_61, %c0_62, %c0_63] : memref<4x256x512xbf16, #tpu.memory_space<vmem>>, vector<1x256x512xbf16>
    %114 = vector.shape_cast %113 : vector<1x256x512xbf16> to vector<256x512xbf16>
    %cst_64 = arith.constant dense<0.000000e+00> : vector<2x512xf32>
    %115 = tpu.matmul %112, %114, %cst_64 {dimension_numbers = #tpu.dot_dimension_numbers<[1], [0], [0], [1], [0, 0, 1, 1], [], []>} : vector<2x256xbf16>, vector<256x512xbf16>, vector<2x512xf32> -> vector<2x512xf32>
    %116 = arith.addf %110, %115 : vector<2x512xf32>
    %117 = vector.extract_strided_slice %97 {offsets = [0, 3, 0], sizes = [2, 1, 256], strides = [1, 1, 1]} : vector<2x4x256xbf16> to vector<2x1x256xbf16>
    %118 = vector.shape_cast %117 : vector<2x1x256xbf16> to vector<2x256xbf16>
    %c3_65 = arith.constant 3 : index
    %c0_66 = arith.constant 0 : index
    %c0_67 = arith.constant 0 : index
    %119 = vector.load %arg6[%c3_65, %c0_66, %c0_67] : memref<4x256x512xbf16, #tpu.memory_space<vmem>>, vector<1x256x512xbf16>
    %120 = vector.shape_cast %119 : vector<1x256x512xbf16> to vector<256x512xbf16>
    %cst_68 = arith.constant dense<0.000000e+00> : vector<2x512xf32>
    %121 = tpu.matmul %118, %120, %cst_68 {dimension_numbers = #tpu.dot_dimension_numbers<[1], [0], [0], [1], [0, 0, 1, 1], [], []>} : vector<2x256xbf16>, vector<256x512xbf16>, vector<2x512xf32> -> vector<2x512xf32>
    %122 = arith.addf %116, %121 : vector<2x512xf32>
    %c0_69 = arith.constant 0 : index
    %c0_70 = arith.constant 0 : index
    %123 = vector.load %arg7[%c0_69, %c0_70] : memref<1x512xf32, #tpu.memory_space<vmem>>, vector<1x512xf32>
    %124 = vector.broadcast %123 : vector<1x512xf32> to vector<2x512xf32>
    %125 = arith.addf %122, %124 : vector<2x512xf32>
    %cst_71 = arith.constant 0.000000e+00 : f32
    %126 = vector.broadcast %cst_71 : f32 to vector<2x512xf32>
    %127 = arith.maximumf %125, %126 : vector<2x512xf32>
    %128 = arith.truncf %127 : vector<2x512xf32> to vector<2x512xbf16>
    %c0_72 = arith.constant 0 : index
    %c0_73 = arith.constant 0 : index
    %129 = vector.load %arg8[%c0_72, %c0_73] : memref<512x128xbf16, #tpu.memory_space<vmem>>, vector<512x128xbf16>
    %cst_74 = arith.constant dense<0.000000e+00> : vector<2x128xf32>
    %130 = tpu.matmul %128, %129, %cst_74 {dimension_numbers = #tpu.dot_dimension_numbers<[1], [0], [0], [1], [0, 0, 1, 1], [], []>} : vector<2x512xbf16>, vector<512x128xbf16>, vector<2x128xf32> -> vector<2x128xf32>
    %c0_75 = arith.constant 0 : index
    %c0_76 = arith.constant 0 : index
    %131 = vector.load %arg9[%c0_75, %c0_76] : memref<1x128xf32, #tpu.memory_space<vmem>>, vector<1x128xf32>
    %132 = vector.broadcast %131 : vector<1x128xf32> to vector<2x128xf32>
    %133 = arith.addf %130, %132 : vector<2x128xf32>
    %cst_77 = arith.constant dense<0xFF800000> : vector<2xf32>
    %134 = vector.multi_reduction <maximumf>, %133, %cst_77 [1] : vector<2x128xf32> to vector<2xf32>
    %135 = vector.shape_cast %134 : vector<2xf32> to vector<2x1xf32>
    %136 = vector.broadcast %135 : vector<2x1xf32> to vector<2x128xf32>
    %137 = arith.subf %133, %136 : vector<2x128xf32>
    %138 = math.exp %137 : vector<2x128xf32>
    %cst_78 = arith.constant dense<0.000000e+00> : vector<2xf32>
    %139 = vector.multi_reduction <add>, %138, %cst_78 [1] : vector<2x128xf32> to vector<2xf32>
    %140 = vector.shape_cast %139 : vector<2xf32> to vector<2x1xf32>
    %141 = math.log %140 : vector<2x1xf32>
    %142 = vector.broadcast %141 : vector<2x1xf32> to vector<2x128xf32>
    %143 = arith.subf %137, %142 : vector<2x128xf32>
    %c0_79 = arith.constant 0 : index
    %c0_80 = arith.constant 0 : index
    %144 = vector.load %arg10[%c0_79, %c0_80] : memref<2x128xf32, #tpu.memory_space<vmem>>, vector<2x128xf32>
    tpu.vector_store %arg10[%c0_79, %c0_80], %143 {strides = array<i32>} : memref<2x128xf32, #tpu.memory_space<vmem>>, vector<2x128xf32>,
    return
  }
  func.func @transform_0(%arg0: i32) -> (i32, i32, i32, i32) {
    %c0_i32 = arith.constant 0 : i32
    %c0_i32_0 = arith.constant 0 : i32
    %c0_i32_1 = arith.constant 0 : i32
    %c0_i32_2 = arith.constant 0 : i32
    return %arg0, %c0_i32, %c0_i32_0, %c0_i32_1 : i32, i32, i32, i32
  }
  func.func @transform_1(%arg0: i32) -> (i32, i32) {
    %c0_i32 = arith.constant 0 : i32
    %c0_i32_0 = arith.constant 0 : i32
    %c0_i32_1 = arith.constant 0 : i32
    return %c0_i32, %c0_i32_0 : i32, i32
  }
  func.func @transform_2(%arg0: i32) -> (i32, i32) {
    %c0_i32 = arith.constant 0 : i32
    %c0_i32_0 = arith.constant 0 : i32
    %c0_i32_1 = arith.constant 0 : i32
    return %c0_i32, %c0_i32_0 : i32, i32
  }
  func.func @transform_3(%arg0: i32) -> (i32, i32, i32) {
    %c0_i32 = arith.constant 0 : i32
    %c0_i32_0 = arith.constant 0 : i32
    %c0_i32_1 = arith.constant 0 : i32
    %c0_i32_2 = arith.constant 0 : i32
    return %c0_i32, %c0_i32_0, %c0_i32_1 : i32, i32, i32
  }
  func.func @transform_4(%arg0: i32) -> (i32, i32) {
    %c0_i32 = arith.constant 0 : i32
    %c0_i32_0 = arith.constant 0 : i32
    %c0_i32_1 = arith.constant 0 : i32
    return %c0_i32, %c0_i32_0 : i32, i32
  }
  func.func @transform_5(%arg0: i32) -> (i32, i32, i32) {
    %c0_i32 = arith.constant 0 : i32
    %c0_i32_0 = arith.constant 0 : i32
    %c0_i32_1 = arith.constant 0 : i32
    %c0_i32_2 = arith.constant 0 : i32
    return %c0_i32, %c0_i32_0, %c0_i32_1 : i32, i32, i32
  }
  func.func @transform_6(%arg0: i32) -> (i32, i32) {
    %c0_i32 = arith.constant 0 : i32
    %c0_i32_0 = arith.constant 0 : i32
    %c0_i32_1 = arith.constant 0 : i32
    return %c0_i32, %c0_i32_0 : i32, i32
  }
  func.func @transform_7(%arg0: i32) -> (i32, i32) {
    %c0_i32 = arith.constant 0 : i32
    %c0_i32_0 = arith.constant 0 : i32
    %c0_i32_1 = arith.constant 0 : i32
    return %c0_i32, %c0_i32_0 : i32, i32
  }
  func.func @transform_8(%arg0: i32) -> (i32, i32) {
    %c0_i32 = arith.constant 0 : i32
    %c0_i32_0 = arith.constant 0 : i32
    %c0_i32_1 = arith.constant 0 : i32
    return %c0_i32, %c0_i32_0 : i32, i32
  }
  func.func @transform_9(%arg0: i32) -> (i32, i32) {
    %c0_i32 = arith.constant 0 : i32
    %c0_i32_0 = arith.constant 0 : i32
    return %arg0, %c0_i32 : i32, i32
  }
}

</mosaic_0001>

<llo_original>
// kernel: lenet_forward.1
$region0: #{lenet_forward.1}
  #allocation0 [shape = 'u32[]', space=smem, size = 0x4, offset = 0x4, fixed_abs, tag = 'smem constant byte address 0x4 - core index']
  #allocation1 [shape = 'u32[144,128]{1,0:T(1,128)}', space=vmem, size = 0x12000, scoped, tag = 'internal scratch']
  %s0 = inlined_call_operand.vmem [shape: bf16[2,4,6,140], index: 0, kind: input, shape index: {}]
  %s1 = inlined_call_operand.hbm [shape: bf16[140,768], index: 1, kind: input, shape index: {}]
  %s2 = inlined_call_operand.hbm [shape: f32[1,384], index: 2, kind: input, shape index: {}]
  %s3 = inlined_call_operand.hbm [shape: bf16[5,384,512], index: 3, kind: input, shape index: {}]
  %s4 = inlined_call_operand.hbm [shape: f32[1,256], index: 4, kind: input, shape index: {}]
  %s5 = inlined_call_operand.hbm [shape: bf16[4,256,512], index: 5, kind: input, shape index: {}]
  %s6 = inlined_call_operand.hbm [shape: f32[1,512], index: 6, kind: input, shape index: {}]
  %s7 = inlined_call_operand.hbm [shape: bf16[512,128], index: 7, kind: input, shape index: {}]
  %s8 = inlined_call_operand.hbm [shape: f32[1,128], index: 8, kind: input, shape index: {}]
  %s9 = inlined_call_operand.hbm [shape: f32[2,128], index: 9, kind: output, shape index: {}]
  %s10 = sld [smem:[#allocation0]]
  $region78: #{lenet_forward.1} parent=0
    _
  %s12 = ssub.s32 1, %s10
  %s13 = scalar_select 0, %s12, %s10
  $region1: #{lenet_forward.1} parent=0
    #allocation2 [shape = 'u8[221184]{0}', space=vmem, size = 0x36000, scoped, tag = 'input window, operand 1, single buffered']
    #allocation3 [shape = 's32[1]{0}', space=sflag, size = 0x4, scoped, tag = 'scoped memory for lenet_forward.1']
    #allocation4 [shape = 's32[1]{0}', space=sflag, size = 0x4, scoped, tag = 'scoped memory for lenet_forward.1']
    #allocation5 [shape = 'u8[1536]{0}', space=vmem, size = 0x800, scoped, tag = 'input window, operand 2, single buffered']
    #allocation6 [shape = 's32[1]{0}', space=sflag, size = 0x4, scoped, tag = 'scoped memory for lenet_forward.1']
    #allocation7 [shape = 'u8[1966080]{0}', space=vmem, size = 0x1e0000, scoped, tag = 'input window, operand 3, single buffered']
    #allocation8 [shape = 'u8[1024]{0}', space=vmem, size = 0x400, scoped, tag = 'input window, operand 4, single buffered']
    #allocation9 [shape = 's32[1]{0}', space=sflag, size = 0x4, scoped, tag = 'scoped memory for lenet_forward.1']
    #allocation10 [shape = 'u8[1048576]{0}', space=vmem, size = 0x100000, scoped, tag = 'input window, operand 5, single buffered']
    #allocation11 [shape = 'u8[2048]{0}', space=vmem, size = 0x800, scoped, tag = 'input window, operand 6, single buffered']
    #allocation12 [shape = 's32[1]{0}', space=sflag, size = 0x4, scoped, tag = 'scoped memory for lenet_forward.1']
    #allocation13 [shape = 'u8[131072]{0}', space=vmem, size = 0x20000, scoped, tag = 'input window, operand 7, single buffered']
    #allocation14 [shape = 'u8[512]{0}', space=vmem, size = 0x400, scoped, tag = 'input window, operand 8, single buffered']
    #allocation15 [shape = 's32[1]{0}', space=sflag, size = 0x4, scoped, tag = 'scoped memory for lenet_forward.1']
    #allocation16 [shape = 'u8[1024]{0}', space=vmem, size = 0x400, scoped, tag = 'output window, operand 0, single buffered']
    %14 = vsyncpa [#allocation3], 0
    %15 = vsyncpa [#allocation6], 0
    %16 = vsyncpa [#allocation9], 0
    %17 = vsyncpa [#allocation12], 0
    %18 = vsyncpa [#allocation15], 0
    %19 = vsyncpa [#allocation4], 0
    // Predicated region
    $region2: #{lenet_forward.1} parent=1 // pred_check
      _
    $region3: #{lenet_forward.1} parent=1 // pred_check_branch
      %21 = sbr.rel (0) target = $region5
    $region4: #{lenet_forward.1} parent=1 // pred_region
      _
    $region5: #{lenet_forward.1} parent=1 // pred_fallthru
      _
    // Predicated region
    $region6: #{lenet_forward.1} parent=1 // pred_check
      _
    $region7: #{lenet_forward.1} parent=1 // pred_check_branch
      %23 = sbr.rel (0) target = $region9
    $region8: #{lenet_forward.1} parent=1 // pred_region
      %s25 = ssub.s32 6912, 6912
      %26 = vsyncadd [#allocation3], %s25
      %s27 = sshll.u32 [#allocation2], 4
      %s28 = int_to_ptr.vmem [resolvable:$true] %s27
      %33 = dma.hbm_to_vmem [thread:$0]  %s1, 6912, %s28, [#allocation3], 384, 384, 24
    $region9: #{lenet_forward.1} parent=1 // pred_fallthru
      _
    // Predicated region
    $region10: #{lenet_forward.1} parent=1 // pred_check
      _
    $region11: #{lenet_forward.1} parent=1 // pred_check_branch
      %35 = sbr.rel (0) target = $region13
    $region12: #{lenet_forward.1} parent=1 // pred_region
      %s37 = ssub.s32 48, 48
      %38 = vsyncadd [#allocation6], %s37
      %s40 = sshll.u32 [#allocation5], 4
      %s41 = int_to_ptr.vmem [resolvable:$true] %s40
      %43 = dma.hbm_to_vmem [thread:$0]  %s2, 48, %s41, [#allocation6]
    $region13: #{lenet_forward.1} parent=1 // pred_fallthru
      _
    // Predicated region
    $region14: #{lenet_forward.1} parent=1 // pred_check
      _
    $region15: #{lenet_forward.1} parent=1 // pred_check_branch
      %45 = sbr.rel (0) target = $region17
    $region16: #{lenet_forward.1} parent=1 // pred_region
      %s47 = ssub.s32 61440, 61440
      %48 = vsyncadd [#allocation6], %s47
      %s49 = sshll.u32 [#allocation7], 4
      %s50 = int_to_ptr.vmem [resolvable:$true] %s49
      %55 = dma.hbm_to_vmem [thread:$0]  %s3, 61440, %s50, [#allocation6], 256, 256, 16
    $region17: #{lenet_forward.1} parent=1 // pred_fallthru
      _
    // Predicated region
    $region18: #{lenet_forward.1} parent=1 // pred_check
      _
    $region19: #{lenet_forward.1} parent=1 // pred_check_branch
      %57 = sbr.rel (0) target = $region21
    $region20: #{lenet_forward.1} parent=1 // pred_region
      %s59 = ssub.s32 32, 32
      %60 = vsyncadd [#allocation9], %s59
      %s62 = sshll.u32 [#allocation8], 4
      %s63 = int_to_ptr.vmem [resolvable:$true] %s62
      %65 = dma.hbm_to_vmem [thread:$0]  %s4, 32, %s63, [#allocation9]
    $region21: #{lenet_forward.1} parent=1 // pred_fallthru
      _
    // Predicated region
    $region22: #{lenet_forward.1} parent=1 // pred_check
      _
    $region23: #{lenet_forward.1} parent=1 // pred_check_branch
      %67 = sbr.rel (0) target = $region25
    $region24: #{lenet_forward.1} parent=1 // pred_region
      %s69 = ssub.s32 32768, 32768
      %70 = vsyncadd [#allocation9], %s69
      %s71 = sshll.u32 [#allocation10], 4
      %s72 = int_to_ptr.vmem [resolvable:$true] %s71
      %77 = dma.hbm_to_vmem [thread:$0]  %s5, 32768, %s72, [#allocation9], 256, 256, 16
    $region25: #{lenet_forward.1} parent=1 // pred_fallthru
      _
    // Predicated region
    $region26: #{lenet_forward.1} parent=1 // pred_check
      _
    $region27: #{lenet_forward.1} parent=1 // pred_check_branch
      %79 = sbr.rel (0) target = $region29
    $region28: #{lenet_forward.1} parent=1 // pred_region
      %s81 = ssub.s32 64, 64
      %82 = vsyncadd [#allocation12], %s81
      %s84 = sshll.u32 [#allocation11], 4
      %s85 = int_to_ptr.vmem [resolvable:$true] %s84
      %87 = dma.hbm_to_vmem [thread:$0]  %s6, 64, %s85, [#allocation12]
    $region29: #{lenet_forward.1} parent=1 // pred_fallthru
      _
    // Predicated region
    $region30: #{lenet_forward.1} parent=1 // pred_check
      _
    $region31: #{lenet_forward.1} parent=1 // pred_check_branch
      %89 = sbr.rel (0) target = $region33
    $region32: #{lenet_forward.1} parent=1 // pred_region
      %s91 = ssub.s32 4096, 4096
      %92 = vsyncadd [#allocation12], %s91
      %s93 = sshll.u32 [#allocation13], 4
      %s94 = int_to_ptr.vmem [resolvable:$true] %s93
      %99 = dma.hbm_to_vmem [thread:$0]  %s7, 4096, %s94, [#allocation12], 64, 64, 4
    $region33: #{lenet_forward.1} parent=1 // pred_fallthru
      _
    // Predicated region
    $region34: #{lenet_forward.1} parent=1 // pred_check
      _
    $region35: #{lenet_forward.1} parent=1 // pred_check_branch
      %101 = sbr.rel (0) target = $region37
    $region36: #{lenet_forward.1} parent=1 // pred_region
      %s103 = ssub.s32 16, 16
      %104 = vsyncadd [#allocation15], %s103
      %s106 = sshll.u32 [#allocation14], 4
      %s107 = int_to_ptr.vmem [resolvable:$true] %s106
      %109 = dma.hbm_to_vmem [thread:$0]  %s8, 16, %s107, [#allocation15]
    $region37: #{lenet_forward.1} parent=1 // pred_fallthru
      _
    // Predicated region
    $region38: #{lenet_forward.1} parent=1 // pred_check
      _
    $region39: #{lenet_forward.1} parent=1 // pred_check_branch
      %111 = sbr.rel (0) target = $region41
    $region40: #{lenet_forward.1} parent=1 // pred_region
      %112 = dma.done [#allocation3], 6912
    $region41: #{lenet_forward.1} parent=1 // pred_fallthru
      _
    // Predicated region
    $region42: #{lenet_forward.1} parent=1 // pred_check
      _
    $region43: #{lenet_forward.1} parent=1 // pred_check_branch
      %114 = sbr.rel (0) target = $region45
    $region44: #{lenet_forward.1} parent=1 // pred_region
      %115 = dma.done [#allocation6], 48
    $region45: #{lenet_forward.1} parent=1 // pred_fallthru
      _
    // Predicated region
    $region46: #{lenet_forward.1} parent=1 // pred_check
      _
    $region47: #{lenet_forward.1} parent=1 // pred_check_branch
      %117 = sbr.rel (0) target = $region49
    $region48: #{lenet_forward.1} parent=1 // pred_region
      %118 = dma.done [#allocation6], 61440
    $region49: #{lenet_forward.1} parent=1 // pred_fallthru
      _
    // Predicated region
    $region50: #{lenet_forward.1} parent=1 // pred_check
      _
    $region51: #{lenet_forward.1} parent=1 // pred_check_branch
      %120 = sbr.rel (0) target = $region53
    $region52: #{lenet_forward.1} parent=1 // pred_region
      %121 = dma.done [#allocation9], 32
    $region53: #{lenet_forward.1} parent=1 // pred_fallthru
      _
    // Predicated region
    $region54: #{lenet_forward.1} parent=1 // pred_check
      _
    $region55: #{lenet_forward.1} parent=1 // pred_check_branch
      %123 = sbr.rel (0) target = $region57
    $region56: #{lenet_forward.1} parent=1 // pred_region
      %124 = dma.done [#allocation9], 32768
    $region57: #{lenet_forward.1} parent=1 // pred_fallthru
      _
    // Predicated region
    $region58: #{lenet_forward.1} parent=1 // pred_check
      _
    $region59: #{lenet_forward.1} parent=1 // pred_check_branch
      %126 = sbr.rel (0) target = $region61
    $region60: #{lenet_forward.1} parent=1 // pred_region
      %127 = dma.done [#allocation12], 64
    $region61: #{lenet_forward.1} parent=1 // pred_fallthru
      _
    // Predicated region
    $region62: #{lenet_forward.1} parent=1 // pred_check
      _
    $region63: #{lenet_forward.1} parent=1 // pred_check_branch
      %129 = sbr.rel (0) target = $region65
    $region64: #{lenet_forward.1} parent=1 // pred_region
      %130 = dma.done [#allocation12], 4096
    $region65: #{lenet_forward.1} parent=1 // pred_fallthru
      _
    // Predicated region
    $region66: #{lenet_forward.1} parent=1 // pred_check
      _
    $region67: #{lenet_forward.1} parent=1 // pred_check_branch
      %132 = sbr.rel (0) target = $region69
    $region68: #{lenet_forward.1} parent=1 // pred_region
      %133 = dma.done [#allocation15], 16
    $region69: #{lenet_forward.1} parent=1 // pred_fallthru
      _
    %v135 = vld [vmem:[#allocation2] sm:$0xff]
    %v136 = vld [vmem:[#allocation2 + $0x8] sm:$0xff]
    %v137 = vld [vmem:[#allocation2 + $0x10] sm:$0xff]
    %v138 = vld [vmem:[#allocation2 + $0x18] sm:$0xff]
    %v139 = vld [vmem:[#allocation2 + $0x20] sm:$0xff]
    %v140 = vld [vmem:[#allocation2 + $0x28] sm:$0xff]
    %v141 = vld [vmem:[#allocation2 + $0x30] sm:$0xff]
    %v142 = vld [vmem:[#allocation2 + $0x38] sm:$0xff]
    %v143 = vld [vmem:[#allocation2 + $0x40] sm:$0xff]
    %v144 = vld [vmem:[#allocation2 + $0x48] sm:$0xff]
    %v145 = vld [vmem:[#allocation2 + $0x50] sm:$0xff]
    %v146 = vld [vmem:[#allocation2 + $0x58] sm:$0xff]
    %v147 = vld [vmem:[#allocation2 + $0x60] sm:$0xff]
    %v148 = vld [vmem:[#allocation2 + $0x68] sm:$0xff]
    %v149 = vld [vmem:[#allocation2 + $0x70] sm:$0xff]
    %v150 = vld [vmem:[#allocation2 + $0x78] sm:$0xff]
    %v151 = vld [vmem:[#allocation2 + $0x80] sm:$0xff]
    %v152 = vld [vmem:[#allocation2 + $0x88] sm:$0xff]
    %v153 = vld [vmem:[#allocation2 + $0x90] sm:$0xff]
    %v154 = vld [vmem:[#allocation2 + $0x98] sm:$0xff]
    %v155 = vld [vmem:[#allocation2 + $0xa0] sm:$0xff]
    %v156 = vld [vmem:[#allocation2 + $0xa8] sm:$0xff]
    %v157 = vld [vmem:[#allocation2 + $0xb0] sm:$0xff]
    %v158 = vld [vmem:[#allocation2 + $0xb8] sm:$0xff]
    %v159 = vld [vmem:[#allocation2 + $0xc0] sm:$0xff]
    %v160 = vld [vmem:[#allocation2 + $0xc8] sm:$0xff]
    %v161 = vld [vmem:[#allocation2 + $0xd0] sm:$0xff]
    %v162 = vld [vmem:[#allocation2 + $0xd8] sm:$0xff]
    %v163 = vld [vmem:[#allocation2 + $0xe0] sm:$0xff]
    %v164 = vld [vmem:[#allocation2 + $0xe8] sm:$0xff]
    %v165 = vld [vmem:[#allocation2 + $0xf0] sm:$0xff]
    %v166 = vld [vmem:[#allocation2 + $0xf8] sm:$0xff]
    %v167 = vld [vmem:[#allocation2 + $0x100] sm:$0xff]
    %v168 = vld [vmem:[#allocation2 + $0x108] sm:$0xff]
    %v169 = vld [vmem:[#allocation2 + $0x110] sm:$0xff]
    %v170 = vld [vmem:[#allocation2 + $0x118] sm:$0xff]
    %v171 = vld [vmem:[#allocation2 + $0x120] sm:$0xff]
    %v172 = vld [vmem:[#allocation2 + $0x128] sm:$0xff]
    %v173 = vld [vmem:[#allocation2 + $0x130] sm:$0xff]
    %v174 = vld [vmem:[#allocation2 + $0x138] sm:$0xff]
    %v175 = vld [vmem:[#allocation2 + $0x140] sm:$0xff]
    %v176 = vld [vmem:[#allocation2 + $0x148] sm:$0xff]
    %v177 = vld [vmem:[#allocation2 + $0x150] sm:$0xff]
    %v178 = vld [vmem:[#allocation2 + $0x158] sm:$0xff]
    %v179 = vld [vmem:[#allocation2 + $0x160] sm:$0xff]
    %v180 = vld [vmem:[#allocation2 + $0x168] sm:$0xff]
    %v181 = vld [vmem:[#allocation2 + $0x170] sm:$0xff]
    %v182 = vld [vmem:[#allocation2 + $0x178] sm:$0xff]
    %v183 = vld [vmem:[#allocation2 + $0x180] sm:$0xff]
    %v184 = vld [vmem:[#allocation2 + $0x188] sm:$0xff]
    %v185 = vld [vmem:[#allocation2 + $0x190] sm:$0xff]
    %v186 = vld [vmem:[#allocation2 + $0x198] sm:$0x33]
    %v187 = vld [vmem:[#allocation2 + $0x1a0] sm:$0x33]
    %v188 = vld [vmem:[#allocation2 + $0x1a8] sm:$0x33]
    %v189 = vld [vmem:[%s0] sm:$0x77]
    %v190 = vld [vmem:[%s0 + $0x20] sm:$0x77]
    %v194 = vunpack.c.l.s4 1966171168
    %v195 = vunpack.c.0.s8 %v194
    %v196 = vlaneseq
    %v197 = vshrl.u32 %v196, 7
    %v198 = vsub.s32 %v195, %v197
    %v199 = vrot.slane %v189, %v198
    %v200 = vcombine.high %v199, %v199
    %v202 = vunpack.c.l.s4 1966171168
    %v203 = vunpack.c.0.s8 %v202
    %v204 = vlaneseq
    %v205 = vshrl.u32 %v204, 7
    %v206 = vsub.s32 %v203, %v205
    %v207 = vrot.slane %v199, %v206
    %v209 = vunpack.c.l.s4 1966171168
    %v210 = vunpack.c.0.s8 %v209
    %v211 = vlaneseq
    %v212 = vshrl.u32 %v211, 7
    %v213 = vsub.s32 %v210, %v212
    %v214 = vrot.slane %v200, %v213
    %v215 = vcombine.high %v207, %v207
    %v217 = vunpack.c.l.s4 1966171168
    %v218 = vunpack.c.0.s8 %v217
    %v219 = vlaneseq
    %v220 = vshrl.u32 %v219, 7
    %v221 = vsub.s32 %v218, %v220
    %v222 = vrot.slane %v190, %v221
    %v223 = vcombine.high %v222, %v222
    %v225 = vunpack.c.l.s4 1966171168
    %v226 = vunpack.c.0.s8 %v225
    %v227 = vlaneseq
    %v228 = vshrl.u32 %v227, 7
    %v229 = vsub.s32 %v226, %v228
    %v230 = vrot.slane %v222, %v229
    %v232 = vunpack.c.l.s4 1966171168
    %v233 = vunpack.c.0.s8 %v232
    %v234 = vlaneseq
    %v235 = vshrl.u32 %v234, 7
    %v236 = vsub.s32 %v233, %v235
    %v237 = vrot.slane %v223, %v236
    %v238 = vcombine.high %v230, %v230
    %v239 = vcombine.low %v207, %v214
    %v240 = vcombine.low %v215, %v230
    %v241 = vcombine.low %v237, %v238
    %v243 = vunpack.c.l.s4 1966171168
    %v244 = vunpack.c.0.s8 %v243
    %v245 = vlaneseq
    %v246 = vshrl.u32 %v245, 7
    %v247 = vsub.s32 %v244, %v246
    %v248 = vrot.slane %v239, %v247
    %v250 = vunpack.c.l.s4 1966171168
    %v251 = vunpack.c.0.s8 %v250
    %v252 = vlaneseq
    %v253 = vshrl.u32 %v252, 7
    %v254 = vsub.s32 %v251, %v253
    %v255 = vrot.slane %v240, %v254
    %v257 = vunpack.c.l.s4 1966171168
    %v258 = vunpack.c.0.s8 %v257
    %v259 = vlaneseq
    %v260 = vshrl.u32 %v259, 7
    %v261 = vsub.s32 %v258, %v260
    %v262 = vrot.slane %v241, %v261
    %v263 = vcombine.low %v248, %v255
    %v264 = vcombine.high %v248, %v255
    %v265 = vcombine.high %v262, %v262
    %v267 = vunpack.c.l.s4 1966171168
    %v268 = vunpack.c.0.s8 %v267
    %v269 = vlaneseq
    %v270 = vshrl.u32 %v269, 7
    %v271 = vsub.s32 %v268, %v270
    %v272 = vrot.slane %v263, %v271
    %v274 = vunpack.c.l.s4 1966171168
    %v275 = vunpack.c.0.s8 %v274
    %v276 = vlaneseq
    %v277 = vshrl.u32 %v276, 7
    %v278 = vsub.s32 %v275, %v277
    %v279 = vrot.slane %v264, %v278
    %v281 = vunpack.c.l.s4 1966171168
    %v282 = vunpack.c.0.s8 %v281
    %v283 = vlaneseq
    %v284 = vshrl.u32 %v283, 7
    %v285 = vsub.s32 %v282, %v284
    %v286 = vrot.slane %v262, %v285
    %v288 = vunpack.c.l.s4 1966171168
    %v289 = vunpack.c.0.s8 %v288
    %v290 = vlaneseq
    %v291 = vshrl.u32 %v290, 7
    %v292 = vsub.s32 %v289, %v291
    %v293 = vrot.slane %v265, %v292
    %v294 = vcombine.low %v272, %v286
    %v295 = vcombine.low %v279, %v293
    %v351 = vunpack.c.l.b16 %v135
    %v352 = vunpack.c.h.b16 %v135
    %v353 = vunpack.c.l.b16 %v136
    %v354 = vunpack.c.h.b16 %v136
    %v355 = vunpack.c.l.b16 %v137
    %v356 = vunpack.c.h.b16 %v137
    %v357 = vunpack.c.l.b16 %v138
    %v358 = vunpack.c.h.b16 %v138
    %v359 = vunpack.c.l.b16 %v139
    %v360 = vunpack.c.h.b16 %v139
    %v361 = vunpack.c.l.b16 %v140
    %v362 = vunpack.c.h.b16 %v140
    %v363 = vunpack.c.l.b16 %v141
    %v364 = vunpack.c.h.b16 %v141
    %v365 = vunpack.c.l.b16 %v142
    %v366 = vunpack.c.h.b16 %v142
    %v367 = vunpack.c.l.b16 %v143
    %v368 = vunpack.c.h.b16 %v143
    %v369 = vunpack.c.l.b16 %v144
    %v370 = vunpack.c.h.b16 %v144
    %v371 = vunpack.c.l.b16 %v145
    %v372 = vunpack.c.h.b16 %v145
    %v373 = vunpack.c.l.b16 %v146
    %v374 = vunpack.c.h.b16 %v146
    %v375 = vunpack.c.l.b16 %v147
    %v376 = vunpack.c.h.b16 %v147
    %v377 = vunpack.c.l.b16 %v148
    %v378 = vunpack.c.h.b16 %v148
    %v379 = vunpack.c.l.b16 %v149
    %v380 = vunpack.c.h.b16 %v149
    %v381 = vunpack.c.l.b16 %v150
    %v382 = vunpack.c.h.b16 %v150
    %v383 = vunpack.c.l.b16 %v151
    %v384 = vunpack.c.h.b16 %v151
    %v385 = vunpack.c.l.b16 %v152
    %v386 = vunpack.c.h.b16 %v152
    %v387 = vunpack.c.l.b16 %v153
    %v388 = vunpack.c.h.b16 %v153
    %v389 = vunpack.c.l.b16 %v154
    %v390 = vunpack.c.h.b16 %v154
    %v391 = vunpack.c.l.b16 %v155
    %v392 = vunpack.c.h.b16 %v155
    %v393 = vunpack.c.l.b16 %v156
    %v394 = vunpack.c.h.b16 %v156
    %v395 = vunpack.c.l.b16 %v157
    %v396 = vunpack.c.h.b16 %v157
    %v397 = vunpack.c.l.b16 %v158
    %v398 = vunpack.c.h.b16 %v158
    %v399 = vunpack.c.l.b16 %v159
    %v400 = vunpack.c.h.b16 %v159
    %v401 = vunpack.c.l.b16 %v160
    %v402 = vunpack.c.h.b16 %v160
    %v403 = vunpack.c.l.b16 %v161
    %v404 = vunpack.c.h.b16 %v161
    %v405 = vunpack.c.l.b16 %v162
    %v406 = vunpack.c.h.b16 %v162
    %v407 = vunpack.c.l.b16 %v163
    %v408 = vunpack.c.h.b16 %v163
    %v409 = vunpack.c.l.b16 %v164
    %v410 = vunpack.c.h.b16 %v164
    %v411 = vunpack.c.l.b16 %v165
    %v412 = vunpack.c.h.b16 %v165
    %v413 = vunpack.c.l.b16 %v166
    %v414 = vunpack.c.h.b16 %v166
    %v415 = vunpack.c.l.b16 %v167
    %v416 = vunpack.c.h.b16 %v167
    %v417 = vunpack.c.l.b16 %v168
    %v418 = vunpack.c.h.b16 %v168
    %v419 = vunpack.c.l.b16 %v169
    %v420 = vunpack.c.h.b16 %v169
    %v421 = vunpack.c.l.b16 %v170
    %v422 = vunpack.c.h.b16 %v170
    %v423 = vunpack.c.l.b16 %v171
    %v424 = vunpack.c.h.b16 %v171
    %v425 = vunpack.c.l.b16 %v172
    %v426 = vunpack.c.h.b16 %v172
    %v427 = vunpack.c.l.b16 %v173
    %v428 = vunpack.c.h.b16 %v173
    %v429 = vunpack.c.l.b16 %v174
    %v430 = vunpack.c.h.b16 %v174
    %v431 = vunpack.c.l.b16 %v175
    %v432 = vunpack.c.h.b16 %v175
    %v433 = vunpack.c.l.b16 %v176
    %v434 = vunpack.c.h.b16 %v176
    %v435 = vunpack.c.l.b16 %v177
    %v436 = vunpack.c.h.b16 %v177
    %v437 = vunpack.c.l.b16 %v178
    %v438 = vunpack.c.h.b16 %v178
    %v439 = vunpack.c.l.b16 %v179
    %v440 = vunpack.c.h.b16 %v179
    %v441 = vunpack.c.l.b16 %v180
    %v442 = vunpack.c.h.b16 %v180
    %v443 = vunpack.c.l.b16 %v181
    %v444 = vunpack.c.h.b16 %v181
    %v445 = vunpack.c.l.b16 %v182
    %v446 = vunpack.c.h.b16 %v182
    %v447 = vunpack.c.l.b16 %v183
    %v448 = vunpack.c.h.b16 %v183
    %v449 = vunpack.c.l.b16 %v184
    %v450 = vunpack.c.h.b16 %v184
    %v451 = vunpack.c.l.b16 %v185
    %v452 = vunpack.c.h.b16 %v185
    %v453 = vunpack.c.l.b16 %v186
    %v454 = vunpack.c.h.b16 %v186
    %v455 = vunpack.c.l.b16 %v187
    %v456 = vunpack.c.h.b16 %v187
    %v457 = vunpack.c.l.b16 %v188
    %v458 = vunpack.c.h.b16 %v188
    %v459 = vpack.c.b16 %v357, %v351
    %v460 = vpack.c.b16 %v358, %v352
    %v461 = vpack.c.b16 %v359, %v353
    %v462 = vpack.c.b16 %v360, %v354
    %v463 = vpack.c.b16 %v361, %v355
    %v464 = vpack.c.b16 %v362, %v356
    %v465 = vpack.c.b16 %v369, %v363
    %v466 = vpack.c.b16 %v370, %v364
    %v467 = vpack.c.b16 %v371, %v365
    %v468 = vpack.c.b16 %v372, %v366
    %v469 = vpack.c.b16 %v373, %v367
    %v470 = vpack.c.b16 %v374, %v368
    %v471 = vpack.c.b16 %v381, %v375
    %v472 = vpack.c.b16 %v382, %v376
    %v473 = vpack.c.b16 %v383, %v377
    %v474 = vpack.c.b16 %v384, %v378
    %v475 = vpack.c.b16 %v385, %v379
    %v476 = vpack.c.b16 %v386, %v380
    %v477 = vpack.c.b16 %v393, %v387
    %v478 = vpack.c.b16 %v394, %v388
    %v479 = vpack.c.b16 %v395, %v389
    %v480 = vpack.c.b16 %v396, %v390
    %v481 = vpack.c.b16 %v397, %v391
    %v482 = vpack.c.b16 %v398, %v392
    %v483 = vpack.c.b16 %v405, %v399
    %v484 = vpack.c.b16 %v406, %v400
    %v485 = vpack.c.b16 %v407, %v401
    %v486 = vpack.c.b16 %v408, %v402
    %v487 = vpack.c.b16 %v409, %v403
    %v488 = vpack.c.b16 %v410, %v404
    %v489 = vpack.c.b16 %v417, %v411
    %v490 = vpack.c.b16 %v418, %v412
    %v491 = vpack.c.b16 %v419, %v413
    %v492 = vpack.c.b16 %v420, %v414
    %v493 = vpack.c.b16 %v421, %v415
    %v494 = vpack.c.b16 %v422, %v416
    %v495 = vpack.c.b16 %v429, %v423
    %v496 = vpack.c.b16 %v430, %v424
    %v497 = vpack.c.b16 %v431, %v425
    %v498 = vpack.c.b16 %v432, %v426
    %v499 = vpack.c.b16 %v433, %v427
    %v500 = vpack.c.b16 %v434, %v428
    %v501 = vpack.c.b16 %v441, %v435
    %v502 = vpack.c.b16 %v442, %v436
    %v503 = vpack.c.b16 %v443, %v437
    %v504 = vpack.c.b16 %v444, %v438
    %v505 = vpack.c.b16 %v445, %v439
    %v506 = vpack.c.b16 %v446, %v440
    %v507 = vpack.c.b16 %v453, %v447
    %v508 = vpack.c.b16 %v454, %v448
    %v509 = vpack.c.b16 %v455, %v449
    %v510 = vpack.c.b16 %v456, %v450
    %v511 = vpack.c.b16 %v457, %v451
    %v512 = vpack.c.b16 %v458, %v452
    %vm561 = vcmask 97280
    %v563 = vsel %vm561, %v295, 0
    %vm565 = vcmask 1045504
    %v567 = vsel %vm565, %v507, 0
    %v570 = vsel %vm565, %v508, 0
    %v573 = vsel %vm565, %v509, 0
    %v576 = vsel %vm565, %v510, 0
    %v579 = vsel %vm565, %v511, 0
    %v582 = vsel %vm565, %v512, 0
    %584 = vmatprep.subr.bf16.mxu0 %v502
    %585 = vmatpush1.bf16.msra.mxu0 %v501
    %586 = vmatprep.subr.bf16.mxu0 %v496
    %587 = vmatpush1.bf16.msra.mxu0 %v495
    %588 = vmatprep.subr.bf16.mxu0 %v490
    %589 = vmatpush1.bf16.msra.mxu0 %v489
    %590 = vmatprep.subr.bf16.mxu0 %v484
    %591 = vmatpush1.bf16.msra.mxu0 %v483
    %592 = vmatprep.subr.bf16.mxu0 %v478
    %593 = vmatpush1.bf16.msra.mxu0 %v477
    %594 = vmatprep.subr.bf16.mxu0 %v472
    %595 = vmatpush1.bf16.msra.mxu0 %v471
    %596 = vmatprep.subr.bf16.mxu0 %v466
    %597 = vmatpush1.bf16.msra.mxu0 %v465
    %598 = vmatprep.subr.bf16.mxu0 %v460
    %599 = vmatpush1.bf16.msra.mxu0 %v459
    %600 = vmatprep.subr.bf16.mxu0 0
    %601 = vmatpush2.bf16.msra.mxu0 0
    %602 = vmatprep.subr.bf16.mxu0 0
    %603 = vmatpush2.bf16.msra.mxu0 0
    %604 = vmatprep.subr.bf16.mxu0 0
    %605 = vmatpush2.bf16.msra.mxu0 0
    %606 = vmatprep.subr.bf16.mxu0 0
    %607 = vmatpush2.bf16.msra.mxu0 0
    %608 = vmatprep.subr.bf16.mxu0 0
    %609 = vmatpush2.bf16.msra.mxu0 0
    %610 = vmatprep.subr.bf16.mxu0 0
    %611 = vmatpush2.bf16.msra.mxu0 0
    %612 = vmatprep.subr.bf16.mxu0 0
    %613 = vmatpush2.bf16.msra.mxu0 0
    %614 = vmatprep.subr.bf16.mxu0 %v570
    %615 = vmatpush2.bf16.msra.mxu0 %v567
    %616 = vmatprep.mubr.bf16.mxu0 %v563
    %617 = vmatmul.mubr.bf16.gmra.mxu0 %v294
    %v618 = vpop.f32.mrf.mxu0
    %v619 = vadd.f32 0.0, %v618
    %v620 = vpop.f32.mrf.mxu0
    %v621 = vadd.f32 0.0, %v620
    %v622 = vpop.f32.mrf.mxu0
    %v623 = vadd.f32 0.0, %v622
    %v624 = vpop.f32.mrf.mxu0
    %v625 = vadd.f32 0.0, %v624
    %626 = vdwg.mxu0
    %627 = vmatprep.subr.bf16.mxu0 %v504
    %628 = vmatpush1.bf16.msra.mxu0 %v503
    %629 = vmatprep.subr.bf16.mxu0 %v498
    %630 = vmatpush1.bf16.msra.mxu0 %v497
    %631 = vmatprep.subr.bf16.mxu0 %v492
    %632 = vmatpush1.bf16.msra.mxu0 %v491
    %633 = vmatprep.subr.bf16.mxu0 %v486
    %634 = vmatpush1.bf16.msra.mxu0 %v485
    %635 = vmatprep.subr.bf16.mxu0 %v480
    %636 = vmatpush1.bf16.msra.mxu0 %v479
    %637 = vmatprep.subr.bf16.mxu0 %v474
    %638 = vmatpush1.bf16.msra.mxu0 %v473
    %639 = vmatprep.subr.bf16.mxu0 %v468
    %640 = vmatpush1.bf16.msra.mxu0 %v467
    %641 = vmatprep.subr.bf16.mxu0 %v462
    %642 = vmatpush1.bf16.msra.mxu0 %v461
    %643 = vmatprep.subr.bf16.mxu0 0
    %644 = vmatpush2.bf16.msra.mxu0 0
    %645 = vmatprep.subr.bf16.mxu0 0
    %646 = vmatpush2.bf16.msra.mxu0 0
    %647 = vmatprep.subr.bf16.mxu0 0
    %648 = vmatpush2.bf16.msra.mxu0 0
    %649 = vmatprep.subr.bf16.mxu0 0
    %650 = vmatpush2.bf16.msra.mxu0 0
    %651 = vmatprep.subr.bf16.mxu0 0
    %652 = vmatpush2.bf16.msra.mxu0 0
    %653 = vmatprep.subr.bf16.mxu0 0
    %654 = vmatpush2.bf16.msra.mxu0 0
    %655 = vmatprep.subr.bf16.mxu0 0
    %656 = vmatpush2.bf16.msra.mxu0 0
    %657 = vmatprep.subr.bf16.mxu0 %v576
    %658 = vmatpush2.bf16.msra.mxu0 %v573
    %659 = vmatprep.mubr.bf16.mxu0 %v563
    %660 = vmatmul.mubr.bf16.gmra.mxu0 %v294
    %v661 = vpop.f32.mrf.mxu0
    %v662 = vadd.f32 0.0, %v661
    %v663 = vpop.f32.mrf.mxu0
    %v664 = vadd.f32 0.0, %v663
    %v665 = vpop.f32.mrf.mxu0
    %v666 = vadd.f32 0.0, %v665
    %v667 = vpop.f32.mrf.mxu0
    %v668 = vadd.f32 0.0, %v667
    %669 = vdwg.mxu0
    %670 = vmatprep.subr.bf16.mxu0 %v506
    %671 = vmatpush1.bf16.msra.mxu0 %v505
    %672 = vmatprep.subr.bf16.mxu0 %v500
    %673 = vmatpush1.bf16.msra.mxu0 %v499
    %674 = vmatprep.subr.bf16.mxu0 %v494
    %675 = vmatpush1.bf16.msra.mxu0 %v493
    %676 = vmatprep.subr.bf16.mxu0 %v488
    %677 = vmatpush1.bf16.msra.mxu0 %v487
    %678 = vmatprep.subr.bf16.mxu0 %v482
    %679 = vmatpush1.bf16.msra.mxu0 %v481
    %680 = vmatprep.subr.bf16.mxu0 %v476
    %681 = vmatpush1.bf16.msra.mxu0 %v475
    %682 = vmatprep.subr.bf16.mxu0 %v470
    %683 = vmatpush1.bf16.msra.mxu0 %v469
    %684 = vmatprep.subr.bf16.mxu0 %v464
    %685 = vmatpush1.bf16.msra.mxu0 %v463
    %686 = vmatprep.subr.bf16.mxu0 0
    %687 = vmatpush2.bf16.msra.mxu0 0
    %688 = vmatprep.subr.bf16.mxu0 0
    %689 = vmatpush2.bf16.msra.mxu0 0
    %690 = vmatprep.subr.bf16.mxu0 0
    %691 = vmatpush2.bf16.msra.mxu0 0
    %692 = vmatprep.subr.bf16.mxu0 0
    %693 = vmatpush2.bf16.msra.mxu0 0
    %694 = vmatprep.subr.bf16.mxu0 0
    %695 = vmatpush2.bf16.msra.mxu0 0
    %696 = vmatprep.subr.bf16.mxu0 0
    %697 = vmatpush2.bf16.msra.mxu0 0
    %698 = vmatprep.subr.bf16.mxu0 0
    %699 = vmatpush2.bf16.msra.mxu0 0
    %700 = vmatprep.subr.bf16.mxu0 %v582
    %701 = vmatpush2.bf16.msra.mxu0 %v579
    %702 = vmatprep.mubr.bf16.mxu0 %v563
    %703 = vmatmul.mubr.bf16.gmra.mxu0 %v294
    %v704 = vpop.f32.mrf.mxu0
    %v705 = vadd.f32 0.0, %v704
    %v706 = vpop.f32.mrf.mxu0
    %v707 = vadd.f32 0.0, %v706
    %v708 = vpop.f32.mrf.mxu0
    %v709 = vadd.f32 0.0, %v708
    %v710 = vpop.f32.mrf.mxu0
    %v711 = vadd.f32 0.0, %v710
    %712 = vdwg.mxu0
    %s713 = scalar_lea.vmem %s0, 8
    %v714 = vld [vmem:[%s713] sm:$0x77]
    %v715 = vld [vmem:[%s713 + $0x20] sm:$0x77]
    %v719 = vunpack.c.l.s4 1966171168
    %v720 = vunpack.c.0.s8 %v719
    %v721 = vlaneseq
    %v722 = vshrl.u32 %v721, 7
    %v723 = vsub.s32 %v720, %v722
    %v724 = vrot.slane %v714, %v723
    %v725 = vcombine.high %v724, %v724
    %v727 = vunpack.c.l.s4 1966171168
    %v728 = vunpack.c.0.s8 %v727
    %v729 = vlaneseq
    %v730 = vshrl.u32 %v729, 7
    %v731 = vsub.s32 %v728, %v730
    %v732 = vrot.slane %v724, %v731
    %v734 = vunpack.c.l.s4 1966171168
    %v735 = vunpack.c.0.s8 %v734
    %v736 = vlaneseq
    %v737 = vshrl.u32 %v736, 7
    %v738 = vsub.s32 %v735, %v737
    %v739 = vrot.slane %v725, %v738
    %v740 = vcombine.high %v732, %v732
    %v742 = vunpack.c.l.s4 1966171168
    %v743 = vunpack.c.0.s8 %v742
    %v744 = vlaneseq
    %v745 = vshrl.u32 %v744, 7
    %v746 = vsub.s32 %v743, %v745
    %v747 = vrot.slane %v715, %v746
    %v748 = vcombine.high %v747, %v747
    %v750 = vunpack.c.l.s4 1966171168
    %v751 = vunpack.c.0.s8 %v750
    %v752 = vlaneseq
    %v753 = vshrl.u32 %v752, 7
    %v754 = vsub.s32 %v751, %v753
    %v755 = vrot.slane %v747, %v754
    %v757 = vunpack.c.l.s4 1966171168
    %v758 = vunpack.c.0.s8 %v757
    %v759 = vlaneseq
    %v760 = vshrl.u32 %v759, 7
    %v761 = vsub.s32 %v758, %v760
    %v762 = vrot.slane %v748, %v761
    %v763 = vcombine.high %v755, %v755
    %v764 = vcombine.low %v732, %v739
    %v765 = vcombine.low %v740, %v755
    %v766 = vcombine.low %v762, %v763
    %v768 = vunpack.c.l.s4 1966171168
    %v769 = vunpack.c.0.s8 %v768
    %v770 = vlaneseq
    %v771 = vshrl.u32 %v770, 7
    %v772 = vsub.s32 %v769, %v771
    %v773 = vrot.slane %v764, %v772
    %v775 = vunpack.c.l.s4 1966171168
    %v776 = vunpack.c.0.s8 %v775
    %v777 = vlaneseq
    %v778 = vshrl.u32 %v777, 7
    %v779 = vsub.s32 %v776, %v778
    %v780 = vrot.slane %v765, %v779
    %v782 = vunpack.c.l.s4 1966171168
    %v783 = vunpack.c.0.s8 %v782
    %v784 = vlaneseq
    %v785 = vshrl.u32 %v784, 7
    %v786 = vsub.s32 %v783, %v785
    %v787 = vrot.slane %v766, %v786
    %v788 = vcombine.low %v773, %v780
    %v789 = vcombine.high %v773, %v780
    %v790 = vcombine.high %v787, %v787
    %v792 = vunpack.c.l.s4 1966171168
    %v793 = vunpack.c.0.s8 %v792
    %v794 = vlaneseq
    %v795 = vshrl.u32 %v794, 7
    %v796 = vsub.s32 %v793, %v795
    %v797 = vrot.slane %v788, %v796
    %v799 = vunpack.c.l.s4 1966171168
    %v800 = vunpack.c.0.s8 %v799
    %v801 = vlaneseq
    %v802 = vshrl.u32 %v801, 7
    %v803 = vsub.s32 %v800, %v802
    %v804 = vrot.slane %v789, %v803
    %v806 = vunpack.c.l.s4 1966171168
    %v807 = vunpack.c.0.s8 %v806
    %v808 = vlaneseq
    %v809 = vshrl.u32 %v808, 7
    %v810 = vsub.s32 %v807, %v809
    %v811 = vrot.slane %v787, %v810
    %v813 = vunpack.c.l.s4 1966171168
    %v814 = vunpack.c.0.s8 %v813
    %v815 = vlaneseq
    %v816 = vshrl.u32 %v815, 7
    %v817 = vsub.s32 %v814, %v816
    %v818 = vrot.slane %v790, %v817
    %v819 = vcombine.low %v797, %v811
    %v820 = vcombine.low %v804, %v818
    %v823 = vsel %vm561, %v820, 0
    %825 = vmatprep.subr.bf16.mxu0 %v502
    %826 = vmatpush1.bf16.msra.mxu0 %v501
    %827 = vmatprep.subr.bf16.mxu0 %v496
    %828 = vmatpush1.bf16.msra.mxu0 %v495
    %829 = vmatprep.subr.bf16.mxu0 %v490
    %830 = vmatpush1.bf16.msra.mxu0 %v489
    %831 = vmatprep.subr.bf16.mxu0 %v484
    %832 = vmatpush1.bf16.msra.mxu0 %v483
    %833 = vmatprep.subr.bf16.mxu0 %v478
    %834 = vmatpush1.bf16.msra.mxu0 %v477
    %835 = vmatprep.subr.bf16.mxu0 %v472
    %836 = vmatpush1.bf16.msra.mxu0 %v471
    %837 = vmatprep.subr.bf16.mxu0 %v466
    %838 = vmatpush1.bf16.msra.mxu0 %v465
    %839 = vmatprep.subr.bf16.mxu0 %v460
    %840 = vmatpush1.bf16.msra.mxu0 %v459
    %841 = vmatprep.subr.bf16.mxu0 0
    %842 = vmatpush2.bf16.msra.mxu0 0
    %843 = vmatprep.subr.bf16.mxu0 0
    %844 = vmatpush2.bf16.msra.mxu0 0
    %845 = vmatprep.subr.bf16.mxu0 0
    %846 = vmatpush2.bf16.msra.mxu0 0
    %847 = vmatprep.subr.bf16.mxu0 0
    %848 = vmatpush2.bf16.msra.mxu0 0
    %849 = vmatprep.subr.bf16.mxu0 0
    %850 = vmatpush2.bf16.msra.mxu0 0
    %851 = vmatprep.subr.bf16.mxu0 0
    %852 = vmatpush2.bf16.msra.mxu0 0
    %853 = vmatprep.subr.bf16.mxu0 0
    %854 = vmatpush2.bf16.msra.mxu0 0
    %855 = vmatprep.subr.bf16.mxu0 %v570
    %856 = vmatpush2.bf16.msra.mxu0 %v567
    %857 = vmatprep.mubr.bf16.mxu0 %v823
    %858 = vmatmul.mubr.bf16.gmra.mxu0 %v819
    %v859 = vpop.f32.mrf.mxu0
    %v860 = vadd.f32 0.0, %v859
    %v861 = vpop.f32.mrf.mxu0
    %v862 = vadd.f32 0.0, %v861
    %v863 = vpop.f32.mrf.mxu0
    %v864 = vadd.f32 0.0, %v863
    %v865 = vpop.f32.mrf.mxu0
    %v866 = vadd.f32 0.0, %v865
    %867 = vdwg.mxu0
    %868 = vmatprep.subr.bf16.mxu0 %v504
    %869 = vmatpush1.bf16.msra.mxu0 %v503
    %870 = vmatprep.subr.bf16.mxu0 %v498
    %871 = vmatpush1.bf16.msra.mxu0 %v497
    %872 = vmatprep.subr.bf16.mxu0 %v492
    %873 = vmatpush1.bf16.msra.mxu0 %v491
    %874 = vmatprep.subr.bf16.mxu0 %v486
    %875 = vmatpush1.bf16.msra.mxu0 %v485
    %876 = vmatprep.subr.bf16.mxu0 %v480
    %877 = vmatpush1.bf16.msra.mxu0 %v479
    %878 = vmatprep.subr.bf16.mxu0 %v474
    %879 = vmatpush1.bf16.msra.mxu0 %v473
    %880 = vmatprep.subr.bf16.mxu0 %v468
    %881 = vmatpush1.bf16.msra.mxu0 %v467
    %882 = vmatprep.subr.bf16.mxu0 %v462
    %883 = vmatpush1.bf16.msra.mxu0 %v461
    %884 = vmatprep.subr.bf16.mxu0 0
    %885 = vmatpush2.bf16.msra.mxu0 0
    %886 = vmatprep.subr.bf16.mxu0 0
    %887 = vmatpush2.bf16.msra.mxu0 0
    %888 = vmatprep.subr.bf16.mxu0 0
    %889 = vmatpush2.bf16.msra.mxu0 0
    %890 = vmatprep.subr.bf16.mxu0 0
    %891 = vmatpush2.bf16.msra.mxu0 0
    %892 = vmatprep.subr.bf16.mxu0 0
    %893 = vmatpush2.bf16.msra.mxu0 0
    %894 = vmatprep.subr.bf16.mxu0 0
    %895 = vmatpush2.bf16.msra.mxu0 0
    %896 = vmatprep.subr.bf16.mxu0 0
    %897 = vmatpush2.bf16.msra.mxu0 0
    %898 = vmatprep.subr.bf16.mxu0 %v576
    %899 = vmatpush2.bf16.msra.mxu0 %v573
    %900 = vmatprep.mubr.bf16.mxu0 %v823
    %901 = vmatmul.mubr.bf16.gmra.mxu0 %v819
    %v902 = vpop.f32.mrf.mxu0
    %v903 = vadd.f32 0.0, %v902
    %v904 = vpop.f32.mrf.mxu0
    %v905 = vadd.f32 0.0, %v904
    %v906 = vpop.f32.mrf.mxu0
    %v907 = vadd.f32 0.0, %v906
    %v908 = vpop.f32.mrf.mxu0
    %v909 = vadd.f32 0.0, %v908
    %910 = vdwg.mxu0
    %911 = vmatprep.subr.bf16.mxu0 %v506
    %912 = vmatpush1.bf16.msra.mxu0 %v505
    %913 = vmatprep.subr.bf16.mxu0 %v500
    %914 = vmatpush1.bf16.msra.mxu0 %v499
    %915 = vmatprep.subr.bf16.mxu0 %v494
    %916 = vmatpush1.bf16.msra.mxu0 %v493
    %917 = vmatprep.subr.bf16.mxu0 %v488
    %918 = vmatpush1.bf16.msra.mxu0 %v487
    %919 = vmatprep.subr.bf16.mxu0 %v482
    %920 = vmatpush1.bf16.msra.mxu0 %v481
    %921 = vmatprep.subr.bf16.mxu0 %v476
    %922 = vmatpush1.bf16.msra.mxu0 %v475
    %923 = vmatprep.subr.bf16.mxu0 %v470
    %924 = vmatpush1.bf16.msra.mxu0 %v469
    %925 = vmatprep.subr.bf16.mxu0 %v464
    %926 = vmatpush1.bf16.msra.mxu0 %v463
    %927 = vmatprep.subr.bf16.mxu0 0
    %928 = vmatpush2.bf16.msra.mxu0 0
    %929 = vmatprep.subr.bf16.mxu0 0
    %930 = vmatpush2.bf16.msra.mxu0 0
    %931 = vmatprep.subr.bf16.mxu0 0
    %932 = vmatpush2.bf16.msra.mxu0 0
    %933 = vmatprep.subr.bf16.mxu0 0
    %934 = vmatpush2.bf16.msra.mxu0 0
    %935 = vmatprep.subr.bf16.mxu0 0
    %936 = vmatpush2.bf16.msra.mxu0 0
    %937 = vmatprep.subr.bf16.mxu0 0
    %938 = vmatpush2.bf16.msra.mxu0 0
    %939 = vmatprep.subr.bf16.mxu0 0
    %940 = vmatpush2.bf16.msra.mxu0 0
    %941 = vmatprep.subr.bf16.mxu0 %v582
    %942 = vmatpush2.bf16.msra.mxu0 %v579
    %943 = vmatprep.mubr.bf16.mxu0 %v823
    %944 = vmatmul.mubr.bf16.gmra.mxu0 %v819
    %v945 = vpop.f32.mrf.mxu0
    %v946 = vadd.f32 0.0, %v945
    %v947 = vpop.f32.mrf.mxu0
    %v948 = vadd.f32 0.0, %v947
    %v949 = vpop.f32.mrf.mxu0
    %v950 = vadd.f32 0.0, %v949
    %v951 = vpop.f32.mrf.mxu0
    %v952 = vadd.f32 0.0, %v951
    %953 = vdwg.mxu0
    %v954 = vmax.f32 %v619, %v860
    %v955 = vmax.f32 %v621, %v862
    %v956 = vmax.f32 %v662, %v903
    %v957 = vmax.f32 %v664, %v905
    %v958 = vmax.f32 %v705, %v946
    %v959 = vmax.f32 %v707, %v948
    %v960 = vmax.f32 %v623, %v864
    %v961 = vmax.f32 %v625, %v866
    %v962 = vmax.f32 %v666, %v907
    %v963 = vmax.f32 %v668, %v909
    %v964 = vmax.f32 %v709, %v950
    %v965 = vmax.f32 %v711, %v952
    %v966 = vmax.f32 %v954, %v957
    %v967 = vmax.f32 %v955, %v958
    %v968 = vmax.f32 %v956, %v959
    %v969 = vmax.f32 %v960, %v963
    %v970 = vmax.f32 %v961, %v964
    %v971 = vmax.f32 %v962, %v965
    %v972 = vld [vmem:[#allocation5] sm:$0x7]
    %v974 = vlaneseq
    %v975 = vshrl.u32 %v974, 7
    %v976 = vsub.s32 0, %v975
    %v977 = vrot.slane %v972, %v976
    %v978 = vlaneseq
    %v979 = vshrl.u32 %v978, 7
    %v980 = vsub.s32 1, %v979
    %v981 = vrot.slane %v972, %v980
    %v982 = vlaneseq
    %v983 = vshrl.u32 %v982, 7
    %v984 = vsub.s32 2, %v983
    %v985 = vrot.slane %v972, %v984
    %v989 = vadd.f32 %v966, %v977
    %v990 = vadd.f32 %v967, %v981
    %v991 = vadd.f32 %v968, %v985
    %v992 = vadd.f32 %v969, %v977
    %v993 = vadd.f32 %v970, %v981
    %v994 = vadd.f32 %v971, %v985
    %v995 = vmax.f32 %v989, 0.0
    %v996 = vmax.f32 %v990, 0.0
    %v997 = vmax.f32 %v991, 0.0
    %v998 = vmax.f32 %v992, 0.0
    %v999 = vmax.f32 %v993, 0.0
    %v1000 = vmax.f32 %v994, 0.0
    %v1001 = vpack.c.bf16 %v998, %v995
    %v1002 = vpack.c.bf16 %v999, %v996
    %v1003 = vpack.c.bf16 %v1000, %v997
    %v1007 = vcombine.low %v1001, %v1002
    %v1008 = vcombine.high %v1001, %v1002
    %v1009 = vcombine.high %v1003, %v1003
    %v1011 = vunpack.c.l.s4 1966171168
    %v1012 = vunpack.c.0.s8 %v1011
    %v1013 = vlaneseq
    %v1014 = vshrl.u32 %v1013, 7
    %v1015 = vsub.s32 %v1012, %v1014
    %v1016 = vrot.slane %v1007, %v1015
    %v1018 = vunpack.c.l.s4 1966171168
    %v1019 = vunpack.c.0.s8 %v1018
    %v1020 = vlaneseq
    %v1021 = vshrl.u32 %v1020, 7
    %v1022 = vsub.s32 %v1019, %v1021
    %v1023 = vrot.slane %v1008, %v1022
    %v1025 = vunpack.c.l.s4 1966171168
    %v1026 = vunpack.c.0.s8 %v1025
    %v1027 = vlaneseq
    %v1028 = vshrl.u32 %v1027, 7
    %v1029 = vsub.s32 %v1026, %v1028
    %v1030 = vrot.slane %v1003, %v1029
    %v1032 = vunpack.c.l.s4 1966171168
    %v1033 = vunpack.c.0.s8 %v1032
    %v1034 = vlaneseq
    %v1035 = vshrl.u32 %v1034, 7
    %v1036 = vsub.s32 %v1033, %v1035
    %v1037 = vrot.slane %v1009, %v1036
    %v1038 = vcombine.low %v1016, %v1030
    %v1039 = vcombine.high %v1016, %v1030
    %v1040 = vcombine.low %v1023, %v1037
    %v1041 = vcombine.high %v1023, %v1037
    %v1043 = vunpack.c.l.s4 1966171168
    %v1044 = vunpack.c.0.s8 %v1043
    %v1045 = vlaneseq
    %v1046 = vshrl.u32 %v1045, 7
    %v1047 = vsub.s32 %v1044, %v1046
    %v1048 = vrot.slane %v1038, %v1047
    %v1050 = vunpack.c.l.s4 1966171168
    %v1051 = vunpack.c.0.s8 %v1050
    %v1052 = vlaneseq
    %v1053 = vshrl.u32 %v1052, 7
    %v1054 = vsub.s32 %v1051, %v1053
    %v1055 = vrot.slane %v1040, %v1054
    %v1057 = vunpack.c.l.s4 1966171168
    %v1058 = vunpack.c.0.s8 %v1057
    %v1059 = vlaneseq
    %v1060 = vshrl.u32 %v1059, 7
    %v1061 = vsub.s32 %v1058, %v1060
    %v1062 = vrot.slane %v1039, %v1061
    %v1064 = vunpack.c.l.s4 1966171168
    %v1065 = vunpack.c.0.s8 %v1064
    %v1066 = vlaneseq
    %v1067 = vshrl.u32 %v1066, 7
    %v1068 = vsub.s32 %v1065, %v1067
    %v1069 = vrot.slane %v1041, %v1068
    %v1070 = vcombine.high %v1048, %v1048
    %v1071 = vcombine.high %v1062, %v1062
    %s1072 = scalar_lea.vmem %s0, 16
    %v1073 = vld [vmem:[%s1072] sm:$0x77]
    %v1074 = vld [vmem:[%s1072 + $0x20] sm:$0x77]
    %v1078 = vunpack.c.l.s4 1966171168
    %v1079 = vunpack.c.0.s8 %v1078
    %v1080 = vlaneseq
    %v1081 = vshrl.u32 %v1080, 7
    %v1082 = vsub.s32 %v1079, %v1081
    %v1083 = vrot.slane %v1073, %v1082
    %v1084 = vcombine.high %v1083, %v1083
    %v1086 = vunpack.c.l.s4 1966171168
    %v1087 = vunpack.c.0.s8 %v1086
    %v1088 = vlaneseq
    %v1089 = vshrl.u32 %v1088, 7
    %v1090 = vsub.s32 %v1087, %v1089
    %v1091 = vrot.slane %v1083, %v1090
    %v1093 = vunpack.c.l.s4 1966171168
    %v1094 = vunpack.c.0.s8 %v1093
    %v1095 = vlaneseq
    %v1096 = vshrl.u32 %v1095, 7
    %v1097 = vsub.s32 %v1094, %v1096
    %v1098 = vrot.slane %v1084, %v1097
    %v1099 = vcombine.high %v1091, %v1091
    %v1101 = vunpack.c.l.s4 1966171168
    %v1102 = vunpack.c.0.s8 %v1101
    %v1103 = vlaneseq
    %v1104 = vshrl.u32 %v1103, 7
    %v1105 = vsub.s32 %v1102, %v1104
    %v1106 = vrot.slane %v1074, %v1105
    %v1107 = vcombine.high %v1106, %v1106
    %v1109 = vunpack.c.l.s4 1966171168
    %v1110 = vunpack.c.0.s8 %v1109
    %v1111 = vlaneseq
    %v1112 = vshrl.u32 %v1111, 7
    %v1113 = vsub.s32 %v1110, %v1112
    %v1114 = vrot.slane %v1106, %v1113
    %v1116 = vunpack.c.l.s4 1966171168
    %v1117 = vunpack.c.0.s8 %v1116
    %v1118 = vlaneseq
    %v1119 = vshrl.u32 %v1118, 7
    %v1120 = vsub.s32 %v1117, %v1119
    %v1121 = vrot.slane %v1107, %v1120
    %v1122 = vcombine.high %v1114, %v1114
    %v1123 = vcombine.low %v1091, %v1098
    %v1124 = vcombine.low %v1099, %v1114
    %v1125 = vcombine.low %v1121, %v1122
    %v1127 = vunpack.c.l.s4 1966171168
    %v1128 = vunpack.c.0.s8 %v1127
    %v1129 = vlaneseq
    %v1130 = vshrl.u32 %v1129, 7
    %v1131 = vsub.s32 %v1128, %v1130
    %v1132 = vrot.slane %v1123, %v1131
    %v1134 = vunpack.c.l.s4 1966171168
    %v1135 = vunpack.c.0.s8 %v1134
    %v1136 = vlaneseq
    %v1137 = vshrl.u32 %v1136, 7
    %v1138 = vsub.s32 %v1135, %v1137
    %v1139 = vrot.slane %v1124, %v1138
    %v1141 = vunpack.c.l.s4 1966171168
    %v1142 = vunpack.c.0.s8 %v1141
    %v1143 = vlaneseq
    %v1144 = vshrl.u32 %v1143, 7
    %v1145 = vsub.s32 %v1142, %v1144
    %v1146 = vrot.slane %v1125, %v1145
    %v1147 = vcombine.low %v1132, %v1139
    %v1148 = vcombine.high %v1132, %v1139
    %v1149 = vcombine.high %v1146, %v1146
    %v1151 = vunpack.c.l.s4 1966171168
    %v1152 = vunpack.c.0.s8 %v1151
    %v1153 = vlaneseq
    %v1154 = vshrl.u32 %v1153, 7
    %v1155 = vsub.s32 %v1152, %v1154
    %v1156 = vrot.slane %v1147, %v1155
    %v1158 = vunpack.c.l.s4 1966171168
    %v1159 = vunpack.c.0.s8 %v1158
    %v1160 = vlaneseq
    %v1161 = vshrl.u32 %v1160, 7
    %v1162 = vsub.s32 %v1159, %v1161
    %v1163 = vrot.slane %v1148, %v1162
    %v1165 = vunpack.c.l.s4 1966171168
    %v1166 = vunpack.c.0.s8 %v1165
    %v1167 = vlaneseq
    %v1168 = vshrl.u32 %v1167, 7
    %v1169 = vsub.s32 %v1166, %v1168
    %v1170 = vrot.slane %v1146, %v1169
    %v1172 = vunpack.c.l.s4 1966171168
    %v1173 = vunpack.c.0.s8 %v1172
    %v1174 = vlaneseq
    %v1175 = vshrl.u32 %v1174, 7
    %v1176 = vsub.s32 %v1173, %v1175
    %v1177 = vrot.slane %v1149, %v1176
    %v1178 = vcombine.low %v1156, %v1170
    %v1179 = vcombine.low %v1163, %v1177
    %v1182 = vsel %vm561, %v1179, 0
    %1184 = vmatprep.subr.bf16.mxu0 %v502
    %1185 = vmatpush1.bf16.msra.mxu0 %v501
    %1186 = vmatprep.subr.bf16.mxu0 %v496
    %1187 = vmatpush1.bf16.msra.mxu0 %v495
    %1188 = vmatprep.subr.bf16.mxu0 %v490
    %1189 = vmatpush1.bf16.msra.mxu0 %v489
    %1190 = vmatprep.subr.bf16.mxu0 %v484
    %1191 = vmatpush1.bf16.msra.mxu0 %v483
    %1192 = vmatprep.subr.bf16.mxu0 %v478
    %1193 = vmatpush1.bf16.msra.mxu0 %v477
    %1194 = vmatprep.subr.bf16.mxu0 %v472
    %1195 = vmatpush1.bf16.msra.mxu0 %v471
    %1196 = vmatprep.subr.bf16.mxu0 %v466
    %1197 = vmatpush1.bf16.msra.mxu0 %v465
    %1198 = vmatprep.subr.bf16.mxu0 %v460
    %1199 = vmatpush1.bf16.msra.mxu0 %v459
    %1200 = vmatprep.subr.bf16.mxu0 0
    %1201 = vmatpush2.bf16.msra.mxu0 0
    %1202 = vmatprep.subr.bf16.mxu0 0
    %1203 = vmatpush2.bf16.msra.mxu0 0
    %1204 = vmatprep.subr.bf16.mxu0 0
    %1205 = vmatpush2.bf16.msra.mxu0 0
    %1206 = vmatprep.subr.bf16.mxu0 0
    %1207 = vmatpush2.bf16.msra.mxu0 0
    %1208 = vmatprep.subr.bf16.mxu0 0
    %1209 = vmatpush2.bf16.msra.mxu0 0
    %1210 = vmatprep.subr.bf16.mxu0 0
    %1211 = vmatpush2.bf16.msra.mxu0 0
    %1212 = vmatprep.subr.bf16.mxu0 0
    %1213 = vmatpush2.bf16.msra.mxu0 0
    %1214 = vmatprep.subr.bf16.mxu0 %v570
    %1215 = vmatpush2.bf16.msra.mxu0 %v567
    %1216 = vmatprep.mubr.bf16.mxu0 %v1182
    %1217 = vmatmul.mubr.bf16.gmra.mxu0 %v1178
    %v1218 = vpop.f32.mrf.mxu0
    %v1219 = vadd.f32 0.0, %v1218
    %v1220 = vpop.f32.mrf.mxu0
    %v1221 = vadd.f32 0.0, %v1220
    %v1222 = vpop.f32.mrf.mxu0
    %v1223 = vadd.f32 0.0, %v1222
    %v1224 = vpop.f32.mrf.mxu0
    %v1225 = vadd.f32 0.0, %v1224
    %1226 = vdwg.mxu0
    %1227 = vmatprep.subr.bf16.mxu0 %v504
    %1228 = vmatpush1.bf16.msra.mxu0 %v503
    %1229 = vmatprep.subr.bf16.mxu0 %v498
    %1230 = vmatpush1.bf16.msra.mxu0 %v497
    %1231 = vmatprep.subr.bf16.mxu0 %v492
    %1232 = vmatpush1.bf16.msra.mxu0 %v491
    %1233 = vmatprep.subr.bf16.mxu0 %v486
    %1234 = vmatpush1.bf16.msra.mxu0 %v485
    %1235 = vmatprep.subr.bf16.mxu0 %v480
    %1236 = vmatpush1.bf16.msra.mxu0 %v479
    %1237 = vmatprep.subr.bf16.mxu0 %v474
    %1238 = vmatpush1.bf16.msra.mxu0 %v473
    %1239 = vmatprep.subr.bf16.mxu0 %v468
    %1240 = vmatpush1.bf16.msra.mxu0 %v467
    %1241 = vmatprep.subr.bf16.mxu0 %v462
    %1242 = vmatpush1.bf16.msra.mxu0 %v461
    %1243 = vmatprep.subr.bf16.mxu0 0
    %1244 = vmatpush2.bf16.msra.mxu0 0
    %1245 = vmatprep.subr.bf16.mxu0 0
    %1246 = vmatpush2.bf16.msra.mxu0 0
    %1247 = vmatprep.subr.bf16.mxu0 0
    %1248 = vmatpush2.bf16.msra.mxu0 0
    %1249 = vmatprep.subr.bf16.mxu0 0
    %1250 = vmatpush2.bf16.msra.mxu0 0
    %1251 = vmatprep.subr.bf16.mxu0 0
    %1252 = vmatpush2.bf16.msra.mxu0 0
    %1253 = vmatprep.subr.bf16.mxu0 0
    %1254 = vmatpush2.bf16.msra.mxu0 0
    %1255 = vmatprep.subr.bf16.mxu0 0
    %1256 = vmatpush2.bf16.msra.mxu0 0
    %1257 = vmatprep.subr.bf16.mxu0 %v576
    %1258 = vmatpush2.bf16.msra.mxu0 %v573
    %1259 = vmatprep.mubr.bf16.mxu0 %v1182
    %1260 = vmatmul.mubr.bf16.gmra.mxu0 %v1178
    %v1261 = vpop.f32.mrf.mxu0
    %v1262 = vadd.f32 0.0, %v1261
    %v1263 = vpop.f32.mrf.mxu0
    %v1264 = vadd.f32 0.0, %v1263
    %v1265 = vpop.f32.mrf.mxu0
    %v1266 = vadd.f32 0.0, %v1265
    %v1267 = vpop.f32.mrf.mxu0
    %v1268 = vadd.f32 0.0, %v1267
    %1269 = vdwg.mxu0
    %1270 = vmatprep.subr.bf16.mxu0 %v506
    %1271 = vmatpush1.bf16.msra.mxu0 %v505
    %1272 = vmatprep.subr.bf16.mxu0 %v500
    %1273 = vmatpush1.bf16.msra.mxu0 %v499
    %1274 = vmatprep.subr.bf16.mxu0 %v494
    %1275 = vmatpush1.bf16.msra.mxu0 %v493
    %1276 = vmatprep.subr.bf16.mxu0 %v488
    %1277 = vmatpush1.bf16.msra.mxu0 %v487
    %1278 = vmatprep.subr.bf16.mxu0 %v482
    %1279 = vmatpush1.bf16.msra.mxu0 %v481
    %1280 = vmatprep.subr.bf16.mxu0 %v476
    %1281 = vmatpush1.bf16.msra.mxu0 %v475
    %1282 = vmatprep.subr.bf16.mxu0 %v470
    %1283 = vmatpush1.bf16.msra.mxu0 %v469
    %1284 = vmatprep.subr.bf16.mxu0 %v464
    %1285 = vmatpush1.bf16.msra.mxu0 %v463
    %1286 = vmatprep.subr.bf16.mxu0 0
    %1287 = vmatpush2.bf16.msra.mxu0 0
    %1288 = vmatprep.subr.bf16.mxu0 0
    %1289 = vmatpush2.bf16.msra.mxu0 0
    %1290 = vmatprep.subr.bf16.mxu0 0
    %1291 = vmatpush2.bf16.msra.mxu0 0
    %1292 = vmatprep.subr.bf16.mxu0 0
    %1293 = vmatpush2.bf16.msra.mxu0 0
    %1294 = vmatprep.subr.bf16.mxu0 0
    %1295 = vmatpush2.bf16.msra.mxu0 0
    %1296 = vmatprep.subr.bf16.mxu0 0
    %1297 = vmatpush2.bf16.msra.mxu0 0
    %1298 = vmatprep.subr.bf16.mxu0 0
    %1299 = vmatpush2.bf16.msra.mxu0 0
    %1300 = vmatprep.subr.bf16.mxu0 %v582
    %1301 = vmatpush2.bf16.msra.mxu0 %v579
    %1302 = vmatprep.mubr.bf16.mxu0 %v1182
    %1303 = vmatmul.mubr.bf16.gmra.mxu0 %v1178
    %v1304 = vpop.f32.mrf.mxu0
    %v1305 = vadd.f32 0.0, %v1304
    %v1306 = vpop.f32.mrf.mxu0
    %v1307 = vadd.f32 0.0, %v1306
    %v1308 = vpop.f32.mrf.mxu0
    %v1309 = vadd.f32 0.0, %v1308
    %v1310 = vpop.f32.mrf.mxu0
    %v1311 = vadd.f32 0.0, %v1310
    %1312 = vdwg.mxu0
    %s1313 = scalar_lea.vmem %s0, 24
    %v1314 = vld [vmem:[%s1313] sm:$0x77]
    %v1315 = vld [vmem:[%s1313 + $0x20] sm:$0x77]
    %v1319 = vunpack.c.l.s4 1966171168
    %v1320 = vunpack.c.0.s8 %v1319
    %v1321 = vlaneseq
    %v1322 = vshrl.u32 %v1321, 7
    %v1323 = vsub.s32 %v1320, %v1322
    %v1324 = vrot.slane %v1314, %v1323
    %v1325 = vcombine.high %v1324, %v1324
    %v1327 = vunpack.c.l.s4 1966171168
    %v1328 = vunpack.c.0.s8 %v1327
    %v1329 = vlaneseq
    %v1330 = vshrl.u32 %v1329, 7
    %v1331 = vsub.s32 %v1328, %v1330
    %v1332 = vrot.slane %v1324, %v1331
    %v1334 = vunpack.c.l.s4 1966171168
    %v1335 = vunpack.c.0.s8 %v1334
    %v1336 = vlaneseq
    %v1337 = vshrl.u32 %v1336, 7
    %v1338 = vsub.s32 %v1335, %v1337
    %v1339 = vrot.slane %v1325, %v1338
    %v1340 = vcombine.high %v1332, %v1332
    %v1342 = vunpack.c.l.s4 1966171168
    %v1343 = vunpack.c.0.s8 %v1342
    %v1344 = vlaneseq
    %v1345 = vshrl.u32 %v1344, 7
    %v1346 = vsub.s32 %v1343, %v1345
    %v1347 = vrot.slane %v1315, %v1346
    %v1348 = vcombine.high %v1347, %v1347
    %v1350 = vunpack.c.l.s4 1966171168
    %v1351 = vunpack.c.0.s8 %v1350
    %v1352 = vlaneseq
    %v1353 = vshrl.u32 %v1352, 7
    %v1354 = vsub.s32 %v1351, %v1353
    %v1355 = vrot.slane %v1347, %v1354
    %v1357 = vunpack.c.l.s4 1966171168
    %v1358 = vunpack.c.0.s8 %v1357
    %v1359 = vlaneseq
    %v1360 = vshrl.u32 %v1359, 7
    %v1361 = vsub.s32 %v1358, %v1360
    %v1362 = vrot.slane %v1348, %v1361
    %v1363 = vcombine.high %v1355, %v1355
    %v1364 = vcombine.low %v1332, %v1339
    %v1365 = vcombine.low %v1340, %v1355
    %v1366 = vcombine.low %v1362, %v1363
    %v1368 = vunpack.c.l.s4 1966171168
    %v1369 = vunpack.c.0.s8 %v1368
    %v1370 = vlaneseq
    %v1371 = vshrl.u32 %v1370, 7
    %v1372 = vsub.s32 %v1369, %v1371
    %v1373 = vrot.slane %v1364, %v1372
    %v1375 = vunpack.c.l.s4 1966171168
    %v1376 = vunpack.c.0.s8 %v1375
    %v1377 = vlaneseq
    %v1378 = vshrl.u32 %v1377, 7
    %v1379 = vsub.s32 %v1376, %v1378
    %v1380 = vrot.slane %v1365, %v1379
    %v1382 = vunpack.c.l.s4 1966171168
    %v1383 = vunpack.c.0.s8 %v1382
    %v1384 = vlaneseq
    %v1385 = vshrl.u32 %v1384, 7
    %v1386 = vsub.s32 %v1383, %v1385
    %v1387 = vrot.slane %v1366, %v1386
    %v1388 = vcombine.low %v1373, %v1380
    %v1389 = vcombine.high %v1373, %v1380
    %v1390 = vcombine.high %v1387, %v1387
    %v1392 = vunpack.c.l.s4 1966171168
    %v1393 = vunpack.c.0.s8 %v1392
    %v1394 = vlaneseq
    %v1395 = vshrl.u32 %v1394, 7
    %v1396 = vsub.s32 %v1393, %v1395
    %v1397 = vrot.slane %v1388, %v1396
    %v1399 = vunpack.c.l.s4 1966171168
    %v1400 = vunpack.c.0.s8 %v1399
    %v1401 = vlaneseq
    %v1402 = vshrl.u32 %v1401, 7
    %v1403 = vsub.s32 %v1400, %v1402
    %v1404 = vrot.slane %v1389, %v1403
    %v1406 = vunpack.c.l.s4 1966171168
    %v1407 = vunpack.c.0.s8 %v1406
    %v1408 = vlaneseq
    %v1409 = vshrl.u32 %v1408, 7
    %v1410 = vsub.s32 %v1407, %v1409
    %v1411 = vrot.slane %v1387, %v1410
    %v1413 = vunpack.c.l.s4 1966171168
    %v1414 = vunpack.c.0.s8 %v1413
    %v1415 = vlaneseq
    %v1416 = vshrl.u32 %v1415, 7
    %v1417 = vsub.s32 %v1414, %v1416
    %v1418 = vrot.slane %v1390, %v1417
    %v1419 = vcombine.low %v1397, %v1411
    %v1420 = vcombine.low %v1404, %v1418
    %v1423 = vsel %vm561, %v1420, 0
    %1425 = vmatprep.subr.bf16.mxu0 %v502
    %1426 = vmatpush1.bf16.msra.mxu0 %v501
    %1427 = vmatprep.subr.bf16.mxu0 %v496
    %1428 = vmatpush1.bf16.msra.mxu0 %v495
    %1429 = vmatprep.subr.bf16.mxu0 %v490
    %1430 = vmatpush1.bf16.msra.mxu0 %v489
    %1431 = vmatprep.subr.bf16.mxu0 %v484
    %1432 = vmatpush1.bf16.msra.mxu0 %v483
    %1433 = vmatprep.subr.bf16.mxu0 %v478
    %1434 = vmatpush1.bf16.msra.mxu0 %v477
    %1435 = vmatprep.subr.bf16.mxu0 %v472
    %1436 = vmatpush1.bf16.msra.mxu0 %v471
    %1437 = vmatprep.subr.bf16.mxu0 %v466
    %1438 = vmatpush1.bf16.msra.mxu0 %v465
    %1439 = vmatprep.subr.bf16.mxu0 %v460
    %1440 = vmatpush1.bf16.msra.mxu0 %v459
    %1441 = vmatprep.subr.bf16.mxu0 0
    %1442 = vmatpush2.bf16.msra.mxu0 0
    %1443 = vmatprep.subr.bf16.mxu0 0
    %1444 = vmatpush2.bf16.msra.mxu0 0
    %1445 = vmatprep.subr.bf16.mxu0 0
    %1446 = vmatpush2.bf16.msra.mxu0 0
    %1447 = vmatprep.subr.bf16.mxu0 0
    %1448 = vmatpush2.bf16.msra.mxu0 0
    %1449 = vmatprep.subr.bf16.mxu0 0
    %1450 = vmatpush2.bf16.msra.mxu0 0
    %1451 = vmatprep.subr.bf16.mxu0 0
    %1452 = vmatpush2.bf16.msra.mxu0 0
    %1453 = vmatprep.subr.bf16.mxu0 0
    %1454 = vmatpush2.bf16.msra.mxu0 0
    %1455 = vmatprep.subr.bf16.mxu0 %v570
    %1456 = vmatpush2.bf16.msra.mxu0 %v567
    %1457 = vmatprep.mubr.bf16.mxu0 %v1423
    %1458 = vmatmul.mubr.bf16.gmra.mxu0 %v1419
    %v1459 = vpop.f32.mrf.mxu0
    %v1460 = vadd.f32 0.0, %v1459
    %v1461 = vpop.f32.mrf.mxu0
    %v1462 = vadd.f32 0.0, %v1461
    %v1463 = vpop.f32.mrf.mxu0
    %v1464 = vadd.f32 0.0, %v1463
    %v1465 = vpop.f32.mrf.mxu0
    %v1466 = vadd.f32 0.0, %v1465
    %1467 = vdwg.mxu0
    %1468 = vmatprep.subr.bf16.mxu0 %v504
    %1469 = vmatpush1.bf16.msra.mxu0 %v503
    %1470 = vmatprep.subr.bf16.mxu0 %v498
    %1471 = vmatpush1.bf16.msra.mxu0 %v497
    %1472 = vmatprep.subr.bf16.mxu0 %v492
    %1473 = vmatpush1.bf16.msra.mxu0 %v491
    %1474 = vmatprep.subr.bf16.mxu0 %v486
    %1475 = vmatpush1.bf16.msra.mxu0 %v485
    %1476 = vmatprep.subr.bf16.mxu0 %v480
    %1477 = vmatpush1.bf16.msra.mxu0 %v479
    %1478 = vmatprep.subr.bf16.mxu0 %v474
    %1479 = vmatpush1.bf16.msra.mxu0 %v473
    %1480 = vmatprep.subr.bf16.mxu0 %v468
    %1481 = vmatpush1.bf16.msra.mxu0 %v467
    %1482 = vmatprep.subr.bf16.mxu0 %v462
    %1483 = vmatpush1.bf16.msra.mxu0 %v461
    %1484 = vmatprep.subr.bf16.mxu0 0
    %1485 = vmatpush2.bf16.msra.mxu0 0
    %1486 = vmatprep.subr.bf16.mxu0 0
    %1487 = vmatpush2.bf16.msra.mxu0 0
    %1488 = vmatprep.subr.bf16.mxu0 0
    %1489 = vmatpush2.bf16.msra.mxu0 0
    %1490 = vmatprep.subr.bf16.mxu0 0
    %1491 = vmatpush2.bf16.msra.mxu0 0
    %1492 = vmatprep.subr.bf16.mxu0 0
    %1493 = vmatpush2.bf16.msra.mxu0 0
    %1494 = vmatprep.subr.bf16.mxu0 0
    %1495 = vmatpush2.bf16.msra.mxu0 0
    %1496 = vmatprep.subr.bf16.mxu0 0
    %1497 = vmatpush2.bf16.msra.mxu0 0
    %1498 = vmatprep.subr.bf16.mxu0 %v576
    %1499 = vmatpush2.bf16.msra.mxu0 %v573
    %1500 = vmatprep.mubr.bf16.mxu0 %v1423
    %1501 = vmatmul.mubr.bf16.gmra.mxu0 %v1419
    %v1502 = vpop.f32.mrf.mxu0
    %v1503 = vadd.f32 0.0, %v1502
    %v1504 = vpop.f32.mrf.mxu0
    %v1505 = vadd.f32 0.0, %v1504
    %v1506 = vpop.f32.mrf.mxu0
    %v1507 = vadd.f32 0.0, %v1506
    %v1508 = vpop.f32.mrf.mxu0
    %v1509 = vadd.f32 0.0, %v1508
    %1510 = vdwg.mxu0
    %1511 = vmatprep.subr.bf16.mxu0 %v506
    %1512 = vmatpush1.bf16.msra.mxu0 %v505
    %1513 = vmatprep.subr.bf16.mxu0 %v500
    %1514 = vmatpush1.bf16.msra.mxu0 %v499
    %1515 = vmatprep.subr.bf16.mxu0 %v494
    %1516 = vmatpush1.bf16.msra.mxu0 %v493
    %1517 = vmatprep.subr.bf16.mxu0 %v488
    %1518 = vmatpush1.bf16.msra.mxu0 %v487
    %1519 = vmatprep.subr.bf16.mxu0 %v482
    %1520 = vmatpush1.bf16.msra.mxu0 %v481
    %1521 = vmatprep.subr.bf16.mxu0 %v476
    %1522 = vmatpush1.bf16.msra.mxu0 %v475
    %1523 = vmatprep.subr.bf16.mxu0 %v470
    %1524 = vmatpush1.bf16.msra.mxu0 %v469
    %1525 = vmatprep.subr.bf16.mxu0 %v464
    %1526 = vmatpush1.bf16.msra.mxu0 %v463
    %1527 = vmatprep.subr.bf16.mxu0 0
    %1528 = vmatpush2.bf16.msra.mxu0 0
    %1529 = vmatprep.subr.bf16.mxu0 0
    %1530 = vmatpush2.bf16.msra.mxu0 0
    %1531 = vmatprep.subr.bf16.mxu0 0
    %1532 = vmatpush2.bf16.msra.mxu0 0
    %1533 = vmatprep.subr.bf16.mxu0 0
    %1534 = vmatpush2.bf16.msra.mxu0 0
    %1535 = vmatprep.subr.bf16.mxu0 0
    %1536 = vmatpush2.bf16.msra.mxu0 0
    %1537 = vmatprep.subr.bf16.mxu0 0
    %1538 = vmatpush2.bf16.msra.mxu0 0
    %1539 = vmatprep.subr.bf16.mxu0 0
    %1540 = vmatpush2.bf16.msra.mxu0 0
    %1541 = vmatprep.subr.bf16.mxu0 %v582
    %1542 = vmatpush2.bf16.msra.mxu0 %v579
    %1543 = vmatprep.mubr.bf16.mxu0 %v1423
    %1544 = vmatmul.mubr.bf16.gmra.mxu0 %v1419
    %v1545 = vpop.f32.mrf.mxu0
    %v1546 = vadd.f32 0.0, %v1545
    %v1547 = vpop.f32.mrf.mxu0
    %v1548 = vadd.f32 0.0, %v1547
    %v1549 = vpop.f32.mrf.mxu0
    %v1550 = vadd.f32 0.0, %v1549
    %v1551 = vpop.f32.mrf.mxu0
    %v1552 = vadd.f32 0.0, %v1551
    %1553 = vdwg.mxu0
    %v1554 = vmax.f32 %v1219, %v1460
    %v1555 = vmax.f32 %v1221, %v1462
    %v1556 = vmax.f32 %v1262, %v1503
    %v1557 = vmax.f32 %v1264, %v1505
    %v1558 = vmax.f32 %v1305, %v1546
    %v1559 = vmax.f32 %v1307, %v1548
    %v1560 = vmax.f32 %v1223, %v1464
    %v1561 = vmax.f32 %v1225, %v1466
    %v1562 = vmax.f32 %v1266, %v1507
    %v1563 = vmax.f32 %v1268, %v1509
    %v1564 = vmax.f32 %v1309, %v1550
    %v1565 = vmax.f32 %v1311, %v1552
    %v1566 = vmax.f32 %v1554, %v1557
    %v1567 = vmax.f32 %v1555, %v1558
    %v1568 = vmax.f32 %v1556, %v1559
    %v1569 = vmax.f32 %v1560, %v1563
    %v1570 = vmax.f32 %v1561, %v1564
    %v1571 = vmax.f32 %v1562, %v1565
    %v1572 = vadd.f32 %v1566, %v977
    %v1573 = vadd.f32 %v1567, %v981
    %v1574 = vadd.f32 %v1568, %v985
    %v1575 = vadd.f32 %v1569, %v977
    %v1576 = vadd.f32 %v1570, %v981
    %v1577 = vadd.f32 %v1571, %v985
    %v1578 = vmax.f32 %v1572, 0.0
    %v1579 = vmax.f32 %v1573, 0.0
    %v1580 = vmax.f32 %v1574, 0.0
    %v1581 = vmax.f32 %v1575, 0.0
    %v1582 = vmax.f32 %v1576, 0.0
    %v1583 = vmax.f32 %v1577, 0.0
    %v1584 = vpack.c.bf16 %v1581, %v1578
    %v1585 = vpack.c.bf16 %v1582, %v1579
    %v1586 = vpack.c.bf16 %v1583, %v1580
    %v1590 = vcombine.low %v1584, %v1585
    %v1591 = vcombine.high %v1584, %v1585
    %v1592 = vcombine.high %v1586, %v1586
    %v1594 = vunpack.c.l.s4 1966171168
    %v1595 = vunpack.c.0.s8 %v1594
    %v1596 = vlaneseq
    %v1597 = vshrl.u32 %v1596, 7
    %v1598 = vsub.s32 %v1595, %v1597
    %v1599 = vrot.slane %v1590, %v1598
    %v1601 = vunpack.c.l.s4 1966171168
    %v1602 = vunpack.c.0.s8 %v1601
    %v1603 = vlaneseq
    %v1604 = vshrl.u32 %v1603, 7
    %v1605 = vsub.s32 %v1602, %v1604
    %v1606 = vrot.slane %v1591, %v1605
    %v1608 = vunpack.c.l.s4 1966171168
    %v1609 = vunpack.c.0.s8 %v1608
    %v1610 = vlaneseq
    %v1611 = vshrl.u32 %v1610, 7
    %v1612 = vsub.s32 %v1609, %v1611
    %v1613 = vrot.slane %v1586, %v1612
    %v1615 = vunpack.c.l.s4 1966171168
    %v1616 = vunpack.c.0.s8 %v1615
    %v1617 = vlaneseq
    %v1618 = vshrl.u32 %v1617, 7
    %v1619 = vsub.s32 %v1616, %v1618
    %v1620 = vrot.slane %v1592, %v1619
    %v1621 = vcombine.low %v1599, %v1613
    %v1622 = vcombine.high %v1599, %v1613
    %v1623 = vcombine.low %v1606, %v1620
    %v1624 = vcombine.high %v1606, %v1620
    %v1626 = vunpack.c.l.s4 1966171168
    %v1627 = vunpack.c.0.s8 %v1626
    %v1628 = vlaneseq
    %v1629 = vshrl.u32 %v1628, 7
    %v1630 = vsub.s32 %v1627, %v1629
    %v1631 = vrot.slane %v1621, %v1630
    %v1633 = vunpack.c.l.s4 1966171168
    %v1634 = vunpack.c.0.s8 %v1633
    %v1635 = vlaneseq
    %v1636 = vshrl.u32 %v1635, 7
    %v1637 = vsub.s32 %v1634, %v1636
    %v1638 = vrot.slane %v1623, %v1637
    %v1640 = vunpack.c.l.s4 1966171168
    %v1641 = vunpack.c.0.s8 %v1640
    %v1642 = vlaneseq
    %v1643 = vshrl.u32 %v1642, 7
    %v1644 = vsub.s32 %v1641, %v1643
    %v1645 = vrot.slane %v1622, %v1644
    %v1647 = vunpack.c.l.s4 1966171168
    %v1648 = vunpack.c.0.s8 %v1647
    %v1649 = vlaneseq
    %v1650 = vshrl.u32 %v1649, 7
    %v1651 = vsub.s32 %v1648, %v1650
    %v1652 = vrot.slane %v1624, %v1651
    %v1653 = vcombine.high %v1631, %v1631
    %v1654 = vcombine.high %v1645, %v1645
    %v1655 = vld [vmem:[#allocation7] sm:$0xff]
    %v1656 = vld [vmem:[#allocation7 + $0x8] sm:$0xff]
    %v1657 = vld [vmem:[#allocation7 + $0x10] sm:$0xff]
    %v1658 = vld [vmem:[#allocation7 + $0x18] sm:$0xff]
    %v1659 = vld [vmem:[#allocation7 + $0x20] sm:$0xff]
    %v1660 = vld [vmem:[#allocation7 + $0x28] sm:$0xff]
    %v1661 = vld [vmem:[#allocation7 + $0x30] sm:$0xff]
    %v1662 = vld [vmem:[#allocation7 + $0x38] sm:$0xff]
    %v1663 = vld [vmem:[#allocation7 + $0x40] sm:$0xff]
    %v1664 = vld [vmem:[#allocation7 + $0x48] sm:$0xff]
    %v1665 = vld [vmem:[#allocation7 + $0x50] sm:$0xff]
    %v1666 = vld [vmem:[#allocation7 + $0x58] sm:$0xff]
    %v1667 = vld [vmem:[#allocation7 + $0x60] sm:$0xff]
    %v1668 = vld [vmem:[#allocation7 + $0x68] sm:$0xff]
    %v1669 = vld [vmem:[#allocation7 + $0x70] sm:$0xff]
    %v1670 = vld [vmem:[#allocation7 + $0x78] sm:$0xff]
    %v1671 = vld [vmem:[#allocation7 + $0x80] sm:$0xff]
    %v1672 = vld [vmem:[#allocation7 + $0x88] sm:$0xff]
    %v1673 = vld [vmem:[#allocation7 + $0x90] sm:$0xff]
    %v1674 = vld [vmem:[#allocation7 + $0x98] sm:$0xff]
    %v1675 = vld [vmem:[#allocation7 + $0xa0] sm:$0xff]
    %v1676 = vld [vmem:[#allocation7 + $0xa8] sm:$0xff]
    %v1677 = vld [vmem:[#allocation7 + $0xb0] sm:$0xff]
    %v1678 = vld [vmem:[#allocation7 + $0xb8] sm:$0xff]
    %v1679 = vld [vmem:[#allocation7 + $0xc0] sm:$0xff]
    %v1680 = vld [vmem:[#allocation7 + $0xc8] sm:$0xff]
    %v1681 = vld [vmem:[#allocation7 + $0xd0] sm:$0xff]
    %v1682 = vld [vmem:[#allocation7 + $0xd8] sm:$0xff]
    %v1683 = vld [vmem:[#allocation7 + $0xe0] sm:$0xff]
    %v1684 = vld [vmem:[#allocation7 + $0xe8] sm:$0xff]
    %v1685 = vld [vmem:[#allocation7 + $0xf0] sm:$0xff]
    %v1686 = vld [vmem:[#allocation7 + $0xf8] sm:$0xff]
    %v1687 = vld [vmem:[#allocation7 + $0x100] sm:$0xff]
    %v1688 = vld [vmem:[#allocation7 + $0x108] sm:$0xff]
    %v1689 = vld [vmem:[#allocation7 + $0x110] sm:$0xff]
    %v1690 = vld [vmem:[#allocation7 + $0x118] sm:$0xff]
    %v1691 = vld [vmem:[#allocation7 + $0x120] sm:$0xff]
    %v1692 = vld [vmem:[#allocation7 + $0x128] sm:$0xff]
    %v1693 = vld [vmem:[#allocation7 + $0x130] sm:$0xff]
    %v1694 = vld [vmem:[#allocation7 + $0x138] sm:$0xff]
    %v1695 = vld [vmem:[#allocation7 + $0x140] sm:$0xff]
    %v1696 = vld [vmem:[#allocation7 + $0x148] sm:$0xff]
    %v1697 = vld [vmem:[#allocation7 + $0x150] sm:$0xff]
    %v1698 = vld [vmem:[#allocation7 + $0x158] sm:$0xff]
    %v1699 = vld [vmem:[#allocation7 + $0x160] sm:$0xff]
    %v1700 = vld [vmem:[#allocation7 + $0x168] sm:$0xff]
    %v1701 = vld [vmem:[#allocation7 + $0x170] sm:$0xff]
    %v1702 = vld [vmem:[#allocation7 + $0x178] sm:$0xff]
    %v1703 = vld [vmem:[#allocation7 + $0x180] sm:$0xff]
    %v1704 = vld [vmem:[#allocation7 + $0x188] sm:$0xff]
    %v1705 = vld [vmem:[#allocation7 + $0x190] sm:$0xff]
    %v1706 = vld [vmem:[#allocation7 + $0x198] sm:$0xff]
    %v1707 = vld [vmem:[#allocation7 + $0x1a0] sm:$0xff]
    %v1708 = vld [vmem:[#allocation7 + $0x1a8] sm:$0xff]
    %v1709 = vld [vmem:[#allocation7 + $0x1b0] sm:$0xff]
    %v1710 = vld [vmem:[#allocation7 + $0x1b8] sm:$0xff]
    %v1711 = vld [vmem:[#allocation7 + $0x1c0] sm:$0xff]
    %v1712 = vld [vmem:[#allocation7 + $0x1c8] sm:$0xff]
    %v1713 = vld [vmem:[#allocation7 + $0x1d0] sm:$0xff]
    %v1714 = vld [vmem:[#allocation7 + $0x1d8] sm:$0xff]
    %v1715 = vld [vmem:[#allocation7 + $0x1e0] sm:$0xff]
    %v1716 = vld [vmem:[#allocation7 + $0x1e8] sm:$0xff]
    %v1717 = vld [vmem:[#allocation7 + $0x1f0] sm:$0xff]
    %v1718 = vld [vmem:[#allocation7 + $0x1f8] sm:$0xff]
    %v1719 = vld [vmem:[#allocation7 + $0x200] sm:$0xff]
    %v1720 = vld [vmem:[#allocation7 + $0x208] sm:$0xff]
    %v1721 = vld [vmem:[#allocation7 + $0x210] sm:$0xff]
    %v1722 = vld [vmem:[#allocation7 + $0x218] sm:$0xff]
    %v1723 = vld [vmem:[#allocation7 + $0x220] sm:$0xff]
    %v1724 = vld [vmem:[#allocation7 + $0x228] sm:$0xff]
    %v1725 = vld [vmem:[#allocation7 + $0x230] sm:$0xff]
    %v1726 = vld [vmem:[#allocation7 + $0x238] sm:$0xff]
    %v1727 = vld [vmem:[#allocation7 + $0x240] sm:$0xff]
    %v1728 = vld [vmem:[#allocation7 + $0x248] sm:$0xff]
    %v1729 = vld [vmem:[#allocation7 + $0x250] sm:$0xff]
    %v1730 = vld [vmem:[#allocation7 + $0x258] sm:$0xff]
    %v1731 = vld [vmem:[#allocation7 + $0x260] sm:$0xff]
    %v1732 = vld [vmem:[#allocation7 + $0x268] sm:$0xff]
    %v1733 = vld [vmem:[#allocation7 + $0x270] sm:$0xff]
    %v1734 = vld [vmem:[#allocation7 + $0x278] sm:$0xff]
    %v1735 = vld [vmem:[#allocation7 + $0x280] sm:$0xff]
    %v1736 = vld [vmem:[#allocation7 + $0x288] sm:$0xff]
    %v1737 = vld [vmem:[#allocation7 + $0x290] sm:$0xff]
    %v1738 = vld [vmem:[#allocation7 + $0x298] sm:$0xff]
    %v1739 = vld [vmem:[#allocation7 + $0x2a0] sm:$0xff]
    %v1740 = vld [vmem:[#allocation7 + $0x2a8] sm:$0xff]
    %v1741 = vld [vmem:[#allocation7 + $0x2b0] sm:$0xff]
    %v1742 = vld [vmem:[#allocation7 + $0x2b8] sm:$0xff]
    %v1743 = vld [vmem:[#allocation7 + $0x2c0] sm:$0xff]
    %v1744 = vld [vmem:[#allocation7 + $0x2c8] sm:$0xff]
    %v1745 = vld [vmem:[#allocation7 + $0x2d0] sm:$0xff]
    %v1746 = vld [vmem:[#allocation7 + $0x2d8] sm:$0xff]
    %v1747 = vld [vmem:[#allocation7 + $0x2e0] sm:$0xff]
    %v1748 = vld [vmem:[#allocation7 + $0x2e8] sm:$0xff]
    %v1749 = vld [vmem:[#allocation7 + $0x2f0] sm:$0xff]
    %v1750 = vld [vmem:[#allocation7 + $0x2f8] sm:$0xff]
    %s1751 = scalar_lea.vmem [#allocation7], 768
    %v1752 = vld [vmem:[%s1751] sm:$0xff]
    %v1753 = vld [vmem:[%s1751 + $0x8] sm:$0xff]
    %v1754 = vld [vmem:[%s1751 + $0x10] sm:$0xff]
    %v1755 = vld [vmem:[%s1751 + $0x18] sm:$0xff]
    %v1756 = vld [vmem:[%s1751 + $0x20] sm:$0xff]
    %v1757 = vld [vmem:[%s1751 + $0x28] sm:$0xff]
    %v1758 = vld [vmem:[%s1751 + $0x30] sm:$0xff]
    %v1759 = vld [vmem:[%s1751 + $0x38] sm:$0xff]
    %v1760 = vld [vmem:[%s1751 + $0x40] sm:$0xff]
    %v1761 = vld [vmem:[%s1751 + $0x48] sm:$0xff]
    %v1762 = vld [vmem:[%s1751 + $0x50] sm:$0xff]
    %v1763 = vld [vmem:[%s1751 + $0x58] sm:$0xff]
    %v1764 = vld [vmem:[%s1751 + $0x60] sm:$0xff]
    %v1765 = vld [vmem:[%s1751 + $0x68] sm:$0xff]
    %v1766 = vld [vmem:[%s1751 + $0x70] sm:$0xff]
    %v1767 = vld [vmem:[%s1751 + $0x78] sm:$0xff]
    %v1768 = vld [vmem:[%s1751 + $0x80] sm:$0xff]
    %v1769 = vld [vmem:[%s1751 + $0x88] sm:$0xff]
    %v1770 = vld [vmem:[%s1751 + $0x90] sm:$0xff]
    %v1771 = vld [vmem:[%s1751 + $0x98] sm:$0xff]
    %v1772 = vld [vmem:[%s1751 + $0xa0] sm:$0xff]
    %v1773 = vld [vmem:[%s1751 + $0xa8] sm:$0xff]
    %v1774 = vld [vmem:[%s1751 + $0xb0] sm:$0xff]
    %v1775 = vld [vmem:[%s1751 + $0xb8] sm:$0xff]
    %v1776 = vld [vmem:[%s1751 + $0xc0] sm:$0xff]
    %v1777 = vld [vmem:[%s1751 + $0xc8] sm:$0xff]
    %v1778 = vld [vmem:[%s1751 + $0xd0] sm:$0xff]
    %v1779 = vld [vmem:[%s1751 + $0xd8] sm:$0xff]
    %v1780 = vld [vmem:[%s1751 + $0xe0] sm:$0xff]
    %v1781 = vld [vmem:[%s1751 + $0xe8] sm:$0xff]
    %v1782 = vld [vmem:[%s1751 + $0xf0] sm:$0xff]
    %v1783 = vld [vmem:[%s1751 + $0xf8] sm:$0xff]
    %v1784 = vld [vmem:[%s1751 + $0x100] sm:$0xff]
    %v1785 = vld [vmem:[%s1751 + $0x108] sm:$0xff]
    %v1786 = vld [vmem:[%s1751 + $0x110] sm:$0xff]
    %v1787 = vld [vmem:[%s1751 + $0x118] sm:$0xff]
    %v1788 = vld [vmem:[%s1751 + $0x120] sm:$0xff]
    %v1789 = vld [vmem:[%s1751 + $0x128] sm:$0xff]
    %v1790 = vld [vmem:[%s1751 + $0x130] sm:$0xff]
    %v1791 = vld [vmem:[%s1751 + $0x138] sm:$0xff]
    %v1792 = vld [vmem:[%s1751 + $0x140] sm:$0xff]
    %v1793 = vld [vmem:[%s1751 + $0x148] sm:$0xff]
    %v1794 = vld [vmem:[%s1751 + $0x150] sm:$0xff]
    %v1795 = vld [vmem:[%s1751 + $0x158] sm:$0xff]
    %v1796 = vld [vmem:[%s1751 + $0x160] sm:$0xff]
    %v1797 = vld [vmem:[%s1751 + $0x168] sm:$0xff]
    %v1798 = vld [vmem:[%s1751 + $0x170] sm:$0xff]
    %v1799 = vld [vmem:[%s1751 + $0x178] sm:$0xff]
    %v1800 = vld [vmem:[%s1751 + $0x180] sm:$0xff]
    %v1801 = vld [vmem:[%s1751 + $0x188] sm:$0xff]
    %v1802 = vld [vmem:[%s1751 + $0x190] sm:$0xff]
    %v1803 = vld [vmem:[%s1751 + $0x198] sm:$0xff]
    %v1804 = vld [vmem:[%s1751 + $0x1a0] sm:$0xff]
    %v1805 = vld [vmem:[%s1751 + $0x1a8] sm:$0xff]
    %v1806 = vld [vmem:[%s1751 + $0x1b0] sm:$0xff]
    %v1807 = vld [vmem:[%s1751 + $0x1b8] sm:$0xff]
    %v1808 = vld [vmem:[%s1751 + $0x1c0] sm:$0xff]
    %v1809 = vld [vmem:[%s1751 + $0x1c8] sm:$0xff]
    %v1810 = vld [vmem:[%s1751 + $0x1d0] sm:$0xff]
    %v1811 = vld [vmem:[%s1751 + $0x1d8] sm:$0xff]
    %v1812 = vld [vmem:[%s1751 + $0x1e0] sm:$0xff]
    %v1813 = vld [vmem:[%s1751 + $0x1e8] sm:$0xff]
    %v1814 = vld [vmem:[%s1751 + $0x1f0] sm:$0xff]
    %v1815 = vld [vmem:[%s1751 + $0x1f8] sm:$0xff]
    %v1816 = vld [vmem:[%s1751 + $0x200] sm:$0xff]
    %v1817 = vld [vmem:[%s1751 + $0x208] sm:$0xff]
    %v1818 = vld [vmem:[%s1751 + $0x210] sm:$0xff]
    %v1819 = vld [vmem:[%s1751 + $0x218] sm:$0xff]
    %v1820 = vld [vmem:[%s1751 + $0x220] sm:$0xff]
    %v1821 = vld [vmem:[%s1751 + $0x228] sm:$0xff]
    %v1822 = vld [vmem:[%s1751 + $0x230] sm:$0xff]
    %v1823 = vld [vmem:[%s1751 + $0x238] sm:$0xff]
    %v1824 = vld [vmem:[%s1751 + $0x240] sm:$0xff]
    %v1825 = vld [vmem:[%s1751 + $0x248] sm:$0xff]
    %v1826 = vld [vmem:[%s1751 + $0x250] sm:$0xff]
    %v1827 = vld [vmem:[%s1751 + $0x258] sm:$0xff]
    %v1828 = vld [vmem:[%s1751 + $0x260] sm:$0xff]
    %v1829 = vld [vmem:[%s1751 + $0x268] sm:$0xff]
    %v1830 = vld [vmem:[%s1751 + $0x270] sm:$0xff]
    %v1831 = vld [vmem:[%s1751 + $0x278] sm:$0xff]
    %v1832 = vld [vmem:[%s1751 + $0x280] sm:$0xff]
    %v1833 = vld [vmem:[%s1751 + $0x288] sm:$0xff]
    %v1834 = vld [vmem:[%s1751 + $0x290] sm:$0xff]
    %v1835 = vld [vmem:[%s1751 + $0x298] sm:$0xff]
    %v1836 = vld [vmem:[%s1751 + $0x2a0] sm:$0xff]
    %v1837 = vld [vmem:[%s1751 + $0x2a8] sm:$0xff]
    %v1838 = vld [vmem:[%s1751 + $0x2b0] sm:$0xff]
    %v1839 = vld [vmem:[%s1751 + $0x2b8] sm:$0xff]
    %v1840 = vld [vmem:[%s1751 + $0x2c0] sm:$0xff]
    %v1841 = vld [vmem:[%s1751 + $0x2c8] sm:$0xff]
    %v1842 = vld [vmem:[%s1751 + $0x2d0] sm:$0xff]
    %v1843 = vld [vmem:[%s1751 + $0x2d8] sm:$0xff]
    %v1844 = vld [vmem:[%s1751 + $0x2e0] sm:$0xff]
    %v1845 = vld [vmem:[%s1751 + $0x2e8] sm:$0xff]
    %v1846 = vld [vmem:[%s1751 + $0x2f0] sm:$0xff]
    %v1847 = vld [vmem:[%s1751 + $0x2f8] sm:$0xff]
    %v1848 = vcombine.low %v1631, %v1645
    %v1849 = vcombine.low %v1654, %v1638
    %v1851 = vunpack.c.l.s4 1966171168
    %v1852 = vunpack.c.0.s8 %v1851
    %v1853 = vlaneseq
    %v1854 = vshrl.u32 %v1853, 7
    %v1855 = vsub.s32 %v1852, %v1854
    %v1856 = vrot.slane %v1848, %v1855
    %v1858 = vunpack.c.l.s4 1966171168
    %v1859 = vunpack.c.0.s8 %v1858
    %v1860 = vlaneseq
    %v1861 = vshrl.u32 %v1860, 7
    %v1862 = vsub.s32 %v1859, %v1861
    %v1863 = vrot.slane %v1849, %v1862
    %v1864 = vcombine.low %v1856, %v1863
    %v1865 = vcombine.high %v1856, %v1863
    %v1867 = vunpack.c.l.s4 1966171168
    %v1868 = vunpack.c.0.s8 %v1867
    %v1869 = vlaneseq
    %v1870 = vshrl.u32 %v1869, 7
    %v1871 = vsub.s32 %v1868, %v1870
    %v1872 = vrot.slane %v1864, %v1871
    %v1874 = vunpack.c.l.s4 1966171168
    %v1875 = vunpack.c.0.s8 %v1874
    %v1876 = vlaneseq
    %v1877 = vshrl.u32 %v1876, 7
    %v1878 = vsub.s32 %v1875, %v1877
    %v1879 = vrot.slane %v1865, %v1878
    %v1880 = vcombine.high %v1872, %v1872
    %v1980 = vunpack.c.l.b16 %v1752
    %v1981 = vunpack.c.h.b16 %v1752
    %v1982 = vunpack.c.l.b16 %v1753
    %v1983 = vunpack.c.h.b16 %v1753
    %v1984 = vunpack.c.l.b16 %v1754
    %v1985 = vunpack.c.h.b16 %v1754
    %v1986 = vunpack.c.l.b16 %v1755
    %v1987 = vunpack.c.h.b16 %v1755
    %v1988 = vunpack.c.l.b16 %v1756
    %v1989 = vunpack.c.h.b16 %v1756
    %v1990 = vunpack.c.l.b16 %v1757
    %v1991 = vunpack.c.h.b16 %v1757
    %v1992 = vunpack.c.l.b16 %v1758
    %v1993 = vunpack.c.h.b16 %v1758
    %v1994 = vunpack.c.l.b16 %v1759
    %v1995 = vunpack.c.h.b16 %v1759
    %v1996 = vunpack.c.l.b16 %v1760
    %v1997 = vunpack.c.h.b16 %v1760
    %v1998 = vunpack.c.l.b16 %v1761
    %v1999 = vunpack.c.h.b16 %v1761
    %v2000 = vunpack.c.l.b16 %v1762
    %v2001 = vunpack.c.h.b16 %v1762
    %v2002 = vunpack.c.l.b16 %v1763
    %v2003 = vunpack.c.h.b16 %v1763
    %v2004 = vunpack.c.l.b16 %v1764
    %v2005 = vunpack.c.h.b16 %v1764
    %v2006 = vunpack.c.l.b16 %v1765
    %v2007 = vunpack.c.h.b16 %v1765
    %v2008 = vunpack.c.l.b16 %v1766
    %v2009 = vunpack.c.h.b16 %v1766
    %v2010 = vunpack.c.l.b16 %v1767
    %v2011 = vunpack.c.h.b16 %v1767
    %v2012 = vunpack.c.l.b16 %v1768
    %v2013 = vunpack.c.h.b16 %v1768
    %v2014 = vunpack.c.l.b16 %v1769
    %v2015 = vunpack.c.h.b16 %v1769
    %v2016 = vunpack.c.l.b16 %v1770
    %v2017 = vunpack.c.h.b16 %v1770
    %v2018 = vunpack.c.l.b16 %v1771
    %v2019 = vunpack.c.h.b16 %v1771
    %v2020 = vunpack.c.l.b16 %v1772
    %v2021 = vunpack.c.h.b16 %v1772
    %v2022 = vunpack.c.l.b16 %v1773
    %v2023 = vunpack.c.h.b16 %v1773
    %v2024 = vunpack.c.l.b16 %v1774
    %v2025 = vunpack.c.h.b16 %v1774
    %v2026 = vunpack.c.l.b16 %v1775
    %v2027 = vunpack.c.h.b16 %v1775
    %v2028 = vunpack.c.l.b16 %v1776
    %v2029 = vunpack.c.h.b16 %v1776
    %v2030 = vunpack.c.l.b16 %v1777
    %v2031 = vunpack.c.h.b16 %v1777
    %v2032 = vunpack.c.l.b16 %v1778
    %v2033 = vunpack.c.h.b16 %v1778
    %v2034 = vunpack.c.l.b16 %v1779
    %v2035 = vunpack.c.h.b16 %v1779
    %v2036 = vunpack.c.l.b16 %v1780
    %v2037 = vunpack.c.h.b16 %v1780
    %v2038 = vunpack.c.l.b16 %v1781
    %v2039 = vunpack.c.h.b16 %v1781
    %v2040 = vunpack.c.l.b16 %v1782
    %v2041 = vunpack.c.h.b16 %v1782
    %v2042 = vunpack.c.l.b16 %v1783
    %v2043 = vunpack.c.h.b16 %v1783
    %v2044 = vunpack.c.l.b16 %v1784
    %v2045 = vunpack.c.h.b16 %v1784
    %v2046 = vunpack.c.l.b16 %v1785
    %v2047 = vunpack.c.h.b16 %v1785
    %v2048 = vunpack.c.l.b16 %v1786
    %v2049 = vunpack.c.h.b16 %v1786
    %v2050 = vunpack.c.l.b16 %v1787
    %v2051 = vunpack.c.h.b16 %v1787
    %v2052 = vunpack.c.l.b16 %v1788
    %v2053 = vunpack.c.h.b16 %v1788
    %v2054 = vunpack.c.l.b16 %v1789
    %v2055 = vunpack.c.h.b16 %v1789
    %v2056 = vunpack.c.l.b16 %v1790
    %v2057 = vunpack.c.h.b16 %v1790
    %v2058 = vunpack.c.l.b16 %v1791
    %v2059 = vunpack.c.h.b16 %v1791
    %v2060 = vunpack.c.l.b16 %v1792
    %v2061 = vunpack.c.h.b16 %v1792
    %v2062 = vunpack.c.l.b16 %v1793
    %v2063 = vunpack.c.h.b16 %v1793
    %v2064 = vunpack.c.l.b16 %v1794
    %v2065 = vunpack.c.h.b16 %v1794
    %v2066 = vunpack.c.l.b16 %v1795
    %v2067 = vunpack.c.h.b16 %v1795
    %v2068 = vunpack.c.l.b16 %v1796
    %v2069 = vunpack.c.h.b16 %v1796
    %v2070 = vunpack.c.l.b16 %v1797
    %v2071 = vunpack.c.h.b16 %v1797
    %v2072 = vunpack.c.l.b16 %v1798
    %v2073 = vunpack.c.h.b16 %v1798
    %v2074 = vunpack.c.l.b16 %v1799
    %v2075 = vunpack.c.h.b16 %v1799
    %v2076 = vunpack.c.l.b16 %v1800
    %v2077 = vunpack.c.h.b16 %v1800
    %v2078 = vunpack.c.l.b16 %v1801
    %v2079 = vunpack.c.h.b16 %v1801
    %v2080 = vunpack.c.l.b16 %v1802
    %v2081 = vunpack.c.h.b16 %v1802
    %v2082 = vunpack.c.l.b16 %v1803
    %v2083 = vunpack.c.h.b16 %v1803
    %v2084 = vunpack.c.l.b16 %v1804
    %v2085 = vunpack.c.h.b16 %v1804
    %v2086 = vunpack.c.l.b16 %v1805
    %v2087 = vunpack.c.h.b16 %v1805
    %v2088 = vunpack.c.l.b16 %v1806
    %v2089 = vunpack.c.h.b16 %v1806
    %v2090 = vunpack.c.l.b16 %v1807
    %v2091 = vunpack.c.h.b16 %v1807
    %v2092 = vunpack.c.l.b16 %v1808
    %v2093 = vunpack.c.h.b16 %v1808
    %v2094 = vunpack.c.l.b16 %v1809
    %v2095 = vunpack.c.h.b16 %v1809
    %v2096 = vunpack.c.l.b16 %v1810
    %v2097 = vunpack.c.h.b16 %v1810
    %v2098 = vunpack.c.l.b16 %v1811
    %v2099 = vunpack.c.h.b16 %v1811
    %v2100 = vunpack.c.l.b16 %v1812
    %v2101 = vunpack.c.h.b16 %v1812
    %v2102 = vunpack.c.l.b16 %v1813
    %v2103 = vunpack.c.h.b16 %v1813
    %v2104 = vunpack.c.l.b16 %v1814
    %v2105 = vunpack.c.h.b16 %v1814
    %v2106 = vunpack.c.l.b16 %v1815
    %v2107 = vunpack.c.h.b16 %v1815
    %v2108 = vunpack.c.l.b16 %v1816
    %v2109 = vunpack.c.h.b16 %v1816
    %v2110 = vunpack.c.l.b16 %v1817
    %v2111 = vunpack.c.h.b16 %v1817
    %v2112 = vunpack.c.l.b16 %v1818
    %v2113 = vunpack.c.h.b16 %v1818
    %v2114 = vunpack.c.l.b16 %v1819
    %v2115 = vunpack.c.h.b16 %v1819
    %v2116 = vunpack.c.l.b16 %v1820
    %v2117 = vunpack.c.h.b16 %v1820
    %v2118 = vunpack.c.l.b16 %v1821
    %v2119 = vunpack.c.h.b16 %v1821
    %v2120 = vunpack.c.l.b16 %v1822
    %v2121 = vunpack.c.h.b16 %v1822
    %v2122 = vunpack.c.l.b16 %v1823
    %v2123 = vunpack.c.h.b16 %v1823
    %v2124 = vunpack.c.l.b16 %v1824
    %v2125 = vunpack.c.h.b16 %v1824
    %v2126 = vunpack.c.l.b16 %v1825
    %v2127 = vunpack.c.h.b16 %v1825
    %v2128 = vunpack.c.l.b16 %v1826
    %v2129 = vunpack.c.h.b16 %v1826
    %v2130 = vunpack.c.l.b16 %v1827
    %v2131 = vunpack.c.h.b16 %v1827
    %v2132 = vunpack.c.l.b16 %v1828
    %v2133 = vunpack.c.h.b16 %v1828
    %v2134 = vunpack.c.l.b16 %v1829
    %v2135 = vunpack.c.h.b16 %v1829
    %v2136 = vunpack.c.l.b16 %v1830
    %v2137 = vunpack.c.h.b16 %v1830
    %v2138 = vunpack.c.l.b16 %v1831
    %v2139 = vunpack.c.h.b16 %v1831
    %v2140 = vunpack.c.l.b16 %v1832
    %v2141 = vunpack.c.h.b16 %v1832
    %v2142 = vunpack.c.l.b16 %v1833
    %v2143 = vunpack.c.h.b16 %v1833
    %v2144 = vunpack.c.l.b16 %v1834
    %v2145 = vunpack.c.h.b16 %v1834
    %v2146 = vunpack.c.l.b16 %v1835
    %v2147 = vunpack.c.h.b16 %v1835
    %v2148 = vunpack.c.l.b16 %v1836
    %v2149 = vunpack.c.h.b16 %v1836
    %v2150 = vunpack.c.l.b16 %v1837
    %v2151 = vunpack.c.h.b16 %v1837
    %v2152 = vunpack.c.l.b16 %v1838
    %v2153 = vunpack.c.h.b16 %v1838
    %v2154 = vunpack.c.l.b16 %v1839
    %v2155 = vunpack.c.h.b16 %v1839
    %v2156 = vunpack.c.l.b16 %v1840
    %v2157 = vunpack.c.h.b16 %v1840
    %v2158 = vunpack.c.l.b16 %v1841
    %v2159 = vunpack.c.h.b16 %v1841
    %v2160 = vunpack.c.l.b16 %v1842
    %v2161 = vunpack.c.h.b16 %v1842
    %v2162 = vunpack.c.l.b16 %v1843
    %v2163 = vunpack.c.h.b16 %v1843
    %v2164 = vunpack.c.l.b16 %v1844
    %v2165 = vunpack.c.h.b16 %v1844
    %v2166 = vunpack.c.l.b16 %v1845
    %v2167 = vunpack.c.h.b16 %v1845
    %v2168 = vunpack.c.l.b16 %v1846
    %v2169 = vunpack.c.h.b16 %v1846
    %v2170 = vunpack.c.l.b16 %v1847
    %v2171 = vunpack.c.h.b16 %v1847
    %v2172 = vpack.c.b16 %v1984, %v1980
    %v2173 = vpack.c.b16 %v1985, %v1981
    %v2174 = vpack.c.b16 %v1986, %v1982
    %v2175 = vpack.c.b16 %v1987, %v1983
    %v2176 = vpack.c.b16 %v1992, %v1988
    %v2177 = vpack.c.b16 %v1993, %v1989
    %v2178 = vpack.c.b16 %v1994, %v1990
    %v2179 = vpack.c.b16 %v1995, %v1991
    %v2180 = vpack.c.b16 %v2000, %v1996
    %v2181 = vpack.c.b16 %v2001, %v1997
    %v2182 = vpack.c.b16 %v2002, %v1998
    %v2183 = vpack.c.b16 %v2003, %v1999
    %v2184 = vpack.c.b16 %v2008, %v2004
    %v2185 = vpack.c.b16 %v2009, %v2005
    %v2186 = vpack.c.b16 %v2010, %v2006
    %v2187 = vpack.c.b16 %v2011, %v2007
    %v2188 = vpack.c.b16 %v2016, %v2012
    %v2189 = vpack.c.b16 %v2017, %v2013
    %v2190 = vpack.c.b16 %v2018, %v2014
    %v2191 = vpack.c.b16 %v2019, %v2015
    %v2192 = vpack.c.b16 %v2024, %v2020
    %v2193 = vpack.c.b16 %v2025, %v2021
    %v2194 = vpack.c.b16 %v2026, %v2022
    %v2195 = vpack.c.b16 %v2027, %v2023
    %v2196 = vpack.c.b16 %v2032, %v2028
    %v2197 = vpack.c.b16 %v2033, %v2029
    %v2198 = vpack.c.b16 %v2034, %v2030
    %v2199 = vpack.c.b16 %v2035, %v2031
    %v2200 = vpack.c.b16 %v2040, %v2036
    %v2201 = vpack.c.b16 %v2041, %v2037
    %v2202 = vpack.c.b16 %v2042, %v2038
    %v2203 = vpack.c.b16 %v2043, %v2039
    %v2204 = vpack.c.b16 %v2048, %v2044
    %v2205 = vpack.c.b16 %v2049, %v2045
    %v2206 = vpack.c.b16 %v2050, %v2046
    %v2207 = vpack.c.b16 %v2051, %v2047
    %v2208 = vpack.c.b16 %v2056, %v2052
    %v2209 = vpack.c.b16 %v2057, %v2053
    %v2210 = vpack.c.b16 %v2058, %v2054
    %v2211 = vpack.c.b16 %v2059, %v2055
    %v2212 = vpack.c.b16 %v2064, %v2060
    %v2213 = vpack.c.b16 %v2065, %v2061
    %v2214 = vpack.c.b16 %v2066, %v2062
    %v2215 = vpack.c.b16 %v2067, %v2063
    %v2216 = vpack.c.b16 %v2072, %v2068
    %v2217 = vpack.c.b16 %v2073, %v2069
    %v2218 = vpack.c.b16 %v2074, %v2070
    %v2219 = vpack.c.b16 %v2075, %v2071
    %v2220 = vpack.c.b16 %v2080, %v2076
    %v2221 = vpack.c.b16 %v2081, %v2077
    %v2222 = vpack.c.b16 %v2082, %v2078
    %v2223 = vpack.c.b16 %v2083, %v2079
    %v2224 = vpack.c.b16 %v2088, %v2084
    %v2225 = vpack.c.b16 %v2089, %v2085
    %v2226 = vpack.c.b16 %v2090, %v2086
    %v2227 = vpack.c.b16 %v2091, %v2087
    %v2228 = vpack.c.b16 %v2096, %v2092
    %v2229 = vpack.c.b16 %v2097, %v2093
    %v2230 = vpack.c.b16 %v2098, %v2094
    %v2231 = vpack.c.b16 %v2099, %v2095
    %v2232 = vpack.c.b16 %v2104, %v2100
    %v2233 = vpack.c.b16 %v2105, %v2101
    %v2234 = vpack.c.b16 %v2106, %v2102
    %v2235 = vpack.c.b16 %v2107, %v2103
    %v2236 = vpack.c.b16 %v2112, %v2108
    %v2237 = vpack.c.b16 %v2113, %v2109
    %v2238 = vpack.c.b16 %v2114, %v2110
    %v2239 = vpack.c.b16 %v2115, %v2111
    %v2240 = vpack.c.b16 %v2120, %v2116
    %v2241 = vpack.c.b16 %v2121, %v2117
    %v2242 = vpack.c.b16 %v2122, %v2118
    %v2243 = vpack.c.b16 %v2123, %v2119
    %v2244 = vpack.c.b16 %v2128, %v2124
    %v2245 = vpack.c.b16 %v2129, %v2125
    %v2246 = vpack.c.b16 %v2130, %v2126
    %v2247 = vpack.c.b16 %v2131, %v2127
    %v2248 = vpack.c.b16 %v2136, %v2132
    %v2249 = vpack.c.b16 %v2137, %v2133
    %v2250 = vpack.c.b16 %v2138, %v2134
    %v2251 = vpack.c.b16 %v2139, %v2135
    %v2252 = vpack.c.b16 %v2144, %v2140
    %v2253 = vpack.c.b16 %v2145, %v2141
    %v2254 = vpack.c.b16 %v2146, %v2142
    %v2255 = vpack.c.b16 %v2147, %v2143
    %v2256 = vpack.c.b16 %v2152, %v2148
    %v2257 = vpack.c.b16 %v2153, %v2149
    %v2258 = vpack.c.b16 %v2154, %v2150
    %v2259 = vpack.c.b16 %v2155, %v2151
    %v2260 = vpack.c.b16 %v2160, %v2156
    %v2261 = vpack.c.b16 %v2161, %v2157
    %v2262 = vpack.c.b16 %v2162, %v2158
    %v2263 = vpack.c.b16 %v2163, %v2159
    %v2264 = vpack.c.b16 %v2168, %v2164
    %v2265 = vpack.c.b16 %v2169, %v2165
    %v2266 = vpack.c.b16 %v2170, %v2166
    %v2267 = vpack.c.b16 %v2171, %v2167
    %2364 = vmatprep.subr.bf16.mxu0 %v2201
    %2365 = vmatpush1.bf16.msra.mxu0 %v2200
    %2366 = vmatprep.subr.bf16.mxu0 %v2197
    %2367 = vmatpush1.bf16.msra.mxu0 %v2196
    %2368 = vmatprep.subr.bf16.mxu0 %v2193
    %2369 = vmatpush1.bf16.msra.mxu0 %v2192
    %2370 = vmatprep.subr.bf16.mxu0 %v2189
    %2371 = vmatpush1.bf16.msra.mxu0 %v2188
    %2372 = vmatprep.subr.bf16.mxu0 %v2185
    %2373 = vmatpush1.bf16.msra.mxu0 %v2184
    %2374 = vmatprep.subr.bf16.mxu0 %v2181
    %2375 = vmatpush1.bf16.msra.mxu0 %v2180
    %2376 = vmatprep.subr.bf16.mxu0 %v2177
    %2377 = vmatpush1.bf16.msra.mxu0 %v2176
    %2378 = vmatprep.subr.bf16.mxu0 %v2173
    %2379 = vmatpush1.bf16.msra.mxu0 %v2172
    %2380 = vmatprep.subr.bf16.mxu0 %v2233
    %2381 = vmatpush2.bf16.msra.mxu0 %v2232
    %2382 = vmatprep.subr.bf16.mxu0 %v2229
    %2383 = vmatpush2.bf16.msra.mxu0 %v2228
    %2384 = vmatprep.subr.bf16.mxu0 %v2225
    %2385 = vmatpush2.bf16.msra.mxu0 %v2224
    %2386 = vmatprep.subr.bf16.mxu0 %v2221
    %2387 = vmatpush2.bf16.msra.mxu0 %v2220
    %2388 = vmatprep.subr.bf16.mxu0 %v2217
    %2389 = vmatpush2.bf16.msra.mxu0 %v2216
    %2390 = vmatprep.subr.bf16.mxu0 %v2213
    %2391 = vmatpush2.bf16.msra.mxu0 %v2212
    %2392 = vmatprep.subr.bf16.mxu0 %v2209
    %2393 = vmatpush2.bf16.msra.mxu0 %v2208
    %2394 = vmatprep.subr.bf16.mxu0 %v2205
    %2395 = vmatpush2.bf16.msra.mxu0 %v2204
    %2396 = vmatprep.mubr.bf16.mxu0 %v1879
    %2397 = vmatmul.mubr.bf16.gmra.mxu0 %v1872
    %v2398 = vpop.f32.mrf.mxu0
    %v2399 = vadd.f32 0.0, %v2398
    %v2400 = vpop.f32.mrf.mxu0
    %v2401 = vadd.f32 0.0, %v2400
    %v2402 = vpop.f32.mrf.mxu0
    %v2403 = vpop.f32.mrf.mxu0
    %2404 = vdwg.mxu0
    %2405 = vmatprep.subr.bf16.mxu0 %v2265
    %2406 = vmatpush1.bf16.msra.mxu0 %v2264
    %2407 = vmatprep.subr.bf16.mxu0 %v2261
    %2408 = vmatpush1.bf16.msra.mxu0 %v2260
    %2409 = vmatprep.subr.bf16.mxu0 %v2257
    %2410 = vmatpush1.bf16.msra.mxu0 %v2256
    %2411 = vmatprep.subr.bf16.mxu0 %v2253
    %2412 = vmatpush1.bf16.msra.mxu0 %v2252
    %2413 = vmatprep.subr.bf16.mxu0 %v2249
    %2414 = vmatpush1.bf16.msra.mxu0 %v2248
    %2415 = vmatprep.subr.bf16.mxu0 %v2245
    %2416 = vmatpush1.bf16.msra.mxu0 %v2244
    %2417 = vmatprep.subr.bf16.mxu0 %v2241
    %2418 = vmatpush1.bf16.msra.mxu0 %v2240
    %2419 = vmatprep.subr.bf16.mxu0 %v2237
    %2420 = vmatpush1.bf16.msra.mxu0 %v2236
    %2421 = vmatprep.subr.bf16.mxu0 0
    %2422 = vmatpush2.bf16.msra.mxu0 0
    %2423 = vmatprep.subr.bf16.mxu0 0
    %2424 = vmatpush2.bf16.msra.mxu0 0
    %2425 = vmatprep.subr.bf16.mxu0 0
    %2426 = vmatpush2.bf16.msra.mxu0 0
    %2427 = vmatprep.subr.bf16.mxu0 0
    %2428 = vmatpush2.bf16.msra.mxu0 0
    %2429 = vmatprep.subr.bf16.mxu0 0
    %2430 = vmatpush2.bf16.msra.mxu0 0
    %2431 = vmatprep.subr.bf16.mxu0 0
    %2432 = vmatpush2.bf16.msra.mxu0 0
    %2433 = vmatprep.subr.bf16.mxu0 0
    %2434 = vmatpush2.bf16.msra.mxu0 0
    %2435 = vmatprep.subr.bf16.mxu0 0
    %2436 = vmatpush2.bf16.msra.mxu0 0
    %2437 = vmatprep.mubr.bf16.mxu0 0
    %2438 = vmatmul.mubr.bf16.gmra.mxu0 %v1880
    %v2439 = vpop.f32.mrf.mxu0
    %v2440 = vadd.f32 %v2399, %v2439
    %v2441 = vpop.f32.mrf.mxu0
    %v2442 = vadd.f32 %v2401, %v2441
    %v2443 = vpop.f32.mrf.mxu0
    %v2444 = vpop.f32.mrf.mxu0
    %2445 = vdwg.mxu0
    %2446 = vmatprep.subr.bf16.mxu0 %v2203
    %2447 = vmatpush1.bf16.msra.mxu0 %v2202
    %2448 = vmatprep.subr.bf16.mxu0 %v2199
    %2449 = vmatpush1.bf16.msra.mxu0 %v2198
    %2450 = vmatprep.subr.bf16.mxu0 %v2195
    %2451 = vmatpush1.bf16.msra.mxu0 %v2194
    %2452 = vmatprep.subr.bf16.mxu0 %v2191
    %2453 = vmatpush1.bf16.msra.mxu0 %v2190
    %2454 = vmatprep.subr.bf16.mxu0 %v2187
    %2455 = vmatpush1.bf16.msra.mxu0 %v2186
    %2456 = vmatprep.subr.bf16.mxu0 %v2183
    %2457 = vmatpush1.bf16.msra.mxu0 %v2182
    %2458 = vmatprep.subr.bf16.mxu0 %v2179
    %2459 = vmatpush1.bf16.msra.mxu0 %v2178
    %2460 = vmatprep.subr.bf16.mxu0 %v2175
    %2461 = vmatpush1.bf16.msra.mxu0 %v2174
    %2462 = vmatprep.subr.bf16.mxu0 %v2235
    %2463 = vmatpush2.bf16.msra.mxu0 %v2234
    %2464 = vmatprep.subr.bf16.mxu0 %v2231
    %2465 = vmatpush2.bf16.msra.mxu0 %v2230
    %2466 = vmatprep.subr.bf16.mxu0 %v2227
    %2467 = vmatpush2.bf16.msra.mxu0 %v2226
    %2468 = vmatprep.subr.bf16.mxu0 %v2223
    %2469 = vmatpush2.bf16.msra.mxu0 %v2222
    %2470 = vmatprep.subr.bf16.mxu0 %v2219
    %2471 = vmatpush2.bf16.msra.mxu0 %v2218
    %2472 = vmatprep.subr.bf16.mxu0 %v2215
    %2473 = vmatpush2.bf16.msra.mxu0 %v2214
    %2474 = vmatprep.subr.bf16.mxu0 %v2211
    %2475 = vmatpush2.bf16.msra.mxu0 %v2210
    %2476 = vmatprep.subr.bf16.mxu0 %v2207
    %2477 = vmatpush2.bf16.msra.mxu0 %v2206
    %2478 = vmatprep.mubr.bf16.mxu0 %v1879
    %2479 = vmatmul.mubr.bf16.gmra.mxu0 %v1872
    %v2480 = vpop.f32.mrf.mxu0
    %v2481 = vadd.f32 0.0, %v2480
    %v2482 = vpop.f32.mrf.mxu0
    %v2483 = vadd.f32 0.0, %v2482
    %v2484 = vpop.f32.mrf.mxu0
    %v2485 = vpop.f32.mrf.mxu0
    %2486 = vdwg.mxu0
    %2487 = vmatprep.subr.bf16.mxu0 %v2267
    %2488 = vmatpush1.bf16.msra.mxu0 %v2266
    %2489 = vmatprep.subr.bf16.mxu0 %v2263
    %2490 = vmatpush1.bf16.msra.mxu0 %v2262
    %2491 = vmatprep.subr.bf16.mxu0 %v2259
    %2492 = vmatpush1.bf16.msra.mxu0 %v2258
    %2493 = vmatprep.subr.bf16.mxu0 %v2255
    %2494 = vmatpush1.bf16.msra.mxu0 %v2254
    %2495 = vmatprep.subr.bf16.mxu0 %v2251
    %2496 = vmatpush1.bf16.msra.mxu0 %v2250
    %2497 = vmatprep.subr.bf16.mxu0 %v2247
    %2498 = vmatpush1.bf16.msra.mxu0 %v2246
    %2499 = vmatprep.subr.bf16.mxu0 %v2243
    %2500 = vmatpush1.bf16.msra.mxu0 %v2242
    %2501 = vmatprep.subr.bf16.mxu0 %v2239
    %2502 = vmatpush1.bf16.msra.mxu0 %v2238
    %2503 = vmatprep.subr.bf16.mxu0 0
    %2504 = vmatpush2.bf16.msra.mxu0 0
    %2505 = vmatprep.subr.bf16.mxu0 0
    %2506 = vmatpush2.bf16.msra.mxu0 0
    %2507 = vmatprep.subr.bf16.mxu0 0
    %2508 = vmatpush2.bf16.msra.mxu0 0
    %2509 = vmatprep.subr.bf16.mxu0 0
    %2510 = vmatpush2.bf16.msra.mxu0 0
    %2511 = vmatprep.subr.bf16.mxu0 0
    %2512 = vmatpush2.bf16.msra.mxu0 0
    %2513 = vmatprep.subr.bf16.mxu0 0
    %2514 = vmatpush2.bf16.msra.mxu0 0
    %2515 = vmatprep.subr.bf16.mxu0 0
    %2516 = vmatpush2.bf16.msra.mxu0 0
    %2517 = vmatprep.subr.bf16.mxu0 0
    %2518 = vmatpush2.bf16.msra.mxu0 0
    %2519 = vmatprep.mubr.bf16.mxu0 0
    %2520 = vmatmul.mubr.bf16.gmra.mxu0 %v1880
    %v2521 = vpop.f32.mrf.mxu0
    %v2522 = vadd.f32 %v2481, %v2521
    %v2523 = vpop.f32.mrf.mxu0
    %v2524 = vadd.f32 %v2483, %v2523
    %v2525 = vpop.f32.mrf.mxu0
    %v2526 = vpop.f32.mrf.mxu0
    %2527 = vdwg.mxu0
    %v2528 = vcombine.low %v1048, %v1062
    %v2529 = vcombine.low %v1071, %v1055
    %v2531 = vunpack.c.l.s4 1966171168
    %v2532 = vunpack.c.0.s8 %v2531
    %v2533 = vlaneseq
    %v2534 = vshrl.u32 %v2533, 7
    %v2535 = vsub.s32 %v2532, %v2534
    %v2536 = vrot.slane %v2528, %v2535
    %v2538 = vunpack.c.l.s4 1966171168
    %v2539 = vunpack.c.0.s8 %v2538
    %v2540 = vlaneseq
    %v2541 = vshrl.u32 %v2540, 7
    %v2542 = vsub.s32 %v2539, %v2541
    %v2543 = vrot.slane %v2529, %v2542
    %v2544 = vcombine.low %v2536, %v2543
    %v2545 = vcombine.high %v2536, %v2543
    %v2547 = vunpack.c.l.s4 1966171168
    %v2548 = vunpack.c.0.s8 %v2547
    %v2549 = vlaneseq
    %v2550 = vshrl.u32 %v2549, 7
    %v2551 = vsub.s32 %v2548, %v2550
    %v2552 = vrot.slane %v2544, %v2551
    %v2554 = vunpack.c.l.s4 1966171168
    %v2555 = vunpack.c.0.s8 %v2554
    %v2556 = vlaneseq
    %v2557 = vshrl.u32 %v2556, 7
    %v2558 = vsub.s32 %v2555, %v2557
    %v2559 = vrot.slane %v2545, %v2558
    %v2560 = vcombine.high %v2552, %v2552
    %v2660 = vunpack.c.l.b16 %v1655
    %v2661 = vunpack.c.h.b16 %v1655
    %v2662 = vunpack.c.l.b16 %v1656
    %v2663 = vunpack.c.h.b16 %v1656
    %v2664 = vunpack.c.l.b16 %v1657
    %v2665 = vunpack.c.h.b16 %v1657
    %v2666 = vunpack.c.l.b16 %v1658
    %v2667 = vunpack.c.h.b16 %v1658
    %v2668 = vunpack.c.l.b16 %v1659
    %v2669 = vunpack.c.h.b16 %v1659
    %v2670 = vunpack.c.l.b16 %v1660
    %v2671 = vunpack.c.h.b16 %v1660
    %v2672 = vunpack.c.l.b16 %v1661
    %v2673 = vunpack.c.h.b16 %v1661
    %v2674 = vunpack.c.l.b16 %v1662
    %v2675 = vunpack.c.h.b16 %v1662
    %v2676 = vunpack.c.l.b16 %v1663
    %v2677 = vunpack.c.h.b16 %v1663
    %v2678 = vunpack.c.l.b16 %v1664
    %v2679 = vunpack.c.h.b16 %v1664
    %v2680 = vunpack.c.l.b16 %v1665
    %v2681 = vunpack.c.h.b16 %v1665
    %v2682 = vunpack.c.l.b16 %v1666
    %v2683 = vunpack.c.h.b16 %v1666
    %v2684 = vunpack.c.l.b16 %v1667
    %v2685 = vunpack.c.h.b16 %v1667
    %v2686 = vunpack.c.l.b16 %v1668
    %v2687 = vunpack.c.h.b16 %v1668
    %v2688 = vunpack.c.l.b16 %v1669
    %v2689 = vunpack.c.h.b16 %v1669
    %v2690 = vunpack.c.l.b16 %v1670
    %v2691 = vunpack.c.h.b16 %v1670
    %v2692 = vunpack.c.l.b16 %v1671
    %v2693 = vunpack.c.h.b16 %v1671
    %v2694 = vunpack.c.l.b16 %v1672
    %v2695 = vunpack.c.h.b16 %v1672
    %v2696 = vunpack.c.l.b16 %v1673
    %v2697 = vunpack.c.h.b16 %v1673
    %v2698 = vunpack.c.l.b16 %v1674
    %v2699 = vunpack.c.h.b16 %v1674
    %v2700 = vunpack.c.l.b16 %v1675
    %v2701 = vunpack.c.h.b16 %v1675
    %v2702 = vunpack.c.l.b16 %v1676
    %v2703 = vunpack.c.h.b16 %v1676
    %v2704 = vunpack.c.l.b16 %v1677
    %v2705 = vunpack.c.h.b16 %v1677
    %v2706 = vunpack.c.l.b16 %v1678
    %v2707 = vunpack.c.h.b16 %v1678
    %v2708 = vunpack.c.l.b16 %v1679
    %v2709 = vunpack.c.h.b16 %v1679
    %v2710 = vunpack.c.l.b16 %v1680
    %v2711 = vunpack.c.h.b16 %v1680
    %v2712 = vunpack.c.l.b16 %v1681
    %v2713 = vunpack.c.h.b16 %v1681
    %v2714 = vunpack.c.l.b16 %v1682
    %v2715 = vunpack.c.h.b16 %v1682
    %v2716 = vunpack.c.l.b16 %v1683
    %v2717 = vunpack.c.h.b16 %v1683
    %v2718 = vunpack.c.l.b16 %v1684
    %v2719 = vunpack.c.h.b16 %v1684
    %v2720 = vunpack.c.l.b16 %v1685
    %v2721 = vunpack.c.h.b16 %v1685
    %v2722 = vunpack.c.l.b16 %v1686
    %v2723 = vunpack.c.h.b16 %v1686
    %v2724 = vunpack.c.l.b16 %v1687
    %v2725 = vunpack.c.h.b16 %v1687
    %v2726 = vunpack.c.l.b16 %v1688
    %v2727 = vunpack.c.h.b16 %v1688
    %v2728 = vunpack.c.l.b16 %v1689
    %v2729 = vunpack.c.h.b16 %v1689
    %v2730 = vunpack.c.l.b16 %v1690
    %v2731 = vunpack.c.h.b16 %v1690
    %v2732 = vunpack.c.l.b16 %v1691
    %v2733 = vunpack.c.h.b16 %v1691
    %v2734 = vunpack.c.l.b16 %v1692
    %v2735 = vunpack.c.h.b16 %v1692
    %v2736 = vunpack.c.l.b16 %v1693
    %v2737 = vunpack.c.h.b16 %v1693
    %v2738 = vunpack.c.l.b16 %v1694
    %v2739 = vunpack.c.h.b16 %v1694
    %v2740 = vunpack.c.l.b16 %v1695
    %v2741 = vunpack.c.h.b16 %v1695
    %v2742 = vunpack.c.l.b16 %v1696
    %v2743 = vunpack.c.h.b16 %v1696
    %v2744 = vunpack.c.l.b16 %v1697
    %v2745 = vunpack.c.h.b16 %v1697
    %v2746 = vunpack.c.l.b16 %v1698
    %v2747 = vunpack.c.h.b16 %v1698
    %v2748 = vunpack.c.l.b16 %v1699
    %v2749 = vunpack.c.h.b16 %v1699
    %v2750 = vunpack.c.l.b16 %v1700
    %v2751 = vunpack.c.h.b16 %v1700
    %v2752 = vunpack.c.l.b16 %v1701
    %v2753 = vunpack.c.h.b16 %v1701
    %v2754 = vunpack.c.l.b16 %v1702
    %v2755 = vunpack.c.h.b16 %v1702
    %v2756 = vunpack.c.l.b16 %v1703
    %v2757 = vunpack.c.h.b16 %v1703
    %v2758 = vunpack.c.l.b16 %v1704
    %v2759 = vunpack.c.h.b16 %v1704
    %v2760 = vunpack.c.l.b16 %v1705
    %v2761 = vunpack.c.h.b16 %v1705
    %v2762 = vunpack.c.l.b16 %v1706
    %v2763 = vunpack.c.h.b16 %v1706
    %v2764 = vunpack.c.l.b16 %v1707
    %v2765 = vunpack.c.h.b16 %v1707
    %v2766 = vunpack.c.l.b16 %v1708
    %v2767 = vunpack.c.h.b16 %v1708
    %v2768 = vunpack.c.l.b16 %v1709
    %v2769 = vunpack.c.h.b16 %v1709
    %v2770 = vunpack.c.l.b16 %v1710
    %v2771 = vunpack.c.h.b16 %v1710
    %v2772 = vunpack.c.l.b16 %v1711
    %v2773 = vunpack.c.h.b16 %v1711
    %v2774 = vunpack.c.l.b16 %v1712
    %v2775 = vunpack.c.h.b16 %v1712
    %v2776 = vunpack.c.l.b16 %v1713
    %v2777 = vunpack.c.h.b16 %v1713
    %v2778 = vunpack.c.l.b16 %v1714
    %v2779 = vunpack.c.h.b16 %v1714
    %v2780 = vunpack.c.l.b16 %v1715
    %v2781 = vunpack.c.h.b16 %v1715
    %v2782 = vunpack.c.l.b16 %v1716
    %v2783 = vunpack.c.h.b16 %v1716
    %v2784 = vunpack.c.l.b16 %v1717
    %v2785 = vunpack.c.h.b16 %v1717
    %v2786 = vunpack.c.l.b16 %v1718
    %v2787 = vunpack.c.h.b16 %v1718
    %v2788 = vunpack.c.l.b16 %v1719
    %v2789 = vunpack.c.h.b16 %v1719
    %v2790 = vunpack.c.l.b16 %v1720
    %v2791 = vunpack.c.h.b16 %v1720
    %v2792 = vunpack.c.l.b16 %v1721
    %v2793 = vunpack.c.h.b16 %v1721
    %v2794 = vunpack.c.l.b16 %v1722
    %v2795 = vunpack.c.h.b16 %v1722
    %v2796 = vunpack.c.l.b16 %v1723
    %v2797 = vunpack.c.h.b16 %v1723
    %v2798 = vunpack.c.l.b16 %v1724
    %v2799 = vunpack.c.h.b16 %v1724
    %v2800 = vunpack.c.l.b16 %v1725
    %v2801 = vunpack.c.h.b16 %v1725
    %v2802 = vunpack.c.l.b16 %v1726
    %v2803 = vunpack.c.h.b16 %v1726
    %v2804 = vunpack.c.l.b16 %v1727
    %v2805 = vunpack.c.h.b16 %v1727
    %v2806 = vunpack.c.l.b16 %v1728
    %v2807 = vunpack.c.h.b16 %v1728
    %v2808 = vunpack.c.l.b16 %v1729
    %v2809 = vunpack.c.h.b16 %v1729
    %v2810 = vunpack.c.l.b16 %v1730
    %v2811 = vunpack.c.h.b16 %v1730
    %v2812 = vunpack.c.l.b16 %v1731
    %v2813 = vunpack.c.h.b16 %v1731
    %v2814 = vunpack.c.l.b16 %v1732
    %v2815 = vunpack.c.h.b16 %v1732
    %v2816 = vunpack.c.l.b16 %v1733
    %v2817 = vunpack.c.h.b16 %v1733
    %v2818 = vunpack.c.l.b16 %v1734
    %v2819 = vunpack.c.h.b16 %v1734
    %v2820 = vunpack.c.l.b16 %v1735
    %v2821 = vunpack.c.h.b16 %v1735
    %v2822 = vunpack.c.l.b16 %v1736
    %v2823 = vunpack.c.h.b16 %v1736
    %v2824 = vunpack.c.l.b16 %v1737
    %v2825 = vunpack.c.h.b16 %v1737
    %v2826 = vunpack.c.l.b16 %v1738
    %v2827 = vunpack.c.h.b16 %v1738
    %v2828 = vunpack.c.l.b16 %v1739
    %v2829 = vunpack.c.h.b16 %v1739
    %v2830 = vunpack.c.l.b16 %v1740
    %v2831 = vunpack.c.h.b16 %v1740
    %v2832 = vunpack.c.l.b16 %v1741
    %v2833 = vunpack.c.h.b16 %v1741
    %v2834 = vunpack.c.l.b16 %v1742
    %v2835 = vunpack.c.h.b16 %v1742
    %v2836 = vunpack.c.l.b16 %v1743
    %v2837 = vunpack.c.h.b16 %v1743
    %v2838 = vunpack.c.l.b16 %v1744
    %v2839 = vunpack.c.h.b16 %v1744
    %v2840 = vunpack.c.l.b16 %v1745
    %v2841 = vunpack.c.h.b16 %v1745
    %v2842 = vunpack.c.l.b16 %v1746
    %v2843 = vunpack.c.h.b16 %v1746
    %v2844 = vunpack.c.l.b16 %v1747
    %v2845 = vunpack.c.h.b16 %v1747
    %v2846 = vunpack.c.l.b16 %v1748
    %v2847 = vunpack.c.h.b16 %v1748
    %v2848 = vunpack.c.l.b16 %v1749
    %v2849 = vunpack.c.h.b16 %v1749
    %v2850 = vunpack.c.l.b16 %v1750
    %v2851 = vunpack.c.h.b16 %v1750
    %v2852 = vpack.c.b16 %v2664, %v2660
    %v2853 = vpack.c.b16 %v2665, %v2661
    %v2854 = vpack.c.b16 %v2666, %v2662
    %v2855 = vpack.c.b16 %v2667, %v2663
    %v2856 = vpack.c.b16 %v2672, %v2668
    %v2857 = vpack.c.b16 %v2673, %v2669
    %v2858 = vpack.c.b16 %v2674, %v2670
    %v2859 = vpack.c.b16 %v2675, %v2671
    %v2860 = vpack.c.b16 %v2680, %v2676
    %v2861 = vpack.c.b16 %v2681, %v2677
    %v2862 = vpack.c.b16 %v2682, %v2678
    %v2863 = vpack.c.b16 %v2683, %v2679
    %v2864 = vpack.c.b16 %v2688, %v2684
    %v2865 = vpack.c.b16 %v2689, %v2685
    %v2866 = vpack.c.b16 %v2690, %v2686
    %v2867 = vpack.c.b16 %v2691, %v2687
    %v2868 = vpack.c.b16 %v2696, %v2692
    %v2869 = vpack.c.b16 %v2697, %v2693
    %v2870 = vpack.c.b16 %v2698, %v2694
    %v2871 = vpack.c.b16 %v2699, %v2695
    %v2872 = vpack.c.b16 %v2704, %v2700
    %v2873 = vpack.c.b16 %v2705, %v2701
    %v2874 = vpack.c.b16 %v2706, %v2702
    %v2875 = vpack.c.b16 %v2707, %v2703
    %v2876 = vpack.c.b16 %v2712, %v2708
    %v2877 = vpack.c.b16 %v2713, %v2709
    %v2878 = vpack.c.b16 %v2714, %v2710
    %v2879 = vpack.c.b16 %v2715, %v2711
    %v2880 = vpack.c.b16 %v2720, %v2716
    %v2881 = vpack.c.b16 %v2721, %v2717
    %v2882 = vpack.c.b16 %v2722, %v2718
    %v2883 = vpack.c.b16 %v2723, %v2719
    %v2884 = vpack.c.b16 %v2728, %v2724
    %v2885 = vpack.c.b16 %v2729, %v2725
    %v2886 = vpack.c.b16 %v2730, %v2726
    %v2887 = vpack.c.b16 %v2731, %v2727
    %v2888 = vpack.c.b16 %v2736, %v2732
    %v2889 = vpack.c.b16 %v2737, %v2733
    %v2890 = vpack.c.b16 %v2738, %v2734
    %v2891 = vpack.c.b16 %v2739, %v2735
    %v2892 = vpack.c.b16 %v2744, %v2740
    %v2893 = vpack.c.b16 %v2745, %v2741
    %v2894 = vpack.c.b16 %v2746, %v2742
    %v2895 = vpack.c.b16 %v2747, %v2743
    %v2896 = vpack.c.b16 %v2752, %v2748
    %v2897 = vpack.c.b16 %v2753, %v2749
    %v2898 = vpack.c.b16 %v2754, %v2750
    %v2899 = vpack.c.b16 %v2755, %v2751
    %v2900 = vpack.c.b16 %v2760, %v2756
    %v2901 = vpack.c.b16 %v2761, %v2757
    %v2902 = vpack.c.b16 %v2762, %v2758
    %v2903 = vpack.c.b16 %v2763, %v2759
    %v2904 = vpack.c.b16 %v2768, %v2764
    %v2905 = vpack.c.b16 %v2769, %v2765
    %v2906 = vpack.c.b16 %v2770, %v2766
    %v2907 = vpack.c.b16 %v2771, %v2767
    %v2908 = vpack.c.b16 %v2776, %v2772
    %v2909 = vpack.c.b16 %v2777, %v2773
    %v2910 = vpack.c.b16 %v2778, %v2774
    %v2911 = vpack.c.b16 %v2779, %v2775
    %v2912 = vpack.c.b16 %v2784, %v2780
    %v2913 = vpack.c.b16 %v2785, %v2781
    %v2914 = vpack.c.b16 %v2786, %v2782
    %v2915 = vpack.c.b16 %v2787, %v2783
    %v2916 = vpack.c.b16 %v2792, %v2788
    %v2917 = vpack.c.b16 %v2793, %v2789
    %v2918 = vpack.c.b16 %v2794, %v2790
    %v2919 = vpack.c.b16 %v2795, %v2791
    %v2920 = vpack.c.b16 %v2800, %v2796
    %v2921 = vpack.c.b16 %v2801, %v2797
    %v2922 = vpack.c.b16 %v2802, %v2798
    %v2923 = vpack.c.b16 %v2803, %v2799
    %v2924 = vpack.c.b16 %v2808, %v2804
    %v2925 = vpack.c.b16 %v2809, %v2805
    %v2926 = vpack.c.b16 %v2810, %v2806
    %v2927 = vpack.c.b16 %v2811, %v2807
    %v2928 = vpack.c.b16 %v2816, %v2812
    %v2929 = vpack.c.b16 %v2817, %v2813
    %v2930 = vpack.c.b16 %v2818, %v2814
    %v2931 = vpack.c.b16 %v2819, %v2815
    %v2932 = vpack.c.b16 %v2824, %v2820
    %v2933 = vpack.c.b16 %v2825, %v2821
    %v2934 = vpack.c.b16 %v2826, %v2822
    %v2935 = vpack.c.b16 %v2827, %v2823
    %v2936 = vpack.c.b16 %v2832, %v2828
    %v2937 = vpack.c.b16 %v2833, %v2829
    %v2938 = vpack.c.b16 %v2834, %v2830
    %v2939 = vpack.c.b16 %v2835, %v2831
    %v2940 = vpack.c.b16 %v2840, %v2836
    %v2941 = vpack.c.b16 %v2841, %v2837
    %v2942 = vpack.c.b16 %v2842, %v2838
    %v2943 = vpack.c.b16 %v2843, %v2839
    %v2944 = vpack.c.b16 %v2848, %v2844
    %v2945 = vpack.c.b16 %v2849, %v2845
    %v2946 = vpack.c.b16 %v2850, %v2846
    %v2947 = vpack.c.b16 %v2851, %v2847
    %3044 = vmatprep.subr.bf16.mxu0 %v2881
    %3045 = vmatpush1.bf16.msra.mxu0 %v2880
    %3046 = vmatprep.subr.bf16.mxu0 %v2877
    %3047 = vmatpush1.bf16.msra.mxu0 %v2876
    %3048 = vmatprep.subr.bf16.mxu0 %v2873
    %3049 = vmatpush1.bf16.msra.mxu0 %v2872
    %3050 = vmatprep.subr.bf16.mxu0 %v2869
    %3051 = vmatpush1.bf16.msra.mxu0 %v2868
    %3052 = vmatprep.subr.bf16.mxu0 %v2865
    %3053 = vmatpush1.bf16.msra.mxu0 %v2864
    %3054 = vmatprep.subr.bf16.mxu0 %v2861
    %3055 = vmatpush1.bf16.msra.mxu0 %v2860
    %3056 = vmatprep.subr.bf16.mxu0 %v2857
    %3057 = vmatpush1.bf16.msra.mxu0 %v2856
    %3058 = vmatprep.subr.bf16.mxu0 %v2853
    %3059 = vmatpush1.bf16.msra.mxu0 %v2852
    %3060 = vmatprep.subr.bf16.mxu0 %v2913
    %3061 = vmatpush2.bf16.msra.mxu0 %v2912
    %3062 = vmatprep.subr.bf16.mxu0 %v2909
    %3063 = vmatpush2.bf16.msra.mxu0 %v2908
    %3064 = vmatprep.subr.bf16.mxu0 %v2905
    %3065 = vmatpush2.bf16.msra.mxu0 %v2904
    %3066 = vmatprep.subr.bf16.mxu0 %v2901
    %3067 = vmatpush2.bf16.msra.mxu0 %v2900
    %3068 = vmatprep.subr.bf16.mxu0 %v2897
    %3069 = vmatpush2.bf16.msra.mxu0 %v2896
    %3070 = vmatprep.subr.bf16.mxu0 %v2893
    %3071 = vmatpush2.bf16.msra.mxu0 %v2892
    %3072 = vmatprep.subr.bf16.mxu0 %v2889
    %3073 = vmatpush2.bf16.msra.mxu0 %v2888
    %3074 = vmatprep.subr.bf16.mxu0 %v2885
    %3075 = vmatpush2.bf16.msra.mxu0 %v2884
    %3076 = vmatprep.mubr.bf16.mxu0 %v2559
    %3077 = vmatmul.mubr.bf16.gmra.mxu0 %v2552
    %v3078 = vpop.f32.mrf.mxu0
    %v3079 = vadd.f32 %v2440, %v3078
    %v3080 = vpop.f32.mrf.mxu0
    %v3081 = vadd.f32 %v2442, %v3080
    %v3082 = vpop.f32.mrf.mxu0
    %v3083 = vpop.f32.mrf.mxu0
    %3084 = vdwg.mxu0
    %3085 = vmatprep.subr.bf16.mxu0 %v2945
    %3086 = vmatpush1.bf16.msra.mxu0 %v2944
    %3087 = vmatprep.subr.bf16.mxu0 %v2941
    %3088 = vmatpush1.bf16.msra.mxu0 %v2940
    %3089 = vmatprep.subr.bf16.mxu0 %v2937
    %3090 = vmatpush1.bf16.msra.mxu0 %v2936
    %3091 = vmatprep.subr.bf16.mxu0 %v2933
    %3092 = vmatpush1.bf16.msra.mxu0 %v2932
    %3093 = vmatprep.subr.bf16.mxu0 %v2929
    %3094 = vmatpush1.bf16.msra.mxu0 %v2928
    %3095 = vmatprep.subr.bf16.mxu0 %v2925
    %3096 = vmatpush1.bf16.msra.mxu0 %v2924
    %3097 = vmatprep.subr.bf16.mxu0 %v2921
    %3098 = vmatpush1.bf16.msra.mxu0 %v2920
    %3099 = vmatprep.subr.bf16.mxu0 %v2917
    %3100 = vmatpush1.bf16.msra.mxu0 %v2916
    %3101 = vmatprep.subr.bf16.mxu0 0
    %3102 = vmatpush2.bf16.msra.mxu0 0
    %3103 = vmatprep.subr.bf16.mxu0 0
    %3104 = vmatpush2.bf16.msra.mxu0 0
    %3105 = vmatprep.subr.bf16.mxu0 0
    %3106 = vmatpush2.bf16.msra.mxu0 0
    %3107 = vmatprep.subr.bf16.mxu0 0
    %3108 = vmatpush2.bf16.msra.mxu0 0
    %3109 = vmatprep.subr.bf16.mxu0 0
    %3110 = vmatpush2.bf16.msra.mxu0 0
    %3111 = vmatprep.subr.bf16.mxu0 0
    %3112 = vmatpush2.bf16.msra.mxu0 0
    %3113 = vmatprep.subr.bf16.mxu0 0
    %3114 = vmatpush2.bf16.msra.mxu0 0
    %3115 = vmatprep.subr.bf16.mxu0 0
    %3116 = vmatpush2.bf16.msra.mxu0 0
    %3117 = vmatprep.mubr.bf16.mxu0 0
    %3118 = vmatmul.mubr.bf16.gmra.mxu0 %v2560
    %v3119 = vpop.f32.mrf.mxu0
    %v3120 = vadd.f32 %v3079, %v3119
    %v3121 = vpop.f32.mrf.mxu0
    %v3122 = vadd.f32 %v3081, %v3121
    %v3123 = vpop.f32.mrf.mxu0
    %v3124 = vpop.f32.mrf.mxu0
    %3125 = vdwg.mxu0
    %3126 = vmatprep.subr.bf16.mxu0 %v2883
    %3127 = vmatpush1.bf16.msra.mxu0 %v2882
    %3128 = vmatprep.subr.bf16.mxu0 %v2879
    %3129 = vmatpush1.bf16.msra.mxu0 %v2878
    %3130 = vmatprep.subr.bf16.mxu0 %v2875
    %3131 = vmatpush1.bf16.msra.mxu0 %v2874
    %3132 = vmatprep.subr.bf16.mxu0 %v2871
    %3133 = vmatpush1.bf16.msra.mxu0 %v2870
    %3134 = vmatprep.subr.bf16.mxu0 %v2867
    %3135 = vmatpush1.bf16.msra.mxu0 %v2866
    %3136 = vmatprep.subr.bf16.mxu0 %v2863
    %3137 = vmatpush1.bf16.msra.mxu0 %v2862
    %3138 = vmatprep.subr.bf16.mxu0 %v2859
    %3139 = vmatpush1.bf16.msra.mxu0 %v2858
    %3140 = vmatprep.subr.bf16.mxu0 %v2855
    %3141 = vmatpush1.bf16.msra.mxu0 %v2854
    %3142 = vmatprep.subr.bf16.mxu0 %v2915
    %3143 = vmatpush2.bf16.msra.mxu0 %v2914
    %3144 = vmatprep.subr.bf16.mxu0 %v2911
    %3145 = vmatpush2.bf16.msra.mxu0 %v2910
    %3146 = vmatprep.subr.bf16.mxu0 %v2907
    %3147 = vmatpush2.bf16.msra.mxu0 %v2906
    %3148 = vmatprep.subr.bf16.mxu0 %v2903
    %3149 = vmatpush2.bf16.msra.mxu0 %v2902
    %3150 = vmatprep.subr.bf16.mxu0 %v2899
    %3151 = vmatpush2.bf16.msra.mxu0 %v2898
    %3152 = vmatprep.subr.bf16.mxu0 %v2895
    %3153 = vmatpush2.bf16.msra.mxu0 %v2894
    %3154 = vmatprep.subr.bf16.mxu0 %v2891
    %3155 = vmatpush2.bf16.msra.mxu0 %v2890
    %3156 = vmatprep.subr.bf16.mxu0 %v2887
    %3157 = vmatpush2.bf16.msra.mxu0 %v2886
    %3158 = vmatprep.mubr.bf16.mxu0 %v2559
    %3159 = vmatmul.mubr.bf16.gmra.mxu0 %v2552
    %v3160 = vpop.f32.mrf.mxu0
    %v3161 = vadd.f32 %v2522, %v3160
    %v3162 = vpop.f32.mrf.mxu0
    %v3163 = vadd.f32 %v2524, %v3162
    %v3164 = vpop.f32.mrf.mxu0
    %v3165 = vpop.f32.mrf.mxu0
    %3166 = vdwg.mxu0
    %3167 = vmatprep.subr.bf16.mxu0 %v2947
    %3168 = vmatpush1.bf16.msra.mxu0 %v2946
    %3169 = vmatprep.subr.bf16.mxu0 %v2943
    %3170 = vmatpush1.bf16.msra.mxu0 %v2942
    %3171 = vmatprep.subr.bf16.mxu0 %v2939
    %3172 = vmatpush1.bf16.msra.mxu0 %v2938
    %3173 = vmatprep.subr.bf16.mxu0 %v2935
    %3174 = vmatpush1.bf16.msra.mxu0 %v2934
    %3175 = vmatprep.subr.bf16.mxu0 %v2931
    %3176 = vmatpush1.bf16.msra.mxu0 %v2930
    %3177 = vmatprep.subr.bf16.mxu0 %v2927
    %3178 = vmatpush1.bf16.msra.mxu0 %v2926
    %3179 = vmatprep.subr.bf16.mxu0 %v2923
    %3180 = vmatpush1.bf16.msra.mxu0 %v2922
    %3181 = vmatprep.subr.bf16.mxu0 %v2919
    %3182 = vmatpush1.bf16.msra.mxu0 %v2918
    %3183 = vmatprep.subr.bf16.mxu0 0
    %3184 = vmatpush2.bf16.msra.mxu0 0
    %3185 = vmatprep.subr.bf16.mxu0 0
    %3186 = vmatpush2.bf16.msra.mxu0 0
    %3187 = vmatprep.subr.bf16.mxu0 0
    %3188 = vmatpush2.bf16.msra.mxu0 0
    %3189 = vmatprep.subr.bf16.mxu0 0
    %3190 = vmatpush2.bf16.msra.mxu0 0
    %3191 = vmatprep.subr.bf16.mxu0 0
    %3192 = vmatpush2.bf16.msra.mxu0 0
    %3193 = vmatprep.subr.bf16.mxu0 0
    %3194 = vmatpush2.bf16.msra.mxu0 0
    %3195 = vmatprep.subr.bf16.mxu0 0
    %3196 = vmatpush2.bf16.msra.mxu0 0
    %3197 = vmatprep.subr.bf16.mxu0 0
    %3198 = vmatpush2.bf16.msra.mxu0 0
    %3199 = vmatprep.mubr.bf16.mxu0 0
    %3200 = vmatmul.mubr.bf16.gmra.mxu0 %v2560
    %v3201 = vpop.f32.mrf.mxu0
    %v3202 = vadd.f32 %v3161, %v3201
    %v3203 = vpop.f32.mrf.mxu0
    %v3204 = vadd.f32 %v3163, %v3203
    %v3205 = vpop.f32.mrf.mxu0
    %v3206 = vpop.f32.mrf.mxu0
    %3207 = vdwg.mxu0
    %vm3208 = vsmask.f32 256
    %vm3209 = vsmask.f32 1284
    %vm3210 = vmor %vm3208, %vm3209
    %vm3211 = vsmask.f32 2312
    %vm3212 = vmor %vm3210, %vm3211
    %vm3213 = vsmask.f32 3340
    %vm3214 = vmor %vm3212, %vm3213
    %vm3215 = vsmask.f32 4368
    %vm3216 = vmor %vm3214, %vm3215
    %vm3217 = vsmask.f32 5396
    %vm3218 = vmor %vm3216, %vm3217
    %vm3219 = vsmask.f32 6424
    %vm3220 = vmor %vm3218, %vm3219
    %vm3221 = vsmask.f32 7452
    %vm3222 = vmor %vm3220, %vm3221
    %v3224 = vshrl.u32 %v1048, 16
    %v3226 = vrot.slane %v3224, 7
    %v3227 = vrot.slane %v3226, 1
    %v3229 = vshll.u32 %v1062, 16
    %v3231 = vsel %vm3222, %v3227, %v3229
    %v3232 = vshrl.u32 %v1062, 16
    %v3234 = vrot.slane %v3232, 7
    %v3235 = vrot.slane %v3234, 1
    %v3237 = vshll.u32 %v1070, 16
    %v3239 = vsel %vm3222, %v3235, %v3237
    %v3241 = vshrl.u32 %v1071, 16
    %v3243 = vrot.slane %v3241, 7
    %v3244 = vrot.slane %v3243, 1
    %v3246 = vshll.u32 %v1055, 16
    %v3248 = vsel %vm3222, %v3244, %v3246
    %v3249 = vshrl.u32 %v1055, 16
    %v3251 = vrot.slane %v3249, 7
    %v3252 = vrot.slane %v3251, 1
    %v3254 = vshll.u32 %v1069, 16
    %v3256 = vsel %vm3222, %v3252, %v3254
    %v3257 = vcombine.low %v3231, %v3239
    %v3258 = vcombine.low %v3248, %v3256
    %v3260 = vunpack.c.l.s4 1966171168
    %v3261 = vunpack.c.0.s8 %v3260
    %v3262 = vlaneseq
    %v3263 = vshrl.u32 %v3262, 7
    %v3264 = vsub.s32 %v3261, %v3263
    %v3265 = vrot.slane %v3257, %v3264
    %v3267 = vunpack.c.l.s4 1966171168
    %v3268 = vunpack.c.0.s8 %v3267
    %v3269 = vlaneseq
    %v3270 = vshrl.u32 %v3269, 7
    %v3271 = vsub.s32 %v3268, %v3270
    %v3272 = vrot.slane %v3258, %v3271
    %v3273 = vcombine.low %v3265, %v3272
    %v3274 = vcombine.high %v3265, %v3272
    %v3276 = vunpack.c.l.s4 1966171168
    %v3277 = vunpack.c.0.s8 %v3276
    %v3278 = vlaneseq
    %v3279 = vshrl.u32 %v3278, 7
    %v3280 = vsub.s32 %v3277, %v3279
    %v3281 = vrot.slane %v3273, %v3280
    %v3283 = vunpack.c.l.s4 1966171168
    %v3284 = vunpack.c.0.s8 %v3283
    %v3285 = vlaneseq
    %v3286 = vshrl.u32 %v3285, 7
    %v3287 = vsub.s32 %v3284, %v3286
    %v3288 = vrot.slane %v3274, %v3287
    %v3289 = vcombine.high %v3281, %v3281
    %3293 = vmatprep.subr.bf16.mxu0 %v2201
    %3294 = vmatpush1.bf16.msra.mxu0 %v2200
    %3295 = vmatprep.subr.bf16.mxu0 %v2197
    %3296 = vmatpush1.bf16.msra.mxu0 %v2196
    %3297 = vmatprep.subr.bf16.mxu0 %v2193
    %3298 = vmatpush1.bf16.msra.mxu0 %v2192
    %3299 = vmatprep.subr.bf16.mxu0 %v2189
    %3300 = vmatpush1.bf16.msra.mxu0 %v2188
    %3301 = vmatprep.subr.bf16.mxu0 %v2185
    %3302 = vmatpush1.bf16.msra.mxu0 %v2184
    %3303 = vmatprep.subr.bf16.mxu0 %v2181
    %3304 = vmatpush1.bf16.msra.mxu0 %v2180
    %3305 = vmatprep.subr.bf16.mxu0 %v2177
    %3306 = vmatpush1.bf16.msra.mxu0 %v2176
    %3307 = vmatprep.subr.bf16.mxu0 %v2173
    %3308 = vmatpush1.bf16.msra.mxu0 %v2172
    %3309 = vmatprep.subr.bf16.mxu0 %v2233
    %3310 = vmatpush2.bf16.msra.mxu0 %v2232
    %3311 = vmatprep.subr.bf16.mxu0 %v2229
    %3312 = vmatpush2.bf16.msra.mxu0 %v2228
    %3313 = vmatprep.subr.bf16.mxu0 %v2225
    %3314 = vmatpush2.bf16.msra.mxu0 %v2224
    %3315 = vmatprep.subr.bf16.mxu0 %v2221
    %3316 = vmatpush2.bf16.msra.mxu0 %v2220
    %3317 = vmatprep.subr.bf16.mxu0 %v2217
    %3318 = vmatpush2.bf16.msra.mxu0 %v2216
    %3319 = vmatprep.subr.bf16.mxu0 %v2213
    %3320 = vmatpush2.bf16.msra.mxu0 %v2212
    %3321 = vmatprep.subr.bf16.mxu0 %v2209
    %3322 = vmatpush2.bf16.msra.mxu0 %v2208
    %3323 = vmatprep.subr.bf16.mxu0 %v2205
    %3324 = vmatpush2.bf16.msra.mxu0 %v2204
    %3325 = vmatprep.mubr.bf16.mxu0 %v3288
    %3326 = vmatmul.mubr.bf16.gmra.mxu0 %v3281
    %v3327 = vpop.f32.mrf.mxu0
    %v3328 = vadd.f32 0.0, %v3327
    %v3329 = vpop.f32.mrf.mxu0
    %v3330 = vadd.f32 0.0, %v3329
    %v3331 = vpop.f32.mrf.mxu0
    %v3332 = vpop.f32.mrf.mxu0
    %3333 = vdwg.mxu0
    %3334 = vmatprep.subr.bf16.mxu0 %v2265
    %3335 = vmatpush1.bf16.msra.mxu0 %v2264
    %3336 = vmatprep.subr.bf16.mxu0 %v2261
    %3337 = vmatpush1.bf16.msra.mxu0 %v2260
    %3338 = vmatprep.subr.bf16.mxu0 %v2257
    %3339 = vmatpush1.bf16.msra.mxu0 %v2256
    %3340 = vmatprep.subr.bf16.mxu0 %v2253
    %3341 = vmatpush1.bf16.msra.mxu0 %v2252
    %3342 = vmatprep.subr.bf16.mxu0 %v2249
    %3343 = vmatpush1.bf16.msra.mxu0 %v2248
    %3344 = vmatprep.subr.bf16.mxu0 %v2245
    %3345 = vmatpush1.bf16.msra.mxu0 %v2244
    %3346 = vmatprep.subr.bf16.mxu0 %v2241
    %3347 = vmatpush1.bf16.msra.mxu0 %v2240
    %3348 = vmatprep.subr.bf16.mxu0 %v2237
    %3349 = vmatpush1.bf16.msra.mxu0 %v2236
    %3350 = vmatprep.subr.bf16.mxu0 0
    %3351 = vmatpush2.bf16.msra.mxu0 0
    %3352 = vmatprep.subr.bf16.mxu0 0
    %3353 = vmatpush2.bf16.msra.mxu0 0
    %3354 = vmatprep.subr.bf16.mxu0 0
    %3355 = vmatpush2.bf16.msra.mxu0 0
    %3356 = vmatprep.subr.bf16.mxu0 0
    %3357 = vmatpush2.bf16.msra.mxu0 0
    %3358 = vmatprep.subr.bf16.mxu0 0
    %3359 = vmatpush2.bf16.msra.mxu0 0
    %3360 = vmatprep.subr.bf16.mxu0 0
    %3361 = vmatpush2.bf16.msra.mxu0 0
    %3362 = vmatprep.subr.bf16.mxu0 0
    %3363 = vmatpush2.bf16.msra.mxu0 0
    %3364 = vmatprep.subr.bf16.mxu0 0
    %3365 = vmatpush2.bf16.msra.mxu0 0
    %3366 = vmatprep.mubr.bf16.mxu0 0
    %3367 = vmatmul.mubr.bf16.gmra.mxu0 %v3289
    %v3368 = vpop.f32.mrf.mxu0
    %v3369 = vadd.f32 %v3328, %v3368
    %v3370 = vpop.f32.mrf.mxu0
    %v3371 = vadd.f32 %v3330, %v3370
    %v3372 = vpop.f32.mrf.mxu0
    %v3373 = vpop.f32.mrf.mxu0
    %3374 = vdwg.mxu0
    %3375 = vmatprep.subr.bf16.mxu0 %v2203
    %3376 = vmatpush1.bf16.msra.mxu0 %v2202
    %3377 = vmatprep.subr.bf16.mxu0 %v2199
    %3378 = vmatpush1.bf16.msra.mxu0 %v2198
    %3379 = vmatprep.subr.bf16.mxu0 %v2195
    %3380 = vmatpush1.bf16.msra.mxu0 %v2194
    %3381 = vmatprep.subr.bf16.mxu0 %v2191
    %3382 = vmatpush1.bf16.msra.mxu0 %v2190
    %3383 = vmatprep.subr.bf16.mxu0 %v2187
    %3384 = vmatpush1.bf16.msra.mxu0 %v2186
    %3385 = vmatprep.subr.bf16.mxu0 %v2183
    %3386 = vmatpush1.bf16.msra.mxu0 %v2182
    %3387 = vmatprep.subr.bf16.mxu0 %v2179
    %3388 = vmatpush1.bf16.msra.mxu0 %v2178
    %3389 = vmatprep.subr.bf16.mxu0 %v2175
    %3390 = vmatpush1.bf16.msra.mxu0 %v2174
    %3391 = vmatprep.subr.bf16.mxu0 %v2235
    %3392 = vmatpush2.bf16.msra.mxu0 %v2234
    %3393 = vmatprep.subr.bf16.mxu0 %v2231
    %3394 = vmatpush2.bf16.msra.mxu0 %v2230
    %3395 = vmatprep.subr.bf16.mxu0 %v2227
    %3396 = vmatpush2.bf16.msra.mxu0 %v2226
    %3397 = vmatprep.subr.bf16.mxu0 %v2223
    %3398 = vmatpush2.bf16.msra.mxu0 %v2222
    %3399 = vmatprep.subr.bf16.mxu0 %v2219
    %3400 = vmatpush2.bf16.msra.mxu0 %v2218
    %3401 = vmatprep.subr.bf16.mxu0 %v2215
    %3402 = vmatpush2.bf16.msra.mxu0 %v2214
    %3403 = vmatprep.subr.bf16.mxu0 %v2211
    %3404 = vmatpush2.bf16.msra.mxu0 %v2210
    %3405 = vmatprep.subr.bf16.mxu0 %v2207
    %3406 = vmatpush2.bf16.msra.mxu0 %v2206
    %3407 = vmatprep.mubr.bf16.mxu0 %v3288
    %3408 = vmatmul.mubr.bf16.gmra.mxu0 %v3281
    %v3409 = vpop.f32.mrf.mxu0
    %v3410 = vadd.f32 0.0, %v3409
    %v3411 = vpop.f32.mrf.mxu0
    %v3412 = vadd.f32 0.0, %v3411
    %v3413 = vpop.f32.mrf.mxu0
    %v3414 = vpop.f32.mrf.mxu0
    %3415 = vdwg.mxu0
    %3416 = vmatprep.subr.bf16.mxu0 %v2267
    %3417 = vmatpush1.bf16.msra.mxu0 %v2266
    %3418 = vmatprep.subr.bf16.mxu0 %v2263
    %3419 = vmatpush1.bf16.msra.mxu0 %v2262
    %3420 = vmatprep.subr.bf16.mxu0 %v2259
    %3421 = vmatpush1.bf16.msra.mxu0 %v2258
    %3422 = vmatprep.subr.bf16.mxu0 %v2255
    %3423 = vmatpush1.bf16.msra.mxu0 %v2254
    %3424 = vmatprep.subr.bf16.mxu0 %v2251
    %3425 = vmatpush1.bf16.msra.mxu0 %v2250
    %3426 = vmatprep.subr.bf16.mxu0 %v2247
    %3427 = vmatpush1.bf16.msra.mxu0 %v2246
    %3428 = vmatprep.subr.bf16.mxu0 %v2243
    %3429 = vmatpush1.bf16.msra.mxu0 %v2242
    %3430 = vmatprep.subr.bf16.mxu0 %v2239
    %3431 = vmatpush1.bf16.msra.mxu0 %v2238
    %3432 = vmatprep.subr.bf16.mxu0 0
    %3433 = vmatpush2.bf16.msra.mxu0 0
    %3434 = vmatprep.subr.bf16.mxu0 0
    %3435 = vmatpush2.bf16.msra.mxu0 0
    %3436 = vmatprep.subr.bf16.mxu0 0
    %3437 = vmatpush2.bf16.msra.mxu0 0
    %3438 = vmatprep.subr.bf16.mxu0 0
    %3439 = vmatpush2.bf16.msra.mxu0 0
    %3440 = vmatprep.subr.bf16.mxu0 0
    %3441 = vmatpush2.bf16.msra.mxu0 0
    %3442 = vmatprep.subr.bf16.mxu0 0
    %3443 = vmatpush2.bf16.msra.mxu0 0
    %3444 = vmatprep.subr.bf16.mxu0 0
    %3445 = vmatpush2.bf16.msra.mxu0 0
    %3446 = vmatprep.subr.bf16.mxu0 0
    %3447 = vmatpush2.bf16.msra.mxu0 0
    %3448 = vmatprep.mubr.bf16.mxu0 0
    %3449 = vmatmul.mubr.bf16.gmra.mxu0 %v3289
    %v3450 = vpop.f32.mrf.mxu0
    %v3451 = vadd.f32 %v3410, %v3450
    %v3452 = vpop.f32.mrf.mxu0
    %v3453 = vadd.f32 %v3412, %v3452
    %v3454 = vpop.f32.mrf.mxu0
    %v3455 = vpop.f32.mrf.mxu0
    %3456 = vdwg.mxu0
    %3457 = vmatprep.subr.bf16.mxu0 %v2881
    %3458 = vmatpush1.bf16.msra.mxu0 %v2880
    %3459 = vmatprep.subr.bf16.mxu0 %v2877
    %3460 = vmatpush1.bf16.msra.mxu0 %v2876
    %3461 = vmatprep.subr.bf16.mxu0 %v2873
    %3462 = vmatpush1.bf16.msra.mxu0 %v2872
    %3463 = vmatprep.subr.bf16.mxu0 %v2869
    %3464 = vmatpush1.bf16.msra.mxu0 %v2868
    %3465 = vmatprep.subr.bf16.mxu0 %v2865
    %3466 = vmatpush1.bf16.msra.mxu0 %v2864
    %3467 = vmatprep.subr.bf16.mxu0 %v2861
    %3468 = vmatpush1.bf16.msra.mxu0 %v2860
    %3469 = vmatprep.subr.bf16.mxu0 %v2857
    %3470 = vmatpush1.bf16.msra.mxu0 %v2856
    %3471 = vmatprep.subr.bf16.mxu0 %v2853
    %3472 = vmatpush1.bf16.msra.mxu0 %v2852
    %3473 = vmatprep.subr.bf16.mxu0 %v2913
    %3474 = vmatpush2.bf16.msra.mxu0 %v2912
    %3475 = vmatprep.subr.bf16.mxu0 %v2909
    %3476 = vmatpush2.bf16.msra.mxu0 %v2908
    %3477 = vmatprep.subr.bf16.mxu0 %v2905
    %3478 = vmatpush2.bf16.msra.mxu0 %v2904
    %3479 = vmatprep.subr.bf16.mxu0 %v2901
    %3480 = vmatpush2.bf16.msra.mxu0 %v2900
    %3481 = vmatprep.subr.bf16.mxu0 %v2897
    %3482 = vmatpush2.bf16.msra.mxu0 %v2896
    %3483 = vmatprep.subr.bf16.mxu0 %v2893
    %3484 = vmatpush2.bf16.msra.mxu0 %v2892
    %3485 = vmatprep.subr.bf16.mxu0 %v2889
    %3486 = vmatpush2.bf16.msra.mxu0 %v2888
    %3487 = vmatprep.subr.bf16.mxu0 %v2885
    %3488 = vmatpush2.bf16.msra.mxu0 %v2884
    %3489 = vmatprep.mubr.bf16.mxu0 %v1879
    %3490 = vmatmul.mubr.bf16.gmra.mxu0 %v1872
    %v3491 = vpop.f32.mrf.mxu0
    %v3492 = vadd.f32 %v3369, %v3491
    %v3493 = vpop.f32.mrf.mxu0
    %v3494 = vadd.f32 %v3371, %v3493
    %v3495 = vpop.f32.mrf.mxu0
    %v3496 = vpop.f32.mrf.mxu0
    %3497 = vdwg.mxu0
    %3498 = vmatprep.subr.bf16.mxu0 %v2945
    %3499 = vmatpush1.bf16.msra.mxu0 %v2944
    %3500 = vmatprep.subr.bf16.mxu0 %v2941
    %3501 = vmatpush1.bf16.msra.mxu0 %v2940
    %3502 = vmatprep.subr.bf16.mxu0 %v2937
    %3503 = vmatpush1.bf16.msra.mxu0 %v2936
    %3504 = vmatprep.subr.bf16.mxu0 %v2933
    %3505 = vmatpush1.bf16.msra.mxu0 %v2932
    %3506 = vmatprep.subr.bf16.mxu0 %v2929
    %3507 = vmatpush1.bf16.msra.mxu0 %v2928
    %3508 = vmatprep.subr.bf16.mxu0 %v2925
    %3509 = vmatpush1.bf16.msra.mxu0 %v2924
    %3510 = vmatprep.subr.bf16.mxu0 %v2921
    %3511 = vmatpush1.bf16.msra.mxu0 %v2920
    %3512 = vmatprep.subr.bf16.mxu0 %v2917
    %3513 = vmatpush1.bf16.msra.mxu0 %v2916
    %3514 = vmatprep.subr.bf16.mxu0 0
    %3515 = vmatpush2.bf16.msra.mxu0 0
    %3516 = vmatprep.subr.bf16.mxu0 0
    %3517 = vmatpush2.bf16.msra.mxu0 0
    %3518 = vmatprep.subr.bf16.mxu0 0
    %3519 = vmatpush2.bf16.msra.mxu0 0
    %3520 = vmatprep.subr.bf16.mxu0 0
    %3521 = vmatpush2.bf16.msra.mxu0 0
    %3522 = vmatprep.subr.bf16.mxu0 0
    %3523 = vmatpush2.bf16.msra.mxu0 0
    %3524 = vmatprep.subr.bf16.mxu0 0
    %3525 = vmatpush2.bf16.msra.mxu0 0
    %3526 = vmatprep.subr.bf16.mxu0 0
    %3527 = vmatpush2.bf16.msra.mxu0 0
    %3528 = vmatprep.subr.bf16.mxu0 0
    %3529 = vmatpush2.bf16.msra.mxu0 0
    %3530 = vmatprep.mubr.bf16.mxu0 0
    %3531 = vmatmul.mubr.bf16.gmra.mxu0 %v1880
    %v3532 = vpop.f32.mrf.mxu0
    %v3533 = vadd.f32 %v3492, %v3532
    %v3534 = vpop.f32.mrf.mxu0
    %v3535 = vadd.f32 %v3494, %v3534
    %v3536 = vpop.f32.mrf.mxu0
    %v3537 = vpop.f32.mrf.mxu0
    %3538 = vdwg.mxu0
    %3539 = vmatprep.subr.bf16.mxu0 %v2883
    %3540 = vmatpush1.bf16.msra.mxu0 %v2882
    %3541 = vmatprep.subr.bf16.mxu0 %v2879
    %3542 = vmatpush1.bf16.msra.mxu0 %v2878
    %3543 = vmatprep.subr.bf16.mxu0 %v2875
    %3544 = vmatpush1.bf16.msra.mxu0 %v2874
    %3545 = vmatprep.subr.bf16.mxu0 %v2871
    %3546 = vmatpush1.bf16.msra.mxu0 %v2870
    %3547 = vmatprep.subr.bf16.mxu0 %v2867
    %3548 = vmatpush1.bf16.msra.mxu0 %v2866
    %3549 = vmatprep.subr.bf16.mxu0 %v2863
    %3550 = vmatpush1.bf16.msra.mxu0 %v2862
    %3551 = vmatprep.subr.bf16.mxu0 %v2859
    %3552 = vmatpush1.bf16.msra.mxu0 %v2858
    %3553 = vmatprep.subr.bf16.mxu0 %v2855
    %3554 = vmatpush1.bf16.msra.mxu0 %v2854
    %3555 = vmatprep.subr.bf16.mxu0 %v2915
    %3556 = vmatpush2.bf16.msra.mxu0 %v2914
    %3557 = vmatprep.subr.bf16.mxu0 %v2911
    %3558 = vmatpush2.bf16.msra.mxu0 %v2910
    %3559 = vmatprep.subr.bf16.mxu0 %v2907
    %3560 = vmatpush2.bf16.msra.mxu0 %v2906
    %3561 = vmatprep.subr.bf16.mxu0 %v2903
    %3562 = vmatpush2.bf16.msra.mxu0 %v2902
    %3563 = vmatprep.subr.bf16.mxu0 %v2899
    %3564 = vmatpush2.bf16.msra.mxu0 %v2898
    %3565 = vmatprep.subr.bf16.mxu0 %v2895
    %3566 = vmatpush2.bf16.msra.mxu0 %v2894
    %3567 = vmatprep.subr.bf16.mxu0 %v2891
    %3568 = vmatpush2.bf16.msra.mxu0 %v2890
    %3569 = vmatprep.subr.bf16.mxu0 %v2887
    %3570 = vmatpush2.bf16.msra.mxu0 %v2886
    %3571 = vmatprep.mubr.bf16.mxu0 %v1879
    %3572 = vmatmul.mubr.bf16.gmra.mxu0 %v1872
    %v3573 = vpop.f32.mrf.mxu0
    %v3574 = vadd.f32 %v3451, %v3573
    %v3575 = vpop.f32.mrf.mxu0
    %v3576 = vadd.f32 %v3453, %v3575
    %v3577 = vpop.f32.mrf.mxu0
    %v3578 = vpop.f32.mrf.mxu0
    %3579 = vdwg.mxu0
    %3580 = vmatprep.subr.bf16.mxu0 %v2947
    %3581 = vmatpush1.bf16.msra.mxu0 %v2946
    %3582 = vmatprep.subr.bf16.mxu0 %v2943
    %3583 = vmatpush1.bf16.msra.mxu0 %v2942
    %3584 = vmatprep.subr.bf16.mxu0 %v2939
    %3585 = vmatpush1.bf16.msra.mxu0 %v2938
    %3586 = vmatprep.subr.bf16.mxu0 %v2935
    %3587 = vmatpush1.bf16.msra.mxu0 %v2934
    %3588 = vmatprep.subr.bf16.mxu0 %v2931
    %3589 = vmatpush1.bf16.msra.mxu0 %v2930
    %3590 = vmatprep.subr.bf16.mxu0 %v2927
    %3591 = vmatpush1.bf16.msra.mxu0 %v2926
    %3592 = vmatprep.subr.bf16.mxu0 %v2923
    %3593 = vmatpush1.bf16.msra.mxu0 %v2922
    %3594 = vmatprep.subr.bf16.mxu0 %v2919
    %3595 = vmatpush1.bf16.msra.mxu0 %v2918
    %3596 = vmatprep.subr.bf16.mxu0 0
    %3597 = vmatpush2.bf16.msra.mxu0 0
    %3598 = vmatprep.subr.bf16.mxu0 0
    %3599 = vmatpush2.bf16.msra.mxu0 0
    %3600 = vmatprep.subr.bf16.mxu0 0
    %3601 = vmatpush2.bf16.msra.mxu0 0
    %3602 = vmatprep.subr.bf16.mxu0 0
    %3603 = vmatpush2.bf16.msra.mxu0 0
    %3604 = vmatprep.subr.bf16.mxu0 0
    %3605 = vmatpush2.bf16.msra.mxu0 0
    %3606 = vmatprep.subr.bf16.mxu0 0
    %3607 = vmatpush2.bf16.msra.mxu0 0
    %3608 = vmatprep.subr.bf16.mxu0 0
    %3609 = vmatpush2.bf16.msra.mxu0 0
    %3610 = vmatprep.subr.bf16.mxu0 0
    %3611 = vmatpush2.bf16.msra.mxu0 0
    %3612 = vmatprep.mubr.bf16.mxu0 0
    %3613 = vmatmul.mubr.bf16.gmra.mxu0 %v1880
    %v3614 = vpop.f32.mrf.mxu0
    %v3615 = vadd.f32 %v3574, %v3614
    %v3616 = vpop.f32.mrf.mxu0
    %v3617 = vadd.f32 %v3576, %v3616
    %v3618 = vpop.f32.mrf.mxu0
    %v3619 = vpop.f32.mrf.mxu0
    %3620 = vdwg.mxu0
    %s3621 = scalar_lea.vmem [#allocation7], 1536
    %v3622 = vld [vmem:[%s3621] sm:$0xff]
    %v3623 = vld [vmem:[%s3621 + $0x8] sm:$0xff]
    %v3624 = vld [vmem:[%s3621 + $0x10] sm:$0xff]
    %v3625 = vld [vmem:[%s3621 + $0x18] sm:$0xff]
    %v3626 = vld [vmem:[%s3621 + $0x20] sm:$0xff]
    %v3627 = vld [vmem:[%s3621 + $0x28] sm:$0xff]
    %v3628 = vld [vmem:[%s3621 + $0x30] sm:$0xff]
    %v3629 = vld [vmem:[%s3621 + $0x38] sm:$0xff]
    %v3630 = vld [vmem:[%s3621 + $0x40] sm:$0xff]
    %v3631 = vld [vmem:[%s3621 + $0x48] sm:$0xff]
    %v3632 = vld [vmem:[%s3621 + $0x50] sm:$0xff]
    %v3633 = vld [vmem:[%s3621 + $0x58] sm:$0xff]
    %v3634 = vld [vmem:[%s3621 + $0x60] sm:$0xff]
    %v3635 = vld [vmem:[%s3621 + $0x68] sm:$0xff]
    %v3636 = vld [vmem:[%s3621 + $0x70] sm:$0xff]
    %v3637 = vld [vmem:[%s3621 + $0x78] sm:$0xff]
    %v3638 = vld [vmem:[%s3621 + $0x80] sm:$0xff]
    %v3639 = vld [vmem:[%s3621 + $0x88] sm:$0xff]
    %v3640 = vld [vmem:[%s3621 + $0x90] sm:$0xff]
    %v3641 = vld [vmem:[%s3621 + $0x98] sm:$0xff]
    %v3642 = vld [vmem:[%s3621 + $0xa0] sm:$0xff]
    %v3643 = vld [vmem:[%s3621 + $0xa8] sm:$0xff]
    %v3644 = vld [vmem:[%s3621 + $0xb0] sm:$0xff]
    %v3645 = vld [vmem:[%s3621 + $0xb8] sm:$0xff]
    %v3646 = vld [vmem:[%s3621 + $0xc0] sm:$0xff]
    %v3647 = vld [vmem:[%s3621 + $0xc8] sm:$0xff]
    %v3648 = vld [vmem:[%s3621 + $0xd0] sm:$0xff]
    %v3649 = vld [vmem:[%s3621 + $0xd8] sm:$0xff]
    %v3650 = vld [vmem:[%s3621 + $0xe0] sm:$0xff]
    %v3651 = vld [vmem:[%s3621 + $0xe8] sm:$0xff]
    %v3652 = vld [vmem:[%s3621 + $0xf0] sm:$0xff]
    %v3653 = vld [vmem:[%s3621 + $0xf8] sm:$0xff]
    %v3654 = vld [vmem:[%s3621 + $0x100] sm:$0xff]
    %v3655 = vld [vmem:[%s3621 + $0x108] sm:$0xff]
    %v3656 = vld [vmem:[%s3621 + $0x110] sm:$0xff]
    %v3657 = vld [vmem:[%s3621 + $0x118] sm:$0xff]
    %v3658 = vld [vmem:[%s3621 + $0x120] sm:$0xff]
    %v3659 = vld [vmem:[%s3621 + $0x128] sm:$0xff]
    %v3660 = vld [vmem:[%s3621 + $0x130] sm:$0xff]
    %v3661 = vld [vmem:[%s3621 + $0x138] sm:$0xff]
    %v3662 = vld [vmem:[%s3621 + $0x140] sm:$0xff]
    %v3663 = vld [vmem:[%s3621 + $0x148] sm:$0xff]
    %v3664 = vld [vmem:[%s3621 + $0x150] sm:$0xff]
    %v3665 = vld [vmem:[%s3621 + $0x158] sm:$0xff]
    %v3666 = vld [vmem:[%s3621 + $0x160] sm:$0xff]
    %v3667 = vld [vmem:[%s3621 + $0x168] sm:$0xff]
    %v3668 = vld [vmem:[%s3621 + $0x170] sm:$0xff]
    %v3669 = vld [vmem:[%s3621 + $0x178] sm:$0xff]
    %v3670 = vld [vmem:[%s3621 + $0x180] sm:$0xff]
    %v3671 = vld [vmem:[%s3621 + $0x188] sm:$0xff]
    %v3672 = vld [vmem:[%s3621 + $0x190] sm:$0xff]
    %v3673 = vld [vmem:[%s3621 + $0x198] sm:$0xff]
    %v3674 = vld [vmem:[%s3621 + $0x1a0] sm:$0xff]
    %v3675 = vld [vmem:[%s3621 + $0x1a8] sm:$0xff]
    %v3676 = vld [vmem:[%s3621 + $0x1b0] sm:$0xff]
    %v3677 = vld [vmem:[%s3621 + $0x1b8] sm:$0xff]
    %v3678 = vld [vmem:[%s3621 + $0x1c0] sm:$0xff]
    %v3679 = vld [vmem:[%s3621 + $0x1c8] sm:$0xff]
    %v3680 = vld [vmem:[%s3621 + $0x1d0] sm:$0xff]
    %v3681 = vld [vmem:[%s3621 + $0x1d8] sm:$0xff]
    %v3682 = vld [vmem:[%s3621 + $0x1e0] sm:$0xff]
    %v3683 = vld [vmem:[%s3621 + $0x1e8] sm:$0xff]
    %v3684 = vld [vmem:[%s3621 + $0x1f0] sm:$0xff]
    %v3685 = vld [vmem:[%s3621 + $0x1f8] sm:$0xff]
    %v3686 = vld [vmem:[%s3621 + $0x200] sm:$0xff]
    %v3687 = vld [vmem:[%s3621 + $0x208] sm:$0xff]
    %v3688 = vld [vmem:[%s3621 + $0x210] sm:$0xff]
    %v3689 = vld [vmem:[%s3621 + $0x218] sm:$0xff]
    %v3690 = vld [vmem:[%s3621 + $0x220] sm:$0xff]
    %v3691 = vld [vmem:[%s3621 + $0x228] sm:$0xff]
    %v3692 = vld [vmem:[%s3621 + $0x230] sm:$0xff]
    %v3693 = vld [vmem:[%s3621 + $0x238] sm:$0xff]
    %v3694 = vld [vmem:[%s3621 + $0x240] sm:$0xff]
    %v3695 = vld [vmem:[%s3621 + $0x248] sm:$0xff]
    %v3696 = vld [vmem:[%s3621 + $0x250] sm:$0xff]
    %v3697 = vld [vmem:[%s3621 + $0x258] sm:$0xff]
    %v3698 = vld [vmem:[%s3621 + $0x260] sm:$0xff]
    %v3699 = vld [vmem:[%s3621 + $0x268] sm:$0xff]
    %v3700 = vld [vmem:[%s3621 + $0x270] sm:$0xff]
    %v3701 = vld [vmem:[%s3621 + $0x278] sm:$0xff]
    %v3702 = vld [vmem:[%s3621 + $0x280] sm:$0xff]
    %v3703 = vld [vmem:[%s3621 + $0x288] sm:$0xff]
    %v3704 = vld [vmem:[%s3621 + $0x290] sm:$0xff]
    %v3705 = vld [vmem:[%s3621 + $0x298] sm:$0xff]
    %v3706 = vld [vmem:[%s3621 + $0x2a0] sm:$0xff]
    %v3707 = vld [vmem:[%s3621 + $0x2a8] sm:$0xff]
    %v3708 = vld [vmem:[%s3621 + $0x2b0] sm:$0xff]
    %v3709 = vld [vmem:[%s3621 + $0x2b8] sm:$0xff]
    %v3710 = vld [vmem:[%s3621 + $0x2c0] sm:$0xff]
    %v3711 = vld [vmem:[%s3621 + $0x2c8] sm:$0xff]
    %v3712 = vld [vmem:[%s3621 + $0x2d0] sm:$0xff]
    %v3713 = vld [vmem:[%s3621 + $0x2d8] sm:$0xff]
    %v3714 = vld [vmem:[%s3621 + $0x2e0] sm:$0xff]
    %v3715 = vld [vmem:[%s3621 + $0x2e8] sm:$0xff]
    %v3716 = vld [vmem:[%s3621 + $0x2f0] sm:$0xff]
    %v3717 = vld [vmem:[%s3621 + $0x2f8] sm:$0xff]
    %v3814 = vunpack.c.l.b16 %v3622
    %v3815 = vunpack.c.h.b16 %v3622
    %v3816 = vunpack.c.l.b16 %v3623
    %v3817 = vunpack.c.h.b16 %v3623
    %v3818 = vunpack.c.l.b16 %v3624
    %v3819 = vunpack.c.h.b16 %v3624
    %v3820 = vunpack.c.l.b16 %v3625
    %v3821 = vunpack.c.h.b16 %v3625
    %v3822 = vunpack.c.l.b16 %v3626
    %v3823 = vunpack.c.h.b16 %v3626
    %v3824 = vunpack.c.l.b16 %v3627
    %v3825 = vunpack.c.h.b16 %v3627
    %v3826 = vunpack.c.l.b16 %v3628
    %v3827 = vunpack.c.h.b16 %v3628
    %v3828 = vunpack.c.l.b16 %v3629
    %v3829 = vunpack.c.h.b16 %v3629
    %v3830 = vunpack.c.l.b16 %v3630
    %v3831 = vunpack.c.h.b16 %v3630
    %v3832 = vunpack.c.l.b16 %v3631
    %v3833 = vunpack.c.h.b16 %v3631
    %v3834 = vunpack.c.l.b16 %v3632
    %v3835 = vunpack.c.h.b16 %v3632
    %v3836 = vunpack.c.l.b16 %v3633
    %v3837 = vunpack.c.h.b16 %v3633
    %v3838 = vunpack.c.l.b16 %v3634
    %v3839 = vunpack.c.h.b16 %v3634
    %v3840 = vunpack.c.l.b16 %v3635
    %v3841 = vunpack.c.h.b16 %v3635
    %v3842 = vunpack.c.l.b16 %v3636
    %v3843 = vunpack.c.h.b16 %v3636
    %v3844 = vunpack.c.l.b16 %v3637
    %v3845 = vunpack.c.h.b16 %v3637
    %v3846 = vunpack.c.l.b16 %v3638
    %v3847 = vunpack.c.h.b16 %v3638
    %v3848 = vunpack.c.l.b16 %v3639
    %v3849 = vunpack.c.h.b16 %v3639
    %v3850 = vunpack.c.l.b16 %v3640
    %v3851 = vunpack.c.h.b16 %v3640
    %v3852 = vunpack.c.l.b16 %v3641
    %v3853 = vunpack.c.h.b16 %v3641
    %v3854 = vunpack.c.l.b16 %v3642
    %v3855 = vunpack.c.h.b16 %v3642
    %v3856 = vunpack.c.l.b16 %v3643
    %v3857 = vunpack.c.h.b16 %v3643
    %v3858 = vunpack.c.l.b16 %v3644
    %v3859 = vunpack.c.h.b16 %v3644
    %v3860 = vunpack.c.l.b16 %v3645
    %v3861 = vunpack.c.h.b16 %v3645
    %v3862 = vunpack.c.l.b16 %v3646
    %v3863 = vunpack.c.h.b16 %v3646
    %v3864 = vunpack.c.l.b16 %v3647
    %v3865 = vunpack.c.h.b16 %v3647
    %v3866 = vunpack.c.l.b16 %v3648
    %v3867 = vunpack.c.h.b16 %v3648
    %v3868 = vunpack.c.l.b16 %v3649
    %v3869 = vunpack.c.h.b16 %v3649
    %v3870 = vunpack.c.l.b16 %v3650
    %v3871 = vunpack.c.h.b16 %v3650
    %v3872 = vunpack.c.l.b16 %v3651
    %v3873 = vunpack.c.h.b16 %v3651
    %v3874 = vunpack.c.l.b16 %v3652
    %v3875 = vunpack.c.h.b16 %v3652
    %v3876 = vunpack.c.l.b16 %v3653
    %v3877 = vunpack.c.h.b16 %v3653
    %v3878 = vunpack.c.l.b16 %v3654
    %v3879 = vunpack.c.h.b16 %v3654
    %v3880 = vunpack.c.l.b16 %v3655
    %v3881 = vunpack.c.h.b16 %v3655
    %v3882 = vunpack.c.l.b16 %v3656
    %v3883 = vunpack.c.h.b16 %v3656
    %v3884 = vunpack.c.l.b16 %v3657
    %v3885 = vunpack.c.h.b16 %v3657
    %v3886 = vunpack.c.l.b16 %v3658
    %v3887 = vunpack.c.h.b16 %v3658
    %v3888 = vunpack.c.l.b16 %v3659
    %v3889 = vunpack.c.h.b16 %v3659
    %v3890 = vunpack.c.l.b16 %v3660
    %v3891 = vunpack.c.h.b16 %v3660
    %v3892 = vunpack.c.l.b16 %v3661
    %v3893 = vunpack.c.h.b16 %v3661
    %v3894 = vunpack.c.l.b16 %v3662
    %v3895 = vunpack.c.h.b16 %v3662
    %v3896 = vunpack.c.l.b16 %v3663
    %v3897 = vunpack.c.h.b16 %v3663
    %v3898 = vunpack.c.l.b16 %v3664
    %v3899 = vunpack.c.h.b16 %v3664
    %v3900 = vunpack.c.l.b16 %v3665
    %v3901 = vunpack.c.h.b16 %v3665
    %v3902 = vunpack.c.l.b16 %v3666
    %v3903 = vunpack.c.h.b16 %v3666
    %v3904 = vunpack.c.l.b16 %v3667
    %v3905 = vunpack.c.h.b16 %v3667
    %v3906 = vunpack.c.l.b16 %v3668
    %v3907 = vunpack.c.h.b16 %v3668
    %v3908 = vunpack.c.l.b16 %v3669
    %v3909 = vunpack.c.h.b16 %v3669
    %v3910 = vunpack.c.l.b16 %v3670
    %v3911 = vunpack.c.h.b16 %v3670
    %v3912 = vunpack.c.l.b16 %v3671
    %v3913 = vunpack.c.h.b16 %v3671
    %v3914 = vunpack.c.l.b16 %v3672
    %v3915 = vunpack.c.h.b16 %v3672
    %v3916 = vunpack.c.l.b16 %v3673
    %v3917 = vunpack.c.h.b16 %v3673
    %v3918 = vunpack.c.l.b16 %v3674
    %v3919 = vunpack.c.h.b16 %v3674
    %v3920 = vunpack.c.l.b16 %v3675
    %v3921 = vunpack.c.h.b16 %v3675
    %v3922 = vunpack.c.l.b16 %v3676
    %v3923 = vunpack.c.h.b16 %v3676
    %v3924 = vunpack.c.l.b16 %v3677
    %v3925 = vunpack.c.h.b16 %v3677
    %v3926 = vunpack.c.l.b16 %v3678
    %v3927 = vunpack.c.h.b16 %v3678
    %v3928 = vunpack.c.l.b16 %v3679
    %v3929 = vunpack.c.h.b16 %v3679
    %v3930 = vunpack.c.l.b16 %v3680
    %v3931 = vunpack.c.h.b16 %v3680
    %v3932 = vunpack.c.l.b16 %v3681
    %v3933 = vunpack.c.h.b16 %v3681
    %v3934 = vunpack.c.l.b16 %v3682
    %v3935 = vunpack.c.h.b16 %v3682
    %v3936 = vunpack.c.l.b16 %v3683
    %v3937 = vunpack.c.h.b16 %v3683
    %v3938 = vunpack.c.l.b16 %v3684
    %v3939 = vunpack.c.h.b16 %v3684
    %v3940 = vunpack.c.l.b16 %v3685
    %v3941 = vunpack.c.h.b16 %v3685
    %v3942 = vunpack.c.l.b16 %v3686
    %v3943 = vunpack.c.h.b16 %v3686
    %v3944 = vunpack.c.l.b16 %v3687
    %v3945 = vunpack.c.h.b16 %v3687
    %v3946 = vunpack.c.l.b16 %v3688
    %v3947 = vunpack.c.h.b16 %v3688
    %v3948 = vunpack.c.l.b16 %v3689
    %v3949 = vunpack.c.h.b16 %v3689
    %v3950 = vunpack.c.l.b16 %v3690
    %v3951 = vunpack.c.h.b16 %v3690
    %v3952 = vunpack.c.l.b16 %v3691
    %v3953 = vunpack.c.h.b16 %v3691
    %v3954 = vunpack.c.l.b16 %v3692
    %v3955 = vunpack.c.h.b16 %v3692
    %v3956 = vunpack.c.l.b16 %v3693
    %v3957 = vunpack.c.h.b16 %v3693
    %v3958 = vunpack.c.l.b16 %v3694
    %v3959 = vunpack.c.h.b16 %v3694
    %v3960 = vunpack.c.l.b16 %v3695
    %v3961 = vunpack.c.h.b16 %v3695
    %v3962 = vunpack.c.l.b16 %v3696
    %v3963 = vunpack.c.h.b16 %v3696
    %v3964 = vunpack.c.l.b16 %v3697
    %v3965 = vunpack.c.h.b16 %v3697
    %v3966 = vunpack.c.l.b16 %v3698
    %v3967 = vunpack.c.h.b16 %v3698
    %v3968 = vunpack.c.l.b16 %v3699
    %v3969 = vunpack.c.h.b16 %v3699
    %v3970 = vunpack.c.l.b16 %v3700
    %v3971 = vunpack.c.h.b16 %v3700
    %v3972 = vunpack.c.l.b16 %v3701
    %v3973 = vunpack.c.h.b16 %v3701
    %v3974 = vunpack.c.l.b16 %v3702
    %v3975 = vunpack.c.h.b16 %v3702
    %v3976 = vunpack.c.l.b16 %v3703
    %v3977 = vunpack.c.h.b16 %v3703
    %v3978 = vunpack.c.l.b16 %v3704
    %v3979 = vunpack.c.h.b16 %v3704
    %v3980 = vunpack.c.l.b16 %v3705
    %v3981 = vunpack.c.h.b16 %v3705
    %v3982 = vunpack.c.l.b16 %v3706
    %v3983 = vunpack.c.h.b16 %v3706
    %v3984 = vunpack.c.l.b16 %v3707
    %v3985 = vunpack.c.h.b16 %v3707
    %v3986 = vunpack.c.l.b16 %v3708
    %v3987 = vunpack.c.h.b16 %v3708
    %v3988 = vunpack.c.l.b16 %v3709
    %v3989 = vunpack.c.h.b16 %v3709
    %v3990 = vunpack.c.l.b16 %v3710
    %v3991 = vunpack.c.h.b16 %v3710
    %v3992 = vunpack.c.l.b16 %v3711
    %v3993 = vunpack.c.h.b16 %v3711
    %v3994 = vunpack.c.l.b16 %v3712
    %v3995 = vunpack.c.h.b16 %v3712
    %v3996 = vunpack.c.l.b16 %v3713
    %v3997 = vunpack.c.h.b16 %v3713
    %v3998 = vunpack.c.l.b16 %v3714
    %v3999 = vunpack.c.h.b16 %v3714
    %v4000 = vunpack.c.l.b16 %v3715
    %v4001 = vunpack.c.h.b16 %v3715
    %v4002 = vunpack.c.l.b16 %v3716
    %v4003 = vunpack.c.h.b16 %v3716
    %v4004 = vunpack.c.l.b16 %v3717
    %v4005 = vunpack.c.h.b16 %v3717
    %v4006 = vpack.c.b16 %v3818, %v3814
    %v4007 = vpack.c.b16 %v3819, %v3815
    %v4008 = vpack.c.b16 %v3820, %v3816
    %v4009 = vpack.c.b16 %v3821, %v3817
    %v4010 = vpack.c.b16 %v3826, %v3822
    %v4011 = vpack.c.b16 %v3827, %v3823
    %v4012 = vpack.c.b16 %v3828, %v3824
    %v4013 = vpack.c.b16 %v3829, %v3825
    %v4014 = vpack.c.b16 %v3834, %v3830
    %v4015 = vpack.c.b16 %v3835, %v3831
    %v4016 = vpack.c.b16 %v3836, %v3832
    %v4017 = vpack.c.b16 %v3837, %v3833
    %v4018 = vpack.c.b16 %v3842, %v3838
    %v4019 = vpack.c.b16 %v3843, %v3839
    %v4020 = vpack.c.b16 %v3844, %v3840
    %v4021 = vpack.c.b16 %v3845, %v3841
    %v4022 = vpack.c.b16 %v3850, %v3846
    %v4023 = vpack.c.b16 %v3851, %v3847
    %v4024 = vpack.c.b16 %v3852, %v3848
    %v4025 = vpack.c.b16 %v3853, %v3849
    %v4026 = vpack.c.b16 %v3858, %v3854
    %v4027 = vpack.c.b16 %v3859, %v3855
    %v4028 = vpack.c.b16 %v3860, %v3856
    %v4029 = vpack.c.b16 %v3861, %v3857
    %v4030 = vpack.c.b16 %v3866, %v3862
    %v4031 = vpack.c.b16 %v3867, %v3863
    %v4032 = vpack.c.b16 %v3868, %v3864
    %v4033 = vpack.c.b16 %v3869, %v3865
    %v4034 = vpack.c.b16 %v3874, %v3870
    %v4035 = vpack.c.b16 %v3875, %v3871
    %v4036 = vpack.c.b16 %v3876, %v3872
    %v4037 = vpack.c.b16 %v3877, %v3873
    %v4038 = vpack.c.b16 %v3882, %v3878
    %v4039 = vpack.c.b16 %v3883, %v3879
    %v4040 = vpack.c.b16 %v3884, %v3880
    %v4041 = vpack.c.b16 %v3885, %v3881
    %v4042 = vpack.c.b16 %v3890, %v3886
    %v4043 = vpack.c.b16 %v3891, %v3887
    %v4044 = vpack.c.b16 %v3892, %v3888
    %v4045 = vpack.c.b16 %v3893, %v3889
    %v4046 = vpack.c.b16 %v3898, %v3894
    %v4047 = vpack.c.b16 %v3899, %v3895
    %v4048 = vpack.c.b16 %v3900, %v3896
    %v4049 = vpack.c.b16 %v3901, %v3897
    %v4050 = vpack.c.b16 %v3906, %v3902
    %v4051 = vpack.c.b16 %v3907, %v3903
    %v4052 = vpack.c.b16 %v3908, %v3904
    %v4053 = vpack.c.b16 %v3909, %v3905
    %v4054 = vpack.c.b16 %v3914, %v3910
    %v4055 = vpack.c.b16 %v3915, %v3911
    %v4056 = vpack.c.b16 %v3916, %v3912
    %v4057 = vpack.c.b16 %v3917, %v3913
    %v4058 = vpack.c.b16 %v3922, %v3918
    %v4059 = vpack.c.b16 %v3923, %v3919
    %v4060 = vpack.c.b16 %v3924, %v3920
    %v4061 = vpack.c.b16 %v3925, %v3921
    %v4062 = vpack.c.b16 %v3930, %v3926
    %v4063 = vpack.c.b16 %v3931, %v3927
    %v4064 = vpack.c.b16 %v3932, %v3928
    %v4065 = vpack.c.b16 %v3933, %v3929
    %v4066 = vpack.c.b16 %v3938, %v3934
    %v4067 = vpack.c.b16 %v3939, %v3935
    %v4068 = vpack.c.b16 %v3940, %v3936
    %v4069 = vpack.c.b16 %v3941, %v3937
    %v4070 = vpack.c.b16 %v3946, %v3942
    %v4071 = vpack.c.b16 %v3947, %v3943
    %v4072 = vpack.c.b16 %v3948, %v3944
    %v4073 = vpack.c.b16 %v3949, %v3945
    %v4074 = vpack.c.b16 %v3954, %v3950
    %v4075 = vpack.c.b16 %v3955, %v3951
    %v4076 = vpack.c.b16 %v3956, %v3952
    %v4077 = vpack.c.b16 %v3957, %v3953
    %v4078 = vpack.c.b16 %v3962, %v3958
    %v4079 = vpack.c.b16 %v3963, %v3959
    %v4080 = vpack.c.b16 %v3964, %v3960
    %v4081 = vpack.c.b16 %v3965, %v3961
    %v4082 = vpack.c.b16 %v3970, %v3966
    %v4083 = vpack.c.b16 %v3971, %v3967
    %v4084 = vpack.c.b16 %v3972, %v3968
    %v4085 = vpack.c.b16 %v3973, %v3969
    %v4086 = vpack.c.b16 %v3978, %v3974
    %v4087 = vpack.c.b16 %v3979, %v3975
    %v4088 = vpack.c.b16 %v3980, %v3976
    %v4089 = vpack.c.b16 %v3981, %v3977
    %v4090 = vpack.c.b16 %v3986, %v3982
    %v4091 = vpack.c.b16 %v3987, %v3983
    %v4092 = vpack.c.b16 %v3988, %v3984
    %v4093 = vpack.c.b16 %v3989, %v3985
    %v4094 = vpack.c.b16 %v3994, %v3990
    %v4095 = vpack.c.b16 %v3995, %v3991
    %v4096 = vpack.c.b16 %v3996, %v3992
    %v4097 = vpack.c.b16 %v3997, %v3993
    %v4098 = vpack.c.b16 %v4002, %v3998
    %v4099 = vpack.c.b16 %v4003, %v3999
    %v4100 = vpack.c.b16 %v4004, %v4000
    %v4101 = vpack.c.b16 %v4005, %v4001
    %4198 = vmatprep.subr.bf16.mxu0 %v4035
    %4199 = vmatpush1.bf16.msra.mxu0 %v4034
    %4200 = vmatprep.subr.bf16.mxu0 %v4031
    %4201 = vmatpush1.bf16.msra.mxu0 %v4030
    %4202 = vmatprep.subr.bf16.mxu0 %v4027
    %4203 = vmatpush1.bf16.msra.mxu0 %v4026
    %4204 = vmatprep.subr.bf16.mxu0 %v4023
    %4205 = vmatpush1.bf16.msra.mxu0 %v4022
    %4206 = vmatprep.subr.bf16.mxu0 %v4019
    %4207 = vmatpush1.bf16.msra.mxu0 %v4018
    %4208 = vmatprep.subr.bf16.mxu0 %v4015
    %4209 = vmatpush1.bf16.msra.mxu0 %v4014
    %4210 = vmatprep.subr.bf16.mxu0 %v4011
    %4211 = vmatpush1.bf16.msra.mxu0 %v4010
    %4212 = vmatprep.subr.bf16.mxu0 %v4007
    %4213 = vmatpush1.bf16.msra.mxu0 %v4006
    %4214 = vmatprep.subr.bf16.mxu0 %v4067
    %4215 = vmatpush2.bf16.msra.mxu0 %v4066
    %4216 = vmatprep.subr.bf16.mxu0 %v4063
    %4217 = vmatpush2.bf16.msra.mxu0 %v4062
    %4218 = vmatprep.subr.bf16.mxu0 %v4059
    %4219 = vmatpush2.bf16.msra.mxu0 %v4058
    %4220 = vmatprep.subr.bf16.mxu0 %v4055
    %4221 = vmatpush2.bf16.msra.mxu0 %v4054
    %4222 = vmatprep.subr.bf16.mxu0 %v4051
    %4223 = vmatpush2.bf16.msra.mxu0 %v4050
    %4224 = vmatprep.subr.bf16.mxu0 %v4047
    %4225 = vmatpush2.bf16.msra.mxu0 %v4046
    %4226 = vmatprep.subr.bf16.mxu0 %v4043
    %4227 = vmatpush2.bf16.msra.mxu0 %v4042
    %4228 = vmatprep.subr.bf16.mxu0 %v4039
    %4229 = vmatpush2.bf16.msra.mxu0 %v4038
    %4230 = vmatprep.mubr.bf16.mxu0 %v3288
    %4231 = vmatmul.mubr.bf16.gmra.mxu0 %v3281
    %v4232 = vpop.f32.mrf.mxu0
    %v4233 = vadd.f32 0.0, %v4232
    %v4234 = vpop.f32.mrf.mxu0
    %v4235 = vadd.f32 0.0, %v4234
    %v4236 = vpop.f32.mrf.mxu0
    %v4237 = vpop.f32.mrf.mxu0
    %4238 = vdwg.mxu0
    %4239 = vmatprep.subr.bf16.mxu0 %v4099
    %4240 = vmatpush1.bf16.msra.mxu0 %v4098
    %4241 = vmatprep.subr.bf16.mxu0 %v4095
    %4242 = vmatpush1.bf16.msra.mxu0 %v4094
    %4243 = vmatprep.subr.bf16.mxu0 %v4091
    %4244 = vmatpush1.bf16.msra.mxu0 %v4090
    %4245 = vmatprep.subr.bf16.mxu0 %v4087
    %4246 = vmatpush1.bf16.msra.mxu0 %v4086
    %4247 = vmatprep.subr.bf16.mxu0 %v4083
    %4248 = vmatpush1.bf16.msra.mxu0 %v4082
    %4249 = vmatprep.subr.bf16.mxu0 %v4079
    %4250 = vmatpush1.bf16.msra.mxu0 %v4078
    %4251 = vmatprep.subr.bf16.mxu0 %v4075
    %4252 = vmatpush1.bf16.msra.mxu0 %v4074
    %4253 = vmatprep.subr.bf16.mxu0 %v4071
    %4254 = vmatpush1.bf16.msra.mxu0 %v4070
    %4255 = vmatprep.subr.bf16.mxu0 0
    %4256 = vmatpush2.bf16.msra.mxu0 0
    %4257 = vmatprep.subr.bf16.mxu0 0
    %4258 = vmatpush2.bf16.msra.mxu0 0
    %4259 = vmatprep.subr.bf16.mxu0 0
    %4260 = vmatpush2.bf16.msra.mxu0 0
    %4261 = vmatprep.subr.bf16.mxu0 0
    %4262 = vmatpush2.bf16.msra.mxu0 0
    %4263 = vmatprep.subr.bf16.mxu0 0
    %4264 = vmatpush2.bf16.msra.mxu0 0
    %4265 = vmatprep.subr.bf16.mxu0 0
    %4266 = vmatpush2.bf16.msra.mxu0 0
    %4267 = vmatprep.subr.bf16.mxu0 0
    %4268 = vmatpush2.bf16.msra.mxu0 0
    %4269 = vmatprep.subr.bf16.mxu0 0
    %4270 = vmatpush2.bf16.msra.mxu0 0
    %4271 = vmatprep.mubr.bf16.mxu0 0
    %4272 = vmatmul.mubr.bf16.gmra.mxu0 %v3289
    %v4273 = vpop.f32.mrf.mxu0
    %v4274 = vadd.f32 %v4233, %v4273
    %v4275 = vpop.f32.mrf.mxu0
    %v4276 = vadd.f32 %v4235, %v4275
    %v4277 = vpop.f32.mrf.mxu0
    %v4278 = vpop.f32.mrf.mxu0
    %4279 = vdwg.mxu0
    %4280 = vmatprep.subr.bf16.mxu0 %v4037
    %4281 = vmatpush1.bf16.msra.mxu0 %v4036
    %4282 = vmatprep.subr.bf16.mxu0 %v4033
    %4283 = vmatpush1.bf16.msra.mxu0 %v4032
    %4284 = vmatprep.subr.bf16.mxu0 %v4029
    %4285 = vmatpush1.bf16.msra.mxu0 %v4028
    %4286 = vmatprep.subr.bf16.mxu0 %v4025
    %4287 = vmatpush1.bf16.msra.mxu0 %v4024
    %4288 = vmatprep.subr.bf16.mxu0 %v4021
    %4289 = vmatpush1.bf16.msra.mxu0 %v4020
    %4290 = vmatprep.subr.bf16.mxu0 %v4017
    %4291 = vmatpush1.bf16.msra.mxu0 %v4016
    %4292 = vmatprep.subr.bf16.mxu0 %v4013
    %4293 = vmatpush1.bf16.msra.mxu0 %v4012
    %4294 = vmatprep.subr.bf16.mxu0 %v4009
    %4295 = vmatpush1.bf16.msra.mxu0 %v4008
    %4296 = vmatprep.subr.bf16.mxu0 %v4069
    %4297 = vmatpush2.bf16.msra.mxu0 %v4068
    %4298 = vmatprep.subr.bf16.mxu0 %v4065
    %4299 = vmatpush2.bf16.msra.mxu0 %v4064
    %4300 = vmatprep.subr.bf16.mxu0 %v4061
    %4301 = vmatpush2.bf16.msra.mxu0 %v4060
    %4302 = vmatprep.subr.bf16.mxu0 %v4057
    %4303 = vmatpush2.bf16.msra.mxu0 %v4056
    %4304 = vmatprep.subr.bf16.mxu0 %v4053
    %4305 = vmatpush2.bf16.msra.mxu0 %v4052
    %4306 = vmatprep.subr.bf16.mxu0 %v4049
    %4307 = vmatpush2.bf16.msra.mxu0 %v4048
    %4308 = vmatprep.subr.bf16.mxu0 %v4045
    %4309 = vmatpush2.bf16.msra.mxu0 %v4044
    %4310 = vmatprep.subr.bf16.mxu0 %v4041
    %4311 = vmatpush2.bf16.msra.mxu0 %v4040
    %4312 = vmatprep.mubr.bf16.mxu0 %v3288
    %4313 = vmatmul.mubr.bf16.gmra.mxu0 %v3281
    %v4314 = vpop.f32.mrf.mxu0
    %v4315 = vadd.f32 0.0, %v4314
    %v4316 = vpop.f32.mrf.mxu0
    %v4317 = vadd.f32 0.0, %v4316
    %v4318 = vpop.f32.mrf.mxu0
    %v4319 = vpop.f32.mrf.mxu0
    %4320 = vdwg.mxu0
    %4321 = vmatprep.subr.bf16.mxu0 %v4101
    %4322 = vmatpush1.bf16.msra.mxu0 %v4100
    %4323 = vmatprep.subr.bf16.mxu0 %v4097
    %4324 = vmatpush1.bf16.msra.mxu0 %v4096
    %4325 = vmatprep.subr.bf16.mxu0 %v4093
    %4326 = vmatpush1.bf16.msra.mxu0 %v4092
    %4327 = vmatprep.subr.bf16.mxu0 %v4089
    %4328 = vmatpush1.bf16.msra.mxu0 %v4088
    %4329 = vmatprep.subr.bf16.mxu0 %v4085
    %4330 = vmatpush1.bf16.msra.mxu0 %v4084
    %4331 = vmatprep.subr.bf16.mxu0 %v4081
    %4332 = vmatpush1.bf16.msra.mxu0 %v4080
    %4333 = vmatprep.subr.bf16.mxu0 %v4077
    %4334 = vmatpush1.bf16.msra.mxu0 %v4076
    %4335 = vmatprep.subr.bf16.mxu0 %v4073
    %4336 = vmatpush1.bf16.msra.mxu0 %v4072
    %4337 = vmatprep.subr.bf16.mxu0 0
    %4338 = vmatpush2.bf16.msra.mxu0 0
    %4339 = vmatprep.subr.bf16.mxu0 0
    %4340 = vmatpush2.bf16.msra.mxu0 0
    %4341 = vmatprep.subr.bf16.mxu0 0
    %4342 = vmatpush2.bf16.msra.mxu0 0
    %4343 = vmatprep.subr.bf16.mxu0 0
    %4344 = vmatpush2.bf16.msra.mxu0 0
    %4345 = vmatprep.subr.bf16.mxu0 0
    %4346 = vmatpush2.bf16.msra.mxu0 0
    %4347 = vmatprep.subr.bf16.mxu0 0
    %4348 = vmatpush2.bf16.msra.mxu0 0
    %4349 = vmatprep.subr.bf16.mxu0 0
    %4350 = vmatpush2.bf16.msra.mxu0 0
    %4351 = vmatprep.subr.bf16.mxu0 0
    %4352 = vmatpush2.bf16.msra.mxu0 0
    %4353 = vmatprep.mubr.bf16.mxu0 0
    %4354 = vmatmul.mubr.bf16.gmra.mxu0 %v3289
    %v4355 = vpop.f32.mrf.mxu0
    %v4356 = vadd.f32 %v4315, %v4355
    %v4357 = vpop.f32.mrf.mxu0
    %v4358 = vadd.f32 %v4317, %v4357
    %v4359 = vpop.f32.mrf.mxu0
    %v4360 = vpop.f32.mrf.mxu0
    %4361 = vdwg.mxu0
    %v4362 = vadd.f32 %v3120, %v4274
    %v4363 = vadd.f32 %v3122, %v4276
    %v4364 = vadd.f32 %v3202, %v4356
    %v4365 = vadd.f32 %v3204, %v4358
    %v4367 = vshrl.u32 %v1631, 16
    %v4369 = vrot.slane %v4367, 7
    %v4370 = vrot.slane %v4369, 1
    %v4372 = vshll.u32 %v1645, 16
    %v4374 = vsel %vm3222, %v4370, %v4372
    %v4375 = vshrl.u32 %v1645, 16
    %v4377 = vrot.slane %v4375, 7
    %v4378 = vrot.slane %v4377, 1
    %v4380 = vshll.u32 %v1653, 16
    %v4382 = vsel %vm3222, %v4378, %v4380
    %v4384 = vshrl.u32 %v1654, 16
    %v4386 = vrot.slane %v4384, 7
    %v4387 = vrot.slane %v4386, 1
    %v4389 = vshll.u32 %v1638, 16
    %v4391 = vsel %vm3222, %v4387, %v4389
    %v4392 = vshrl.u32 %v1638, 16
    %v4394 = vrot.slane %v4392, 7
    %v4395 = vrot.slane %v4394, 1
    %v4397 = vshll.u32 %v1652, 16
    %v4399 = vsel %vm3222, %v4395, %v4397
    %v4400 = vcombine.low %v4374, %v4382
    %v4401 = vcombine.low %v4391, %v4399
    %v4403 = vunpack.c.l.s4 1966171168
    %v4404 = vunpack.c.0.s8 %v4403
    %v4405 = vlaneseq
    %v4406 = vshrl.u32 %v4405, 7
    %v4407 = vsub.s32 %v4404, %v4406
    %v4408 = vrot.slane %v4400, %v4407
    %v4410 = vunpack.c.l.s4 1966171168
    %v4411 = vunpack.c.0.s8 %v4410
    %v4412 = vlaneseq
    %v4413 = vshrl.u32 %v4412, 7
    %v4414 = vsub.s32 %v4411, %v4413
    %v4415 = vrot.slane %v4401, %v4414
    %v4416 = vcombine.low %v4408, %v4415
    %v4417 = vcombine.high %v4408, %v4415
    %v4419 = vunpack.c.l.s4 1966171168
    %v4420 = vunpack.c.0.s8 %v4419
    %v4421 = vlaneseq
    %v4422 = vshrl.u32 %v4421, 7
    %v4423 = vsub.s32 %v4420, %v4422
    %v4424 = vrot.slane %v4416, %v4423
    %v4426 = vunpack.c.l.s4 1966171168
    %v4427 = vunpack.c.0.s8 %v4426
    %v4428 = vlaneseq
    %v4429 = vshrl.u32 %v4428, 7
    %v4430 = vsub.s32 %v4427, %v4429
    %v4431 = vrot.slane %v4417, %v4430
    %v4432 = vcombine.high %v4424, %v4424
    %4436 = vmatprep.subr.bf16.mxu0 %v4035
    %4437 = vmatpush1.bf16.msra.mxu0 %v4034
    %4438 = vmatprep.subr.bf16.mxu0 %v4031
    %4439 = vmatpush1.bf16.msra.mxu0 %v4030
    %4440 = vmatprep.subr.bf16.mxu0 %v4027
    %4441 = vmatpush1.bf16.msra.mxu0 %v4026
    %4442 = vmatprep.subr.bf16.mxu0 %v4023
    %4443 = vmatpush1.bf16.msra.mxu0 %v4022
    %4444 = vmatprep.subr.bf16.mxu0 %v4019
    %4445 = vmatpush1.bf16.msra.mxu0 %v4018
    %4446 = vmatprep.subr.bf16.mxu0 %v4015
    %4447 = vmatpush1.bf16.msra.mxu0 %v4014
    %4448 = vmatprep.subr.bf16.mxu0 %v4011
    %4449 = vmatpush1.bf16.msra.mxu0 %v4010
    %4450 = vmatprep.subr.bf16.mxu0 %v4007
    %4451 = vmatpush1.bf16.msra.mxu0 %v4006
    %4452 = vmatprep.subr.bf16.mxu0 %v4067
    %4453 = vmatpush2.bf16.msra.mxu0 %v4066
    %4454 = vmatprep.subr.bf16.mxu0 %v4063
    %4455 = vmatpush2.bf16.msra.mxu0 %v4062
    %4456 = vmatprep.subr.bf16.mxu0 %v4059
    %4457 = vmatpush2.bf16.msra.mxu0 %v4058
    %4458 = vmatprep.subr.bf16.mxu0 %v4055
    %4459 = vmatpush2.bf16.msra.mxu0 %v4054
    %4460 = vmatprep.subr.bf16.mxu0 %v4051
    %4461 = vmatpush2.bf16.msra.mxu0 %v4050
    %4462 = vmatprep.subr.bf16.mxu0 %v4047
    %4463 = vmatpush2.bf16.msra.mxu0 %v4046
    %4464 = vmatprep.subr.bf16.mxu0 %v4043
    %4465 = vmatpush2.bf16.msra.mxu0 %v4042
    %4466 = vmatprep.subr.bf16.mxu0 %v4039
    %4467 = vmatpush2.bf16.msra.mxu0 %v4038
    %4468 = vmatprep.mubr.bf16.mxu0 %v4431
    %4469 = vmatmul.mubr.bf16.gmra.mxu0 %v4424
    %v4470 = vpop.f32.mrf.mxu0
    %v4471 = vadd.f32 0.0, %v4470
    %v4472 = vpop.f32.mrf.mxu0
    %v4473 = vadd.f32 0.0, %v4472
    %v4474 = vpop.f32.mrf.mxu0
    %v4475 = vpop.f32.mrf.mxu0
    %4476 = vdwg.mxu0
    %4477 = vmatprep.subr.bf16.mxu0 %v4099
    %4478 = vmatpush1.bf16.msra.mxu0 %v4098
    %4479 = vmatprep.subr.bf16.mxu0 %v4095
    %4480 = vmatpush1.bf16.msra.mxu0 %v4094
    %4481 = vmatprep.subr.bf16.mxu0 %v4091
    %4482 = vmatpush1.bf16.msra.mxu0 %v4090
    %4483 = vmatprep.subr.bf16.mxu0 %v4087
    %4484 = vmatpush1.bf16.msra.mxu0 %v4086
    %4485 = vmatprep.subr.bf16.mxu0 %v4083
    %4486 = vmatpush1.bf16.msra.mxu0 %v4082
    %4487 = vmatprep.subr.bf16.mxu0 %v4079
    %4488 = vmatpush1.bf16.msra.mxu0 %v4078
    %4489 = vmatprep.subr.bf16.mxu0 %v4075
    %4490 = vmatpush1.bf16.msra.mxu0 %v4074
    %4491 = vmatprep.subr.bf16.mxu0 %v4071
    %4492 = vmatpush1.bf16.msra.mxu0 %v4070
    %4493 = vmatprep.subr.bf16.mxu0 0
    %4494 = vmatpush2.bf16.msra.mxu0 0
    %4495 = vmatprep.subr.bf16.mxu0 0
    %4496 = vmatpush2.bf16.msra.mxu0 0
    %4497 = vmatprep.subr.bf16.mxu0 0
    %4498 = vmatpush2.bf16.msra.mxu0 0
    %4499 = vmatprep.subr.bf16.mxu0 0
    %4500 = vmatpush2.bf16.msra.mxu0 0
    %4501 = vmatprep.subr.bf16.mxu0 0
    %4502 = vmatpush2.bf16.msra.mxu0 0
    %4503 = vmatprep.subr.bf16.mxu0 0
    %4504 = vmatpush2.bf16.msra.mxu0 0
    %4505 = vmatprep.subr.bf16.mxu0 0
    %4506 = vmatpush2.bf16.msra.mxu0 0
    %4507 = vmatprep.subr.bf16.mxu0 0
    %4508 = vmatpush2.bf16.msra.mxu0 0
    %4509 = vmatprep.mubr.bf16.mxu0 0
    %4510 = vmatmul.mubr.bf16.gmra.mxu0 %v4432
    %v4511 = vpop.f32.mrf.mxu0
    %v4512 = vadd.f32 %v4471, %v4511
    %v4513 = vpop.f32.mrf.mxu0
    %v4514 = vadd.f32 %v4473, %v4513
    %v4515 = vpop.f32.mrf.mxu0
    %v4516 = vpop.f32.mrf.mxu0
    %4517 = vdwg.mxu0
    %4518 = vmatprep.subr.bf16.mxu0 %v4037
    %4519 = vmatpush1.bf16.msra.mxu0 %v4036
    %4520 = vmatprep.subr.bf16.mxu0 %v4033
    %4521 = vmatpush1.bf16.msra.mxu0 %v4032
    %4522 = vmatprep.subr.bf16.mxu0 %v4029
    %4523 = vmatpush1.bf16.msra.mxu0 %v4028
    %4524 = vmatprep.subr.bf16.mxu0 %v4025
    %4525 = vmatpush1.bf16.msra.mxu0 %v4024
    %4526 = vmatprep.subr.bf16.mxu0 %v4021
    %4527 = vmatpush1.bf16.msra.mxu0 %v4020
    %4528 = vmatprep.subr.bf16.mxu0 %v4017
    %4529 = vmatpush1.bf16.msra.mxu0 %v4016
    %4530 = vmatprep.subr.bf16.mxu0 %v4013
    %4531 = vmatpush1.bf16.msra.mxu0 %v4012
    %4532 = vmatprep.subr.bf16.mxu0 %v4009
    %4533 = vmatpush1.bf16.msra.mxu0 %v4008
    %4534 = vmatprep.subr.bf16.mxu0 %v4069
    %4535 = vmatpush2.bf16.msra.mxu0 %v4068
    %4536 = vmatprep.subr.bf16.mxu0 %v4065
    %4537 = vmatpush2.bf16.msra.mxu0 %v4064
    %4538 = vmatprep.subr.bf16.mxu0 %v4061
    %4539 = vmatpush2.bf16.msra.mxu0 %v4060
    %4540 = vmatprep.subr.bf16.mxu0 %v4057
    %4541 = vmatpush2.bf16.msra.mxu0 %v4056
    %4542 = vmatprep.subr.bf16.mxu0 %v4053
    %4543 = vmatpush2.bf16.msra.mxu0 %v4052
    %4544 = vmatprep.subr.bf16.mxu0 %v4049
    %4545 = vmatpush2.bf16.msra.mxu0 %v4048
    %4546 = vmatprep.subr.bf16.mxu0 %v4045
    %4547 = vmatpush2.bf16.msra.mxu0 %v4044
    %4548 = vmatprep.subr.bf16.mxu0 %v4041
    %4549 = vmatpush2.bf16.msra.mxu0 %v4040
    %4550 = vmatprep.mubr.bf16.mxu0 %v4431
    %4551 = vmatmul.mubr.bf16.gmra.mxu0 %v4424
    %v4552 = vpop.f32.mrf.mxu0
    %v4553 = vadd.f32 0.0, %v4552
    %v4554 = vpop.f32.mrf.mxu0
    %v4555 = vadd.f32 0.0, %v4554
    %v4556 = vpop.f32.mrf.mxu0
    %v4557 = vpop.f32.mrf.mxu0
    %4558 = vdwg.mxu0
    %4559 = vmatprep.subr.bf16.mxu0 %v4101
    %4560 = vmatpush1.bf16.msra.mxu0 %v4100
    %4561 = vmatprep.subr.bf16.mxu0 %v4097
    %4562 = vmatpush1.bf16.msra.mxu0 %v4096
    %4563 = vmatprep.subr.bf16.mxu0 %v4093
    %4564 = vmatpush1.bf16.msra.mxu0 %v4092
    %4565 = vmatprep.subr.bf16.mxu0 %v4089
    %4566 = vmatpush1.bf16.msra.mxu0 %v4088
    %4567 = vmatprep.subr.bf16.mxu0 %v4085
    %4568 = vmatpush1.bf16.msra.mxu0 %v4084
    %4569 = vmatprep.subr.bf16.mxu0 %v4081
    %4570 = vmatpush1.bf16.msra.mxu0 %v4080
    %4571 = vmatprep.subr.bf16.mxu0 %v4077
    %4572 = vmatpush1.bf16.msra.mxu0 %v4076
    %4573 = vmatprep.subr.bf16.mxu0 %v4073
    %4574 = vmatpush1.bf16.msra.mxu0 %v4072
    %4575 = vmatprep.subr.bf16.mxu0 0
    %4576 = vmatpush2.bf16.msra.mxu0 0
    %4577 = vmatprep.subr.bf16.mxu0 0
    %4578 = vmatpush2.bf16.msra.mxu0 0
    %4579 = vmatprep.subr.bf16.mxu0 0
    %4580 = vmatpush2.bf16.msra.mxu0 0
    %4581 = vmatprep.subr.bf16.mxu0 0
    %4582 = vmatpush2.bf16.msra.mxu0 0
    %4583 = vmatprep.subr.bf16.mxu0 0
    %4584 = vmatpush2.bf16.msra.mxu0 0
    %4585 = vmatprep.subr.bf16.mxu0 0
    %4586 = vmatpush2.bf16.msra.mxu0 0
    %4587 = vmatprep.subr.bf16.mxu0 0
    %4588 = vmatpush2.bf16.msra.mxu0 0
    %4589 = vmatprep.subr.bf16.mxu0 0
    %4590 = vmatpush2.bf16.msra.mxu0 0
    %4591 = vmatprep.mubr.bf16.mxu0 0
    %4592 = vmatmul.mubr.bf16.gmra.mxu0 %v4432
    %v4593 = vpop.f32.mrf.mxu0
    %v4594 = vadd.f32 %v4553, %v4593
    %v4595 = vpop.f32.mrf.mxu0
    %v4596 = vadd.f32 %v4555, %v4595
    %v4597 = vpop.f32.mrf.mxu0
    %v4598 = vpop.f32.mrf.mxu0
    %4599 = vdwg.mxu0
    %v4600 = vadd.f32 %v3533, %v4512
    %v4601 = vadd.f32 %v3535, %v4514
    %v4602 = vadd.f32 %v3615, %v4594
    %v4603 = vadd.f32 %v3617, %v4596
    %s4604 = scalar_lea.vmem [#allocation7], 2304
    %v4605 = vld [vmem:[%s4604] sm:$0xff]
    %v4606 = vld [vmem:[%s4604 + $0x8] sm:$0xff]
    %v4607 = vld [vmem:[%s4604 + $0x10] sm:$0xff]
    %v4608 = vld [vmem:[%s4604 + $0x18] sm:$0xff]
    %v4609 = vld [vmem:[%s4604 + $0x20] sm:$0xff]
    %v4610 = vld [vmem:[%s4604 + $0x28] sm:$0xff]
    %v4611 = vld [vmem:[%s4604 + $0x30] sm:$0xff]
    %v4612 = vld [vmem:[%s4604 + $0x38] sm:$0xff]
    %v4613 = vld [vmem:[%s4604 + $0x40] sm:$0xff]
    %v4614 = vld [vmem:[%s4604 + $0x48] sm:$0xff]
    %v4615 = vld [vmem:[%s4604 + $0x50] sm:$0xff]
    %v4616 = vld [vmem:[%s4604 + $0x58] sm:$0xff]
    %v4617 = vld [vmem:[%s4604 + $0x60] sm:$0xff]
    %v4618 = vld [vmem:[%s4604 + $0x68] sm:$0xff]
    %v4619 = vld [vmem:[%s4604 + $0x70] sm:$0xff]
    %v4620 = vld [vmem:[%s4604 + $0x78] sm:$0xff]
    %v4621 = vld [vmem:[%s4604 + $0x80] sm:$0xff]
    %v4622 = vld [vmem:[%s4604 + $0x88] sm:$0xff]
    %v4623 = vld [vmem:[%s4604 + $0x90] sm:$0xff]
    %v4624 = vld [vmem:[%s4604 + $0x98] sm:$0xff]
    %v4625 = vld [vmem:[%s4604 + $0xa0] sm:$0xff]
    %v4626 = vld [vmem:[%s4604 + $0xa8] sm:$0xff]
    %v4627 = vld [vmem:[%s4604 + $0xb0] sm:$0xff]
    %v4628 = vld [vmem:[%s4604 + $0xb8] sm:$0xff]
    %v4629 = vld [vmem:[%s4604 + $0xc0] sm:$0xff]
    %v4630 = vld [vmem:[%s4604 + $0xc8] sm:$0xff]
    %v4631 = vld [vmem:[%s4604 + $0xd0] sm:$0xff]
    %v4632 = vld [vmem:[%s4604 + $0xd8] sm:$0xff]
    %v4633 = vld [vmem:[%s4604 + $0xe0] sm:$0xff]
    %v4634 = vld [vmem:[%s4604 + $0xe8] sm:$0xff]
    %v4635 = vld [vmem:[%s4604 + $0xf0] sm:$0xff]
    %v4636 = vld [vmem:[%s4604 + $0xf8] sm:$0xff]
    %v4637 = vld [vmem:[%s4604 + $0x100] sm:$0xff]
    %v4638 = vld [vmem:[%s4604 + $0x108] sm:$0xff]
    %v4639 = vld [vmem:[%s4604 + $0x110] sm:$0xff]
    %v4640 = vld [vmem:[%s4604 + $0x118] sm:$0xff]
    %v4641 = vld [vmem:[%s4604 + $0x120] sm:$0xff]
    %v4642 = vld [vmem:[%s4604 + $0x128] sm:$0xff]
    %v4643 = vld [vmem:[%s4604 + $0x130] sm:$0xff]
    %v4644 = vld [vmem:[%s4604 + $0x138] sm:$0xff]
    %v4645 = vld [vmem:[%s4604 + $0x140] sm:$0xff]
    %v4646 = vld [vmem:[%s4604 + $0x148] sm:$0xff]
    %v4647 = vld [vmem:[%s4604 + $0x150] sm:$0xff]
    %v4648 = vld [vmem:[%s4604 + $0x158] sm:$0xff]
    %v4649 = vld [vmem:[%s4604 + $0x160] sm:$0xff]
    %v4650 = vld [vmem:[%s4604 + $0x168] sm:$0xff]
    %v4651 = vld [vmem:[%s4604 + $0x170] sm:$0xff]
    %v4652 = vld [vmem:[%s4604 + $0x178] sm:$0xff]
    %v4653 = vld [vmem:[%s4604 + $0x180] sm:$0xff]
    %v4654 = vld [vmem:[%s4604 + $0x188] sm:$0xff]
    %v4655 = vld [vmem:[%s4604 + $0x190] sm:$0xff]
    %v4656 = vld [vmem:[%s4604 + $0x198] sm:$0xff]
    %v4657 = vld [vmem:[%s4604 + $0x1a0] sm:$0xff]
    %v4658 = vld [vmem:[%s4604 + $0x1a8] sm:$0xff]
    %v4659 = vld [vmem:[%s4604 + $0x1b0] sm:$0xff]
    %v4660 = vld [vmem:[%s4604 + $0x1b8] sm:$0xff]
    %v4661 = vld [vmem:[%s4604 + $0x1c0] sm:$0xff]
    %v4662 = vld [vmem:[%s4604 + $0x1c8] sm:$0xff]
    %v4663 = vld [vmem:[%s4604 + $0x1d0] sm:$0xff]
    %v4664 = vld [vmem:[%s4604 + $0x1d8] sm:$0xff]
    %v4665 = vld [vmem:[%s4604 + $0x1e0] sm:$0xff]
    %v4666 = vld [vmem:[%s4604 + $0x1e8] sm:$0xff]
    %v4667 = vld [vmem:[%s4604 + $0x1f0] sm:$0xff]
    %v4668 = vld [vmem:[%s4604 + $0x1f8] sm:$0xff]
    %v4669 = vld [vmem:[%s4604 + $0x200] sm:$0xff]
    %v4670 = vld [vmem:[%s4604 + $0x208] sm:$0xff]
    %v4671 = vld [vmem:[%s4604 + $0x210] sm:$0xff]
    %v4672 = vld [vmem:[%s4604 + $0x218] sm:$0xff]
    %v4673 = vld [vmem:[%s4604 + $0x220] sm:$0xff]
    %v4674 = vld [vmem:[%s4604 + $0x228] sm:$0xff]
    %v4675 = vld [vmem:[%s4604 + $0x230] sm:$0xff]
    %v4676 = vld [vmem:[%s4604 + $0x238] sm:$0xff]
    %v4677 = vld [vmem:[%s4604 + $0x240] sm:$0xff]
    %v4678 = vld [vmem:[%s4604 + $0x248] sm:$0xff]
    %v4679 = vld [vmem:[%s4604 + $0x250] sm:$0xff]
    %v4680 = vld [vmem:[%s4604 + $0x258] sm:$0xff]
    %v4681 = vld [vmem:[%s4604 + $0x260] sm:$0xff]
    %v4682 = vld [vmem:[%s4604 + $0x268] sm:$0xff]
    %v4683 = vld [vmem:[%s4604 + $0x270] sm:$0xff]
    %v4684 = vld [vmem:[%s4604 + $0x278] sm:$0xff]
    %v4685 = vld [vmem:[%s4604 + $0x280] sm:$0xff]
    %v4686 = vld [vmem:[%s4604 + $0x288] sm:$0xff]
    %v4687 = vld [vmem:[%s4604 + $0x290] sm:$0xff]
    %v4688 = vld [vmem:[%s4604 + $0x298] sm:$0xff]
    %v4689 = vld [vmem:[%s4604 + $0x2a0] sm:$0xff]
    %v4690 = vld [vmem:[%s4604 + $0x2a8] sm:$0xff]
    %v4691 = vld [vmem:[%s4604 + $0x2b0] sm:$0xff]
    %v4692 = vld [vmem:[%s4604 + $0x2b8] sm:$0xff]
    %v4693 = vld [vmem:[%s4604 + $0x2c0] sm:$0xff]
    %v4694 = vld [vmem:[%s4604 + $0x2c8] sm:$0xff]
    %v4695 = vld [vmem:[%s4604 + $0x2d0] sm:$0xff]
    %v4696 = vld [vmem:[%s4604 + $0x2d8] sm:$0xff]
    %v4697 = vld [vmem:[%s4604 + $0x2e0] sm:$0xff]
    %v4698 = vld [vmem:[%s4604 + $0x2e8] sm:$0xff]
    %v4699 = vld [vmem:[%s4604 + $0x2f0] sm:$0xff]
    %v4700 = vld [vmem:[%s4604 + $0x2f8] sm:$0xff]
    %v4797 = vunpack.c.l.b16 %v4605
    %v4798 = vunpack.c.h.b16 %v4605
    %v4799 = vunpack.c.l.b16 %v4606
    %v4800 = vunpack.c.h.b16 %v4606
    %v4801 = vunpack.c.l.b16 %v4607
    %v4802 = vunpack.c.h.b16 %v4607
    %v4803 = vunpack.c.l.b16 %v4608
    %v4804 = vunpack.c.h.b16 %v4608
    %v4805 = vunpack.c.l.b16 %v4609
    %v4806 = vunpack.c.h.b16 %v4609
    %v4807 = vunpack.c.l.b16 %v4610
    %v4808 = vunpack.c.h.b16 %v4610
    %v4809 = vunpack.c.l.b16 %v4611
    %v4810 = vunpack.c.h.b16 %v4611
    %v4811 = vunpack.c.l.b16 %v4612
    %v4812 = vunpack.c.h.b16 %v4612
    %v4813 = vunpack.c.l.b16 %v4613
    %v4814 = vunpack.c.h.b16 %v4613
    %v4815 = vunpack.c.l.b16 %v4614
    %v4816 = vunpack.c.h.b16 %v4614
    %v4817 = vunpack.c.l.b16 %v4615
    %v4818 = vunpack.c.h.b16 %v4615
    %v4819 = vunpack.c.l.b16 %v4616
    %v4820 = vunpack.c.h.b16 %v4616
    %v4821 = vunpack.c.l.b16 %v4617
    %v4822 = vunpack.c.h.b16 %v4617
    %v4823 = vunpack.c.l.b16 %v4618
    %v4824 = vunpack.c.h.b16 %v4618
    %v4825 = vunpack.c.l.b16 %v4619
    %v4826 = vunpack.c.h.b16 %v4619
    %v4827 = vunpack.c.l.b16 %v4620
    %v4828 = vunpack.c.h.b16 %v4620
    %v4829 = vunpack.c.l.b16 %v4621
    %v4830 = vunpack.c.h.b16 %v4621
    %v4831 = vunpack.c.l.b16 %v4622
    %v4832 = vunpack.c.h.b16 %v4622
    %v4833 = vunpack.c.l.b16 %v4623
    %v4834 = vunpack.c.h.b16 %v4623
    %v4835 = vunpack.c.l.b16 %v4624
    %v4836 = vunpack.c.h.b16 %v4624
    %v4837 = vunpack.c.l.b16 %v4625
    %v4838 = vunpack.c.h.b16 %v4625
    %v4839 = vunpack.c.l.b16 %v4626
    %v4840 = vunpack.c.h.b16 %v4626
    %v4841 = vunpack.c.l.b16 %v4627
    %v4842 = vunpack.c.h.b16 %v4627
    %v4843 = vunpack.c.l.b16 %v4628
    %v4844 = vunpack.c.h.b16 %v4628
    %v4845 = vunpack.c.l.b16 %v4629
    %v4846 = vunpack.c.h.b16 %v4629
    %v4847 = vunpack.c.l.b16 %v4630
    %v4848 = vunpack.c.h.b16 %v4630
    %v4849 = vunpack.c.l.b16 %v4631
    %v4850 = vunpack.c.h.b16 %v4631
    %v4851 = vunpack.c.l.b16 %v4632
    %v4852 = vunpack.c.h.b16 %v4632
    %v4853 = vunpack.c.l.b16 %v4633
    %v4854 = vunpack.c.h.b16 %v4633
    %v4855 = vunpack.c.l.b16 %v4634
    %v4856 = vunpack.c.h.b16 %v4634
    %v4857 = vunpack.c.l.b16 %v4635
    %v4858 = vunpack.c.h.b16 %v4635
    %v4859 = vunpack.c.l.b16 %v4636
    %v4860 = vunpack.c.h.b16 %v4636
    %v4861 = vunpack.c.l.b16 %v4637
    %v4862 = vunpack.c.h.b16 %v4637
    %v4863 = vunpack.c.l.b16 %v4638
    %v4864 = vunpack.c.h.b16 %v4638
    %v4865 = vunpack.c.l.b16 %v4639
    %v4866 = vunpack.c.h.b16 %v4639
    %v4867 = vunpack.c.l.b16 %v4640
    %v4868 = vunpack.c.h.b16 %v4640
    %v4869 = vunpack.c.l.b16 %v4641
    %v4870 = vunpack.c.h.b16 %v4641
    %v4871 = vunpack.c.l.b16 %v4642
    %v4872 = vunpack.c.h.b16 %v4642
    %v4873 = vunpack.c.l.b16 %v4643
    %v4874 = vunpack.c.h.b16 %v4643
    %v4875 = vunpack.c.l.b16 %v4644
    %v4876 = vunpack.c.h.b16 %v4644
    %v4877 = vunpack.c.l.b16 %v4645
    %v4878 = vunpack.c.h.b16 %v4645
    %v4879 = vunpack.c.l.b16 %v4646
    %v4880 = vunpack.c.h.b16 %v4646
    %v4881 = vunpack.c.l.b16 %v4647
    %v4882 = vunpack.c.h.b16 %v4647
    %v4883 = vunpack.c.l.b16 %v4648
    %v4884 = vunpack.c.h.b16 %v4648
    %v4885 = vunpack.c.l.b16 %v4649
    %v4886 = vunpack.c.h.b16 %v4649
    %v4887 = vunpack.c.l.b16 %v4650
    %v4888 = vunpack.c.h.b16 %v4650
    %v4889 = vunpack.c.l.b16 %v4651
    %v4890 = vunpack.c.h.b16 %v4651
    %v4891 = vunpack.c.l.b16 %v4652
    %v4892 = vunpack.c.h.b16 %v4652
    %v4893 = vunpack.c.l.b16 %v4653
    %v4894 = vunpack.c.h.b16 %v4653
    %v4895 = vunpack.c.l.b16 %v4654
    %v4896 = vunpack.c.h.b16 %v4654
    %v4897 = vunpack.c.l.b16 %v4655
    %v4898 = vunpack.c.h.b16 %v4655
    %v4899 = vunpack.c.l.b16 %v4656
    %v4900 = vunpack.c.h.b16 %v4656
    %v4901 = vunpack.c.l.b16 %v4657
    %v4902 = vunpack.c.h.b16 %v4657
    %v4903 = vunpack.c.l.b16 %v4658
    %v4904 = vunpack.c.h.b16 %v4658
    %v4905 = vunpack.c.l.b16 %v4659
    %v4906 = vunpack.c.h.b16 %v4659
    %v4907 = vunpack.c.l.b16 %v4660
    %v4908 = vunpack.c.h.b16 %v4660
    %v4909 = vunpack.c.l.b16 %v4661
    %v4910 = vunpack.c.h.b16 %v4661
    %v4911 = vunpack.c.l.b16 %v4662
    %v4912 = vunpack.c.h.b16 %v4662
    %v4913 = vunpack.c.l.b16 %v4663
    %v4914 = vunpack.c.h.b16 %v4663
    %v4915 = vunpack.c.l.b16 %v4664
    %v4916 = vunpack.c.h.b16 %v4664
    %v4917 = vunpack.c.l.b16 %v4665
    %v4918 = vunpack.c.h.b16 %v4665
    %v4919 = vunpack.c.l.b16 %v4666
    %v4920 = vunpack.c.h.b16 %v4666
    %v4921 = vunpack.c.l.b16 %v4667
    %v4922 = vunpack.c.h.b16 %v4667
    %v4923 = vunpack.c.l.b16 %v4668
    %v4924 = vunpack.c.h.b16 %v4668
    %v4925 = vunpack.c.l.b16 %v4669
    %v4926 = vunpack.c.h.b16 %v4669
    %v4927 = vunpack.c.l.b16 %v4670
    %v4928 = vunpack.c.h.b16 %v4670
    %v4929 = vunpack.c.l.b16 %v4671
    %v4930 = vunpack.c.h.b16 %v4671
    %v4931 = vunpack.c.l.b16 %v4672
    %v4932 = vunpack.c.h.b16 %v4672
    %v4933 = vunpack.c.l.b16 %v4673
    %v4934 = vunpack.c.h.b16 %v4673
    %v4935 = vunpack.c.l.b16 %v4674
    %v4936 = vunpack.c.h.b16 %v4674
    %v4937 = vunpack.c.l.b16 %v4675
    %v4938 = vunpack.c.h.b16 %v4675
    %v4939 = vunpack.c.l.b16 %v4676
    %v4940 = vunpack.c.h.b16 %v4676
    %v4941 = vunpack.c.l.b16 %v4677
    %v4942 = vunpack.c.h.b16 %v4677
    %v4943 = vunpack.c.l.b16 %v4678
    %v4944 = vunpack.c.h.b16 %v4678
    %v4945 = vunpack.c.l.b16 %v4679
    %v4946 = vunpack.c.h.b16 %v4679
    %v4947 = vunpack.c.l.b16 %v4680
    %v4948 = vunpack.c.h.b16 %v4680
    %v4949 = vunpack.c.l.b16 %v4681
    %v4950 = vunpack.c.h.b16 %v4681
    %v4951 = vunpack.c.l.b16 %v4682
    %v4952 = vunpack.c.h.b16 %v4682
    %v4953 = vunpack.c.l.b16 %v4683
    %v4954 = vunpack.c.h.b16 %v4683
    %v4955 = vunpack.c.l.b16 %v4684
    %v4956 = vunpack.c.h.b16 %v4684
    %v4957 = vunpack.c.l.b16 %v4685
    %v4958 = vunpack.c.h.b16 %v4685
    %v4959 = vunpack.c.l.b16 %v4686
    %v4960 = vunpack.c.h.b16 %v4686
    %v4961 = vunpack.c.l.b16 %v4687
    %v4962 = vunpack.c.h.b16 %v4687
    %v4963 = vunpack.c.l.b16 %v4688
    %v4964 = vunpack.c.h.b16 %v4688
    %v4965 = vunpack.c.l.b16 %v4689
    %v4966 = vunpack.c.h.b16 %v4689
    %v4967 = vunpack.c.l.b16 %v4690
    %v4968 = vunpack.c.h.b16 %v4690
    %v4969 = vunpack.c.l.b16 %v4691
    %v4970 = vunpack.c.h.b16 %v4691
    %v4971 = vunpack.c.l.b16 %v4692
    %v4972 = vunpack.c.h.b16 %v4692
    %v4973 = vunpack.c.l.b16 %v4693
    %v4974 = vunpack.c.h.b16 %v4693
    %v4975 = vunpack.c.l.b16 %v4694
    %v4976 = vunpack.c.h.b16 %v4694
    %v4977 = vunpack.c.l.b16 %v4695
    %v4978 = vunpack.c.h.b16 %v4695
    %v4979 = vunpack.c.l.b16 %v4696
    %v4980 = vunpack.c.h.b16 %v4696
    %v4981 = vunpack.c.l.b16 %v4697
    %v4982 = vunpack.c.h.b16 %v4697
    %v4983 = vunpack.c.l.b16 %v4698
    %v4984 = vunpack.c.h.b16 %v4698
    %v4985 = vunpack.c.l.b16 %v4699
    %v4986 = vunpack.c.h.b16 %v4699
    %v4987 = vunpack.c.l.b16 %v4700
    %v4988 = vunpack.c.h.b16 %v4700
    %v4989 = vpack.c.b16 %v4801, %v4797
    %v4990 = vpack.c.b16 %v4802, %v4798
    %v4991 = vpack.c.b16 %v4803, %v4799
    %v4992 = vpack.c.b16 %v4804, %v4800
    %v4993 = vpack.c.b16 %v4809, %v4805
    %v4994 = vpack.c.b16 %v4810, %v4806
    %v4995 = vpack.c.b16 %v4811, %v4807
    %v4996 = vpack.c.b16 %v4812, %v4808
    %v4997 = vpack.c.b16 %v4817, %v4813
    %v4998 = vpack.c.b16 %v4818, %v4814
    %v4999 = vpack.c.b16 %v4819, %v4815
    %v5000 = vpack.c.b16 %v4820, %v4816
    %v5001 = vpack.c.b16 %v4825, %v4821
    %v5002 = vpack.c.b16 %v4826, %v4822
    %v5003 = vpack.c.b16 %v4827, %v4823
    %v5004 = vpack.c.b16 %v4828, %v4824
    %v5005 = vpack.c.b16 %v4833, %v4829
    %v5006 = vpack.c.b16 %v4834, %v4830
    %v5007 = vpack.c.b16 %v4835, %v4831
    %v5008 = vpack.c.b16 %v4836, %v4832
    %v5009 = vpack.c.b16 %v4841, %v4837
    %v5010 = vpack.c.b16 %v4842, %v4838
    %v5011 = vpack.c.b16 %v4843, %v4839
    %v5012 = vpack.c.b16 %v4844, %v4840
    %v5013 = vpack.c.b16 %v4849, %v4845
    %v5014 = vpack.c.b16 %v4850, %v4846
    %v5015 = vpack.c.b16 %v4851, %v4847
    %v5016 = vpack.c.b16 %v4852, %v4848
    %v5017 = vpack.c.b16 %v4857, %v4853
    %v5018 = vpack.c.b16 %v4858, %v4854
    %v5019 = vpack.c.b16 %v4859, %v4855
    %v5020 = vpack.c.b16 %v4860, %v4856
    %v5021 = vpack.c.b16 %v4865, %v4861
    %v5022 = vpack.c.b16 %v4866, %v4862
    %v5023 = vpack.c.b16 %v4867, %v4863
    %v5024 = vpack.c.b16 %v4868, %v4864
    %v5025 = vpack.c.b16 %v4873, %v4869
    %v5026 = vpack.c.b16 %v4874, %v4870
    %v5027 = vpack.c.b16 %v4875, %v4871
    %v5028 = vpack.c.b16 %v4876, %v4872
    %v5029 = vpack.c.b16 %v4881, %v4877
    %v5030 = vpack.c.b16 %v4882, %v4878
    %v5031 = vpack.c.b16 %v4883, %v4879
    %v5032 = vpack.c.b16 %v4884, %v4880
    %v5033 = vpack.c.b16 %v4889, %v4885
    %v5034 = vpack.c.b16 %v4890, %v4886
    %v5035 = vpack.c.b16 %v4891, %v4887
    %v5036 = vpack.c.b16 %v4892, %v4888
    %v5037 = vpack.c.b16 %v4897, %v4893
    %v5038 = vpack.c.b16 %v4898, %v4894
    %v5039 = vpack.c.b16 %v4899, %v4895
    %v5040 = vpack.c.b16 %v4900, %v4896
    %v5041 = vpack.c.b16 %v4905, %v4901
    %v5042 = vpack.c.b16 %v4906, %v4902
    %v5043 = vpack.c.b16 %v4907, %v4903
    %v5044 = vpack.c.b16 %v4908, %v4904
    %v5045 = vpack.c.b16 %v4913, %v4909
    %v5046 = vpack.c.b16 %v4914, %v4910
    %v5047 = vpack.c.b16 %v4915, %v4911
    %v5048 = vpack.c.b16 %v4916, %v4912
    %v5049 = vpack.c.b16 %v4921, %v4917
    %v5050 = vpack.c.b16 %v4922, %v4918
    %v5051 = vpack.c.b16 %v4923, %v4919
    %v5052 = vpack.c.b16 %v4924, %v4920
    %v5053 = vpack.c.b16 %v4929, %v4925
    %v5054 = vpack.c.b16 %v4930, %v4926
    %v5055 = vpack.c.b16 %v4931, %v4927
    %v5056 = vpack.c.b16 %v4932, %v4928
    %v5057 = vpack.c.b16 %v4937, %v4933
    %v5058 = vpack.c.b16 %v4938, %v4934
    %v5059 = vpack.c.b16 %v4939, %v4935
    %v5060 = vpack.c.b16 %v4940, %v4936
    %v5061 = vpack.c.b16 %v4945, %v4941
    %v5062 = vpack.c.b16 %v4946, %v4942
    %v5063 = vpack.c.b16 %v4947, %v4943
    %v5064 = vpack.c.b16 %v4948, %v4944
    %v5065 = vpack.c.b16 %v4953, %v4949
    %v5066 = vpack.c.b16 %v4954, %v4950
    %v5067 = vpack.c.b16 %v4955, %v4951
    %v5068 = vpack.c.b16 %v4956, %v4952
    %v5069 = vpack.c.b16 %v4961, %v4957
    %v5070 = vpack.c.b16 %v4962, %v4958
    %v5071 = vpack.c.b16 %v4963, %v4959
    %v5072 = vpack.c.b16 %v4964, %v4960
    %v5073 = vpack.c.b16 %v4969, %v4965
    %v5074 = vpack.c.b16 %v4970, %v4966
    %v5075 = vpack.c.b16 %v4971, %v4967
    %v5076 = vpack.c.b16 %v4972, %v4968
    %v5077 = vpack.c.b16 %v4977, %v4973
    %v5078 = vpack.c.b16 %v4978, %v4974
    %v5079 = vpack.c.b16 %v4979, %v4975
    %v5080 = vpack.c.b16 %v4980, %v4976
    %v5081 = vpack.c.b16 %v4985, %v4981
    %v5082 = vpack.c.b16 %v4986, %v4982
    %v5083 = vpack.c.b16 %v4987, %v4983
    %v5084 = vpack.c.b16 %v4988, %v4984
    %5181 = vmatprep.subr.bf16.mxu0 %v5018
    %5182 = vmatpush1.bf16.msra.mxu0 %v5017
    %5183 = vmatprep.subr.bf16.mxu0 %v5014
    %5184 = vmatpush1.bf16.msra.mxu0 %v5013
    %5185 = vmatprep.subr.bf16.mxu0 %v5010
    %5186 = vmatpush1.bf16.msra.mxu0 %v5009
    %5187 = vmatprep.subr.bf16.mxu0 %v5006
    %5188 = vmatpush1.bf16.msra.mxu0 %v5005
    %5189 = vmatprep.subr.bf16.mxu0 %v5002
    %5190 = vmatpush1.bf16.msra.mxu0 %v5001
    %5191 = vmatprep.subr.bf16.mxu0 %v4998
    %5192 = vmatpush1.bf16.msra.mxu0 %v4997
    %5193 = vmatprep.subr.bf16.mxu0 %v4994
    %5194 = vmatpush1.bf16.msra.mxu0 %v4993
    %5195 = vmatprep.subr.bf16.mxu0 %v4990
    %5196 = vmatpush1.bf16.msra.mxu0 %v4989
    %5197 = vmatprep.subr.bf16.mxu0 %v5050
    %5198 = vmatpush2.bf16.msra.mxu0 %v5049
    %5199 = vmatprep.subr.bf16.mxu0 %v5046
    %5200 = vmatpush2.bf16.msra.mxu0 %v5045
    %5201 = vmatprep.subr.bf16.mxu0 %v5042
    %5202 = vmatpush2.bf16.msra.mxu0 %v5041
    %5203 = vmatprep.subr.bf16.mxu0 %v5038
    %5204 = vmatpush2.bf16.msra.mxu0 %v5037
    %5205 = vmatprep.subr.bf16.mxu0 %v5034
    %5206 = vmatpush2.bf16.msra.mxu0 %v5033
    %5207 = vmatprep.subr.bf16.mxu0 %v5030
    %5208 = vmatpush2.bf16.msra.mxu0 %v5029
    %5209 = vmatprep.subr.bf16.mxu0 %v5026
    %5210 = vmatpush2.bf16.msra.mxu0 %v5025
    %5211 = vmatprep.subr.bf16.mxu0 %v5022
    %5212 = vmatpush2.bf16.msra.mxu0 %v5021
    %5213 = vmatprep.mubr.bf16.mxu0 %v4431
    %5214 = vmatmul.mubr.bf16.gmra.mxu0 %v4424
    %v5215 = vpop.f32.mrf.mxu0
    %v5216 = vadd.f32 0.0, %v5215
    %v5217 = vpop.f32.mrf.mxu0
    %v5218 = vadd.f32 0.0, %v5217
    %v5219 = vpop.f32.mrf.mxu0
    %v5220 = vpop.f32.mrf.mxu0
    %5221 = vdwg.mxu0
    %5222 = vmatprep.subr.bf16.mxu0 %v5082
    %5223 = vmatpush1.bf16.msra.mxu0 %v5081
    %5224 = vmatprep.subr.bf16.mxu0 %v5078
    %5225 = vmatpush1.bf16.msra.mxu0 %v5077
    %5226 = vmatprep.subr.bf16.mxu0 %v5074
    %5227 = vmatpush1.bf16.msra.mxu0 %v5073
    %5228 = vmatprep.subr.bf16.mxu0 %v5070
    %5229 = vmatpush1.bf16.msra.mxu0 %v5069
    %5230 = vmatprep.subr.bf16.mxu0 %v5066
    %5231 = vmatpush1.bf16.msra.mxu0 %v5065
    %5232 = vmatprep.subr.bf16.mxu0 %v5062
    %5233 = vmatpush1.bf16.msra.mxu0 %v5061
    %5234 = vmatprep.subr.bf16.mxu0 %v5058
    %5235 = vmatpush1.bf16.msra.mxu0 %v5057
    %5236 = vmatprep.subr.bf16.mxu0 %v5054
    %5237 = vmatpush1.bf16.msra.mxu0 %v5053
    %5238 = vmatprep.subr.bf16.mxu0 0
    %5239 = vmatpush2.bf16.msra.mxu0 0
    %5240 = vmatprep.subr.bf16.mxu0 0
    %5241 = vmatpush2.bf16.msra.mxu0 0
    %5242 = vmatprep.subr.bf16.mxu0 0
    %5243 = vmatpush2.bf16.msra.mxu0 0
    %5244 = vmatprep.subr.bf16.mxu0 0
    %5245 = vmatpush2.bf16.msra.mxu0 0
    %5246 = vmatprep.subr.bf16.mxu0 0
    %5247 = vmatpush2.bf16.msra.mxu0 0
    %5248 = vmatprep.subr.bf16.mxu0 0
    %5249 = vmatpush2.bf16.msra.mxu0 0
    %5250 = vmatprep.subr.bf16.mxu0 0
    %5251 = vmatpush2.bf16.msra.mxu0 0
    %5252 = vmatprep.subr.bf16.mxu0 0
    %5253 = vmatpush2.bf16.msra.mxu0 0
    %5254 = vmatprep.mubr.bf16.mxu0 0
    %5255 = vmatmul.mubr.bf16.gmra.mxu0 %v4432
    %v5256 = vpop.f32.mrf.mxu0
    %v5257 = vadd.f32 %v5216, %v5256
    %v5258 = vpop.f32.mrf.mxu0
    %v5259 = vadd.f32 %v5218, %v5258
    %v5260 = vpop.f32.mrf.mxu0
    %v5261 = vpop.f32.mrf.mxu0
    %5262 = vdwg.mxu0
    %5263 = vmatprep.subr.bf16.mxu0 %v5020
    %5264 = vmatpush1.bf16.msra.mxu0 %v5019
    %5265 = vmatprep.subr.bf16.mxu0 %v5016
    %5266 = vmatpush1.bf16.msra.mxu0 %v5015
    %5267 = vmatprep.subr.bf16.mxu0 %v5012
    %5268 = vmatpush1.bf16.msra.mxu0 %v5011
    %5269 = vmatprep.subr.bf16.mxu0 %v5008
    %5270 = vmatpush1.bf16.msra.mxu0 %v5007
    %5271 = vmatprep.subr.bf16.mxu0 %v5004
    %5272 = vmatpush1.bf16.msra.mxu0 %v5003
    %5273 = vmatprep.subr.bf16.mxu0 %v5000
    %5274 = vmatpush1.bf16.msra.mxu0 %v4999
    %5275 = vmatprep.subr.bf16.mxu0 %v4996
    %5276 = vmatpush1.bf16.msra.mxu0 %v4995
    %5277 = vmatprep.subr.bf16.mxu0 %v4992
    %5278 = vmatpush1.bf16.msra.mxu0 %v4991
    %5279 = vmatprep.subr.bf16.mxu0 %v5052
    %5280 = vmatpush2.bf16.msra.mxu0 %v5051
    %5281 = vmatprep.subr.bf16.mxu0 %v5048
    %5282 = vmatpush2.bf16.msra.mxu0 %v5047
    %5283 = vmatprep.subr.bf16.mxu0 %v5044
    %5284 = vmatpush2.bf16.msra.mxu0 %v5043
    %5285 = vmatprep.subr.bf16.mxu0 %v5040
    %5286 = vmatpush2.bf16.msra.mxu0 %v5039
    %5287 = vmatprep.subr.bf16.mxu0 %v5036
    %5288 = vmatpush2.bf16.msra.mxu0 %v5035
    %5289 = vmatprep.subr.bf16.mxu0 %v5032
    %5290 = vmatpush2.bf16.msra.mxu0 %v5031
    %5291 = vmatprep.subr.bf16.mxu0 %v5028
    %5292 = vmatpush2.bf16.msra.mxu0 %v5027
    %5293 = vmatprep.subr.bf16.mxu0 %v5024
    %5294 = vmatpush2.bf16.msra.mxu0 %v5023
    %5295 = vmatprep.mubr.bf16.mxu0 %v4431
    %5296 = vmatmul.mubr.bf16.gmra.mxu0 %v4424
    %v5297 = vpop.f32.mrf.mxu0
    %v5298 = vadd.f32 0.0, %v5297
    %v5299 = vpop.f32.mrf.mxu0
    %v5300 = vadd.f32 0.0, %v5299
    %v5301 = vpop.f32.mrf.mxu0
    %v5302 = vpop.f32.mrf.mxu0
    %5303 = vdwg.mxu0
    %5304 = vmatprep.subr.bf16.mxu0 %v5084
    %5305 = vmatpush1.bf16.msra.mxu0 %v5083
    %5306 = vmatprep.subr.bf16.mxu0 %v5080
    %5307 = vmatpush1.bf16.msra.mxu0 %v5079
    %5308 = vmatprep.subr.bf16.mxu0 %v5076
    %5309 = vmatpush1.bf16.msra.mxu0 %v5075
    %5310 = vmatprep.subr.bf16.mxu0 %v5072
    %5311 = vmatpush1.bf16.msra.mxu0 %v5071
    %5312 = vmatprep.subr.bf16.mxu0 %v5068
    %5313 = vmatpush1.bf16.msra.mxu0 %v5067
    %5314 = vmatprep.subr.bf16.mxu0 %v5064
    %5315 = vmatpush1.bf16.msra.mxu0 %v5063
    %5316 = vmatprep.subr.bf16.mxu0 %v5060
    %5317 = vmatpush1.bf16.msra.mxu0 %v5059
    %5318 = vmatprep.subr.bf16.mxu0 %v5056
    %5319 = vmatpush1.bf16.msra.mxu0 %v5055
    %5320 = vmatprep.subr.bf16.mxu0 0
    %5321 = vmatpush2.bf16.msra.mxu0 0
    %5322 = vmatprep.subr.bf16.mxu0 0
    %5323 = vmatpush2.bf16.msra.mxu0 0
    %5324 = vmatprep.subr.bf16.mxu0 0
    %5325 = vmatpush2.bf16.msra.mxu0 0
    %5326 = vmatprep.subr.bf16.mxu0 0
    %5327 = vmatpush2.bf16.msra.mxu0 0
    %5328 = vmatprep.subr.bf16.mxu0 0
    %5329 = vmatpush2.bf16.msra.mxu0 0
    %5330 = vmatprep.subr.bf16.mxu0 0
    %5331 = vmatpush2.bf16.msra.mxu0 0
    %5332 = vmatprep.subr.bf16.mxu0 0
    %5333 = vmatpush2.bf16.msra.mxu0 0
    %5334 = vmatprep.subr.bf16.mxu0 0
    %5335 = vmatpush2.bf16.msra.mxu0 0
    %5336 = vmatprep.mubr.bf16.mxu0 0
    %5337 = vmatmul.mubr.bf16.gmra.mxu0 %v4432
    %v5338 = vpop.f32.mrf.mxu0
    %v5339 = vadd.f32 %v5298, %v5338
    %v5340 = vpop.f32.mrf.mxu0
    %v5341 = vadd.f32 %v5300, %v5340
    %v5342 = vpop.f32.mrf.mxu0
    %v5343 = vpop.f32.mrf.mxu0
    %5344 = vdwg.mxu0
    %v5345 = vadd.f32 %v4362, %v5257
    %v5346 = vadd.f32 %v4363, %v5259
    %v5347 = vadd.f32 %v4364, %v5339
    %v5348 = vadd.f32 %v4365, %v5341
    %v5349 = vcombine.low %v1062, %v1070
    %v5350 = vcombine.low %v1055, %v1069
    %v5352 = vunpack.c.l.s4 1966171168
    %v5353 = vunpack.c.0.s8 %v5352
    %v5354 = vlaneseq
    %v5355 = vshrl.u32 %v5354, 7
    %v5356 = vsub.s32 %v5353, %v5355
    %v5357 = vrot.slane %v5349, %v5356
    %v5359 = vunpack.c.l.s4 1966171168
    %v5360 = vunpack.c.0.s8 %v5359
    %v5361 = vlaneseq
    %v5362 = vshrl.u32 %v5361, 7
    %v5363 = vsub.s32 %v5360, %v5362
    %v5364 = vrot.slane %v5350, %v5363
    %v5365 = vcombine.low %v5357, %v5364
    %v5366 = vcombine.high %v5357, %v5364
    %v5368 = vunpack.c.l.s4 1966171168
    %v5369 = vunpack.c.0.s8 %v5368
    %v5370 = vlaneseq
    %v5371 = vshrl.u32 %v5370, 7
    %v5372 = vsub.s32 %v5369, %v5371
    %v5373 = vrot.slane %v5365, %v5372
    %v5375 = vunpack.c.l.s4 1966171168
    %v5376 = vunpack.c.0.s8 %v5375
    %v5377 = vlaneseq
    %v5378 = vshrl.u32 %v5377, 7
    %v5379 = vsub.s32 %v5376, %v5378
    %v5380 = vrot.slane %v5366, %v5379
    %v5381 = vcombine.high %v5373, %v5373
    %5385 = vmatprep.subr.bf16.mxu0 %v5018
    %5386 = vmatpush1.bf16.msra.mxu0 %v5017
    %5387 = vmatprep.subr.bf16.mxu0 %v5014
    %5388 = vmatpush1.bf16.msra.mxu0 %v5013
    %5389 = vmatprep.subr.bf16.mxu0 %v5010
    %5390 = vmatpush1.bf16.msra.mxu0 %v5009
    %5391 = vmatprep.subr.bf16.mxu0 %v5006
    %5392 = vmatpush1.bf16.msra.mxu0 %v5005
    %5393 = vmatprep.subr.bf16.mxu0 %v5002
    %5394 = vmatpush1.bf16.msra.mxu0 %v5001
    %5395 = vmatprep.subr.bf16.mxu0 %v4998
    %5396 = vmatpush1.bf16.msra.mxu0 %v4997
    %5397 = vmatprep.subr.bf16.mxu0 %v4994
    %5398 = vmatpush1.bf16.msra.mxu0 %v4993
    %5399 = vmatprep.subr.bf16.mxu0 %v4990
    %5400 = vmatpush1.bf16.msra.mxu0 %v4989
    %5401 = vmatprep.subr.bf16.mxu0 %v5050
    %5402 = vmatpush2.bf16.msra.mxu0 %v5049
    %5403 = vmatprep.subr.bf16.mxu0 %v5046
    %5404 = vmatpush2.bf16.msra.mxu0 %v5045
    %5405 = vmatprep.subr.bf16.mxu0 %v5042
    %5406 = vmatpush2.bf16.msra.mxu0 %v5041
    %5407 = vmatprep.subr.bf16.mxu0 %v5038
    %5408 = vmatpush2.bf16.msra.mxu0 %v5037
    %5409 = vmatprep.subr.bf16.mxu0 %v5034
    %5410 = vmatpush2.bf16.msra.mxu0 %v5033
    %5411 = vmatprep.subr.bf16.mxu0 %v5030
    %5412 = vmatpush2.bf16.msra.mxu0 %v5029
    %5413 = vmatprep.subr.bf16.mxu0 %v5026
    %5414 = vmatpush2.bf16.msra.mxu0 %v5025
    %5415 = vmatprep.subr.bf16.mxu0 %v5022
    %5416 = vmatpush2.bf16.msra.mxu0 %v5021
    %5417 = vmatprep.mubr.bf16.mxu0 %v5380
    %5418 = vmatmul.mubr.bf16.gmra.mxu0 %v5373
    %v5419 = vpop.f32.mrf.mxu0
    %v5420 = vadd.f32 0.0, %v5419
    %v5421 = vpop.f32.mrf.mxu0
    %v5422 = vadd.f32 0.0, %v5421
    %v5423 = vpop.f32.mrf.mxu0
    %v5424 = vpop.f32.mrf.mxu0
    %5425 = vdwg.mxu0
    %5426 = vmatprep.subr.bf16.mxu0 %v5082
    %5427 = vmatpush1.bf16.msra.mxu0 %v5081
    %5428 = vmatprep.subr.bf16.mxu0 %v5078
    %5429 = vmatpush1.bf16.msra.mxu0 %v5077
    %5430 = vmatprep.subr.bf16.mxu0 %v5074
    %5431 = vmatpush1.bf16.msra.mxu0 %v5073
    %5432 = vmatprep.subr.bf16.mxu0 %v5070
    %5433 = vmatpush1.bf16.msra.mxu0 %v5069
    %5434 = vmatprep.subr.bf16.mxu0 %v5066
    %5435 = vmatpush1.bf16.msra.mxu0 %v5065
    %5436 = vmatprep.subr.bf16.mxu0 %v5062
    %5437 = vmatpush1.bf16.msra.mxu0 %v5061
    %5438 = vmatprep.subr.bf16.mxu0 %v5058
    %5439 = vmatpush1.bf16.msra.mxu0 %v5057
    %5440 = vmatprep.subr.bf16.mxu0 %v5054
    %5441 = vmatpush1.bf16.msra.mxu0 %v5053
    %5442 = vmatprep.subr.bf16.mxu0 0
    %5443 = vmatpush2.bf16.msra.mxu0 0
    %5444 = vmatprep.subr.bf16.mxu0 0
    %5445 = vmatpush2.bf16.msra.mxu0 0
    %5446 = vmatprep.subr.bf16.mxu0 0
    %5447 = vmatpush2.bf16.msra.mxu0 0
    %5448 = vmatprep.subr.bf16.mxu0 0
    %5449 = vmatpush2.bf16.msra.mxu0 0
    %5450 = vmatprep.subr.bf16.mxu0 0
    %5451 = vmatpush2.bf16.msra.mxu0 0
    %5452 = vmatprep.subr.bf16.mxu0 0
    %5453 = vmatpush2.bf16.msra.mxu0 0
    %5454 = vmatprep.subr.bf16.mxu0 0
    %5455 = vmatpush2.bf16.msra.mxu0 0
    %5456 = vmatprep.subr.bf16.mxu0 0
    %5457 = vmatpush2.bf16.msra.mxu0 0
    %5458 = vmatprep.mubr.bf16.mxu0 0
    %5459 = vmatmul.mubr.bf16.gmra.mxu0 %v5381
    %v5460 = vpop.f32.mrf.mxu0
    %v5461 = vadd.f32 %v5420, %v5460
    %v5462 = vpop.f32.mrf.mxu0
    %v5463 = vadd.f32 %v5422, %v5462
    %v5464 = vpop.f32.mrf.mxu0
    %v5465 = vpop.f32.mrf.mxu0
    %5466 = vdwg.mxu0
    %5467 = vmatprep.subr.bf16.mxu0 %v5020
    %5468 = vmatpush1.bf16.msra.mxu0 %v5019
    %5469 = vmatprep.subr.bf16.mxu0 %v5016
    %5470 = vmatpush1.bf16.msra.mxu0 %v5015
    %5471 = vmatprep.subr.bf16.mxu0 %v5012
    %5472 = vmatpush1.bf16.msra.mxu0 %v5011
    %5473 = vmatprep.subr.bf16.mxu0 %v5008
    %5474 = vmatpush1.bf16.msra.mxu0 %v5007
    %5475 = vmatprep.subr.bf16.mxu0 %v5004
    %5476 = vmatpush1.bf16.msra.mxu0 %v5003
    %5477 = vmatprep.subr.bf16.mxu0 %v5000
    %5478 = vmatpush1.bf16.msra.mxu0 %v4999
    %5479 = vmatprep.subr.bf16.mxu0 %v4996
    %5480 = vmatpush1.bf16.msra.mxu0 %v4995
    %5481 = vmatprep.subr.bf16.mxu0 %v4992
    %5482 = vmatpush1.bf16.msra.mxu0 %v4991
    %5483 = vmatprep.subr.bf16.mxu0 %v5052
    %5484 = vmatpush2.bf16.msra.mxu0 %v5051
    %5485 = vmatprep.subr.bf16.mxu0 %v5048
    %5486 = vmatpush2.bf16.msra.mxu0 %v5047
    %5487 = vmatprep.subr.bf16.mxu0 %v5044
    %5488 = vmatpush2.bf16.msra.mxu0 %v5043
    %5489 = vmatprep.subr.bf16.mxu0 %v5040
    %5490 = vmatpush2.bf16.msra.mxu0 %v5039
    %5491 = vmatprep.subr.bf16.mxu0 %v5036
    %5492 = vmatpush2.bf16.msra.mxu0 %v5035
    %5493 = vmatprep.subr.bf16.mxu0 %v5032
    %5494 = vmatpush2.bf16.msra.mxu0 %v5031
    %5495 = vmatprep.subr.bf16.mxu0 %v5028
    %5496 = vmatpush2.bf16.msra.mxu0 %v5027
    %5497 = vmatprep.subr.bf16.mxu0 %v5024
    %5498 = vmatpush2.bf16.msra.mxu0 %v5023
    %5499 = vmatprep.mubr.bf16.mxu0 %v5380
    %5500 = vmatmul.mubr.bf16.gmra.mxu0 %v5373
    %v5501 = vpop.f32.mrf.mxu0
    %v5502 = vadd.f32 0.0, %v5501
    %v5503 = vpop.f32.mrf.mxu0
    %v5504 = vadd.f32 0.0, %v5503
    %v5505 = vpop.f32.mrf.mxu0
    %v5506 = vpop.f32.mrf.mxu0
    %5507 = vdwg.mxu0
    %5508 = vmatprep.subr.bf16.mxu0 %v5084
    %5509 = vmatpush1.bf16.msra.mxu0 %v5083
    %5510 = vmatprep.subr.bf16.mxu0 %v5080
    %5511 = vmatpush1.bf16.msra.mxu0 %v5079
    %5512 = vmatprep.subr.bf16.mxu0 %v5076
    %5513 = vmatpush1.bf16.msra.mxu0 %v5075
    %5514 = vmatprep.subr.bf16.mxu0 %v5072
    %5515 = vmatpush1.bf16.msra.mxu0 %v5071
    %5516 = vmatprep.subr.bf16.mxu0 %v5068
    %5517 = vmatpush1.bf16.msra.mxu0 %v5067
    %5518 = vmatprep.subr.bf16.mxu0 %v5064
    %5519 = vmatpush1.bf16.msra.mxu0 %v5063
    %5520 = vmatprep.subr.bf16.mxu0 %v5060
    %5521 = vmatpush1.bf16.msra.mxu0 %v5059
    %5522 = vmatprep.subr.bf16.mxu0 %v5056
    %5523 = vmatpush1.bf16.msra.mxu0 %v5055
    %5524 = vmatprep.subr.bf16.mxu0 0
    %5525 = vmatpush2.bf16.msra.mxu0 0
    %5526 = vmatprep.subr.bf16.mxu0 0
    %5527 = vmatpush2.bf16.msra.mxu0 0
    %5528 = vmatprep.subr.bf16.mxu0 0
    %5529 = vmatpush2.bf16.msra.mxu0 0
    %5530 = vmatprep.subr.bf16.mxu0 0
    %5531 = vmatpush2.bf16.msra.mxu0 0
    %5532 = vmatprep.subr.bf16.mxu0 0
    %5533 = vmatpush2.bf16.msra.mxu0 0
    %5534 = vmatprep.subr.bf16.mxu0 0
    %5535 = vmatpush2.bf16.msra.mxu0 0
    %5536 = vmatprep.subr.bf16.mxu0 0
    %5537 = vmatpush2.bf16.msra.mxu0 0
    %5538 = vmatprep.subr.bf16.mxu0 0
    %5539 = vmatpush2.bf16.msra.mxu0 0
    %5540 = vmatprep.mubr.bf16.mxu0 0
    %5541 = vmatmul.mubr.bf16.gmra.mxu0 %v5381
    %v5542 = vpop.f32.mrf.mxu0
    %v5543 = vadd.f32 %v5502, %v5542
    %v5544 = vpop.f32.mrf.mxu0
    %v5545 = vadd.f32 %v5504, %v5544
    %v5546 = vpop.f32.mrf.mxu0
    %v5547 = vpop.f32.mrf.mxu0
    %5548 = vdwg.mxu0
    %v5549 = vadd.f32 %v4600, %v5461
    %v5550 = vadd.f32 %v4601, %v5463
    %v5551 = vadd.f32 %v4602, %v5543
    %v5552 = vadd.f32 %v4603, %v5545
    %s5553 = scalar_lea.vmem [#allocation7], 3072
    %v5554 = vld [vmem:[%s5553] sm:$0xff]
    %v5555 = vld [vmem:[%s5553 + $0x8] sm:$0xff]
    %v5556 = vld [vmem:[%s5553 + $0x10] sm:$0xff]
    %v5557 = vld [vmem:[%s5553 + $0x18] sm:$0xff]
    %v5558 = vld [vmem:[%s5553 + $0x20] sm:$0xff]
    %v5559 = vld [vmem:[%s5553 + $0x28] sm:$0xff]
    %v5560 = vld [vmem:[%s5553 + $0x30] sm:$0xff]
    %v5561 = vld [vmem:[%s5553 + $0x38] sm:$0xff]
    %v5562 = vld [vmem:[%s5553 + $0x40] sm:$0xff]
    %v5563 = vld [vmem:[%s5553 + $0x48] sm:$0xff]
    %v5564 = vld [vmem:[%s5553 + $0x50] sm:$0xff]
    %v5565 = vld [vmem:[%s5553 + $0x58] sm:$0xff]
    %v5566 = vld [vmem:[%s5553 + $0x60] sm:$0xff]
    %v5567 = vld [vmem:[%s5553 + $0x68] sm:$0xff]
    %v5568 = vld [vmem:[%s5553 + $0x70] sm:$0xff]
    %v5569 = vld [vmem:[%s5553 + $0x78] sm:$0xff]
    %v5570 = vld [vmem:[%s5553 + $0x80] sm:$0xff]
    %v5571 = vld [vmem:[%s5553 + $0x88] sm:$0xff]
    %v5572 = vld [vmem:[%s5553 + $0x90] sm:$0xff]
    %v5573 = vld [vmem:[%s5553 + $0x98] sm:$0xff]
    %v5574 = vld [vmem:[%s5553 + $0xa0] sm:$0xff]
    %v5575 = vld [vmem:[%s5553 + $0xa8] sm:$0xff]
    %v5576 = vld [vmem:[%s5553 + $0xb0] sm:$0xff]
    %v5577 = vld [vmem:[%s5553 + $0xb8] sm:$0xff]
    %v5578 = vld [vmem:[%s5553 + $0xc0] sm:$0xff]
    %v5579 = vld [vmem:[%s5553 + $0xc8] sm:$0xff]
    %v5580 = vld [vmem:[%s5553 + $0xd0] sm:$0xff]
    %v5581 = vld [vmem:[%s5553 + $0xd8] sm:$0xff]
    %v5582 = vld [vmem:[%s5553 + $0xe0] sm:$0xff]
    %v5583 = vld [vmem:[%s5553 + $0xe8] sm:$0xff]
    %v5584 = vld [vmem:[%s5553 + $0xf0] sm:$0xff]
    %v5585 = vld [vmem:[%s5553 + $0xf8] sm:$0xff]
    %v5586 = vld [vmem:[%s5553 + $0x100] sm:$0xff]
    %v5587 = vld [vmem:[%s5553 + $0x108] sm:$0xff]
    %v5588 = vld [vmem:[%s5553 + $0x110] sm:$0xff]
    %v5589 = vld [vmem:[%s5553 + $0x118] sm:$0xff]
    %v5590 = vld [vmem:[%s5553 + $0x120] sm:$0xff]
    %v5591 = vld [vmem:[%s5553 + $0x128] sm:$0xff]
    %v5592 = vld [vmem:[%s5553 + $0x130] sm:$0xff]
    %v5593 = vld [vmem:[%s5553 + $0x138] sm:$0xff]
    %v5594 = vld [vmem:[%s5553 + $0x140] sm:$0xff]
    %v5595 = vld [vmem:[%s5553 + $0x148] sm:$0xff]
    %v5596 = vld [vmem:[%s5553 + $0x150] sm:$0xff]
    %v5597 = vld [vmem:[%s5553 + $0x158] sm:$0xff]
    %v5598 = vld [vmem:[%s5553 + $0x160] sm:$0xff]
    %v5599 = vld [vmem:[%s5553 + $0x168] sm:$0xff]
    %v5600 = vld [vmem:[%s5553 + $0x170] sm:$0xff]
    %v5601 = vld [vmem:[%s5553 + $0x178] sm:$0xff]
    %v5602 = vld [vmem:[%s5553 + $0x180] sm:$0xff]
    %v5603 = vld [vmem:[%s5553 + $0x188] sm:$0xff]
    %v5604 = vld [vmem:[%s5553 + $0x190] sm:$0xff]
    %v5605 = vld [vmem:[%s5553 + $0x198] sm:$0xff]
    %v5606 = vld [vmem:[%s5553 + $0x1a0] sm:$0xff]
    %v5607 = vld [vmem:[%s5553 + $0x1a8] sm:$0xff]
    %v5608 = vld [vmem:[%s5553 + $0x1b0] sm:$0xff]
    %v5609 = vld [vmem:[%s5553 + $0x1b8] sm:$0xff]
    %v5610 = vld [vmem:[%s5553 + $0x1c0] sm:$0xff]
    %v5611 = vld [vmem:[%s5553 + $0x1c8] sm:$0xff]
    %v5612 = vld [vmem:[%s5553 + $0x1d0] sm:$0xff]
    %v5613 = vld [vmem:[%s5553 + $0x1d8] sm:$0xff]
    %v5614 = vld [vmem:[%s5553 + $0x1e0] sm:$0xff]
    %v5615 = vld [vmem:[%s5553 + $0x1e8] sm:$0xff]
    %v5616 = vld [vmem:[%s5553 + $0x1f0] sm:$0xff]
    %v5617 = vld [vmem:[%s5553 + $0x1f8] sm:$0xff]
    %v5618 = vld [vmem:[%s5553 + $0x200] sm:$0xff]
    %v5619 = vld [vmem:[%s5553 + $0x208] sm:$0xff]
    %v5620 = vld [vmem:[%s5553 + $0x210] sm:$0xff]
    %v5621 = vld [vmem:[%s5553 + $0x218] sm:$0xff]
    %v5622 = vld [vmem:[%s5553 + $0x220] sm:$0xff]
    %v5623 = vld [vmem:[%s5553 + $0x228] sm:$0xff]
    %v5624 = vld [vmem:[%s5553 + $0x230] sm:$0xff]
    %v5625 = vld [vmem:[%s5553 + $0x238] sm:$0xff]
    %v5626 = vld [vmem:[%s5553 + $0x240] sm:$0xff]
    %v5627 = vld [vmem:[%s5553 + $0x248] sm:$0xff]
    %v5628 = vld [vmem:[%s5553 + $0x250] sm:$0xff]
    %v5629 = vld [vmem:[%s5553 + $0x258] sm:$0xff]
    %v5630 = vld [vmem:[%s5553 + $0x260] sm:$0xff]
    %v5631 = vld [vmem:[%s5553 + $0x268] sm:$0xff]
    %v5632 = vld [vmem:[%s5553 + $0x270] sm:$0xff]
    %v5633 = vld [vmem:[%s5553 + $0x278] sm:$0xff]
    %v5634 = vld [vmem:[%s5553 + $0x280] sm:$0xff]
    %v5635 = vld [vmem:[%s5553 + $0x288] sm:$0xff]
    %v5636 = vld [vmem:[%s5553 + $0x290] sm:$0xff]
    %v5637 = vld [vmem:[%s5553 + $0x298] sm:$0xff]
    %v5638 = vld [vmem:[%s5553 + $0x2a0] sm:$0xff]
    %v5639 = vld [vmem:[%s5553 + $0x2a8] sm:$0xff]
    %v5640 = vld [vmem:[%s5553 + $0x2b0] sm:$0xff]
    %v5641 = vld [vmem:[%s5553 + $0x2b8] sm:$0xff]
    %v5642 = vld [vmem:[%s5553 + $0x2c0] sm:$0xff]
    %v5643 = vld [vmem:[%s5553 + $0x2c8] sm:$0xff]
    %v5644 = vld [vmem:[%s5553 + $0x2d0] sm:$0xff]
    %v5645 = vld [vmem:[%s5553 + $0x2d8] sm:$0xff]
    %v5646 = vld [vmem:[%s5553 + $0x2e0] sm:$0xff]
    %v5647 = vld [vmem:[%s5553 + $0x2e8] sm:$0xff]
    %v5648 = vld [vmem:[%s5553 + $0x2f0] sm:$0xff]
    %v5649 = vld [vmem:[%s5553 + $0x2f8] sm:$0xff]
    %v5746 = vunpack.c.l.b16 %v5554
    %v5747 = vunpack.c.h.b16 %v5554
    %v5748 = vunpack.c.l.b16 %v5555
    %v5749 = vunpack.c.h.b16 %v5555
    %v5750 = vunpack.c.l.b16 %v5556
    %v5751 = vunpack.c.h.b16 %v5556
    %v5752 = vunpack.c.l.b16 %v5557
    %v5753 = vunpack.c.h.b16 %v5557
    %v5754 = vunpack.c.l.b16 %v5558
    %v5755 = vunpack.c.h.b16 %v5558
    %v5756 = vunpack.c.l.b16 %v5559
    %v5757 = vunpack.c.h.b16 %v5559
    %v5758 = vunpack.c.l.b16 %v5560
    %v5759 = vunpack.c.h.b16 %v5560
    %v5760 = vunpack.c.l.b16 %v5561
    %v5761 = vunpack.c.h.b16 %v5561
    %v5762 = vunpack.c.l.b16 %v5562
    %v5763 = vunpack.c.h.b16 %v5562
    %v5764 = vunpack.c.l.b16 %v5563
    %v5765 = vunpack.c.h.b16 %v5563
    %v5766 = vunpack.c.l.b16 %v5564
    %v5767 = vunpack.c.h.b16 %v5564
    %v5768 = vunpack.c.l.b16 %v5565
    %v5769 = vunpack.c.h.b16 %v5565
    %v5770 = vunpack.c.l.b16 %v5566
    %v5771 = vunpack.c.h.b16 %v5566
    %v5772 = vunpack.c.l.b16 %v5567
    %v5773 = vunpack.c.h.b16 %v5567
    %v5774 = vunpack.c.l.b16 %v5568
    %v5775 = vunpack.c.h.b16 %v5568
    %v5776 = vunpack.c.l.b16 %v5569
    %v5777 = vunpack.c.h.b16 %v5569
    %v5778 = vunpack.c.l.b16 %v5570
    %v5779 = vunpack.c.h.b16 %v5570
    %v5780 = vunpack.c.l.b16 %v5571
    %v5781 = vunpack.c.h.b16 %v5571
    %v5782 = vunpack.c.l.b16 %v5572
    %v5783 = vunpack.c.h.b16 %v5572
    %v5784 = vunpack.c.l.b16 %v5573
    %v5785 = vunpack.c.h.b16 %v5573
    %v5786 = vunpack.c.l.b16 %v5574
    %v5787 = vunpack.c.h.b16 %v5574
    %v5788 = vunpack.c.l.b16 %v5575
    %v5789 = vunpack.c.h.b16 %v5575
    %v5790 = vunpack.c.l.b16 %v5576
    %v5791 = vunpack.c.h.b16 %v5576
    %v5792 = vunpack.c.l.b16 %v5577
    %v5793 = vunpack.c.h.b16 %v5577
    %v5794 = vunpack.c.l.b16 %v5578
    %v5795 = vunpack.c.h.b16 %v5578
    %v5796 = vunpack.c.l.b16 %v5579
    %v5797 = vunpack.c.h.b16 %v5579
    %v5798 = vunpack.c.l.b16 %v5580
    %v5799 = vunpack.c.h.b16 %v5580
    %v5800 = vunpack.c.l.b16 %v5581
    %v5801 = vunpack.c.h.b16 %v5581
    %v5802 = vunpack.c.l.b16 %v5582
    %v5803 = vunpack.c.h.b16 %v5582
    %v5804 = vunpack.c.l.b16 %v5583
    %v5805 = vunpack.c.h.b16 %v5583
    %v5806 = vunpack.c.l.b16 %v5584
    %v5807 = vunpack.c.h.b16 %v5584
    %v5808 = vunpack.c.l.b16 %v5585
    %v5809 = vunpack.c.h.b16 %v5585
    %v5810 = vunpack.c.l.b16 %v5586
    %v5811 = vunpack.c.h.b16 %v5586
    %v5812 = vunpack.c.l.b16 %v5587
    %v5813 = vunpack.c.h.b16 %v5587
    %v5814 = vunpack.c.l.b16 %v5588
    %v5815 = vunpack.c.h.b16 %v5588
    %v5816 = vunpack.c.l.b16 %v5589
    %v5817 = vunpack.c.h.b16 %v5589
    %v5818 = vunpack.c.l.b16 %v5590
    %v5819 = vunpack.c.h.b16 %v5590
    %v5820 = vunpack.c.l.b16 %v5591
    %v5821 = vunpack.c.h.b16 %v5591
    %v5822 = vunpack.c.l.b16 %v5592
    %v5823 = vunpack.c.h.b16 %v5592
    %v5824 = vunpack.c.l.b16 %v5593
    %v5825 = vunpack.c.h.b16 %v5593
    %v5826 = vunpack.c.l.b16 %v5594
    %v5827 = vunpack.c.h.b16 %v5594
    %v5828 = vunpack.c.l.b16 %v5595
    %v5829 = vunpack.c.h.b16 %v5595
    %v5830 = vunpack.c.l.b16 %v5596
    %v5831 = vunpack.c.h.b16 %v5596
    %v5832 = vunpack.c.l.b16 %v5597
    %v5833 = vunpack.c.h.b16 %v5597
    %v5834 = vunpack.c.l.b16 %v5598
    %v5835 = vunpack.c.h.b16 %v5598
    %v5836 = vunpack.c.l.b16 %v5599
    %v5837 = vunpack.c.h.b16 %v5599
    %v5838 = vunpack.c.l.b16 %v5600
    %v5839 = vunpack.c.h.b16 %v5600
    %v5840 = vunpack.c.l.b16 %v5601
    %v5841 = vunpack.c.h.b16 %v5601
    %v5842 = vunpack.c.l.b16 %v5602
    %v5843 = vunpack.c.h.b16 %v5602
    %v5844 = vunpack.c.l.b16 %v5603
    %v5845 = vunpack.c.h.b16 %v5603
    %v5846 = vunpack.c.l.b16 %v5604
    %v5847 = vunpack.c.h.b16 %v5604
    %v5848 = vunpack.c.l.b16 %v5605
    %v5849 = vunpack.c.h.b16 %v5605
    %v5850 = vunpack.c.l.b16 %v5606
    %v5851 = vunpack.c.h.b16 %v5606
    %v5852 = vunpack.c.l.b16 %v5607
    %v5853 = vunpack.c.h.b16 %v5607
    %v5854 = vunpack.c.l.b16 %v5608
    %v5855 = vunpack.c.h.b16 %v5608
    %v5856 = vunpack.c.l.b16 %v5609
    %v5857 = vunpack.c.h.b16 %v5609
    %v5858 = vunpack.c.l.b16 %v5610
    %v5859 = vunpack.c.h.b16 %v5610
    %v5860 = vunpack.c.l.b16 %v5611
    %v5861 = vunpack.c.h.b16 %v5611
    %v5862 = vunpack.c.l.b16 %v5612
    %v5863 = vunpack.c.h.b16 %v5612
    %v5864 = vunpack.c.l.b16 %v5613
    %v5865 = vunpack.c.h.b16 %v5613
    %v5866 = vunpack.c.l.b16 %v5614
    %v5867 = vunpack.c.h.b16 %v5614
    %v5868 = vunpack.c.l.b16 %v5615
    %v5869 = vunpack.c.h.b16 %v5615
    %v5870 = vunpack.c.l.b16 %v5616
    %v5871 = vunpack.c.h.b16 %v5616
    %v5872 = vunpack.c.l.b16 %v5617
    %v5873 = vunpack.c.h.b16 %v5617
    %v5874 = vunpack.c.l.b16 %v5618
    %v5875 = vunpack.c.h.b16 %v5618
    %v5876 = vunpack.c.l.b16 %v5619
    %v5877 = vunpack.c.h.b16 %v5619
    %v5878 = vunpack.c.l.b16 %v5620
    %v5879 = vunpack.c.h.b16 %v5620
    %v5880 = vunpack.c.l.b16 %v5621
    %v5881 = vunpack.c.h.b16 %v5621
    %v5882 = vunpack.c.l.b16 %v5622
    %v5883 = vunpack.c.h.b16 %v5622
    %v5884 = vunpack.c.l.b16 %v5623
    %v5885 = vunpack.c.h.b16 %v5623
    %v5886 = vunpack.c.l.b16 %v5624
    %v5887 = vunpack.c.h.b16 %v5624
    %v5888 = vunpack.c.l.b16 %v5625
    %v5889 = vunpack.c.h.b16 %v5625
    %v5890 = vunpack.c.l.b16 %v5626
    %v5891 = vunpack.c.h.b16 %v5626
    %v5892 = vunpack.c.l.b16 %v5627
    %v5893 = vunpack.c.h.b16 %v5627
    %v5894 = vunpack.c.l.b16 %v5628
    %v5895 = vunpack.c.h.b16 %v5628
    %v5896 = vunpack.c.l.b16 %v5629
    %v5897 = vunpack.c.h.b16 %v5629
    %v5898 = vunpack.c.l.b16 %v5630
    %v5899 = vunpack.c.h.b16 %v5630
    %v5900 = vunpack.c.l.b16 %v5631
    %v5901 = vunpack.c.h.b16 %v5631
    %v5902 = vunpack.c.l.b16 %v5632
    %v5903 = vunpack.c.h.b16 %v5632
    %v5904 = vunpack.c.l.b16 %v5633
    %v5905 = vunpack.c.h.b16 %v5633
    %v5906 = vunpack.c.l.b16 %v5634
    %v5907 = vunpack.c.h.b16 %v5634
    %v5908 = vunpack.c.l.b16 %v5635
    %v5909 = vunpack.c.h.b16 %v5635
    %v5910 = vunpack.c.l.b16 %v5636
    %v5911 = vunpack.c.h.b16 %v5636
    %v5912 = vunpack.c.l.b16 %v5637
    %v5913 = vunpack.c.h.b16 %v5637
    %v5914 = vunpack.c.l.b16 %v5638
    %v5915 = vunpack.c.h.b16 %v5638
    %v5916 = vunpack.c.l.b16 %v5639
    %v5917 = vunpack.c.h.b16 %v5639
    %v5918 = vunpack.c.l.b16 %v5640
    %v5919 = vunpack.c.h.b16 %v5640
    %v5920 = vunpack.c.l.b16 %v5641
    %v5921 = vunpack.c.h.b16 %v5641
    %v5922 = vunpack.c.l.b16 %v5642
    %v5923 = vunpack.c.h.b16 %v5642
    %v5924 = vunpack.c.l.b16 %v5643
    %v5925 = vunpack.c.h.b16 %v5643
    %v5926 = vunpack.c.l.b16 %v5644
    %v5927 = vunpack.c.h.b16 %v5644
    %v5928 = vunpack.c.l.b16 %v5645
    %v5929 = vunpack.c.h.b16 %v5645
    %v5930 = vunpack.c.l.b16 %v5646
    %v5931 = vunpack.c.h.b16 %v5646
    %v5932 = vunpack.c.l.b16 %v5647
    %v5933 = vunpack.c.h.b16 %v5647
    %v5934 = vunpack.c.l.b16 %v5648
    %v5935 = vunpack.c.h.b16 %v5648
    %v5936 = vunpack.c.l.b16 %v5649
    %v5937 = vunpack.c.h.b16 %v5649
    %v5938 = vpack.c.b16 %v5750, %v5746
    %v5939 = vpack.c.b16 %v5751, %v5747
    %v5940 = vpack.c.b16 %v5752, %v5748
    %v5941 = vpack.c.b16 %v5753, %v5749
    %v5942 = vpack.c.b16 %v5758, %v5754
    %v5943 = vpack.c.b16 %v5759, %v5755
    %v5944 = vpack.c.b16 %v5760, %v5756
    %v5945 = vpack.c.b16 %v5761, %v5757
    %v5946 = vpack.c.b16 %v5766, %v5762
    %v5947 = vpack.c.b16 %v5767, %v5763
    %v5948 = vpack.c.b16 %v5768, %v5764
    %v5949 = vpack.c.b16 %v5769, %v5765
    %v5950 = vpack.c.b16 %v5774, %v5770
    %v5951 = vpack.c.b16 %v5775, %v5771
    %v5952 = vpack.c.b16 %v5776, %v5772
    %v5953 = vpack.c.b16 %v5777, %v5773
    %v5954 = vpack.c.b16 %v5782, %v5778
    %v5955 = vpack.c.b16 %v5783, %v5779
    %v5956 = vpack.c.b16 %v5784, %v5780
    %v5957 = vpack.c.b16 %v5785, %v5781
    %v5958 = vpack.c.b16 %v5790, %v5786
    %v5959 = vpack.c.b16 %v5791, %v5787
    %v5960 = vpack.c.b16 %v5792, %v5788
    %v5961 = vpack.c.b16 %v5793, %v5789
    %v5962 = vpack.c.b16 %v5798, %v5794
    %v5963 = vpack.c.b16 %v5799, %v5795
    %v5964 = vpack.c.b16 %v5800, %v5796
    %v5965 = vpack.c.b16 %v5801, %v5797
    %v5966 = vpack.c.b16 %v5806, %v5802
    %v5967 = vpack.c.b16 %v5807, %v5803
    %v5968 = vpack.c.b16 %v5808, %v5804
    %v5969 = vpack.c.b16 %v5809, %v5805
    %v5970 = vpack.c.b16 %v5814, %v5810
    %v5971 = vpack.c.b16 %v5815, %v5811
    %v5972 = vpack.c.b16 %v5816, %v5812
    %v5973 = vpack.c.b16 %v5817, %v5813
    %v5974 = vpack.c.b16 %v5822, %v5818
    %v5975 = vpack.c.b16 %v5823, %v5819
    %v5976 = vpack.c.b16 %v5824, %v5820
    %v5977 = vpack.c.b16 %v5825, %v5821
    %v5978 = vpack.c.b16 %v5830, %v5826
    %v5979 = vpack.c.b16 %v5831, %v5827
    %v5980 = vpack.c.b16 %v5832, %v5828
    %v5981 = vpack.c.b16 %v5833, %v5829
    %v5982 = vpack.c.b16 %v5838, %v5834
    %v5983 = vpack.c.b16 %v5839, %v5835
    %v5984 = vpack.c.b16 %v5840, %v5836
    %v5985 = vpack.c.b16 %v5841, %v5837
    %v5986 = vpack.c.b16 %v5846, %v5842
    %v5987 = vpack.c.b16 %v5847, %v5843
    %v5988 = vpack.c.b16 %v5848, %v5844
    %v5989 = vpack.c.b16 %v5849, %v5845
    %v5990 = vpack.c.b16 %v5854, %v5850
    %v5991 = vpack.c.b16 %v5855, %v5851
    %v5992 = vpack.c.b16 %v5856, %v5852
    %v5993 = vpack.c.b16 %v5857, %v5853
    %v5994 = vpack.c.b16 %v5862, %v5858
    %v5995 = vpack.c.b16 %v5863, %v5859
    %v5996 = vpack.c.b16 %v5864, %v5860
    %v5997 = vpack.c.b16 %v5865, %v5861
    %v5998 = vpack.c.b16 %v5870, %v5866
    %v5999 = vpack.c.b16 %v5871, %v5867
    %v6000 = vpack.c.b16 %v5872, %v5868
    %v6001 = vpack.c.b16 %v5873, %v5869
    %v6002 = vpack.c.b16 %v5878, %v5874
    %v6003 = vpack.c.b16 %v5879, %v5875
    %v6004 = vpack.c.b16 %v5880, %v5876
    %v6005 = vpack.c.b16 %v5881, %v5877
    %v6006 = vpack.c.b16 %v5886, %v5882
    %v6007 = vpack.c.b16 %v5887, %v5883
    %v6008 = vpack.c.b16 %v5888, %v5884
    %v6009 = vpack.c.b16 %v5889, %v5885
    %v6010 = vpack.c.b16 %v5894, %v5890
    %v6011 = vpack.c.b16 %v5895, %v5891
    %v6012 = vpack.c.b16 %v5896, %v5892
    %v6013 = vpack.c.b16 %v5897, %v5893
    %v6014 = vpack.c.b16 %v5902, %v5898
    %v6015 = vpack.c.b16 %v5903, %v5899
    %v6016 = vpack.c.b16 %v5904, %v5900
    %v6017 = vpack.c.b16 %v5905, %v5901
    %v6018 = vpack.c.b16 %v5910, %v5906
    %v6019 = vpack.c.b16 %v5911, %v5907
    %v6020 = vpack.c.b16 %v5912, %v5908
    %v6021 = vpack.c.b16 %v5913, %v5909
    %v6022 = vpack.c.b16 %v5918, %v5914
    %v6023 = vpack.c.b16 %v5919, %v5915
    %v6024 = vpack.c.b16 %v5920, %v5916
    %v6025 = vpack.c.b16 %v5921, %v5917
    %v6026 = vpack.c.b16 %v5926, %v5922
    %v6027 = vpack.c.b16 %v5927, %v5923
    %v6028 = vpack.c.b16 %v5928, %v5924
    %v6029 = vpack.c.b16 %v5929, %v5925
    %v6030 = vpack.c.b16 %v5934, %v5930
    %v6031 = vpack.c.b16 %v5935, %v5931
    %v6032 = vpack.c.b16 %v5936, %v5932
    %v6033 = vpack.c.b16 %v5937, %v5933
    %6130 = vmatprep.subr.bf16.mxu0 %v5967
    %6131 = vmatpush1.bf16.msra.mxu0 %v5966
    %6132 = vmatprep.subr.bf16.mxu0 %v5963
    %6133 = vmatpush1.bf16.msra.mxu0 %v5962
    %6134 = vmatprep.subr.bf16.mxu0 %v5959
    %6135 = vmatpush1.bf16.msra.mxu0 %v5958
    %6136 = vmatprep.subr.bf16.mxu0 %v5955
    %6137 = vmatpush1.bf16.msra.mxu0 %v5954
    %6138 = vmatprep.subr.bf16.mxu0 %v5951
    %6139 = vmatpush1.bf16.msra.mxu0 %v5950
    %6140 = vmatprep.subr.bf16.mxu0 %v5947
    %6141 = vmatpush1.bf16.msra.mxu0 %v5946
    %6142 = vmatprep.subr.bf16.mxu0 %v5943
    %6143 = vmatpush1.bf16.msra.mxu0 %v5942
    %6144 = vmatprep.subr.bf16.mxu0 %v5939
    %6145 = vmatpush1.bf16.msra.mxu0 %v5938
    %6146 = vmatprep.subr.bf16.mxu0 %v5999
    %6147 = vmatpush2.bf16.msra.mxu0 %v5998
    %6148 = vmatprep.subr.bf16.mxu0 %v5995
    %6149 = vmatpush2.bf16.msra.mxu0 %v5994
    %6150 = vmatprep.subr.bf16.mxu0 %v5991
    %6151 = vmatpush2.bf16.msra.mxu0 %v5990
    %6152 = vmatprep.subr.bf16.mxu0 %v5987
    %6153 = vmatpush2.bf16.msra.mxu0 %v5986
    %6154 = vmatprep.subr.bf16.mxu0 %v5983
    %6155 = vmatpush2.bf16.msra.mxu0 %v5982
    %6156 = vmatprep.subr.bf16.mxu0 %v5979
    %6157 = vmatpush2.bf16.msra.mxu0 %v5978
    %6158 = vmatprep.subr.bf16.mxu0 %v5975
    %6159 = vmatpush2.bf16.msra.mxu0 %v5974
    %6160 = vmatprep.subr.bf16.mxu0 %v5971
    %6161 = vmatpush2.bf16.msra.mxu0 %v5970
    %6162 = vmatprep.mubr.bf16.mxu0 %v5380
    %6163 = vmatmul.mubr.bf16.gmra.mxu0 %v5373
    %v6164 = vpop.f32.mrf.mxu0
    %v6165 = vadd.f32 0.0, %v6164
    %v6166 = vpop.f32.mrf.mxu0
    %v6167 = vadd.f32 0.0, %v6166
    %v6168 = vpop.f32.mrf.mxu0
    %v6169 = vpop.f32.mrf.mxu0
    %6170 = vdwg.mxu0
    %6171 = vmatprep.subr.bf16.mxu0 %v6031
    %6172 = vmatpush1.bf16.msra.mxu0 %v6030
    %6173 = vmatprep.subr.bf16.mxu0 %v6027
    %6174 = vmatpush1.bf16.msra.mxu0 %v6026
    %6175 = vmatprep.subr.bf16.mxu0 %v6023
    %6176 = vmatpush1.bf16.msra.mxu0 %v6022
    %6177 = vmatprep.subr.bf16.mxu0 %v6019
    %6178 = vmatpush1.bf16.msra.mxu0 %v6018
    %6179 = vmatprep.subr.bf16.mxu0 %v6015
    %6180 = vmatpush1.bf16.msra.mxu0 %v6014
    %6181 = vmatprep.subr.bf16.mxu0 %v6011
    %6182 = vmatpush1.bf16.msra.mxu0 %v6010
    %6183 = vmatprep.subr.bf16.mxu0 %v6007
    %6184 = vmatpush1.bf16.msra.mxu0 %v6006
    %6185 = vmatprep.subr.bf16.mxu0 %v6003
    %6186 = vmatpush1.bf16.msra.mxu0 %v6002
    %6187 = vmatprep.subr.bf16.mxu0 0
    %6188 = vmatpush2.bf16.msra.mxu0 0
    %6189 = vmatprep.subr.bf16.mxu0 0
    %6190 = vmatpush2.bf16.msra.mxu0 0
    %6191 = vmatprep.subr.bf16.mxu0 0
    %6192 = vmatpush2.bf16.msra.mxu0 0
    %6193 = vmatprep.subr.bf16.mxu0 0
    %6194 = vmatpush2.bf16.msra.mxu0 0
    %6195 = vmatprep.subr.bf16.mxu0 0
    %6196 = vmatpush2.bf16.msra.mxu0 0
    %6197 = vmatprep.subr.bf16.mxu0 0
    %6198 = vmatpush2.bf16.msra.mxu0 0
    %6199 = vmatprep.subr.bf16.mxu0 0
    %6200 = vmatpush2.bf16.msra.mxu0 0
    %6201 = vmatprep.subr.bf16.mxu0 0
    %6202 = vmatpush2.bf16.msra.mxu0 0
    %6203 = vmatprep.mubr.bf16.mxu0 0
    %6204 = vmatmul.mubr.bf16.gmra.mxu0 %v5381
    %v6205 = vpop.f32.mrf.mxu0
    %v6206 = vadd.f32 %v6165, %v6205
    %v6207 = vpop.f32.mrf.mxu0
    %v6208 = vadd.f32 %v6167, %v6207
    %v6209 = vpop.f32.mrf.mxu0
    %v6210 = vpop.f32.mrf.mxu0
    %6211 = vdwg.mxu0
    %6212 = vmatprep.subr.bf16.mxu0 %v5969
    %6213 = vmatpush1.bf16.msra.mxu0 %v5968
    %6214 = vmatprep.subr.bf16.mxu0 %v5965
    %6215 = vmatpush1.bf16.msra.mxu0 %v5964
    %6216 = vmatprep.subr.bf16.mxu0 %v5961
    %6217 = vmatpush1.bf16.msra.mxu0 %v5960
    %6218 = vmatprep.subr.bf16.mxu0 %v5957
    %6219 = vmatpush1.bf16.msra.mxu0 %v5956
    %6220 = vmatprep.subr.bf16.mxu0 %v5953
    %6221 = vmatpush1.bf16.msra.mxu0 %v5952
    %6222 = vmatprep.subr.bf16.mxu0 %v5949
    %6223 = vmatpush1.bf16.msra.mxu0 %v5948
    %6224 = vmatprep.subr.bf16.mxu0 %v5945
    %6225 = vmatpush1.bf16.msra.mxu0 %v5944
    %6226 = vmatprep.subr.bf16.mxu0 %v5941
    %6227 = vmatpush1.bf16.msra.mxu0 %v5940
    %6228 = vmatprep.subr.bf16.mxu0 %v6001
    %6229 = vmatpush2.bf16.msra.mxu0 %v6000
    %6230 = vmatprep.subr.bf16.mxu0 %v5997
    %6231 = vmatpush2.bf16.msra.mxu0 %v5996
    %6232 = vmatprep.subr.bf16.mxu0 %v5993
    %6233 = vmatpush2.bf16.msra.mxu0 %v5992
    %6234 = vmatprep.subr.bf16.mxu0 %v5989
    %6235 = vmatpush2.bf16.msra.mxu0 %v5988
    %6236 = vmatprep.subr.bf16.mxu0 %v5985
    %6237 = vmatpush2.bf16.msra.mxu0 %v5984
    %6238 = vmatprep.subr.bf16.mxu0 %v5981
    %6239 = vmatpush2.bf16.msra.mxu0 %v5980
    %6240 = vmatprep.subr.bf16.mxu0 %v5977
    %6241 = vmatpush2.bf16.msra.mxu0 %v5976
    %6242 = vmatprep.subr.bf16.mxu0 %v5973
    %6243 = vmatpush2.bf16.msra.mxu0 %v5972
    %6244 = vmatprep.mubr.bf16.mxu0 %v5380
    %6245 = vmatmul.mubr.bf16.gmra.mxu0 %v5373
    %v6246 = vpop.f32.mrf.mxu0
    %v6247 = vadd.f32 0.0, %v6246
    %v6248 = vpop.f32.mrf.mxu0
    %v6249 = vadd.f32 0.0, %v6248
    %v6250 = vpop.f32.mrf.mxu0
    %v6251 = vpop.f32.mrf.mxu0
    %6252 = vdwg.mxu0
    %6253 = vmatprep.subr.bf16.mxu0 %v6033
    %6254 = vmatpush1.bf16.msra.mxu0 %v6032
    %6255 = vmatprep.subr.bf16.mxu0 %v6029
    %6256 = vmatpush1.bf16.msra.mxu0 %v6028
    %6257 = vmatprep.subr.bf16.mxu0 %v6025
    %6258 = vmatpush1.bf16.msra.mxu0 %v6024
    %6259 = vmatprep.subr.bf16.mxu0 %v6021
    %6260 = vmatpush1.bf16.msra.mxu0 %v6020
    %6261 = vmatprep.subr.bf16.mxu0 %v6017
    %6262 = vmatpush1.bf16.msra.mxu0 %v6016
    %6263 = vmatprep.subr.bf16.mxu0 %v6013
    %6264 = vmatpush1.bf16.msra.mxu0 %v6012
    %6265 = vmatprep.subr.bf16.mxu0 %v6009
    %6266 = vmatpush1.bf16.msra.mxu0 %v6008
    %6267 = vmatprep.subr.bf16.mxu0 %v6005
    %6268 = vmatpush1.bf16.msra.mxu0 %v6004
    %6269 = vmatprep.subr.bf16.mxu0 0
    %6270 = vmatpush2.bf16.msra.mxu0 0
    %6271 = vmatprep.subr.bf16.mxu0 0
    %6272 = vmatpush2.bf16.msra.mxu0 0
    %6273 = vmatprep.subr.bf16.mxu0 0
    %6274 = vmatpush2.bf16.msra.mxu0 0
    %6275 = vmatprep.subr.bf16.mxu0 0
    %6276 = vmatpush2.bf16.msra.mxu0 0
    %6277 = vmatprep.subr.bf16.mxu0 0
    %6278 = vmatpush2.bf16.msra.mxu0 0
    %6279 = vmatprep.subr.bf16.mxu0 0
    %6280 = vmatpush2.bf16.msra.mxu0 0
    %6281 = vmatprep.subr.bf16.mxu0 0
    %6282 = vmatpush2.bf16.msra.mxu0 0
    %6283 = vmatprep.subr.bf16.mxu0 0
    %6284 = vmatpush2.bf16.msra.mxu0 0
    %6285 = vmatprep.mubr.bf16.mxu0 0
    %6286 = vmatmul.mubr.bf16.gmra.mxu0 %v5381
    %v6287 = vpop.f32.mrf.mxu0
    %v6288 = vadd.f32 %v6247, %v6287
    %v6289 = vpop.f32.mrf.mxu0
    %v6290 = vadd.f32 %v6249, %v6289
    %v6291 = vpop.f32.mrf.mxu0
    %v6292 = vpop.f32.mrf.mxu0
    %6293 = vdwg.mxu0
    %v6294 = vadd.f32 %v5345, %v6206
    %v6295 = vadd.f32 %v5346, %v6208
    %v6296 = vadd.f32 %v5347, %v6288
    %v6297 = vadd.f32 %v5348, %v6290
    %v6298 = vcombine.low %v1645, %v1653
    %v6299 = vcombine.low %v1638, %v1652
    %v6301 = vunpack.c.l.s4 1966171168
    %v6302 = vunpack.c.0.s8 %v6301
    %v6303 = vlaneseq
    %v6304 = vshrl.u32 %v6303, 7
    %v6305 = vsub.s32 %v6302, %v6304
    %v6306 = vrot.slane %v6298, %v6305
    %v6308 = vunpack.c.l.s4 1966171168
    %v6309 = vunpack.c.0.s8 %v6308
    %v6310 = vlaneseq
    %v6311 = vshrl.u32 %v6310, 7
    %v6312 = vsub.s32 %v6309, %v6311
    %v6313 = vrot.slane %v6299, %v6312
    %v6314 = vcombine.low %v6306, %v6313
    %v6315 = vcombine.high %v6306, %v6313
    %v6317 = vunpack.c.l.s4 1966171168
    %v6318 = vunpack.c.0.s8 %v6317
    %v6319 = vlaneseq
    %v6320 = vshrl.u32 %v6319, 7
    %v6321 = vsub.s32 %v6318, %v6320
    %v6322 = vrot.slane %v6314, %v6321
    %v6324 = vunpack.c.l.s4 1966171168
    %v6325 = vunpack.c.0.s8 %v6324
    %v6326 = vlaneseq
    %v6327 = vshrl.u32 %v6326, 7
    %v6328 = vsub.s32 %v6325, %v6327
    %v6329 = vrot.slane %v6315, %v6328
    %v6330 = vcombine.high %v6322, %v6322
    %6334 = vmatprep.subr.bf16.mxu0 %v5967
    %6335 = vmatpush1.bf16.msra.mxu0 %v5966
    %6336 = vmatprep.subr.bf16.mxu0 %v5963
    %6337 = vmatpush1.bf16.msra.mxu0 %v5962
    %6338 = vmatprep.subr.bf16.mxu0 %v5959
    %6339 = vmatpush1.bf16.msra.mxu0 %v5958
    %6340 = vmatprep.subr.bf16.mxu0 %v5955
    %6341 = vmatpush1.bf16.msra.mxu0 %v5954
    %6342 = vmatprep.subr.bf16.mxu0 %v5951
    %6343 = vmatpush1.bf16.msra.mxu0 %v5950
    %6344 = vmatprep.subr.bf16.mxu0 %v5947
    %6345 = vmatpush1.bf16.msra.mxu0 %v5946
    %6346 = vmatprep.subr.bf16.mxu0 %v5943
    %6347 = vmatpush1.bf16.msra.mxu0 %v5942
    %6348 = vmatprep.subr.bf16.mxu0 %v5939
    %6349 = vmatpush1.bf16.msra.mxu0 %v5938
    %6350 = vmatprep.subr.bf16.mxu0 %v5999
    %6351 = vmatpush2.bf16.msra.mxu0 %v5998
    %6352 = vmatprep.subr.bf16.mxu0 %v5995
    %6353 = vmatpush2.bf16.msra.mxu0 %v5994
    %6354 = vmatprep.subr.bf16.mxu0 %v5991
    %6355 = vmatpush2.bf16.msra.mxu0 %v5990
    %6356 = vmatprep.subr.bf16.mxu0 %v5987
    %6357 = vmatpush2.bf16.msra.mxu0 %v5986
    %6358 = vmatprep.subr.bf16.mxu0 %v5983
    %6359 = vmatpush2.bf16.msra.mxu0 %v5982
    %6360 = vmatprep.subr.bf16.mxu0 %v5979
    %6361 = vmatpush2.bf16.msra.mxu0 %v5978
    %6362 = vmatprep.subr.bf16.mxu0 %v5975
    %6363 = vmatpush2.bf16.msra.mxu0 %v5974
    %6364 = vmatprep.subr.bf16.mxu0 %v5971
    %6365 = vmatpush2.bf16.msra.mxu0 %v5970
    %6366 = vmatprep.mubr.bf16.mxu0 %v6329
    %6367 = vmatmul.mubr.bf16.gmra.mxu0 %v6322
    %v6368 = vpop.f32.mrf.mxu0
    %v6369 = vadd.f32 0.0, %v6368
    %v6370 = vpop.f32.mrf.mxu0
    %v6371 = vadd.f32 0.0, %v6370
    %v6372 = vpop.f32.mrf.mxu0
    %v6373 = vpop.f32.mrf.mxu0
    %6374 = vdwg.mxu0
    %6375 = vmatprep.subr.bf16.mxu0 %v6031
    %6376 = vmatpush1.bf16.msra.mxu0 %v6030
    %6377 = vmatprep.subr.bf16.mxu0 %v6027
    %6378 = vmatpush1.bf16.msra.mxu0 %v6026
    %6379 = vmatprep.subr.bf16.mxu0 %v6023
    %6380 = vmatpush1.bf16.msra.mxu0 %v6022
    %6381 = vmatprep.subr.bf16.mxu0 %v6019
    %6382 = vmatpush1.bf16.msra.mxu0 %v6018
    %6383 = vmatprep.subr.bf16.mxu0 %v6015
    %6384 = vmatpush1.bf16.msra.mxu0 %v6014
    %6385 = vmatprep.subr.bf16.mxu0 %v6011
    %6386 = vmatpush1.bf16.msra.mxu0 %v6010
    %6387 = vmatprep.subr.bf16.mxu0 %v6007
    %6388 = vmatpush1.bf16.msra.mxu0 %v6006
    %6389 = vmatprep.subr.bf16.mxu0 %v6003
    %6390 = vmatpush1.bf16.msra.mxu0 %v6002
    %6391 = vmatprep.subr.bf16.mxu0 0
    %6392 = vmatpush2.bf16.msra.mxu0 0
    %6393 = vmatprep.subr.bf16.mxu0 0
    %6394 = vmatpush2.bf16.msra.mxu0 0
    %6395 = vmatprep.subr.bf16.mxu0 0
    %6396 = vmatpush2.bf16.msra.mxu0 0
    %6397 = vmatprep.subr.bf16.mxu0 0
    %6398 = vmatpush2.bf16.msra.mxu0 0
    %6399 = vmatprep.subr.bf16.mxu0 0
    %6400 = vmatpush2.bf16.msra.mxu0 0
    %6401 = vmatprep.subr.bf16.mxu0 0
    %6402 = vmatpush2.bf16.msra.mxu0 0
    %6403 = vmatprep.subr.bf16.mxu0 0
    %6404 = vmatpush2.bf16.msra.mxu0 0
    %6405 = vmatprep.subr.bf16.mxu0 0
    %6406 = vmatpush2.bf16.msra.mxu0 0
    %6407 = vmatprep.mubr.bf16.mxu0 0
    %6408 = vmatmul.mubr.bf16.gmra.mxu0 %v6330
    %v6409 = vpop.f32.mrf.mxu0
    %v6410 = vadd.f32 %v6369, %v6409
    %v6411 = vpop.f32.mrf.mxu0
    %v6412 = vadd.f32 %v6371, %v6411
    %v6413 = vpop.f32.mrf.mxu0
    %v6414 = vpop.f32.mrf.mxu0
    %6415 = vdwg.mxu0
    %6416 = vmatprep.subr.bf16.mxu0 %v5969
    %6417 = vmatpush1.bf16.msra.mxu0 %v5968
    %6418 = vmatprep.subr.bf16.mxu0 %v5965
    %6419 = vmatpush1.bf16.msra.mxu0 %v5964
    %6420 = vmatprep.subr.bf16.mxu0 %v5961
    %6421 = vmatpush1.bf16.msra.mxu0 %v5960
    %6422 = vmatprep.subr.bf16.mxu0 %v5957
    %6423 = vmatpush1.bf16.msra.mxu0 %v5956
    %6424 = vmatprep.subr.bf16.mxu0 %v5953
    %6425 = vmatpush1.bf16.msra.mxu0 %v5952
    %6426 = vmatprep.subr.bf16.mxu0 %v5949
    %6427 = vmatpush1.bf16.msra.mxu0 %v5948
    %6428 = vmatprep.subr.bf16.mxu0 %v5945
    %6429 = vmatpush1.bf16.msra.mxu0 %v5944
    %6430 = vmatprep.subr.bf16.mxu0 %v5941
    %6431 = vmatpush1.bf16.msra.mxu0 %v5940
    %6432 = vmatprep.subr.bf16.mxu0 %v6001
    %6433 = vmatpush2.bf16.msra.mxu0 %v6000
    %6434 = vmatprep.subr.bf16.mxu0 %v5997
    %6435 = vmatpush2.bf16.msra.mxu0 %v5996
    %6436 = vmatprep.subr.bf16.mxu0 %v5993
    %6437 = vmatpush2.bf16.msra.mxu0 %v5992
    %6438 = vmatprep.subr.bf16.mxu0 %v5989
    %6439 = vmatpush2.bf16.msra.mxu0 %v5988
    %6440 = vmatprep.subr.bf16.mxu0 %v5985
    %6441 = vmatpush2.bf16.msra.mxu0 %v5984
    %6442 = vmatprep.subr.bf16.mxu0 %v5981
    %6443 = vmatpush2.bf16.msra.mxu0 %v5980
    %6444 = vmatprep.subr.bf16.mxu0 %v5977
    %6445 = vmatpush2.bf16.msra.mxu0 %v5976
    %6446 = vmatprep.subr.bf16.mxu0 %v5973
    %6447 = vmatpush2.bf16.msra.mxu0 %v5972
    %6448 = vmatprep.mubr.bf16.mxu0 %v6329
    %6449 = vmatmul.mubr.bf16.gmra.mxu0 %v6322
    %v6450 = vpop.f32.mrf.mxu0
    %v6451 = vadd.f32 0.0, %v6450
    %v6452 = vpop.f32.mrf.mxu0
    %v6453 = vadd.f32 0.0, %v6452
    %v6454 = vpop.f32.mrf.mxu0
    %v6455 = vpop.f32.mrf.mxu0
    %6456 = vdwg.mxu0
    %6457 = vmatprep.subr.bf16.mxu0 %v6033
    %6458 = vmatpush1.bf16.msra.mxu0 %v6032
    %6459 = vmatprep.subr.bf16.mxu0 %v6029
    %6460 = vmatpush1.bf16.msra.mxu0 %v6028
    %6461 = vmatprep.subr.bf16.mxu0 %v6025
    %6462 = vmatpush1.bf16.msra.mxu0 %v6024
    %6463 = vmatprep.subr.bf16.mxu0 %v6021
    %6464 = vmatpush1.bf16.msra.mxu0 %v6020
    %6465 = vmatprep.subr.bf16.mxu0 %v6017
    %6466 = vmatpush1.bf16.msra.mxu0 %v6016
    %6467 = vmatprep.subr.bf16.mxu0 %v6013
    %6468 = vmatpush1.bf16.msra.mxu0 %v6012
    %6469 = vmatprep.subr.bf16.mxu0 %v6009
    %6470 = vmatpush1.bf16.msra.mxu0 %v6008
    %6471 = vmatprep.subr.bf16.mxu0 %v6005
    %6472 = vmatpush1.bf16.msra.mxu0 %v6004
    %6473 = vmatprep.subr.bf16.mxu0 0
    %6474 = vmatpush2.bf16.msra.mxu0 0
    %6475 = vmatprep.subr.bf16.mxu0 0
    %6476 = vmatpush2.bf16.msra.mxu0 0
    %6477 = vmatprep.subr.bf16.mxu0 0
    %6478 = vmatpush2.bf16.msra.mxu0 0
    %6479 = vmatprep.subr.bf16.mxu0 0
    %6480 = vmatpush2.bf16.msra.mxu0 0
    %6481 = vmatprep.subr.bf16.mxu0 0
    %6482 = vmatpush2.bf16.msra.mxu0 0
    %6483 = vmatprep.subr.bf16.mxu0 0
    %6484 = vmatpush2.bf16.msra.mxu0 0
    %6485 = vmatprep.subr.bf16.mxu0 0
    %6486 = vmatpush2.bf16.msra.mxu0 0
    %6487 = vmatprep.subr.bf16.mxu0 0
    %6488 = vmatpush2.bf16.msra.mxu0 0
    %6489 = vmatprep.mubr.bf16.mxu0 0
    %6490 = vmatmul.mubr.bf16.gmra.mxu0 %v6330
    %v6491 = vpop.f32.mrf.mxu0
    %v6492 = vadd.f32 %v6451, %v6491
    %v6493 = vpop.f32.mrf.mxu0
    %v6494 = vadd.f32 %v6453, %v6493
    %v6495 = vpop.f32.mrf.mxu0
    %v6496 = vpop.f32.mrf.mxu0
    %6497 = vdwg.mxu0
    %v6498 = vadd.f32 %v5549, %v6410
    %v6499 = vadd.f32 %v5550, %v6412
    %v6500 = vadd.f32 %v5551, %v6492
    %v6501 = vadd.f32 %v5552, %v6494
    %v6502 = vmax.f32 %v6294, %v6498
    %v6503 = vmax.f32 %v6295, %v6499
    %v6504 = vmax.f32 %v6296, %v6500
    %v6505 = vmax.f32 %v6297, %v6501
    %v6506 = vmax.f32 %v6502, %v6504
    %v6507 = vmax.f32 %v6503, %v6505
    %v6508 = vld [vmem:[#allocation8] sm:$0x3]
    %v6510 = vlaneseq
    %v6511 = vshrl.u32 %v6510, 7
    %v6512 = vsub.s32 0, %v6511
    %v6513 = vrot.slane %v6508, %v6512
    %v6514 = vlaneseq
    %v6515 = vshrl.u32 %v6514, 7
    %v6516 = vsub.s32 1, %v6515
    %v6517 = vrot.slane %v6508, %v6516
    %v6520 = vadd.f32 %v6506, %v6513
    %v6521 = vadd.f32 %v6507, %v6517
    %v6522 = vmax.f32 %v6520, 0.0
    %v6523 = vmax.f32 %v6521, 0.0
    %v6526 = vcombine.low %v6522, %v6523
    %v6527 = vcombine.high %v6522, %v6523
    %v6530 = vcombine.high %v6526, %v6526
    %v6531 = vcombine.high %v6527, %v6527
    %v6534 = vpack.c.bf16 %v6526, %v6526
    %v6535 = vpack.c.bf16 %v6530, %v6530
    %v6536 = vpack.c.bf16 %v6527, %v6527
    %v6537 = vpack.c.bf16 %v6531, %v6531
    %v6538 = vld [vmem:[#allocation10] sm:$0xff]
    %v6539 = vld [vmem:[#allocation10 + $0x8] sm:$0xff]
    %v6540 = vld [vmem:[#allocation10 + $0x10] sm:$0xff]
    %v6541 = vld [vmem:[#allocation10 + $0x18] sm:$0xff]
    %v6542 = vld [vmem:[#allocation10 + $0x20] sm:$0xff]
    %v6543 = vld [vmem:[#allocation10 + $0x28] sm:$0xff]
    %v6544 = vld [vmem:[#allocation10 + $0x30] sm:$0xff]
    %v6545 = vld [vmem:[#allocation10 + $0x38] sm:$0xff]
    %v6546 = vld [vmem:[#allocation10 + $0x40] sm:$0xff]
    %v6547 = vld [vmem:[#allocation10 + $0x48] sm:$0xff]
    %v6548 = vld [vmem:[#allocation10 + $0x50] sm:$0xff]
    %v6549 = vld [vmem:[#allocation10 + $0x58] sm:$0xff]
    %v6550 = vld [vmem:[#allocation10 + $0x60] sm:$0xff]
    %v6551 = vld [vmem:[#allocation10 + $0x68] sm:$0xff]
    %v6552 = vld [vmem:[#allocation10 + $0x70] sm:$0xff]
    %v6553 = vld [vmem:[#allocation10 + $0x78] sm:$0xff]
    %v6554 = vld [vmem:[#allocation10 + $0x80] sm:$0xff]
    %v6555 = vld [vmem:[#allocation10 + $0x88] sm:$0xff]
    %v6556 = vld [vmem:[#allocation10 + $0x90] sm:$0xff]
    %v6557 = vld [vmem:[#allocation10 + $0x98] sm:$0xff]
    %v6558 = vld [vmem:[#allocation10 + $0xa0] sm:$0xff]
    %v6559 = vld [vmem:[#allocation10 + $0xa8] sm:$0xff]
    %v6560 = vld [vmem:[#allocation10 + $0xb0] sm:$0xff]
    %v6561 = vld [vmem:[#allocation10 + $0xb8] sm:$0xff]
    %v6562 = vld [vmem:[#allocation10 + $0xc0] sm:$0xff]
    %v6563 = vld [vmem:[#allocation10 + $0xc8] sm:$0xff]
    %v6564 = vld [vmem:[#allocation10 + $0xd0] sm:$0xff]
    %v6565 = vld [vmem:[#allocation10 + $0xd8] sm:$0xff]
    %v6566 = vld [vmem:[#allocation10 + $0xe0] sm:$0xff]
    %v6567 = vld [vmem:[#allocation10 + $0xe8] sm:$0xff]
    %v6568 = vld [vmem:[#allocation10 + $0xf0] sm:$0xff]
    %v6569 = vld [vmem:[#allocation10 + $0xf8] sm:$0xff]
    %v6570 = vld [vmem:[#allocation10 + $0x100] sm:$0xff]
    %v6571 = vld [vmem:[#allocation10 + $0x108] sm:$0xff]
    %v6572 = vld [vmem:[#allocation10 + $0x110] sm:$0xff]
    %v6573 = vld [vmem:[#allocation10 + $0x118] sm:$0xff]
    %v6574 = vld [vmem:[#allocation10 + $0x120] sm:$0xff]
    %v6575 = vld [vmem:[#allocation10 + $0x128] sm:$0xff]
    %v6576 = vld [vmem:[#allocation10 + $0x130] sm:$0xff]
    %v6577 = vld [vmem:[#allocation10 + $0x138] sm:$0xff]
    %v6578 = vld [vmem:[#allocation10 + $0x140] sm:$0xff]
    %v6579 = vld [vmem:[#allocation10 + $0x148] sm:$0xff]
    %v6580 = vld [vmem:[#allocation10 + $0x150] sm:$0xff]
    %v6581 = vld [vmem:[#allocation10 + $0x158] sm:$0xff]
    %v6582 = vld [vmem:[#allocation10 + $0x160] sm:$0xff]
    %v6583 = vld [vmem:[#allocation10 + $0x168] sm:$0xff]
    %v6584 = vld [vmem:[#allocation10 + $0x170] sm:$0xff]
    %v6585 = vld [vmem:[#allocation10 + $0x178] sm:$0xff]
    %v6586 = vld [vmem:[#allocation10 + $0x180] sm:$0xff]
    %v6587 = vld [vmem:[#allocation10 + $0x188] sm:$0xff]
    %v6588 = vld [vmem:[#allocation10 + $0x190] sm:$0xff]
    %v6589 = vld [vmem:[#allocation10 + $0x198] sm:$0xff]
    %v6590 = vld [vmem:[#allocation10 + $0x1a0] sm:$0xff]
    %v6591 = vld [vmem:[#allocation10 + $0x1a8] sm:$0xff]
    %v6592 = vld [vmem:[#allocation10 + $0x1b0] sm:$0xff]
    %v6593 = vld [vmem:[#allocation10 + $0x1b8] sm:$0xff]
    %v6594 = vld [vmem:[#allocation10 + $0x1c0] sm:$0xff]
    %v6595 = vld [vmem:[#allocation10 + $0x1c8] sm:$0xff]
    %v6596 = vld [vmem:[#allocation10 + $0x1d0] sm:$0xff]
    %v6597 = vld [vmem:[#allocation10 + $0x1d8] sm:$0xff]
    %v6598 = vld [vmem:[#allocation10 + $0x1e0] sm:$0xff]
    %v6599 = vld [vmem:[#allocation10 + $0x1e8] sm:$0xff]
    %v6600 = vld [vmem:[#allocation10 + $0x1f0] sm:$0xff]
    %v6601 = vld [vmem:[#allocation10 + $0x1f8] sm:$0xff]
    %s6602 = scalar_lea.vmem [#allocation10], 512
    %v6603 = vld [vmem:[%s6602] sm:$0xff]
    %v6604 = vld [vmem:[%s6602 + $0x8] sm:$0xff]
    %v6605 = vld [vmem:[%s6602 + $0x10] sm:$0xff]
    %v6606 = vld [vmem:[%s6602 + $0x18] sm:$0xff]
    %v6607 = vld [vmem:[%s6602 + $0x20] sm:$0xff]
    %v6608 = vld [vmem:[%s6602 + $0x28] sm:$0xff]
    %v6609 = vld [vmem:[%s6602 + $0x30] sm:$0xff]
    %v6610 = vld [vmem:[%s6602 + $0x38] sm:$0xff]
    %v6611 = vld [vmem:[%s6602 + $0x40] sm:$0xff]
    %v6612 = vld [vmem:[%s6602 + $0x48] sm:$0xff]
    %v6613 = vld [vmem:[%s6602 + $0x50] sm:$0xff]
    %v6614 = vld [vmem:[%s6602 + $0x58] sm:$0xff]
    %v6615 = vld [vmem:[%s6602 + $0x60] sm:$0xff]
    %v6616 = vld [vmem:[%s6602 + $0x68] sm:$0xff]
    %v6617 = vld [vmem:[%s6602 + $0x70] sm:$0xff]
    %v6618 = vld [vmem:[%s6602 + $0x78] sm:$0xff]
    %v6619 = vld [vmem:[%s6602 + $0x80] sm:$0xff]
    %v6620 = vld [vmem:[%s6602 + $0x88] sm:$0xff]
    %v6621 = vld [vmem:[%s6602 + $0x90] sm:$0xff]
    %v6622 = vld [vmem:[%s6602 + $0x98] sm:$0xff]
    %v6623 = vld [vmem:[%s6602 + $0xa0] sm:$0xff]
    %v6624 = vld [vmem:[%s6602 + $0xa8] sm:$0xff]
    %v6625 = vld [vmem:[%s6602 + $0xb0] sm:$0xff]
    %v6626 = vld [vmem:[%s6602 + $0xb8] sm:$0xff]
    %v6627 = vld [vmem:[%s6602 + $0xc0] sm:$0xff]
    %v6628 = vld [vmem:[%s6602 + $0xc8] sm:$0xff]
    %v6629 = vld [vmem:[%s6602 + $0xd0] sm:$0xff]
    %v6630 = vld [vmem:[%s6602 + $0xd8] sm:$0xff]
    %v6631 = vld [vmem:[%s6602 + $0xe0] sm:$0xff]
    %v6632 = vld [vmem:[%s6602 + $0xe8] sm:$0xff]
    %v6633 = vld [vmem:[%s6602 + $0xf0] sm:$0xff]
    %v6634 = vld [vmem:[%s6602 + $0xf8] sm:$0xff]
    %v6635 = vld [vmem:[%s6602 + $0x100] sm:$0xff]
    %v6636 = vld [vmem:[%s6602 + $0x108] sm:$0xff]
    %v6637 = vld [vmem:[%s6602 + $0x110] sm:$0xff]
    %v6638 = vld [vmem:[%s6602 + $0x118] sm:$0xff]
    %v6639 = vld [vmem:[%s6602 + $0x120] sm:$0xff]
    %v6640 = vld [vmem:[%s6602 + $0x128] sm:$0xff]
    %v6641 = vld [vmem:[%s6602 + $0x130] sm:$0xff]
    %v6642 = vld [vmem:[%s6602 + $0x138] sm:$0xff]
    %v6643 = vld [vmem:[%s6602 + $0x140] sm:$0xff]
    %v6644 = vld [vmem:[%s6602 + $0x148] sm:$0xff]
    %v6645 = vld [vmem:[%s6602 + $0x150] sm:$0xff]
    %v6646 = vld [vmem:[%s6602 + $0x158] sm:$0xff]
    %v6647 = vld [vmem:[%s6602 + $0x160] sm:$0xff]
    %v6648 = vld [vmem:[%s6602 + $0x168] sm:$0xff]
    %v6649 = vld [vmem:[%s6602 + $0x170] sm:$0xff]
    %v6650 = vld [vmem:[%s6602 + $0x178] sm:$0xff]
    %v6651 = vld [vmem:[%s6602 + $0x180] sm:$0xff]
    %v6652 = vld [vmem:[%s6602 + $0x188] sm:$0xff]
    %v6653 = vld [vmem:[%s6602 + $0x190] sm:$0xff]
    %v6654 = vld [vmem:[%s6602 + $0x198] sm:$0xff]
    %v6655 = vld [vmem:[%s6602 + $0x1a0] sm:$0xff]
    %v6656 = vld [vmem:[%s6602 + $0x1a8] sm:$0xff]
    %v6657 = vld [vmem:[%s6602 + $0x1b0] sm:$0xff]
    %v6658 = vld [vmem:[%s6602 + $0x1b8] sm:$0xff]
    %v6659 = vld [vmem:[%s6602 + $0x1c0] sm:$0xff]
    %v6660 = vld [vmem:[%s6602 + $0x1c8] sm:$0xff]
    %v6661 = vld [vmem:[%s6602 + $0x1d0] sm:$0xff]
    %v6662 = vld [vmem:[%s6602 + $0x1d8] sm:$0xff]
    %v6663 = vld [vmem:[%s6602 + $0x1e0] sm:$0xff]
    %v6664 = vld [vmem:[%s6602 + $0x1e8] sm:$0xff]
    %v6665 = vld [vmem:[%s6602 + $0x1f0] sm:$0xff]
    %v6666 = vld [vmem:[%s6602 + $0x1f8] sm:$0xff]
    %v6671 = vunpack.c.l.b16 %v6534
    %v6672 = vunpack.c.l.b16 %v6535
    %v6673 = vunpack.c.l.b16 %v6536
    %v6674 = vunpack.c.l.b16 %v6537
    %v6675 = vrot.slane %v6671, 1
    %vm6676 = vcmask 1041409
    %v6677 = vsel %vm6676, %v6673, %v6675
    %v6678 = vrot.slane %v6672, 1
    %v6679 = vsel %vm6676, %v6674, %v6678
    %v6680 = vpack.c.b16 %v6677, %v6677
    %v6681 = vpack.c.b16 %v6679, %v6679
    %v6748 = vunpack.c.l.b16 %v6603
    %v6749 = vunpack.c.h.b16 %v6603
    %v6750 = vunpack.c.l.b16 %v6604
    %v6751 = vunpack.c.h.b16 %v6604
    %v6752 = vunpack.c.l.b16 %v6605
    %v6753 = vunpack.c.h.b16 %v6605
    %v6754 = vunpack.c.l.b16 %v6606
    %v6755 = vunpack.c.h.b16 %v6606
    %v6756 = vunpack.c.l.b16 %v6607
    %v6757 = vunpack.c.h.b16 %v6607
    %v6758 = vunpack.c.l.b16 %v6608
    %v6759 = vunpack.c.h.b16 %v6608
    %v6760 = vunpack.c.l.b16 %v6609
    %v6761 = vunpack.c.h.b16 %v6609
    %v6762 = vunpack.c.l.b16 %v6610
    %v6763 = vunpack.c.h.b16 %v6610
    %v6764 = vunpack.c.l.b16 %v6611
    %v6765 = vunpack.c.h.b16 %v6611
    %v6766 = vunpack.c.l.b16 %v6612
    %v6767 = vunpack.c.h.b16 %v6612
    %v6768 = vunpack.c.l.b16 %v6613
    %v6769 = vunpack.c.h.b16 %v6613
    %v6770 = vunpack.c.l.b16 %v6614
    %v6771 = vunpack.c.h.b16 %v6614
    %v6772 = vunpack.c.l.b16 %v6615
    %v6773 = vunpack.c.h.b16 %v6615
    %v6774 = vunpack.c.l.b16 %v6616
    %v6775 = vunpack.c.h.b16 %v6616
    %v6776 = vunpack.c.l.b16 %v6617
    %v6777 = vunpack.c.h.b16 %v6617
    %v6778 = vunpack.c.l.b16 %v6618
    %v6779 = vunpack.c.h.b16 %v6618
    %v6780 = vunpack.c.l.b16 %v6619
    %v6781 = vunpack.c.h.b16 %v6619
    %v6782 = vunpack.c.l.b16 %v6620
    %v6783 = vunpack.c.h.b16 %v6620
    %v6784 = vunpack.c.l.b16 %v6621
    %v6785 = vunpack.c.h.b16 %v6621
    %v6786 = vunpack.c.l.b16 %v6622
    %v6787 = vunpack.c.h.b16 %v6622
    %v6788 = vunpack.c.l.b16 %v6623
    %v6789 = vunpack.c.h.b16 %v6623
    %v6790 = vunpack.c.l.b16 %v6624
    %v6791 = vunpack.c.h.b16 %v6624
    %v6792 = vunpack.c.l.b16 %v6625
    %v6793 = vunpack.c.h.b16 %v6625
    %v6794 = vunpack.c.l.b16 %v6626
    %v6795 = vunpack.c.h.b16 %v6626
    %v6796 = vunpack.c.l.b16 %v6627
    %v6797 = vunpack.c.h.b16 %v6627
    %v6798 = vunpack.c.l.b16 %v6628
    %v6799 = vunpack.c.h.b16 %v6628
    %v6800 = vunpack.c.l.b16 %v6629
    %v6801 = vunpack.c.h.b16 %v6629
    %v6802 = vunpack.c.l.b16 %v6630
    %v6803 = vunpack.c.h.b16 %v6630
    %v6804 = vunpack.c.l.b16 %v6631
    %v6805 = vunpack.c.h.b16 %v6631
    %v6806 = vunpack.c.l.b16 %v6632
    %v6807 = vunpack.c.h.b16 %v6632
    %v6808 = vunpack.c.l.b16 %v6633
    %v6809 = vunpack.c.h.b16 %v6633
    %v6810 = vunpack.c.l.b16 %v6634
    %v6811 = vunpack.c.h.b16 %v6634
    %v6812 = vunpack.c.l.b16 %v6635
    %v6813 = vunpack.c.h.b16 %v6635
    %v6814 = vunpack.c.l.b16 %v6636
    %v6815 = vunpack.c.h.b16 %v6636
    %v6816 = vunpack.c.l.b16 %v6637
    %v6817 = vunpack.c.h.b16 %v6637
    %v6818 = vunpack.c.l.b16 %v6638
    %v6819 = vunpack.c.h.b16 %v6638
    %v6820 = vunpack.c.l.b16 %v6639
    %v6821 = vunpack.c.h.b16 %v6639
    %v6822 = vunpack.c.l.b16 %v6640
    %v6823 = vunpack.c.h.b16 %v6640
    %v6824 = vunpack.c.l.b16 %v6641
    %v6825 = vunpack.c.h.b16 %v6641
    %v6826 = vunpack.c.l.b16 %v6642
    %v6827 = vunpack.c.h.b16 %v6642
    %v6828 = vunpack.c.l.b16 %v6643
    %v6829 = vunpack.c.h.b16 %v6643
    %v6830 = vunpack.c.l.b16 %v6644
    %v6831 = vunpack.c.h.b16 %v6644
    %v6832 = vunpack.c.l.b16 %v6645
    %v6833 = vunpack.c.h.b16 %v6645
    %v6834 = vunpack.c.l.b16 %v6646
    %v6835 = vunpack.c.h.b16 %v6646
    %v6836 = vunpack.c.l.b16 %v6647
    %v6837 = vunpack.c.h.b16 %v6647
    %v6838 = vunpack.c.l.b16 %v6648
    %v6839 = vunpack.c.h.b16 %v6648
    %v6840 = vunpack.c.l.b16 %v6649
    %v6841 = vunpack.c.h.b16 %v6649
    %v6842 = vunpack.c.l.b16 %v6650
    %v6843 = vunpack.c.h.b16 %v6650
    %v6844 = vunpack.c.l.b16 %v6651
    %v6845 = vunpack.c.h.b16 %v6651
    %v6846 = vunpack.c.l.b16 %v6652
    %v6847 = vunpack.c.h.b16 %v6652
    %v6848 = vunpack.c.l.b16 %v6653
    %v6849 = vunpack.c.h.b16 %v6653
    %v6850 = vunpack.c.l.b16 %v6654
    %v6851 = vunpack.c.h.b16 %v6654
    %v6852 = vunpack.c.l.b16 %v6655
    %v6853 = vunpack.c.h.b16 %v6655
    %v6854 = vunpack.c.l.b16 %v6656
    %v6855 = vunpack.c.h.b16 %v6656
    %v6856 = vunpack.c.l.b16 %v6657
    %v6857 = vunpack.c.h.b16 %v6657
    %v6858 = vunpack.c.l.b16 %v6658
    %v6859 = vunpack.c.h.b16 %v6658
    %v6860 = vunpack.c.l.b16 %v6659
    %v6861 = vunpack.c.h.b16 %v6659
    %v6862 = vunpack.c.l.b16 %v6660
    %v6863 = vunpack.c.h.b16 %v6660
    %v6864 = vunpack.c.l.b16 %v6661
    %v6865 = vunpack.c.h.b16 %v6661
    %v6866 = vunpack.c.l.b16 %v6662
    %v6867 = vunpack.c.h.b16 %v6662
    %v6868 = vunpack.c.l.b16 %v6663
    %v6869 = vunpack.c.h.b16 %v6663
    %v6870 = vunpack.c.l.b16 %v6664
    %v6871 = vunpack.c.h.b16 %v6664
    %v6872 = vunpack.c.l.b16 %v6665
    %v6873 = vunpack.c.h.b16 %v6665
    %v6874 = vunpack.c.l.b16 %v6666
    %v6875 = vunpack.c.h.b16 %v6666
    %v6876 = vpack.c.b16 %v6752, %v6748
    %v6877 = vpack.c.b16 %v6753, %v6749
    %v6878 = vpack.c.b16 %v6754, %v6750
    %v6879 = vpack.c.b16 %v6755, %v6751
    %v6880 = vpack.c.b16 %v6760, %v6756
    %v6881 = vpack.c.b16 %v6761, %v6757
    %v6882 = vpack.c.b16 %v6762, %v6758
    %v6883 = vpack.c.b16 %v6763, %v6759
    %v6884 = vpack.c.b16 %v6768, %v6764
    %v6885 = vpack.c.b16 %v6769, %v6765
    %v6886 = vpack.c.b16 %v6770, %v6766
    %v6887 = vpack.c.b16 %v6771, %v6767
    %v6888 = vpack.c.b16 %v6776, %v6772
    %v6889 = vpack.c.b16 %v6777, %v6773
    %v6890 = vpack.c.b16 %v6778, %v6774
    %v6891 = vpack.c.b16 %v6779, %v6775
    %v6892 = vpack.c.b16 %v6784, %v6780
    %v6893 = vpack.c.b16 %v6785, %v6781
    %v6894 = vpack.c.b16 %v6786, %v6782
    %v6895 = vpack.c.b16 %v6787, %v6783
    %v6896 = vpack.c.b16 %v6792, %v6788
    %v6897 = vpack.c.b16 %v6793, %v6789
    %v6898 = vpack.c.b16 %v6794, %v6790
    %v6899 = vpack.c.b16 %v6795, %v6791
    %v6900 = vpack.c.b16 %v6800, %v6796
    %v6901 = vpack.c.b16 %v6801, %v6797
    %v6902 = vpack.c.b16 %v6802, %v6798
    %v6903 = vpack.c.b16 %v6803, %v6799
    %v6904 = vpack.c.b16 %v6808, %v6804
    %v6905 = vpack.c.b16 %v6809, %v6805
    %v6906 = vpack.c.b16 %v6810, %v6806
    %v6907 = vpack.c.b16 %v6811, %v6807
    %v6908 = vpack.c.b16 %v6816, %v6812
    %v6909 = vpack.c.b16 %v6817, %v6813
    %v6910 = vpack.c.b16 %v6818, %v6814
    %v6911 = vpack.c.b16 %v6819, %v6815
    %v6912 = vpack.c.b16 %v6824, %v6820
    %v6913 = vpack.c.b16 %v6825, %v6821
    %v6914 = vpack.c.b16 %v6826, %v6822
    %v6915 = vpack.c.b16 %v6827, %v6823
    %v6916 = vpack.c.b16 %v6832, %v6828
    %v6917 = vpack.c.b16 %v6833, %v6829
    %v6918 = vpack.c.b16 %v6834, %v6830
    %v6919 = vpack.c.b16 %v6835, %v6831
    %v6920 = vpack.c.b16 %v6840, %v6836
    %v6921 = vpack.c.b16 %v6841, %v6837
    %v6922 = vpack.c.b16 %v6842, %v6838
    %v6923 = vpack.c.b16 %v6843, %v6839
    %v6924 = vpack.c.b16 %v6848, %v6844
    %v6925 = vpack.c.b16 %v6849, %v6845
    %v6926 = vpack.c.b16 %v6850, %v6846
    %v6927 = vpack.c.b16 %v6851, %v6847
    %v6928 = vpack.c.b16 %v6856, %v6852
    %v6929 = vpack.c.b16 %v6857, %v6853
    %v6930 = vpack.c.b16 %v6858, %v6854
    %v6931 = vpack.c.b16 %v6859, %v6855
    %v6932 = vpack.c.b16 %v6864, %v6860
    %v6933 = vpack.c.b16 %v6865, %v6861
    %v6934 = vpack.c.b16 %v6866, %v6862
    %v6935 = vpack.c.b16 %v6867, %v6863
    %v6936 = vpack.c.b16 %v6872, %v6868
    %v6937 = vpack.c.b16 %v6873, %v6869
    %v6938 = vpack.c.b16 %v6874, %v6870
    %v6939 = vpack.c.b16 %v6875, %v6871
    %7004 = vmatprep.subr.bf16.mxu0 %v6905
    %7005 = vmatpush1.bf16.msra.mxu0 %v6904
    %7006 = vmatprep.subr.bf16.mxu0 %v6901
    %7007 = vmatpush1.bf16.msra.mxu0 %v6900
    %7008 = vmatprep.subr.bf16.mxu0 %v6897
    %7009 = vmatpush1.bf16.msra.mxu0 %v6896
    %7010 = vmatprep.subr.bf16.mxu0 %v6893
    %7011 = vmatpush1.bf16.msra.mxu0 %v6892
    %7012 = vmatprep.subr.bf16.mxu0 %v6889
    %7013 = vmatpush1.bf16.msra.mxu0 %v6888
    %7014 = vmatprep.subr.bf16.mxu0 %v6885
    %7015 = vmatpush1.bf16.msra.mxu0 %v6884
    %7016 = vmatprep.subr.bf16.mxu0 %v6881
    %7017 = vmatpush1.bf16.msra.mxu0 %v6880
    %7018 = vmatprep.subr.bf16.mxu0 %v6877
    %7019 = vmatpush1.bf16.msra.mxu0 %v6876
    %7020 = vmatprep.subr.bf16.mxu0 %v6937
    %7021 = vmatpush2.bf16.msra.mxu0 %v6936
    %7022 = vmatprep.subr.bf16.mxu0 %v6933
    %7023 = vmatpush2.bf16.msra.mxu0 %v6932
    %7024 = vmatprep.subr.bf16.mxu0 %v6929
    %7025 = vmatpush2.bf16.msra.mxu0 %v6928
    %7026 = vmatprep.subr.bf16.mxu0 %v6925
    %7027 = vmatpush2.bf16.msra.mxu0 %v6924
    %7028 = vmatprep.subr.bf16.mxu0 %v6921
    %7029 = vmatpush2.bf16.msra.mxu0 %v6920
    %7030 = vmatprep.subr.bf16.mxu0 %v6917
    %7031 = vmatpush2.bf16.msra.mxu0 %v6916
    %7032 = vmatprep.subr.bf16.mxu0 %v6913
    %7033 = vmatpush2.bf16.msra.mxu0 %v6912
    %7034 = vmatprep.subr.bf16.mxu0 %v6909
    %7035 = vmatpush2.bf16.msra.mxu0 %v6908
    %7036 = vmatprep.mubr.bf16.mxu0 %v6681
    %7037 = vmatmul.mubr.bf16.gmra.mxu0 %v6680
    %v7038 = vpop.f32.mrf.mxu0
    %v7039 = vadd.f32 0.0, %v7038
    %v7040 = vpop.f32.mrf.mxu0
    %v7041 = vadd.f32 0.0, %v7040
    %v7042 = vpop.f32.mrf.mxu0
    %v7043 = vpop.f32.mrf.mxu0
    %7044 = vdwg.mxu0
    %7045 = vmatprep.subr.bf16.mxu0 %v6907
    %7046 = vmatpush1.bf16.msra.mxu0 %v6906
    %7047 = vmatprep.subr.bf16.mxu0 %v6903
    %7048 = vmatpush1.bf16.msra.mxu0 %v6902
    %7049 = vmatprep.subr.bf16.mxu0 %v6899
    %7050 = vmatpush1.bf16.msra.mxu0 %v6898
    %7051 = vmatprep.subr.bf16.mxu0 %v6895
    %7052 = vmatpush1.bf16.msra.mxu0 %v6894
    %7053 = vmatprep.subr.bf16.mxu0 %v6891
    %7054 = vmatpush1.bf16.msra.mxu0 %v6890
    %7055 = vmatprep.subr.bf16.mxu0 %v6887
    %7056 = vmatpush1.bf16.msra.mxu0 %v6886
    %7057 = vmatprep.subr.bf16.mxu0 %v6883
    %7058 = vmatpush1.bf16.msra.mxu0 %v6882
    %7059 = vmatprep.subr.bf16.mxu0 %v6879
    %7060 = vmatpush1.bf16.msra.mxu0 %v6878
    %7061 = vmatprep.subr.bf16.mxu0 %v6939
    %7062 = vmatpush2.bf16.msra.mxu0 %v6938
    %7063 = vmatprep.subr.bf16.mxu0 %v6935
    %7064 = vmatpush2.bf16.msra.mxu0 %v6934
    %7065 = vmatprep.subr.bf16.mxu0 %v6931
    %7066 = vmatpush2.bf16.msra.mxu0 %v6930
    %7067 = vmatprep.subr.bf16.mxu0 %v6927
    %7068 = vmatpush2.bf16.msra.mxu0 %v6926
    %7069 = vmatprep.subr.bf16.mxu0 %v6923
    %7070 = vmatpush2.bf16.msra.mxu0 %v6922
    %7071 = vmatprep.subr.bf16.mxu0 %v6919
    %7072 = vmatpush2.bf16.msra.mxu0 %v6918
    %7073 = vmatprep.subr.bf16.mxu0 %v6915
    %7074 = vmatpush2.bf16.msra.mxu0 %v6914
    %7075 = vmatprep.subr.bf16.mxu0 %v6911
    %7076 = vmatpush2.bf16.msra.mxu0 %v6910
    %7077 = vmatprep.mubr.bf16.mxu0 %v6681
    %7078 = vmatmul.mubr.bf16.gmra.mxu0 %v6680
    %v7079 = vpop.f32.mrf.mxu0
    %v7080 = vadd.f32 0.0, %v7079
    %v7081 = vpop.f32.mrf.mxu0
    %v7082 = vadd.f32 0.0, %v7081
    %v7083 = vpop.f32.mrf.mxu0
    %v7084 = vpop.f32.mrf.mxu0
    %7085 = vdwg.mxu0
    %v7086 = vrot.slane %v6673, 7
    %v7087 = vsel %vm6676, %v7086, %v6671
    %v7088 = vrot.slane %v6674, 7
    %v7089 = vsel %vm6676, %v7088, %v6672
    %v7090 = vpack.c.b16 %v7087, %v7087
    %v7091 = vpack.c.b16 %v7089, %v7089
    %v7158 = vunpack.c.l.b16 %v6538
    %v7159 = vunpack.c.h.b16 %v6538
    %v7160 = vunpack.c.l.b16 %v6539
    %v7161 = vunpack.c.h.b16 %v6539
    %v7162 = vunpack.c.l.b16 %v6540
    %v7163 = vunpack.c.h.b16 %v6540
    %v7164 = vunpack.c.l.b16 %v6541
    %v7165 = vunpack.c.h.b16 %v6541
    %v7166 = vunpack.c.l.b16 %v6542
    %v7167 = vunpack.c.h.b16 %v6542
    %v7168 = vunpack.c.l.b16 %v6543
    %v7169 = vunpack.c.h.b16 %v6543
    %v7170 = vunpack.c.l.b16 %v6544
    %v7171 = vunpack.c.h.b16 %v6544
    %v7172 = vunpack.c.l.b16 %v6545
    %v7173 = vunpack.c.h.b16 %v6545
    %v7174 = vunpack.c.l.b16 %v6546
    %v7175 = vunpack.c.h.b16 %v6546
    %v7176 = vunpack.c.l.b16 %v6547
    %v7177 = vunpack.c.h.b16 %v6547
    %v7178 = vunpack.c.l.b16 %v6548
    %v7179 = vunpack.c.h.b16 %v6548
    %v7180 = vunpack.c.l.b16 %v6549
    %v7181 = vunpack.c.h.b16 %v6549
    %v7182 = vunpack.c.l.b16 %v6550
    %v7183 = vunpack.c.h.b16 %v6550
    %v7184 = vunpack.c.l.b16 %v6551
    %v7185 = vunpack.c.h.b16 %v6551
    %v7186 = vunpack.c.l.b16 %v6552
    %v7187 = vunpack.c.h.b16 %v6552
    %v7188 = vunpack.c.l.b16 %v6553
    %v7189 = vunpack.c.h.b16 %v6553
    %v7190 = vunpack.c.l.b16 %v6554
    %v7191 = vunpack.c.h.b16 %v6554
    %v7192 = vunpack.c.l.b16 %v6555
    %v7193 = vunpack.c.h.b16 %v6555
    %v7194 = vunpack.c.l.b16 %v6556
    %v7195 = vunpack.c.h.b16 %v6556
    %v7196 = vunpack.c.l.b16 %v6557
    %v7197 = vunpack.c.h.b16 %v6557
    %v7198 = vunpack.c.l.b16 %v6558
    %v7199 = vunpack.c.h.b16 %v6558
    %v7200 = vunpack.c.l.b16 %v6559
    %v7201 = vunpack.c.h.b16 %v6559
    %v7202 = vunpack.c.l.b16 %v6560
    %v7203 = vunpack.c.h.b16 %v6560
    %v7204 = vunpack.c.l.b16 %v6561
    %v7205 = vunpack.c.h.b16 %v6561
    %v7206 = vunpack.c.l.b16 %v6562
    %v7207 = vunpack.c.h.b16 %v6562
    %v7208 = vunpack.c.l.b16 %v6563
    %v7209 = vunpack.c.h.b16 %v6563
    %v7210 = vunpack.c.l.b16 %v6564
    %v7211 = vunpack.c.h.b16 %v6564
    %v7212 = vunpack.c.l.b16 %v6565
    %v7213 = vunpack.c.h.b16 %v6565
    %v7214 = vunpack.c.l.b16 %v6566
    %v7215 = vunpack.c.h.b16 %v6566
    %v7216 = vunpack.c.l.b16 %v6567
    %v7217 = vunpack.c.h.b16 %v6567
    %v7218 = vunpack.c.l.b16 %v6568
    %v7219 = vunpack.c.h.b16 %v6568
    %v7220 = vunpack.c.l.b16 %v6569
    %v7221 = vunpack.c.h.b16 %v6569
    %v7222 = vunpack.c.l.b16 %v6570
    %v7223 = vunpack.c.h.b16 %v6570
    %v7224 = vunpack.c.l.b16 %v6571
    %v7225 = vunpack.c.h.b16 %v6571
    %v7226 = vunpack.c.l.b16 %v6572
    %v7227 = vunpack.c.h.b16 %v6572
    %v7228 = vunpack.c.l.b16 %v6573
    %v7229 = vunpack.c.h.b16 %v6573
    %v7230 = vunpack.c.l.b16 %v6574
    %v7231 = vunpack.c.h.b16 %v6574
    %v7232 = vunpack.c.l.b16 %v6575
    %v7233 = vunpack.c.h.b16 %v6575
    %v7234 = vunpack.c.l.b16 %v6576
    %v7235 = vunpack.c.h.b16 %v6576
    %v7236 = vunpack.c.l.b16 %v6577
    %v7237 = vunpack.c.h.b16 %v6577
    %v7238 = vunpack.c.l.b16 %v6578
    %v7239 = vunpack.c.h.b16 %v6578
    %v7240 = vunpack.c.l.b16 %v6579
    %v7241 = vunpack.c.h.b16 %v6579
    %v7242 = vunpack.c.l.b16 %v6580
    %v7243 = vunpack.c.h.b16 %v6580
    %v7244 = vunpack.c.l.b16 %v6581
    %v7245 = vunpack.c.h.b16 %v6581
    %v7246 = vunpack.c.l.b16 %v6582
    %v7247 = vunpack.c.h.b16 %v6582
    %v7248 = vunpack.c.l.b16 %v6583
    %v7249 = vunpack.c.h.b16 %v6583
    %v7250 = vunpack.c.l.b16 %v6584
    %v7251 = vunpack.c.h.b16 %v6584
    %v7252 = vunpack.c.l.b16 %v6585
    %v7253 = vunpack.c.h.b16 %v6585
    %v7254 = vunpack.c.l.b16 %v6586
    %v7255 = vunpack.c.h.b16 %v6586
    %v7256 = vunpack.c.l.b16 %v6587
    %v7257 = vunpack.c.h.b16 %v6587
    %v7258 = vunpack.c.l.b16 %v6588
    %v7259 = vunpack.c.h.b16 %v6588
    %v7260 = vunpack.c.l.b16 %v6589
    %v7261 = vunpack.c.h.b16 %v6589
    %v7262 = vunpack.c.l.b16 %v6590
    %v7263 = vunpack.c.h.b16 %v6590
    %v7264 = vunpack.c.l.b16 %v6591
    %v7265 = vunpack.c.h.b16 %v6591
    %v7266 = vunpack.c.l.b16 %v6592
    %v7267 = vunpack.c.h.b16 %v6592
    %v7268 = vunpack.c.l.b16 %v6593
    %v7269 = vunpack.c.h.b16 %v6593
    %v7270 = vunpack.c.l.b16 %v6594
    %v7271 = vunpack.c.h.b16 %v6594
    %v7272 = vunpack.c.l.b16 %v6595
    %v7273 = vunpack.c.h.b16 %v6595
    %v7274 = vunpack.c.l.b16 %v6596
    %v7275 = vunpack.c.h.b16 %v6596
    %v7276 = vunpack.c.l.b16 %v6597
    %v7277 = vunpack.c.h.b16 %v6597
    %v7278 = vunpack.c.l.b16 %v6598
    %v7279 = vunpack.c.h.b16 %v6598
    %v7280 = vunpack.c.l.b16 %v6599
    %v7281 = vunpack.c.h.b16 %v6599
    %v7282 = vunpack.c.l.b16 %v6600
    %v7283 = vunpack.c.h.b16 %v6600
    %v7284 = vunpack.c.l.b16 %v6601
    %v7285 = vunpack.c.h.b16 %v6601
    %v7286 = vpack.c.b16 %v7162, %v7158
    %v7287 = vpack.c.b16 %v7163, %v7159
    %v7288 = vpack.c.b16 %v7164, %v7160
    %v7289 = vpack.c.b16 %v7165, %v7161
    %v7290 = vpack.c.b16 %v7170, %v7166
    %v7291 = vpack.c.b16 %v7171, %v7167
    %v7292 = vpack.c.b16 %v7172, %v7168
    %v7293 = vpack.c.b16 %v7173, %v7169
    %v7294 = vpack.c.b16 %v7178, %v7174
    %v7295 = vpack.c.b16 %v7179, %v7175
    %v7296 = vpack.c.b16 %v7180, %v7176
    %v7297 = vpack.c.b16 %v7181, %v7177
    %v7298 = vpack.c.b16 %v7186, %v7182
    %v7299 = vpack.c.b16 %v7187, %v7183
    %v7300 = vpack.c.b16 %v7188, %v7184
    %v7301 = vpack.c.b16 %v7189, %v7185
    %v7302 = vpack.c.b16 %v7194, %v7190
    %v7303 = vpack.c.b16 %v7195, %v7191
    %v7304 = vpack.c.b16 %v7196, %v7192
    %v7305 = vpack.c.b16 %v7197, %v7193
    %v7306 = vpack.c.b16 %v7202, %v7198
    %v7307 = vpack.c.b16 %v7203, %v7199
    %v7308 = vpack.c.b16 %v7204, %v7200
    %v7309 = vpack.c.b16 %v7205, %v7201
    %v7310 = vpack.c.b16 %v7210, %v7206
    %v7311 = vpack.c.b16 %v7211, %v7207
    %v7312 = vpack.c.b16 %v7212, %v7208
    %v7313 = vpack.c.b16 %v7213, %v7209
    %v7314 = vpack.c.b16 %v7218, %v7214
    %v7315 = vpack.c.b16 %v7219, %v7215
    %v7316 = vpack.c.b16 %v7220, %v7216
    %v7317 = vpack.c.b16 %v7221, %v7217
    %v7318 = vpack.c.b16 %v7226, %v7222
    %v7319 = vpack.c.b16 %v7227, %v7223
    %v7320 = vpack.c.b16 %v7228, %v7224
    %v7321 = vpack.c.b16 %v7229, %v7225
    %v7322 = vpack.c.b16 %v7234, %v7230
    %v7323 = vpack.c.b16 %v7235, %v7231
    %v7324 = vpack.c.b16 %v7236, %v7232
    %v7325 = vpack.c.b16 %v7237, %v7233
    %v7326 = vpack.c.b16 %v7242, %v7238
    %v7327 = vpack.c.b16 %v7243, %v7239
    %v7328 = vpack.c.b16 %v7244, %v7240
    %v7329 = vpack.c.b16 %v7245, %v7241
    %v7330 = vpack.c.b16 %v7250, %v7246
    %v7331 = vpack.c.b16 %v7251, %v7247
    %v7332 = vpack.c.b16 %v7252, %v7248
    %v7333 = vpack.c.b16 %v7253, %v7249
    %v7334 = vpack.c.b16 %v7258, %v7254
    %v7335 = vpack.c.b16 %v7259, %v7255
    %v7336 = vpack.c.b16 %v7260, %v7256
    %v7337 = vpack.c.b16 %v7261, %v7257
    %v7338 = vpack.c.b16 %v7266, %v7262
    %v7339 = vpack.c.b16 %v7267, %v7263
    %v7340 = vpack.c.b16 %v7268, %v7264
    %v7341 = vpack.c.b16 %v7269, %v7265
    %v7342 = vpack.c.b16 %v7274, %v7270
    %v7343 = vpack.c.b16 %v7275, %v7271
    %v7344 = vpack.c.b16 %v7276, %v7272
    %v7345 = vpack.c.b16 %v7277, %v7273
    %v7346 = vpack.c.b16 %v7282, %v7278
    %v7347 = vpack.c.b16 %v7283, %v7279
    %v7348 = vpack.c.b16 %v7284, %v7280
    %v7349 = vpack.c.b16 %v7285, %v7281
    %7414 = vmatprep.subr.bf16.mxu0 %v7315
    %7415 = vmatpush1.bf16.msra.mxu0 %v7314
    %7416 = vmatprep.subr.bf16.mxu0 %v7311
    %7417 = vmatpush1.bf16.msra.mxu0 %v7310
    %7418 = vmatprep.subr.bf16.mxu0 %v7307
    %7419 = vmatpush1.bf16.msra.mxu0 %v7306
    %7420 = vmatprep.subr.bf16.mxu0 %v7303
    %7421 = vmatpush1.bf16.msra.mxu0 %v7302
    %7422 = vmatprep.subr.bf16.mxu0 %v7299
    %7423 = vmatpush1.bf16.msra.mxu0 %v7298
    %7424 = vmatprep.subr.bf16.mxu0 %v7295
    %7425 = vmatpush1.bf16.msra.mxu0 %v7294
    %7426 = vmatprep.subr.bf16.mxu0 %v7291
    %7427 = vmatpush1.bf16.msra.mxu0 %v7290
    %7428 = vmatprep.subr.bf16.mxu0 %v7287
    %7429 = vmatpush1.bf16.msra.mxu0 %v7286
    %7430 = vmatprep.subr.bf16.mxu0 %v7347
    %7431 = vmatpush2.bf16.msra.mxu0 %v7346
    %7432 = vmatprep.subr.bf16.mxu0 %v7343
    %7433 = vmatpush2.bf16.msra.mxu0 %v7342
    %7434 = vmatprep.subr.bf16.mxu0 %v7339
    %7435 = vmatpush2.bf16.msra.mxu0 %v7338
    %7436 = vmatprep.subr.bf16.mxu0 %v7335
    %7437 = vmatpush2.bf16.msra.mxu0 %v7334
    %7438 = vmatprep.subr.bf16.mxu0 %v7331
    %7439 = vmatpush2.bf16.msra.mxu0 %v7330
    %7440 = vmatprep.subr.bf16.mxu0 %v7327
    %7441 = vmatpush2.bf16.msra.mxu0 %v7326
    %7442 = vmatprep.subr.bf16.mxu0 %v7323
    %7443 = vmatpush2.bf16.msra.mxu0 %v7322
    %7444 = vmatprep.subr.bf16.mxu0 %v7319
    %7445 = vmatpush2.bf16.msra.mxu0 %v7318
    %7446 = vmatprep.mubr.bf16.mxu0 %v7091
    %7447 = vmatmul.mubr.bf16.gmra.mxu0 %v7090
    %v7448 = vpop.f32.mrf.mxu0
    %v7449 = vadd.f32 %v7039, %v7448
    %v7450 = vpop.f32.mrf.mxu0
    %v7451 = vadd.f32 %v7041, %v7450
    %v7452 = vpop.f32.mrf.mxu0
    %v7453 = vpop.f32.mrf.mxu0
    %7454 = vdwg.mxu0
    %7455 = vmatprep.subr.bf16.mxu0 %v7317
    %7456 = vmatpush1.bf16.msra.mxu0 %v7316
    %7457 = vmatprep.subr.bf16.mxu0 %v7313
    %7458 = vmatpush1.bf16.msra.mxu0 %v7312
    %7459 = vmatprep.subr.bf16.mxu0 %v7309
    %7460 = vmatpush1.bf16.msra.mxu0 %v7308
    %7461 = vmatprep.subr.bf16.mxu0 %v7305
    %7462 = vmatpush1.bf16.msra.mxu0 %v7304
    %7463 = vmatprep.subr.bf16.mxu0 %v7301
    %7464 = vmatpush1.bf16.msra.mxu0 %v7300
    %7465 = vmatprep.subr.bf16.mxu0 %v7297
    %7466 = vmatpush1.bf16.msra.mxu0 %v7296
    %7467 = vmatprep.subr.bf16.mxu0 %v7293
    %7468 = vmatpush1.bf16.msra.mxu0 %v7292
    %7469 = vmatprep.subr.bf16.mxu0 %v7289
    %7470 = vmatpush1.bf16.msra.mxu0 %v7288
    %7471 = vmatprep.subr.bf16.mxu0 %v7349
    %7472 = vmatpush2.bf16.msra.mxu0 %v7348
    %7473 = vmatprep.subr.bf16.mxu0 %v7345
    %7474 = vmatpush2.bf16.msra.mxu0 %v7344
    %7475 = vmatprep.subr.bf16.mxu0 %v7341
    %7476 = vmatpush2.bf16.msra.mxu0 %v7340
    %7477 = vmatprep.subr.bf16.mxu0 %v7337
    %7478 = vmatpush2.bf16.msra.mxu0 %v7336
    %7479 = vmatprep.subr.bf16.mxu0 %v7333
    %7480 = vmatpush2.bf16.msra.mxu0 %v7332
    %7481 = vmatprep.subr.bf16.mxu0 %v7329
    %7482 = vmatpush2.bf16.msra.mxu0 %v7328
    %7483 = vmatprep.subr.bf16.mxu0 %v7325
    %7484 = vmatpush2.bf16.msra.mxu0 %v7324
    %7485 = vmatprep.subr.bf16.mxu0 %v7321
    %7486 = vmatpush2.bf16.msra.mxu0 %v7320
    %7487 = vmatprep.mubr.bf16.mxu0 %v7091
    %7488 = vmatmul.mubr.bf16.gmra.mxu0 %v7090
    %v7489 = vpop.f32.mrf.mxu0
    %v7490 = vadd.f32 %v7080, %v7489
    %v7491 = vpop.f32.mrf.mxu0
    %v7492 = vadd.f32 %v7082, %v7491
    %v7493 = vpop.f32.mrf.mxu0
    %v7494 = vpop.f32.mrf.mxu0
    %7495 = vdwg.mxu0
    %s7496 = scalar_lea.vmem [#allocation10], 1024
    %v7497 = vld [vmem:[%s7496] sm:$0xff]
    %v7498 = vld [vmem:[%s7496 + $0x8] sm:$0xff]
    %v7499 = vld [vmem:[%s7496 + $0x10] sm:$0xff]
    %v7500 = vld [vmem:[%s7496 + $0x18] sm:$0xff]
    %v7501 = vld [vmem:[%s7496 + $0x20] sm:$0xff]
    %v7502 = vld [vmem:[%s7496 + $0x28] sm:$0xff]
    %v7503 = vld [vmem:[%s7496 + $0x30] sm:$0xff]
    %v7504 = vld [vmem:[%s7496 + $0x38] sm:$0xff]
    %v7505 = vld [vmem:[%s7496 + $0x40] sm:$0xff]
    %v7506 = vld [vmem:[%s7496 + $0x48] sm:$0xff]
    %v7507 = vld [vmem:[%s7496 + $0x50] sm:$0xff]
    %v7508 = vld [vmem:[%s7496 + $0x58] sm:$0xff]
    %v7509 = vld [vmem:[%s7496 + $0x60] sm:$0xff]
    %v7510 = vld [vmem:[%s7496 + $0x68] sm:$0xff]
    %v7511 = vld [vmem:[%s7496 + $0x70] sm:$0xff]
    %v7512 = vld [vmem:[%s7496 + $0x78] sm:$0xff]
    %v7513 = vld [vmem:[%s7496 + $0x80] sm:$0xff]
    %v7514 = vld [vmem:[%s7496 + $0x88] sm:$0xff]
    %v7515 = vld [vmem:[%s7496 + $0x90] sm:$0xff]
    %v7516 = vld [vmem:[%s7496 + $0x98] sm:$0xff]
    %v7517 = vld [vmem:[%s7496 + $0xa0] sm:$0xff]
    %v7518 = vld [vmem:[%s7496 + $0xa8] sm:$0xff]
    %v7519 = vld [vmem:[%s7496 + $0xb0] sm:$0xff]
    %v7520 = vld [vmem:[%s7496 + $0xb8] sm:$0xff]
    %v7521 = vld [vmem:[%s7496 + $0xc0] sm:$0xff]
    %v7522 = vld [vmem:[%s7496 + $0xc8] sm:$0xff]
    %v7523 = vld [vmem:[%s7496 + $0xd0] sm:$0xff]
    %v7524 = vld [vmem:[%s7496 + $0xd8] sm:$0xff]
    %v7525 = vld [vmem:[%s7496 + $0xe0] sm:$0xff]
    %v7526 = vld [vmem:[%s7496 + $0xe8] sm:$0xff]
    %v7527 = vld [vmem:[%s7496 + $0xf0] sm:$0xff]
    %v7528 = vld [vmem:[%s7496 + $0xf8] sm:$0xff]
    %v7529 = vld [vmem:[%s7496 + $0x100] sm:$0xff]
    %v7530 = vld [vmem:[%s7496 + $0x108] sm:$0xff]
    %v7531 = vld [vmem:[%s7496 + $0x110] sm:$0xff]
    %v7532 = vld [vmem:[%s7496 + $0x118] sm:$0xff]
    %v7533 = vld [vmem:[%s7496 + $0x120] sm:$0xff]
    %v7534 = vld [vmem:[%s7496 + $0x128] sm:$0xff]
    %v7535 = vld [vmem:[%s7496 + $0x130] sm:$0xff]
    %v7536 = vld [vmem:[%s7496 + $0x138] sm:$0xff]
    %v7537 = vld [vmem:[%s7496 + $0x140] sm:$0xff]
    %v7538 = vld [vmem:[%s7496 + $0x148] sm:$0xff]
    %v7539 = vld [vmem:[%s7496 + $0x150] sm:$0xff]
    %v7540 = vld [vmem:[%s7496 + $0x158] sm:$0xff]
    %v7541 = vld [vmem:[%s7496 + $0x160] sm:$0xff]
    %v7542 = vld [vmem:[%s7496 + $0x168] sm:$0xff]
    %v7543 = vld [vmem:[%s7496 + $0x170] sm:$0xff]
    %v7544 = vld [vmem:[%s7496 + $0x178] sm:$0xff]
    %v7545 = vld [vmem:[%s7496 + $0x180] sm:$0xff]
    %v7546 = vld [vmem:[%s7496 + $0x188] sm:$0xff]
    %v7547 = vld [vmem:[%s7496 + $0x190] sm:$0xff]
    %v7548 = vld [vmem:[%s7496 + $0x198] sm:$0xff]
    %v7549 = vld [vmem:[%s7496 + $0x1a0] sm:$0xff]
    %v7550 = vld [vmem:[%s7496 + $0x1a8] sm:$0xff]
    %v7551 = vld [vmem:[%s7496 + $0x1b0] sm:$0xff]
    %v7552 = vld [vmem:[%s7496 + $0x1b8] sm:$0xff]
    %v7553 = vld [vmem:[%s7496 + $0x1c0] sm:$0xff]
    %v7554 = vld [vmem:[%s7496 + $0x1c8] sm:$0xff]
    %v7555 = vld [vmem:[%s7496 + $0x1d0] sm:$0xff]
    %v7556 = vld [vmem:[%s7496 + $0x1d8] sm:$0xff]
    %v7557 = vld [vmem:[%s7496 + $0x1e0] sm:$0xff]
    %v7558 = vld [vmem:[%s7496 + $0x1e8] sm:$0xff]
    %v7559 = vld [vmem:[%s7496 + $0x1f0] sm:$0xff]
    %v7560 = vld [vmem:[%s7496 + $0x1f8] sm:$0xff]
    %v7561 = vrot.slane %v6671, 2
    %v7562 = vrot.slane %v6673, 1
    %v7563 = vsel %vm6676, %v7562, %v7561
    %v7564 = vrot.slane %v6672, 2
    %v7565 = vrot.slane %v6674, 1
    %v7566 = vsel %vm6676, %v7565, %v7564
    %v7567 = vpack.c.b16 %v7563, %v7563
    %v7568 = vpack.c.b16 %v7566, %v7566
    %v7635 = vunpack.c.l.b16 %v7497
    %v7636 = vunpack.c.h.b16 %v7497
    %v7637 = vunpack.c.l.b16 %v7498
    %v7638 = vunpack.c.h.b16 %v7498
    %v7639 = vunpack.c.l.b16 %v7499
    %v7640 = vunpack.c.h.b16 %v7499
    %v7641 = vunpack.c.l.b16 %v7500
    %v7642 = vunpack.c.h.b16 %v7500
    %v7643 = vunpack.c.l.b16 %v7501
    %v7644 = vunpack.c.h.b16 %v7501
    %v7645 = vunpack.c.l.b16 %v7502
    %v7646 = vunpack.c.h.b16 %v7502
    %v7647 = vunpack.c.l.b16 %v7503
    %v7648 = vunpack.c.h.b16 %v7503
    %v7649 = vunpack.c.l.b16 %v7504
    %v7650 = vunpack.c.h.b16 %v7504
    %v7651 = vunpack.c.l.b16 %v7505
    %v7652 = vunpack.c.h.b16 %v7505
    %v7653 = vunpack.c.l.b16 %v7506
    %v7654 = vunpack.c.h.b16 %v7506
    %v7655 = vunpack.c.l.b16 %v7507
    %v7656 = vunpack.c.h.b16 %v7507
    %v7657 = vunpack.c.l.b16 %v7508
    %v7658 = vunpack.c.h.b16 %v7508
    %v7659 = vunpack.c.l.b16 %v7509
    %v7660 = vunpack.c.h.b16 %v7509
    %v7661 = vunpack.c.l.b16 %v7510
    %v7662 = vunpack.c.h.b16 %v7510
    %v7663 = vunpack.c.l.b16 %v7511
    %v7664 = vunpack.c.h.b16 %v7511
    %v7665 = vunpack.c.l.b16 %v7512
    %v7666 = vunpack.c.h.b16 %v7512
    %v7667 = vunpack.c.l.b16 %v7513
    %v7668 = vunpack.c.h.b16 %v7513
    %v7669 = vunpack.c.l.b16 %v7514
    %v7670 = vunpack.c.h.b16 %v7514
    %v7671 = vunpack.c.l.b16 %v7515
    %v7672 = vunpack.c.h.b16 %v7515
    %v7673 = vunpack.c.l.b16 %v7516
    %v7674 = vunpack.c.h.b16 %v7516
    %v7675 = vunpack.c.l.b16 %v7517
    %v7676 = vunpack.c.h.b16 %v7517
    %v7677 = vunpack.c.l.b16 %v7518
    %v7678 = vunpack.c.h.b16 %v7518
    %v7679 = vunpack.c.l.b16 %v7519
    %v7680 = vunpack.c.h.b16 %v7519
    %v7681 = vunpack.c.l.b16 %v7520
    %v7682 = vunpack.c.h.b16 %v7520
    %v7683 = vunpack.c.l.b16 %v7521
    %v7684 = vunpack.c.h.b16 %v7521
    %v7685 = vunpack.c.l.b16 %v7522
    %v7686 = vunpack.c.h.b16 %v7522
    %v7687 = vunpack.c.l.b16 %v7523
    %v7688 = vunpack.c.h.b16 %v7523
    %v7689 = vunpack.c.l.b16 %v7524
    %v7690 = vunpack.c.h.b16 %v7524
    %v7691 = vunpack.c.l.b16 %v7525
    %v7692 = vunpack.c.h.b16 %v7525
    %v7693 = vunpack.c.l.b16 %v7526
    %v7694 = vunpack.c.h.b16 %v7526
    %v7695 = vunpack.c.l.b16 %v7527
    %v7696 = vunpack.c.h.b16 %v7527
    %v7697 = vunpack.c.l.b16 %v7528
    %v7698 = vunpack.c.h.b16 %v7528
    %v7699 = vunpack.c.l.b16 %v7529
    %v7700 = vunpack.c.h.b16 %v7529
    %v7701 = vunpack.c.l.b16 %v7530
    %v7702 = vunpack.c.h.b16 %v7530
    %v7703 = vunpack.c.l.b16 %v7531
    %v7704 = vunpack.c.h.b16 %v7531
    %v7705 = vunpack.c.l.b16 %v7532
    %v7706 = vunpack.c.h.b16 %v7532
    %v7707 = vunpack.c.l.b16 %v7533
    %v7708 = vunpack.c.h.b16 %v7533
    %v7709 = vunpack.c.l.b16 %v7534
    %v7710 = vunpack.c.h.b16 %v7534
    %v7711 = vunpack.c.l.b16 %v7535
    %v7712 = vunpack.c.h.b16 %v7535
    %v7713 = vunpack.c.l.b16 %v7536
    %v7714 = vunpack.c.h.b16 %v7536
    %v7715 = vunpack.c.l.b16 %v7537
    %v7716 = vunpack.c.h.b16 %v7537
    %v7717 = vunpack.c.l.b16 %v7538
    %v7718 = vunpack.c.h.b16 %v7538
    %v7719 = vunpack.c.l.b16 %v7539
    %v7720 = vunpack.c.h.b16 %v7539
    %v7721 = vunpack.c.l.b16 %v7540
    %v7722 = vunpack.c.h.b16 %v7540
    %v7723 = vunpack.c.l.b16 %v7541
    %v7724 = vunpack.c.h.b16 %v7541
    %v7725 = vunpack.c.l.b16 %v7542
    %v7726 = vunpack.c.h.b16 %v7542
    %v7727 = vunpack.c.l.b16 %v7543
    %v7728 = vunpack.c.h.b16 %v7543
    %v7729 = vunpack.c.l.b16 %v7544
    %v7730 = vunpack.c.h.b16 %v7544
    %v7731 = vunpack.c.l.b16 %v7545
    %v7732 = vunpack.c.h.b16 %v7545
    %v7733 = vunpack.c.l.b16 %v7546
    %v7734 = vunpack.c.h.b16 %v7546
    %v7735 = vunpack.c.l.b16 %v7547
    %v7736 = vunpack.c.h.b16 %v7547
    %v7737 = vunpack.c.l.b16 %v7548
    %v7738 = vunpack.c.h.b16 %v7548
    %v7739 = vunpack.c.l.b16 %v7549
    %v7740 = vunpack.c.h.b16 %v7549
    %v7741 = vunpack.c.l.b16 %v7550
    %v7742 = vunpack.c.h.b16 %v7550
    %v7743 = vunpack.c.l.b16 %v7551
    %v7744 = vunpack.c.h.b16 %v7551
    %v7745 = vunpack.c.l.b16 %v7552
    %v7746 = vunpack.c.h.b16 %v7552
    %v7747 = vunpack.c.l.b16 %v7553
    %v7748 = vunpack.c.h.b16 %v7553
    %v7749 = vunpack.c.l.b16 %v7554
    %v7750 = vunpack.c.h.b16 %v7554
    %v7751 = vunpack.c.l.b16 %v7555
    %v7752 = vunpack.c.h.b16 %v7555
    %v7753 = vunpack.c.l.b16 %v7556
    %v7754 = vunpack.c.h.b16 %v7556
    %v7755 = vunpack.c.l.b16 %v7557
    %v7756 = vunpack.c.h.b16 %v7557
    %v7757 = vunpack.c.l.b16 %v7558
    %v7758 = vunpack.c.h.b16 %v7558
    %v7759 = vunpack.c.l.b16 %v7559
    %v7760 = vunpack.c.h.b16 %v7559
    %v7761 = vunpack.c.l.b16 %v7560
    %v7762 = vunpack.c.h.b16 %v7560
    %v7763 = vpack.c.b16 %v7639, %v7635
    %v7764 = vpack.c.b16 %v7640, %v7636
    %v7765 = vpack.c.b16 %v7641, %v7637
    %v7766 = vpack.c.b16 %v7642, %v7638
    %v7767 = vpack.c.b16 %v7647, %v7643
    %v7768 = vpack.c.b16 %v7648, %v7644
    %v7769 = vpack.c.b16 %v7649, %v7645
    %v7770 = vpack.c.b16 %v7650, %v7646
    %v7771 = vpack.c.b16 %v7655, %v7651
    %v7772 = vpack.c.b16 %v7656, %v7652
    %v7773 = vpack.c.b16 %v7657, %v7653
    %v7774 = vpack.c.b16 %v7658, %v7654
    %v7775 = vpack.c.b16 %v7663, %v7659
    %v7776 = vpack.c.b16 %v7664, %v7660
    %v7777 = vpack.c.b16 %v7665, %v7661
    %v7778 = vpack.c.b16 %v7666, %v7662
    %v7779 = vpack.c.b16 %v7671, %v7667
    %v7780 = vpack.c.b16 %v7672, %v7668
    %v7781 = vpack.c.b16 %v7673, %v7669
    %v7782 = vpack.c.b16 %v7674, %v7670
    %v7783 = vpack.c.b16 %v7679, %v7675
    %v7784 = vpack.c.b16 %v7680, %v7676
    %v7785 = vpack.c.b16 %v7681, %v7677
    %v7786 = vpack.c.b16 %v7682, %v7678
    %v7787 = vpack.c.b16 %v7687, %v7683
    %v7788 = vpack.c.b16 %v7688, %v7684
    %v7789 = vpack.c.b16 %v7689, %v7685
    %v7790 = vpack.c.b16 %v7690, %v7686
    %v7791 = vpack.c.b16 %v7695, %v7691
    %v7792 = vpack.c.b16 %v7696, %v7692
    %v7793 = vpack.c.b16 %v7697, %v7693
    %v7794 = vpack.c.b16 %v7698, %v7694
    %v7795 = vpack.c.b16 %v7703, %v7699
    %v7796 = vpack.c.b16 %v7704, %v7700
    %v7797 = vpack.c.b16 %v7705, %v7701
    %v7798 = vpack.c.b16 %v7706, %v7702
    %v7799 = vpack.c.b16 %v7711, %v7707
    %v7800 = vpack.c.b16 %v7712, %v7708
    %v7801 = vpack.c.b16 %v7713, %v7709
    %v7802 = vpack.c.b16 %v7714, %v7710
    %v7803 = vpack.c.b16 %v7719, %v7715
    %v7804 = vpack.c.b16 %v7720, %v7716
    %v7805 = vpack.c.b16 %v7721, %v7717
    %v7806 = vpack.c.b16 %v7722, %v7718
    %v7807 = vpack.c.b16 %v7727, %v7723
    %v7808 = vpack.c.b16 %v7728, %v7724
    %v7809 = vpack.c.b16 %v7729, %v7725
    %v7810 = vpack.c.b16 %v7730, %v7726
    %v7811 = vpack.c.b16 %v7735, %v7731
    %v7812 = vpack.c.b16 %v7736, %v7732
    %v7813 = vpack.c.b16 %v7737, %v7733
    %v7814 = vpack.c.b16 %v7738, %v7734
    %v7815 = vpack.c.b16 %v7743, %v7739
    %v7816 = vpack.c.b16 %v7744, %v7740
    %v7817 = vpack.c.b16 %v7745, %v7741
    %v7818 = vpack.c.b16 %v7746, %v7742
    %v7819 = vpack.c.b16 %v7751, %v7747
    %v7820 = vpack.c.b16 %v7752, %v7748
    %v7821 = vpack.c.b16 %v7753, %v7749
    %v7822 = vpack.c.b16 %v7754, %v7750
    %v7823 = vpack.c.b16 %v7759, %v7755
    %v7824 = vpack.c.b16 %v7760, %v7756
    %v7825 = vpack.c.b16 %v7761, %v7757
    %v7826 = vpack.c.b16 %v7762, %v7758
    %7891 = vmatprep.subr.bf16.mxu0 %v7792
    %7892 = vmatpush1.bf16.msra.mxu0 %v7791
    %7893 = vmatprep.subr.bf16.mxu0 %v7788
    %7894 = vmatpush1.bf16.msra.mxu0 %v7787
    %7895 = vmatprep.subr.bf16.mxu0 %v7784
    %7896 = vmatpush1.bf16.msra.mxu0 %v7783
    %7897 = vmatprep.subr.bf16.mxu0 %v7780
    %7898 = vmatpush1.bf16.msra.mxu0 %v7779
    %7899 = vmatprep.subr.bf16.mxu0 %v7776
    %7900 = vmatpush1.bf16.msra.mxu0 %v7775
    %7901 = vmatprep.subr.bf16.mxu0 %v7772
    %7902 = vmatpush1.bf16.msra.mxu0 %v7771
    %7903 = vmatprep.subr.bf16.mxu0 %v7768
    %7904 = vmatpush1.bf16.msra.mxu0 %v7767
    %7905 = vmatprep.subr.bf16.mxu0 %v7764
    %7906 = vmatpush1.bf16.msra.mxu0 %v7763
    %7907 = vmatprep.subr.bf16.mxu0 %v7824
    %7908 = vmatpush2.bf16.msra.mxu0 %v7823
    %7909 = vmatprep.subr.bf16.mxu0 %v7820
    %7910 = vmatpush2.bf16.msra.mxu0 %v7819
    %7911 = vmatprep.subr.bf16.mxu0 %v7816
    %7912 = vmatpush2.bf16.msra.mxu0 %v7815
    %7913 = vmatprep.subr.bf16.mxu0 %v7812
    %7914 = vmatpush2.bf16.msra.mxu0 %v7811
    %7915 = vmatprep.subr.bf16.mxu0 %v7808
    %7916 = vmatpush2.bf16.msra.mxu0 %v7807
    %7917 = vmatprep.subr.bf16.mxu0 %v7804
    %7918 = vmatpush2.bf16.msra.mxu0 %v7803
    %7919 = vmatprep.subr.bf16.mxu0 %v7800
    %7920 = vmatpush2.bf16.msra.mxu0 %v7799
    %7921 = vmatprep.subr.bf16.mxu0 %v7796
    %7922 = vmatpush2.bf16.msra.mxu0 %v7795
    %7923 = vmatprep.mubr.bf16.mxu0 %v7568
    %7924 = vmatmul.mubr.bf16.gmra.mxu0 %v7567
    %v7925 = vpop.f32.mrf.mxu0
    %v7926 = vadd.f32 0.0, %v7925
    %v7927 = vpop.f32.mrf.mxu0
    %v7928 = vadd.f32 0.0, %v7927
    %v7929 = vpop.f32.mrf.mxu0
    %v7930 = vpop.f32.mrf.mxu0
    %7931 = vdwg.mxu0
    %7932 = vmatprep.subr.bf16.mxu0 %v7794
    %7933 = vmatpush1.bf16.msra.mxu0 %v7793
    %7934 = vmatprep.subr.bf16.mxu0 %v7790
    %7935 = vmatpush1.bf16.msra.mxu0 %v7789
    %7936 = vmatprep.subr.bf16.mxu0 %v7786
    %7937 = vmatpush1.bf16.msra.mxu0 %v7785
    %7938 = vmatprep.subr.bf16.mxu0 %v7782
    %7939 = vmatpush1.bf16.msra.mxu0 %v7781
    %7940 = vmatprep.subr.bf16.mxu0 %v7778
    %7941 = vmatpush1.bf16.msra.mxu0 %v7777
    %7942 = vmatprep.subr.bf16.mxu0 %v7774
    %7943 = vmatpush1.bf16.msra.mxu0 %v7773
    %7944 = vmatprep.subr.bf16.mxu0 %v7770
    %7945 = vmatpush1.bf16.msra.mxu0 %v7769
    %7946 = vmatprep.subr.bf16.mxu0 %v7766
    %7947 = vmatpush1.bf16.msra.mxu0 %v7765
    %7948 = vmatprep.subr.bf16.mxu0 %v7826
    %7949 = vmatpush2.bf16.msra.mxu0 %v7825
    %7950 = vmatprep.subr.bf16.mxu0 %v7822
    %7951 = vmatpush2.bf16.msra.mxu0 %v7821
    %7952 = vmatprep.subr.bf16.mxu0 %v7818
    %7953 = vmatpush2.bf16.msra.mxu0 %v7817
    %7954 = vmatprep.subr.bf16.mxu0 %v7814
    %7955 = vmatpush2.bf16.msra.mxu0 %v7813
    %7956 = vmatprep.subr.bf16.mxu0 %v7810
    %7957 = vmatpush2.bf16.msra.mxu0 %v7809
    %7958 = vmatprep.subr.bf16.mxu0 %v7806
    %7959 = vmatpush2.bf16.msra.mxu0 %v7805
    %7960 = vmatprep.subr.bf16.mxu0 %v7802
    %7961 = vmatpush2.bf16.msra.mxu0 %v7801
    %7962 = vmatprep.subr.bf16.mxu0 %v7798
    %7963 = vmatpush2.bf16.msra.mxu0 %v7797
    %7964 = vmatprep.mubr.bf16.mxu0 %v7568
    %7965 = vmatmul.mubr.bf16.gmra.mxu0 %v7567
    %v7966 = vpop.f32.mrf.mxu0
    %v7967 = vadd.f32 0.0, %v7966
    %v7968 = vpop.f32.mrf.mxu0
    %v7969 = vadd.f32 0.0, %v7968
    %v7970 = vpop.f32.mrf.mxu0
    %v7971 = vpop.f32.mrf.mxu0
    %7972 = vdwg.mxu0
    %v7973 = vadd.f32 %v7449, %v7926
    %v7974 = vadd.f32 %v7451, %v7928
    %v7975 = vadd.f32 %v7490, %v7967
    %v7976 = vadd.f32 %v7492, %v7969
    %s7977 = scalar_lea.vmem [#allocation10], 1536
    %v7978 = vld [vmem:[%s7977] sm:$0xff]
    %v7979 = vld [vmem:[%s7977 + $0x8] sm:$0xff]
    %v7980 = vld [vmem:[%s7977 + $0x10] sm:$0xff]
    %v7981 = vld [vmem:[%s7977 + $0x18] sm:$0xff]
    %v7982 = vld [vmem:[%s7977 + $0x20] sm:$0xff]
    %v7983 = vld [vmem:[%s7977 + $0x28] sm:$0xff]
    %v7984 = vld [vmem:[%s7977 + $0x30] sm:$0xff]
    %v7985 = vld [vmem:[%s7977 + $0x38] sm:$0xff]
    %v7986 = vld [vmem:[%s7977 + $0x40] sm:$0xff]
    %v7987 = vld [vmem:[%s7977 + $0x48] sm:$0xff]
    %v7988 = vld [vmem:[%s7977 + $0x50] sm:$0xff]
    %v7989 = vld [vmem:[%s7977 + $0x58] sm:$0xff]
    %v7990 = vld [vmem:[%s7977 + $0x60] sm:$0xff]
    %v7991 = vld [vmem:[%s7977 + $0x68] sm:$0xff]
    %v7992 = vld [vmem:[%s7977 + $0x70] sm:$0xff]
    %v7993 = vld [vmem:[%s7977 + $0x78] sm:$0xff]
    %v7994 = vld [vmem:[%s7977 + $0x80] sm:$0xff]
    %v7995 = vld [vmem:[%s7977 + $0x88] sm:$0xff]
    %v7996 = vld [vmem:[%s7977 + $0x90] sm:$0xff]
    %v7997 = vld [vmem:[%s7977 + $0x98] sm:$0xff]
    %v7998 = vld [vmem:[%s7977 + $0xa0] sm:$0xff]
    %v7999 = vld [vmem:[%s7977 + $0xa8] sm:$0xff]
    %v8000 = vld [vmem:[%s7977 + $0xb0] sm:$0xff]
    %v8001 = vld [vmem:[%s7977 + $0xb8] sm:$0xff]
    %v8002 = vld [vmem:[%s7977 + $0xc0] sm:$0xff]
    %v8003 = vld [vmem:[%s7977 + $0xc8] sm:$0xff]
    %v8004 = vld [vmem:[%s7977 + $0xd0] sm:$0xff]
    %v8005 = vld [vmem:[%s7977 + $0xd8] sm:$0xff]
    %v8006 = vld [vmem:[%s7977 + $0xe0] sm:$0xff]
    %v8007 = vld [vmem:[%s7977 + $0xe8] sm:$0xff]
    %v8008 = vld [vmem:[%s7977 + $0xf0] sm:$0xff]
    %v8009 = vld [vmem:[%s7977 + $0xf8] sm:$0xff]
    %v8010 = vld [vmem:[%s7977 + $0x100] sm:$0xff]
    %v8011 = vld [vmem:[%s7977 + $0x108] sm:$0xff]
    %v8012 = vld [vmem:[%s7977 + $0x110] sm:$0xff]
    %v8013 = vld [vmem:[%s7977 + $0x118] sm:$0xff]
    %v8014 = vld [vmem:[%s7977 + $0x120] sm:$0xff]
    %v8015 = vld [vmem:[%s7977 + $0x128] sm:$0xff]
    %v8016 = vld [vmem:[%s7977 + $0x130] sm:$0xff]
    %v8017 = vld [vmem:[%s7977 + $0x138] sm:$0xff]
    %v8018 = vld [vmem:[%s7977 + $0x140] sm:$0xff]
    %v8019 = vld [vmem:[%s7977 + $0x148] sm:$0xff]
    %v8020 = vld [vmem:[%s7977 + $0x150] sm:$0xff]
    %v8021 = vld [vmem:[%s7977 + $0x158] sm:$0xff]
    %v8022 = vld [vmem:[%s7977 + $0x160] sm:$0xff]
    %v8023 = vld [vmem:[%s7977 + $0x168] sm:$0xff]
    %v8024 = vld [vmem:[%s7977 + $0x170] sm:$0xff]
    %v8025 = vld [vmem:[%s7977 + $0x178] sm:$0xff]
    %v8026 = vld [vmem:[%s7977 + $0x180] sm:$0xff]
    %v8027 = vld [vmem:[%s7977 + $0x188] sm:$0xff]
    %v8028 = vld [vmem:[%s7977 + $0x190] sm:$0xff]
    %v8029 = vld [vmem:[%s7977 + $0x198] sm:$0xff]
    %v8030 = vld [vmem:[%s7977 + $0x1a0] sm:$0xff]
    %v8031 = vld [vmem:[%s7977 + $0x1a8] sm:$0xff]
    %v8032 = vld [vmem:[%s7977 + $0x1b0] sm:$0xff]
    %v8033 = vld [vmem:[%s7977 + $0x1b8] sm:$0xff]
    %v8034 = vld [vmem:[%s7977 + $0x1c0] sm:$0xff]
    %v8035 = vld [vmem:[%s7977 + $0x1c8] sm:$0xff]
    %v8036 = vld [vmem:[%s7977 + $0x1d0] sm:$0xff]
    %v8037 = vld [vmem:[%s7977 + $0x1d8] sm:$0xff]
    %v8038 = vld [vmem:[%s7977 + $0x1e0] sm:$0xff]
    %v8039 = vld [vmem:[%s7977 + $0x1e8] sm:$0xff]
    %v8040 = vld [vmem:[%s7977 + $0x1f0] sm:$0xff]
    %v8041 = vld [vmem:[%s7977 + $0x1f8] sm:$0xff]
    %v8042 = vrot.slane %v6671, 3
    %v8043 = vrot.slane %v6673, 2
    %v8044 = vsel %vm6676, %v8043, %v8042
    %v8045 = vrot.slane %v6672, 3
    %v8046 = vrot.slane %v6674, 2
    %v8047 = vsel %vm6676, %v8046, %v8045
    %v8048 = vpack.c.b16 %v8044, %v8044
    %v8049 = vpack.c.b16 %v8047, %v8047
    %v8116 = vunpack.c.l.b16 %v7978
    %v8117 = vunpack.c.h.b16 %v7978
    %v8118 = vunpack.c.l.b16 %v7979
    %v8119 = vunpack.c.h.b16 %v7979
    %v8120 = vunpack.c.l.b16 %v7980
    %v8121 = vunpack.c.h.b16 %v7980
    %v8122 = vunpack.c.l.b16 %v7981
    %v8123 = vunpack.c.h.b16 %v7981
    %v8124 = vunpack.c.l.b16 %v7982
    %v8125 = vunpack.c.h.b16 %v7982
    %v8126 = vunpack.c.l.b16 %v7983
    %v8127 = vunpack.c.h.b16 %v7983
    %v8128 = vunpack.c.l.b16 %v7984
    %v8129 = vunpack.c.h.b16 %v7984
    %v8130 = vunpack.c.l.b16 %v7985
    %v8131 = vunpack.c.h.b16 %v7985
    %v8132 = vunpack.c.l.b16 %v7986
    %v8133 = vunpack.c.h.b16 %v7986
    %v8134 = vunpack.c.l.b16 %v7987
    %v8135 = vunpack.c.h.b16 %v7987
    %v8136 = vunpack.c.l.b16 %v7988
    %v8137 = vunpack.c.h.b16 %v7988
    %v8138 = vunpack.c.l.b16 %v7989
    %v8139 = vunpack.c.h.b16 %v7989
    %v8140 = vunpack.c.l.b16 %v7990
    %v8141 = vunpack.c.h.b16 %v7990
    %v8142 = vunpack.c.l.b16 %v7991
    %v8143 = vunpack.c.h.b16 %v7991
    %v8144 = vunpack.c.l.b16 %v7992
    %v8145 = vunpack.c.h.b16 %v7992
    %v8146 = vunpack.c.l.b16 %v7993
    %v8147 = vunpack.c.h.b16 %v7993
    %v8148 = vunpack.c.l.b16 %v7994
    %v8149 = vunpack.c.h.b16 %v7994
    %v8150 = vunpack.c.l.b16 %v7995
    %v8151 = vunpack.c.h.b16 %v7995
    %v8152 = vunpack.c.l.b16 %v7996
    %v8153 = vunpack.c.h.b16 %v7996
    %v8154 = vunpack.c.l.b16 %v7997
    %v8155 = vunpack.c.h.b16 %v7997
    %v8156 = vunpack.c.l.b16 %v7998
    %v8157 = vunpack.c.h.b16 %v7998
    %v8158 = vunpack.c.l.b16 %v7999
    %v8159 = vunpack.c.h.b16 %v7999
    %v8160 = vunpack.c.l.b16 %v8000
    %v8161 = vunpack.c.h.b16 %v8000
    %v8162 = vunpack.c.l.b16 %v8001
    %v8163 = vunpack.c.h.b16 %v8001
    %v8164 = vunpack.c.l.b16 %v8002
    %v8165 = vunpack.c.h.b16 %v8002
    %v8166 = vunpack.c.l.b16 %v8003
    %v8167 = vunpack.c.h.b16 %v8003
    %v8168 = vunpack.c.l.b16 %v8004
    %v8169 = vunpack.c.h.b16 %v8004
    %v8170 = vunpack.c.l.b16 %v8005
    %v8171 = vunpack.c.h.b16 %v8005
    %v8172 = vunpack.c.l.b16 %v8006
    %v8173 = vunpack.c.h.b16 %v8006
    %v8174 = vunpack.c.l.b16 %v8007
    %v8175 = vunpack.c.h.b16 %v8007
    %v8176 = vunpack.c.l.b16 %v8008
    %v8177 = vunpack.c.h.b16 %v8008
    %v8178 = vunpack.c.l.b16 %v8009
    %v8179 = vunpack.c.h.b16 %v8009
    %v8180 = vunpack.c.l.b16 %v8010
    %v8181 = vunpack.c.h.b16 %v8010
    %v8182 = vunpack.c.l.b16 %v8011
    %v8183 = vunpack.c.h.b16 %v8011
    %v8184 = vunpack.c.l.b16 %v8012
    %v8185 = vunpack.c.h.b16 %v8012
    %v8186 = vunpack.c.l.b16 %v8013
    %v8187 = vunpack.c.h.b16 %v8013
    %v8188 = vunpack.c.l.b16 %v8014
    %v8189 = vunpack.c.h.b16 %v8014
    %v8190 = vunpack.c.l.b16 %v8015
    %v8191 = vunpack.c.h.b16 %v8015
    %v8192 = vunpack.c.l.b16 %v8016
    %v8193 = vunpack.c.h.b16 %v8016
    %v8194 = vunpack.c.l.b16 %v8017
    %v8195 = vunpack.c.h.b16 %v8017
    %v8196 = vunpack.c.l.b16 %v8018
    %v8197 = vunpack.c.h.b16 %v8018
    %v8198 = vunpack.c.l.b16 %v8019
    %v8199 = vunpack.c.h.b16 %v8019
    %v8200 = vunpack.c.l.b16 %v8020
    %v8201 = vunpack.c.h.b16 %v8020
    %v8202 = vunpack.c.l.b16 %v8021
    %v8203 = vunpack.c.h.b16 %v8021
    %v8204 = vunpack.c.l.b16 %v8022
    %v8205 = vunpack.c.h.b16 %v8022
    %v8206 = vunpack.c.l.b16 %v8023
    %v8207 = vunpack.c.h.b16 %v8023
    %v8208 = vunpack.c.l.b16 %v8024
    %v8209 = vunpack.c.h.b16 %v8024
    %v8210 = vunpack.c.l.b16 %v8025
    %v8211 = vunpack.c.h.b16 %v8025
    %v8212 = vunpack.c.l.b16 %v8026
    %v8213 = vunpack.c.h.b16 %v8026
    %v8214 = vunpack.c.l.b16 %v8027
    %v8215 = vunpack.c.h.b16 %v8027
    %v8216 = vunpack.c.l.b16 %v8028
    %v8217 = vunpack.c.h.b16 %v8028
    %v8218 = vunpack.c.l.b16 %v8029
    %v8219 = vunpack.c.h.b16 %v8029
    %v8220 = vunpack.c.l.b16 %v8030
    %v8221 = vunpack.c.h.b16 %v8030
    %v8222 = vunpack.c.l.b16 %v8031
    %v8223 = vunpack.c.h.b16 %v8031
    %v8224 = vunpack.c.l.b16 %v8032
    %v8225 = vunpack.c.h.b16 %v8032
    %v8226 = vunpack.c.l.b16 %v8033
    %v8227 = vunpack.c.h.b16 %v8033
    %v8228 = vunpack.c.l.b16 %v8034
    %v8229 = vunpack.c.h.b16 %v8034
    %v8230 = vunpack.c.l.b16 %v8035
    %v8231 = vunpack.c.h.b16 %v8035
    %v8232 = vunpack.c.l.b16 %v8036
    %v8233 = vunpack.c.h.b16 %v8036
    %v8234 = vunpack.c.l.b16 %v8037
    %v8235 = vunpack.c.h.b16 %v8037
    %v8236 = vunpack.c.l.b16 %v8038
    %v8237 = vunpack.c.h.b16 %v8038
    %v8238 = vunpack.c.l.b16 %v8039
    %v8239 = vunpack.c.h.b16 %v8039
    %v8240 = vunpack.c.l.b16 %v8040
    %v8241 = vunpack.c.h.b16 %v8040
    %v8242 = vunpack.c.l.b16 %v8041
    %v8243 = vunpack.c.h.b16 %v8041
    %v8244 = vpack.c.b16 %v8120, %v8116
    %v8245 = vpack.c.b16 %v8121, %v8117
    %v8246 = vpack.c.b16 %v8122, %v8118
    %v8247 = vpack.c.b16 %v8123, %v8119
    %v8248 = vpack.c.b16 %v8128, %v8124
    %v8249 = vpack.c.b16 %v8129, %v8125
    %v8250 = vpack.c.b16 %v8130, %v8126
    %v8251 = vpack.c.b16 %v8131, %v8127
    %v8252 = vpack.c.b16 %v8136, %v8132
    %v8253 = vpack.c.b16 %v8137, %v8133
    %v8254 = vpack.c.b16 %v8138, %v8134
    %v8255 = vpack.c.b16 %v8139, %v8135
    %v8256 = vpack.c.b16 %v8144, %v8140
    %v8257 = vpack.c.b16 %v8145, %v8141
    %v8258 = vpack.c.b16 %v8146, %v8142
    %v8259 = vpack.c.b16 %v8147, %v8143
    %v8260 = vpack.c.b16 %v8152, %v8148
    %v8261 = vpack.c.b16 %v8153, %v8149
    %v8262 = vpack.c.b16 %v8154, %v8150
    %v8263 = vpack.c.b16 %v8155, %v8151
    %v8264 = vpack.c.b16 %v8160, %v8156
    %v8265 = vpack.c.b16 %v8161, %v8157
    %v8266 = vpack.c.b16 %v8162, %v8158
    %v8267 = vpack.c.b16 %v8163, %v8159
    %v8268 = vpack.c.b16 %v8168, %v8164
    %v8269 = vpack.c.b16 %v8169, %v8165
    %v8270 = vpack.c.b16 %v8170, %v8166
    %v8271 = vpack.c.b16 %v8171, %v8167
    %v8272 = vpack.c.b16 %v8176, %v8172
    %v8273 = vpack.c.b16 %v8177, %v8173
    %v8274 = vpack.c.b16 %v8178, %v8174
    %v8275 = vpack.c.b16 %v8179, %v8175
    %v8276 = vpack.c.b16 %v8184, %v8180
    %v8277 = vpack.c.b16 %v8185, %v8181
    %v8278 = vpack.c.b16 %v8186, %v8182
    %v8279 = vpack.c.b16 %v8187, %v8183
    %v8280 = vpack.c.b16 %v8192, %v8188
    %v8281 = vpack.c.b16 %v8193, %v8189
    %v8282 = vpack.c.b16 %v8194, %v8190
    %v8283 = vpack.c.b16 %v8195, %v8191
    %v8284 = vpack.c.b16 %v8200, %v8196
    %v8285 = vpack.c.b16 %v8201, %v8197
    %v8286 = vpack.c.b16 %v8202, %v8198
    %v8287 = vpack.c.b16 %v8203, %v8199
    %v8288 = vpack.c.b16 %v8208, %v8204
    %v8289 = vpack.c.b16 %v8209, %v8205
    %v8290 = vpack.c.b16 %v8210, %v8206
    %v8291 = vpack.c.b16 %v8211, %v8207
    %v8292 = vpack.c.b16 %v8216, %v8212
    %v8293 = vpack.c.b16 %v8217, %v8213
    %v8294 = vpack.c.b16 %v8218, %v8214
    %v8295 = vpack.c.b16 %v8219, %v8215
    %v8296 = vpack.c.b16 %v8224, %v8220
    %v8297 = vpack.c.b16 %v8225, %v8221
    %v8298 = vpack.c.b16 %v8226, %v8222
    %v8299 = vpack.c.b16 %v8227, %v8223
    %v8300 = vpack.c.b16 %v8232, %v8228
    %v8301 = vpack.c.b16 %v8233, %v8229
    %v8302 = vpack.c.b16 %v8234, %v8230
    %v8303 = vpack.c.b16 %v8235, %v8231
    %v8304 = vpack.c.b16 %v8240, %v8236
    %v8305 = vpack.c.b16 %v8241, %v8237
    %v8306 = vpack.c.b16 %v8242, %v8238
    %v8307 = vpack.c.b16 %v8243, %v8239
    %8372 = vmatprep.subr.bf16.mxu0 %v8273
    %8373 = vmatpush1.bf16.msra.mxu0 %v8272
    %8374 = vmatprep.subr.bf16.mxu0 %v8269
    %8375 = vmatpush1.bf16.msra.mxu0 %v8268
    %8376 = vmatprep.subr.bf16.mxu0 %v8265
    %8377 = vmatpush1.bf16.msra.mxu0 %v8264
    %8378 = vmatprep.subr.bf16.mxu0 %v8261
    %8379 = vmatpush1.bf16.msra.mxu0 %v8260
    %8380 = vmatprep.subr.bf16.mxu0 %v8257
    %8381 = vmatpush1.bf16.msra.mxu0 %v8256
    %8382 = vmatprep.subr.bf16.mxu0 %v8253
    %8383 = vmatpush1.bf16.msra.mxu0 %v8252
    %8384 = vmatprep.subr.bf16.mxu0 %v8249
    %8385 = vmatpush1.bf16.msra.mxu0 %v8248
    %8386 = vmatprep.subr.bf16.mxu0 %v8245
    %8387 = vmatpush1.bf16.msra.mxu0 %v8244
    %8388 = vmatprep.subr.bf16.mxu0 %v8305
    %8389 = vmatpush2.bf16.msra.mxu0 %v8304
    %8390 = vmatprep.subr.bf16.mxu0 %v8301
    %8391 = vmatpush2.bf16.msra.mxu0 %v8300
    %8392 = vmatprep.subr.bf16.mxu0 %v8297
    %8393 = vmatpush2.bf16.msra.mxu0 %v8296
    %8394 = vmatprep.subr.bf16.mxu0 %v8293
    %8395 = vmatpush2.bf16.msra.mxu0 %v8292
    %8396 = vmatprep.subr.bf16.mxu0 %v8289
    %8397 = vmatpush2.bf16.msra.mxu0 %v8288
    %8398 = vmatprep.subr.bf16.mxu0 %v8285
    %8399 = vmatpush2.bf16.msra.mxu0 %v8284
    %8400 = vmatprep.subr.bf16.mxu0 %v8281
    %8401 = vmatpush2.bf16.msra.mxu0 %v8280
    %8402 = vmatprep.subr.bf16.mxu0 %v8277
    %8403 = vmatpush2.bf16.msra.mxu0 %v8276
    %8404 = vmatprep.mubr.bf16.mxu0 %v8049
    %8405 = vmatmul.mubr.bf16.gmra.mxu0 %v8048
    %v8406 = vpop.f32.mrf.mxu0
    %v8407 = vadd.f32 0.0, %v8406
    %v8408 = vpop.f32.mrf.mxu0
    %v8409 = vadd.f32 0.0, %v8408
    %v8410 = vpop.f32.mrf.mxu0
    %v8411 = vpop.f32.mrf.mxu0
    %8412 = vdwg.mxu0
    %8413 = vmatprep.subr.bf16.mxu0 %v8275
    %8414 = vmatpush1.bf16.msra.mxu0 %v8274
    %8415 = vmatprep.subr.bf16.mxu0 %v8271
    %8416 = vmatpush1.bf16.msra.mxu0 %v8270
    %8417 = vmatprep.subr.bf16.mxu0 %v8267
    %8418 = vmatpush1.bf16.msra.mxu0 %v8266
    %8419 = vmatprep.subr.bf16.mxu0 %v8263
    %8420 = vmatpush1.bf16.msra.mxu0 %v8262
    %8421 = vmatprep.subr.bf16.mxu0 %v8259
    %8422 = vmatpush1.bf16.msra.mxu0 %v8258
    %8423 = vmatprep.subr.bf16.mxu0 %v8255
    %8424 = vmatpush1.bf16.msra.mxu0 %v8254
    %8425 = vmatprep.subr.bf16.mxu0 %v8251
    %8426 = vmatpush1.bf16.msra.mxu0 %v8250
    %8427 = vmatprep.subr.bf16.mxu0 %v8247
    %8428 = vmatpush1.bf16.msra.mxu0 %v8246
    %8429 = vmatprep.subr.bf16.mxu0 %v8307
    %8430 = vmatpush2.bf16.msra.mxu0 %v8306
    %8431 = vmatprep.subr.bf16.mxu0 %v8303
    %8432 = vmatpush2.bf16.msra.mxu0 %v8302
    %8433 = vmatprep.subr.bf16.mxu0 %v8299
    %8434 = vmatpush2.bf16.msra.mxu0 %v8298
    %8435 = vmatprep.subr.bf16.mxu0 %v8295
    %8436 = vmatpush2.bf16.msra.mxu0 %v8294
    %8437 = vmatprep.subr.bf16.mxu0 %v8291
    %8438 = vmatpush2.bf16.msra.mxu0 %v8290
    %8439 = vmatprep.subr.bf16.mxu0 %v8287
    %8440 = vmatpush2.bf16.msra.mxu0 %v8286
    %8441 = vmatprep.subr.bf16.mxu0 %v8283
    %8442 = vmatpush2.bf16.msra.mxu0 %v8282
    %8443 = vmatprep.subr.bf16.mxu0 %v8279
    %8444 = vmatpush2.bf16.msra.mxu0 %v8278
    %8445 = vmatprep.mubr.bf16.mxu0 %v8049
    %8446 = vmatmul.mubr.bf16.gmra.mxu0 %v8048
    %v8447 = vpop.f32.mrf.mxu0
    %v8448 = vadd.f32 0.0, %v8447
    %v8449 = vpop.f32.mrf.mxu0
    %v8450 = vadd.f32 0.0, %v8449
    %v8451 = vpop.f32.mrf.mxu0
    %v8452 = vpop.f32.mrf.mxu0
    %8453 = vdwg.mxu0
    %v8454 = vadd.f32 %v7973, %v8407
    %v8455 = vadd.f32 %v7974, %v8409
    %v8456 = vadd.f32 %v7975, %v8448
    %v8457 = vadd.f32 %v7976, %v8450
    %v8458 = vld [vmem:[#allocation11] sm:$0xf]
    %v8460 = vlaneseq
    %v8461 = vshrl.u32 %v8460, 7
    %v8462 = vsub.s32 0, %v8461
    %v8463 = vrot.slane %v8458, %v8462
    %v8464 = vlaneseq
    %v8465 = vshrl.u32 %v8464, 7
    %v8466 = vsub.s32 1, %v8465
    %v8467 = vrot.slane %v8458, %v8466
    %v8468 = vlaneseq
    %v8469 = vshrl.u32 %v8468, 7
    %v8470 = vsub.s32 2, %v8469
    %v8471 = vrot.slane %v8458, %v8470
    %v8472 = vlaneseq
    %v8473 = vshrl.u32 %v8472, 7
    %v8474 = vsub.s32 3, %v8473
    %v8475 = vrot.slane %v8458, %v8474
    %v8480 = vadd.f32 %v8454, %v8463
    %v8481 = vadd.f32 %v8455, %v8467
    %v8482 = vadd.f32 %v8456, %v8471
    %v8483 = vadd.f32 %v8457, %v8475
    %v8484 = vmax.f32 %v8480, 0.0
    %v8485 = vmax.f32 %v8481, 0.0
    %v8486 = vmax.f32 %v8482, 0.0
    %v8487 = vmax.f32 %v8483, 0.0
    %v8488 = vpack.c.bf16 %v8484, %v8484
    %v8489 = vpack.c.bf16 %v8485, %v8485
    %v8490 = vpack.c.bf16 %v8486, %v8486
    %v8491 = vpack.c.bf16 %v8487, %v8487
    %v8492 = vld [vmem:[#allocation13] sm:$0xf]
    %v8493 = vld [vmem:[#allocation13 + $0x4] sm:$0xf]
    %v8494 = vld [vmem:[#allocation13 + $0x8] sm:$0xf]
    %v8495 = vld [vmem:[#allocation13 + $0xc] sm:$0xf]
    %v8496 = vld [vmem:[#allocation13 + $0x10] sm:$0xf]
    %v8497 = vld [vmem:[#allocation13 + $0x14] sm:$0xf]
    %v8498 = vld [vmem:[#allocation13 + $0x18] sm:$0xf]
    %v8499 = vld [vmem:[#allocation13 + $0x1c] sm:$0xf]
    %v8500 = vld [vmem:[#allocation13 + $0x20] sm:$0xf]
    %v8501 = vld [vmem:[#allocation13 + $0x24] sm:$0xf]
    %v8502 = vld [vmem:[#allocation13 + $0x28] sm:$0xf]
    %v8503 = vld [vmem:[#allocation13 + $0x2c] sm:$0xf]
    %v8504 = vld [vmem:[#allocation13 + $0x30] sm:$0xf]
    %v8505 = vld [vmem:[#allocation13 + $0x34] sm:$0xf]
    %v8506 = vld [vmem:[#allocation13 + $0x38] sm:$0xf]
    %v8507 = vld [vmem:[#allocation13 + $0x3c] sm:$0xf]
    %v8508 = vld [vmem:[#allocation13 + $0x40] sm:$0xf]
    %v8509 = vld [vmem:[#allocation13 + $0x44] sm:$0xf]
    %v8510 = vld [vmem:[#allocation13 + $0x48] sm:$0xf]
    %v8511 = vld [vmem:[#allocation13 + $0x4c] sm:$0xf]
    %v8512 = vld [vmem:[#allocation13 + $0x50] sm:$0xf]
    %v8513 = vld [vmem:[#allocation13 + $0x54] sm:$0xf]
    %v8514 = vld [vmem:[#allocation13 + $0x58] sm:$0xf]
    %v8515 = vld [vmem:[#allocation13 + $0x5c] sm:$0xf]
    %v8516 = vld [vmem:[#allocation13 + $0x60] sm:$0xf]
    %v8517 = vld [vmem:[#allocation13 + $0x64] sm:$0xf]
    %v8518 = vld [vmem:[#allocation13 + $0x68] sm:$0xf]
    %v8519 = vld [vmem:[#allocation13 + $0x6c] sm:$0xf]
    %v8520 = vld [vmem:[#allocation13 + $0x70] sm:$0xf]
    %v8521 = vld [vmem:[#allocation13 + $0x74] sm:$0xf]
    %v8522 = vld [vmem:[#allocation13 + $0x78] sm:$0xf]
    %v8523 = vld [vmem:[#allocation13 + $0x7c] sm:$0xf]
    %v8524 = vld [vmem:[#allocation13 + $0x80] sm:$0xf]
    %v8525 = vld [vmem:[#allocation13 + $0x84] sm:$0xf]
    %v8526 = vld [vmem:[#allocation13 + $0x88] sm:$0xf]
    %v8527 = vld [vmem:[#allocation13 + $0x8c] sm:$0xf]
    %v8528 = vld [vmem:[#allocation13 + $0x90] sm:$0xf]
    %v8529 = vld [vmem:[#allocation13 + $0x94] sm:$0xf]
    %v8530 = vld [vmem:[#allocation13 + $0x98] sm:$0xf]
    %v8531 = vld [vmem:[#allocation13 + $0x9c] sm:$0xf]
    %v8532 = vld [vmem:[#allocation13 + $0xa0] sm:$0xf]
    %v8533 = vld [vmem:[#allocation13 + $0xa4] sm:$0xf]
    %v8534 = vld [vmem:[#allocation13 + $0xa8] sm:$0xf]
    %v8535 = vld [vmem:[#allocation13 + $0xac] sm:$0xf]
    %v8536 = vld [vmem:[#allocation13 + $0xb0] sm:$0xf]
    %v8537 = vld [vmem:[#allocation13 + $0xb4] sm:$0xf]
    %v8538 = vld [vmem:[#allocation13 + $0xb8] sm:$0xf]
    %v8539 = vld [vmem:[#allocation13 + $0xbc] sm:$0xf]
    %v8540 = vld [vmem:[#allocation13 + $0xc0] sm:$0xf]
    %v8541 = vld [vmem:[#allocation13 + $0xc4] sm:$0xf]
    %v8542 = vld [vmem:[#allocation13 + $0xc8] sm:$0xf]
    %v8543 = vld [vmem:[#allocation13 + $0xcc] sm:$0xf]
    %v8544 = vld [vmem:[#allocation13 + $0xd0] sm:$0xf]
    %v8545 = vld [vmem:[#allocation13 + $0xd4] sm:$0xf]
    %v8546 = vld [vmem:[#allocation13 + $0xd8] sm:$0xf]
    %v8547 = vld [vmem:[#allocation13 + $0xdc] sm:$0xf]
    %v8548 = vld [vmem:[#allocation13 + $0xe0] sm:$0xf]
    %v8549 = vld [vmem:[#allocation13 + $0xe4] sm:$0xf]
    %v8550 = vld [vmem:[#allocation13 + $0xe8] sm:$0xf]
    %v8551 = vld [vmem:[#allocation13 + $0xec] sm:$0xf]
    %v8552 = vld [vmem:[#allocation13 + $0xf0] sm:$0xf]
    %v8553 = vld [vmem:[#allocation13 + $0xf4] sm:$0xf]
    %v8554 = vld [vmem:[#allocation13 + $0xf8] sm:$0xf]
    %v8555 = vld [vmem:[#allocation13 + $0xfc] sm:$0xf]
    %v8556 = vld [vmem:[#allocation14] sm:$0x1]
    %v8558 = vlaneseq
    %v8559 = vshrl.u32 %v8558, 7
    %v8560 = vsub.s32 0, %v8559
    %v8561 = vrot.slane %v8556, %v8560
    %v8627 = vunpack.c.l.b16 %v8492
    %v8628 = vunpack.c.l.b16 %v8493
    %v8629 = vunpack.c.l.b16 %v8494
    %v8630 = vunpack.c.l.b16 %v8495
    %v8631 = vunpack.c.l.b16 %v8496
    %v8632 = vunpack.c.l.b16 %v8497
    %v8633 = vunpack.c.l.b16 %v8498
    %v8634 = vunpack.c.l.b16 %v8499
    %v8635 = vunpack.c.l.b16 %v8500
    %v8636 = vunpack.c.l.b16 %v8501
    %v8637 = vunpack.c.l.b16 %v8502
    %v8638 = vunpack.c.l.b16 %v8503
    %v8639 = vunpack.c.l.b16 %v8504
    %v8640 = vunpack.c.l.b16 %v8505
    %v8641 = vunpack.c.l.b16 %v8506
    %v8642 = vunpack.c.l.b16 %v8507
    %v8643 = vunpack.c.l.b16 %v8508
    %v8644 = vunpack.c.l.b16 %v8509
    %v8645 = vunpack.c.l.b16 %v8510
    %v8646 = vunpack.c.l.b16 %v8511
    %v8647 = vunpack.c.l.b16 %v8512
    %v8648 = vunpack.c.l.b16 %v8513
    %v8649 = vunpack.c.l.b16 %v8514
    %v8650 = vunpack.c.l.b16 %v8515
    %v8651 = vunpack.c.l.b16 %v8516
    %v8652 = vunpack.c.l.b16 %v8517
    %v8653 = vunpack.c.l.b16 %v8518
    %v8654 = vunpack.c.l.b16 %v8519
    %v8655 = vunpack.c.l.b16 %v8520
    %v8656 = vunpack.c.l.b16 %v8521
    %v8657 = vunpack.c.l.b16 %v8522
    %v8658 = vunpack.c.l.b16 %v8523
    %v8659 = vunpack.c.l.b16 %v8524
    %v8660 = vunpack.c.l.b16 %v8525
    %v8661 = vunpack.c.l.b16 %v8526
    %v8662 = vunpack.c.l.b16 %v8527
    %v8663 = vunpack.c.l.b16 %v8528
    %v8664 = vunpack.c.l.b16 %v8529
    %v8665 = vunpack.c.l.b16 %v8530
    %v8666 = vunpack.c.l.b16 %v8531
    %v8667 = vunpack.c.l.b16 %v8532
    %v8668 = vunpack.c.l.b16 %v8533
    %v8669 = vunpack.c.l.b16 %v8534
    %v8670 = vunpack.c.l.b16 %v8535
    %v8671 = vunpack.c.l.b16 %v8536
    %v8672 = vunpack.c.l.b16 %v8537
    %v8673 = vunpack.c.l.b16 %v8538
    %v8674 = vunpack.c.l.b16 %v8539
    %v8675 = vunpack.c.l.b16 %v8540
    %v8676 = vunpack.c.l.b16 %v8541
    %v8677 = vunpack.c.l.b16 %v8542
    %v8678 = vunpack.c.l.b16 %v8543
    %v8679 = vunpack.c.l.b16 %v8544
    %v8680 = vunpack.c.l.b16 %v8545
    %v8681 = vunpack.c.l.b16 %v8546
    %v8682 = vunpack.c.l.b16 %v8547
    %v8683 = vunpack.c.l.b16 %v8548
    %v8684 = vunpack.c.l.b16 %v8549
    %v8685 = vunpack.c.l.b16 %v8550
    %v8686 = vunpack.c.l.b16 %v8551
    %v8687 = vunpack.c.l.b16 %v8552
    %v8688 = vunpack.c.l.b16 %v8553
    %v8689 = vunpack.c.l.b16 %v8554
    %v8690 = vunpack.c.l.b16 %v8555
    %v8691 = vpack.c.b16 %v8628, %v8627
    %v8692 = vpack.c.b16 %v8630, %v8629
    %v8693 = vpack.c.b16 %v8632, %v8631
    %v8694 = vpack.c.b16 %v8634, %v8633
    %v8695 = vpack.c.b16 %v8636, %v8635
    %v8696 = vpack.c.b16 %v8638, %v8637
    %v8697 = vpack.c.b16 %v8640, %v8639
    %v8698 = vpack.c.b16 %v8642, %v8641
    %v8699 = vpack.c.b16 %v8644, %v8643
    %v8700 = vpack.c.b16 %v8646, %v8645
    %v8701 = vpack.c.b16 %v8648, %v8647
    %v8702 = vpack.c.b16 %v8650, %v8649
    %v8703 = vpack.c.b16 %v8652, %v8651
    %v8704 = vpack.c.b16 %v8654, %v8653
    %v8705 = vpack.c.b16 %v8656, %v8655
    %v8706 = vpack.c.b16 %v8658, %v8657
    %v8707 = vpack.c.b16 %v8660, %v8659
    %v8708 = vpack.c.b16 %v8662, %v8661
    %v8709 = vpack.c.b16 %v8664, %v8663
    %v8710 = vpack.c.b16 %v8666, %v8665
    %v8711 = vpack.c.b16 %v8668, %v8667
    %v8712 = vpack.c.b16 %v8670, %v8669
    %v8713 = vpack.c.b16 %v8672, %v8671
    %v8714 = vpack.c.b16 %v8674, %v8673
    %v8715 = vpack.c.b16 %v8676, %v8675
    %v8716 = vpack.c.b16 %v8678, %v8677
    %v8717 = vpack.c.b16 %v8680, %v8679
    %v8718 = vpack.c.b16 %v8682, %v8681
    %v8719 = vpack.c.b16 %v8684, %v8683
    %v8720 = vpack.c.b16 %v8686, %v8685
    %v8721 = vpack.c.b16 %v8688, %v8687
    %v8722 = vpack.c.b16 %v8690, %v8689
    %8755 = vmatprep.subr.bf16.mxu0 0
    %8756 = vmatpush1.bf16.msra.mxu0 %v8698
    %8757 = vmatprep.subr.bf16.mxu0 0
    %8758 = vmatpush1.bf16.msra.mxu0 %v8697
    %8759 = vmatprep.subr.bf16.mxu0 0
    %8760 = vmatpush1.bf16.msra.mxu0 %v8696
    %8761 = vmatprep.subr.bf16.mxu0 0
    %8762 = vmatpush1.bf16.msra.mxu0 %v8695
    %8763 = vmatprep.subr.bf16.mxu0 0
    %8764 = vmatpush1.bf16.msra.mxu0 %v8694
    %8765 = vmatprep.subr.bf16.mxu0 0
    %8766 = vmatpush1.bf16.msra.mxu0 %v8693
    %8767 = vmatprep.subr.bf16.mxu0 0
    %8768 = vmatpush1.bf16.msra.mxu0 %v8692
    %8769 = vmatprep.subr.bf16.mxu0 0
    %8770 = vmatpush1.bf16.msra.mxu0 %v8691
    %8771 = vmatprep.subr.bf16.mxu0 0
    %8772 = vmatpush2.bf16.msra.mxu0 %v8706
    %8773 = vmatprep.subr.bf16.mxu0 0
    %8774 = vmatpush2.bf16.msra.mxu0 %v8705
    %8775 = vmatprep.subr.bf16.mxu0 0
    %8776 = vmatpush2.bf16.msra.mxu0 %v8704
    %8777 = vmatprep.subr.bf16.mxu0 0
    %8778 = vmatpush2.bf16.msra.mxu0 %v8703
    %8779 = vmatprep.subr.bf16.mxu0 0
    %8780 = vmatpush2.bf16.msra.mxu0 %v8702
    %8781 = vmatprep.subr.bf16.mxu0 0
    %8782 = vmatpush2.bf16.msra.mxu0 %v8701
    %8783 = vmatprep.subr.bf16.mxu0 0
    %8784 = vmatpush2.bf16.msra.mxu0 %v8700
    %8785 = vmatprep.subr.bf16.mxu0 0
    %8786 = vmatpush2.bf16.msra.mxu0 %v8699
    %8787 = vmatprep.mubr.bf16.mxu0 %v8489
    %8788 = vmatmul.mubr.bf16.gmra.mxu0 %v8488
    %v8789 = vpop.f32.mrf.mxu0
    %v8790 = vadd.f32 %v8561, %v8789
    %v8791 = vpop.f32.mrf.mxu0
    %v8792 = vpop.f32.mrf.mxu0
    %v8793 = vpop.f32.mrf.mxu0
    %8794 = vdwg.mxu0
    %8795 = vmatprep.subr.bf16.mxu0 0
    %8796 = vmatpush1.bf16.msra.mxu0 %v8714
    %8797 = vmatprep.subr.bf16.mxu0 0
    %8798 = vmatpush1.bf16.msra.mxu0 %v8713
    %8799 = vmatprep.subr.bf16.mxu0 0
    %8800 = vmatpush1.bf16.msra.mxu0 %v8712
    %8801 = vmatprep.subr.bf16.mxu0 0
    %8802 = vmatpush1.bf16.msra.mxu0 %v8711
    %8803 = vmatprep.subr.bf16.mxu0 0
    %8804 = vmatpush1.bf16.msra.mxu0 %v8710
    %8805 = vmatprep.subr.bf16.mxu0 0
    %8806 = vmatpush1.bf16.msra.mxu0 %v8709
    %8807 = vmatprep.subr.bf16.mxu0 0
    %8808 = vmatpush1.bf16.msra.mxu0 %v8708
    %8809 = vmatprep.subr.bf16.mxu0 0
    %8810 = vmatpush1.bf16.msra.mxu0 %v8707
    %8811 = vmatprep.subr.bf16.mxu0 0
    %8812 = vmatpush2.bf16.msra.mxu0 %v8722
    %8813 = vmatprep.subr.bf16.mxu0 0
    %8814 = vmatpush2.bf16.msra.mxu0 %v8721
    %8815 = vmatprep.subr.bf16.mxu0 0
    %8816 = vmatpush2.bf16.msra.mxu0 %v8720
    %8817 = vmatprep.subr.bf16.mxu0 0
    %8818 = vmatpush2.bf16.msra.mxu0 %v8719
    %8819 = vmatprep.subr.bf16.mxu0 0
    %8820 = vmatpush2.bf16.msra.mxu0 %v8718
    %8821 = vmatprep.subr.bf16.mxu0 0
    %8822 = vmatpush2.bf16.msra.mxu0 %v8717
    %8823 = vmatprep.subr.bf16.mxu0 0
    %8824 = vmatpush2.bf16.msra.mxu0 %v8716
    %8825 = vmatprep.subr.bf16.mxu0 0
    %8826 = vmatpush2.bf16.msra.mxu0 %v8715
    %8827 = vmatprep.mubr.bf16.mxu0 %v8491
    %8828 = vmatmul.mubr.bf16.gmra.mxu0 %v8490
    %v8829 = vpop.f32.mrf.mxu0
    %v8830 = vadd.f32 %v8790, %v8829
    %v8831 = vpop.f32.mrf.mxu0
    %v8832 = vpop.f32.mrf.mxu0
    %v8833 = vpop.f32.mrf.mxu0
    %8834 = vdwg.mxu0
    %vm8835 = vcmask 1041408
    %v8836 = vsel %vm8835, %v8830, -inf
    %8837 = vmax.xlane.f32.xlu0 %v8836
    %v8838 = vpop.xlane.xlu0 %8837
    %v8839 = vsub.f32 %v8830, %v8838
    %v8840 = vmul.f32 %v8839, 1.442695
    %v8841 = vpow.pop %v8840
    %v8842 = vsel %vm8835, %v8841, 0.0
    %8843 = vadd.xlane.f32.xlu0 %v8842
    %v8844 = vpop.xlane.xlu0 %8843
    %v8845 = vlog2.pop %v8844
    %v8846 = vmul.f32 %v8845, 0.6931472
    %v8847 = vsub.f32 %v8839, %v8846
    %8848 = vst [vmem:[#allocation16] sm:$0x3] %v8847
    // Predicated region
    $region70: #{lenet_forward.1} parent=1 // pred_check
      _
    $region71: #{lenet_forward.1} parent=1 // pred_check_branch
      %8850 = sbr.rel (0) target = $region73
    $region72: #{lenet_forward.1} parent=1 // pred_region
      %s8852 = ssub.s32 32, 32
      %8853 = vsyncadd [#allocation4], %s8852
      %s8855 = sshll.u32 [#allocation16], 4
      %s8856 = int_to_ptr.vmem [resolvable:$true] %s8855
      %8858 = dma.vmem_to_hbm [thread:$0]  %s8856, 32, %s9, [#allocation4]
    $region73: #{lenet_forward.1} parent=1 // pred_fallthru
      _
    // Predicated region
    $region74: #{lenet_forward.1} parent=1 // pred_check
      _
    $region75: #{lenet_forward.1} parent=1 // pred_check_branch
      %8860 = sbr.rel (0) target = $region77
    $region76: #{lenet_forward.1} parent=1 // pred_region
      %8861 = dma.done [#allocation4], 32
    $region77: #{lenet_forward.1} parent=1 // pred_fallthru
      _
    %8862 = vsyncpa [#allocation3], 1
    %8863 = vsyncpa [#allocation6], 1
    %8864 = vsyncpa [#allocation9], 1
    %8865 = vsyncpa [#allocation12], 1
    %8866 = vsyncpa [#allocation15], 1
    %8867 = vsyncpa [#allocation4], 1

</llo_original>
